<compile_context>
chip_gen: v6e
topology: v6e:2x2x1
jax: 0.10.0
libtpu: 0.0.40
codegen_flags: <defaults>
</compile_context>

<pallas_src>
import functools

import jax
import jax.numpy as jnp
from jax.experimental import pallas as pl
from jax.experimental.pallas import tpu as pltpu

F32 = jnp.float32


# ----------------------------- pallas helpers ------------------------------

def _vspec():
    return pl.BlockSpec(memory_space=pltpu.MemorySpace.VMEM)


def _sds(shape):
    return jax.ShapeDtypeStruct(shape, F32)


def _pcall(kernel, out_shape, *args):
    multi = isinstance(out_shape, (tuple, list))
    return pl.pallas_call(
        kernel,
        out_shape=tuple(out_shape) if multi else out_shape,
        in_specs=[_vspec() for _ in args],
        out_specs=tuple(_vspec() for _ in out_shape) if multi else _vspec(),
    )(*args)


# -------------------------------- kernels ----------------------------------

def stem_kernel(x4_ref, v1_ref, v2_ref, skw_ref, skb_ref, cur_ref, adp_ref):
    # adaptive adjacency: softmax(relu(nodevec1 @ nodevec2), dim=1)
    logits = jnp.maximum(
        jnp.dot(v1_ref[...], v2_ref[...], preferred_element_type=F32), 0.0)
    m = jnp.max(logits, axis=1, keepdims=True)
    e = jnp.exp(logits - m)
    adp_ref[...] = e / jnp.sum(e, axis=1, keepdims=True)
    # skip_convs (4 -> 32); rows are (t, b, n)
    cur_ref[...] = (jnp.dot(x4_ref[...], skw_ref[...],
                            preferred_element_type=F32) + skb_ref[...])


def make_spatial_kernel(T, B, N, C, is_first, is_last):
    """Fused per-layer kernel (TCN + skip + GCN + InGRU, plus ReGRU fuse of the
    previous layer's GRU output and, for the final layer, the output head)."""
    BN = B * N

    def kernel(*refs):
        it = iter(refs)
        # ------------------------- inputs -------------------------
        if is_first:
            cur2 = next(it)[...]                               # (R, C)
        else:
            res_prev = next(it)[...]                           # (R, C)
            gnn_prev = next(it)[...]                           # (R, C)
            g_col = next(it)[...]                              # (R, 1) GRU out
            regru_w = next(it)[...]                            # (1, C)
            regru_b = next(it)[...]                            # (1, C)
            skip_in = next(it)[...]                            # (R, C)
            # ReGRU(1->32) + residual + gnn  (== `input = outputs + residual + gnn`)
            cur2 = g_col * regru_w + regru_b + res_prev + gnn_prev
        wfg0 = next(it)[...]                                   # (C, 2C) tap t-1
        wfg1 = next(it)[...]                                   # (C, 2C) tap t
        bfg = next(it)[...]                                    # (1, 2C)
        if not is_last:
            adp_big = next(it)[...]                            # (R, R) block-diag adp^T
            gwa = next(it)[...]
            gwb = next(it)[...]
            gwc = next(it)[...]
            gb = next(it)[...]                                 # (1, C)
            ingru_w = next(it)[...]                            # (C, 1)
            ingru_b = next(it)[...]                            # (1, 1)
        else:
            e1w = next(it)[...]                                # (C, 64)
            e1b = next(it)[...]                                # (1, 64)
            e2w = next(it)[...]                                # (64, 1)
            e2b = next(it)[...]                                # (1, 1)
        # ----------------------- output refs ----------------------
        if is_last:
            head_ref = next(it)                                # (R, 1)
        else:
            skip_ref = next(it)                                # (R, C)
            gnn_ref = next(it)                                 # (R, C)
            xgru_ref = next(it)                                # (R, 1)
            res_ref = next(it) if not is_first else None       # (R, C)

        # Gated TCN, Conv2d kernel (1,2) on a left-(time)-padded input:
        # output_t = W0 @ x_{t-1} + W1 @ x_t ; rows are (t, b, n), so the t-1
        # tap is a shift of B*N rows with zeros for t == 0 (no pad materialised).
        prev2 = jnp.concatenate(
            [jnp.zeros((BN, C), F32), cur2[:(T - 1) * BN, :]], axis=0)
        fg = (jnp.dot(prev2, wfg0, preferred_element_type=F32)
              + jnp.dot(cur2, wfg1, preferred_element_type=F32) + bfg)
        x = jnp.tanh(fg[:, :C]) * jax.nn.sigmoid(fg[:, C:])    # stacked [filt|gate]

        skip = x if is_first else x + skip_in

        if is_last:
            # Fused head: relu(skip) -> end_conv_1 -> relu -> end_conv_2.
            s = jnp.maximum(skip, 0.0)
            h1 = jnp.maximum(
                jnp.dot(s, e1w, preferred_element_type=F32) + e1b, 0.0)
            head_ref[...] = jnp.dot(h1, e2w, preferred_element_type=F32) + e2b
            return

        skip_ref[...] = skip
        if res_ref is not None:
            res_ref[...] = cur2

        # GCN (gcn_gwnet, order=2, single adaptive support).  The reference
        # calls the *same* gconv module for `gnn` and `x` -> identical in eval,
        # so it is computed once.
        x1g = jnp.dot(adp_big, x, preferred_element_type=F32)
        x2g = jnp.dot(adp_big, x1g, preferred_element_type=F32)
        gnn = (jnp.dot(x, gwa, preferred_element_type=F32)
               + jnp.dot(x1g, gwb, preferred_element_type=F32)
               + jnp.dot(x2g, gwc, preferred_element_type=F32) + gb)
        gnn_ref[...] = gnn
        # TODO(synk): F.dropout(p=0.3) inside gcn_gwnet is identity in eval mode.

        # InGRU conv (32 -> 1), fused; the (R, 1) column feeds the GRU kernel.
        xgru_ref[...] = (jnp.dot(gnn, ingru_w, preferred_element_type=F32)
                         + ingru_b)

    return kernel


def gru_kernel(x_ref, m_ref, wxzr_ref, whzr_ref, bzr_ref,
               wxh_ref, whh_ref, bh_ref, out_ref):
    # Sequential masked GRU over time; x/m/out are (T, B, N) in VMEM.
    T, B, N = x_ref.shape
    wxzr = wxzr_ref[...]
    whzr = whzr_ref[...]
    bzr = bzr_ref[...]
    wxh = wxh_ref[...]
    whh = whh_ref[...]
    bh = bh_ref[...]
    h = jnp.zeros((B, N), F32)
    # T is small and static: fully unroll the recurrence (serial critical path)
    # and use stacked [z|r] gate weights so each step is 4 matmuls, not 6.
    for t in range(T):
        m_t = m_ref[t, :, :]
        # NOTE: the reference applies sigmoid to the mask-imputed input before
        # the gates (`x = torch.sigmoid(x)` in slmgnn.step); reproduced here.
        x = jax.nn.sigmoid(x_ref[t, :, :] * m_t + h * (1.0 - m_t))
        zr = jax.nn.sigmoid(jnp.dot(x, wxzr, preferred_element_type=F32)
                            + jnp.dot(h, whzr, preferred_element_type=F32)
                            + bzr)
        z = zr[:, :N]
        r = zr[:, N:]
        h_tilde = jnp.tanh(jnp.dot(x, wxh, preferred_element_type=F32)
                           + jnp.dot(r * h, whh, preferred_element_type=F32)
                           + bh)
        h = (1.0 - z) * h + z * h_tilde
        out_ref[t, :, :] = h


# ----------------------------- parameter setup ------------------------------

def init_params(key, n, layers):
    ks = iter(jax.random.split(key, 128))

    def nrm(shape, scale=0.1):
        return scale * jax.random.normal(next(ks), shape, dtype=F32)

    p = {}
    # GRU linears nn.Linear(2n, n): weight (n, 2n), bias (n,).  Split into the
    # x / h halves and stack the z|r gates along the output axis.
    wz, bz = nrm((n, 2 * n)), nrm((n,))
    wr, br = nrm((n, 2 * n)), nrm((n,))
    wh, bh = nrm((n, 2 * n)), nrm((n,))
    p['gru_wx_zr'] = jnp.concatenate([wz[:, :n].T, wr[:, :n].T], axis=1)  # (n, 2n)
    p['gru_wh_zr'] = jnp.concatenate([wz[:, n:].T, wr[:, n:].T], axis=1)  # (n, 2n)
    p['gru_b_zr'] = jnp.concatenate([bz, br]).reshape(1, 2 * n)
    p['gru_wx_h'] = wh[:, :n].T
    p['gru_wh_h'] = wh[:, n:].T
    p['gru_b_h'] = bh.reshape(1, n)

    p['nodevec1'] = jax.random.normal(next(ks), (n, 10), dtype=F32)
    p['nodevec2'] = jax.random.normal(next(ks), (10, n), dtype=F32)

    # skip_convs Conv2d(4, 32, 1x1)
    p['skip_w'] = nrm((32, 4)).T
    p['skip_b'] = nrm((32,)).reshape(1, 32)
    # InGRU_convs Conv2d(32, 1, 1x1)
    p['ingru_w'] = nrm((1, 32)).T                 # (32, 1)
    p['ingru_b'] = nrm((1,)).reshape(1, 1)
    # ReGRU_convs Conv2d(1, 32, 1x1)
    p['regru_w'] = nrm((32,)).reshape(1, 32)
    p['regru_b'] = nrm((32,)).reshape(1, 32)

    layer_params = []
    for _ in range(layers):
        lp = {}
        wf, bf = nrm((32, 32, 1, 2)), nrm((32,))
        wg, bg = nrm((32, 32, 1, 2)), nrm((32,))
        # Stacked [filter | gate] weights per conv tap (tap 0 -> x_{t-1}, tap 1 -> x_t)
        lp['wfg0'] = jnp.concatenate([wf[:, :, 0, 0].T, wg[:, :, 0, 0].T], axis=1)
        lp['wfg1'] = jnp.concatenate([wf[:, :, 0, 1].T, wg[:, :, 0, 1].T], axis=1)
        lp['bfg'] = jnp.concatenate([bf, bg]).reshape(1, 64)
        # gcn mlp Conv2d(96, 32, 1x1), split over the [x, A^T x, (A^T)^2 x] concat
        wm, bm = nrm((32, 96)), nrm((32,))
        lp['gwa'] = wm[:, 0:32].T
        lp['gwb'] = wm[:, 32:64].T
        lp['gwc'] = wm[:, 64:96].T
        lp['gb'] = bm.reshape(1, 32)
        layer_params.append(lp)
    p['layers'] = layer_params

    # end convs
    p['end1_w'] = nrm((64, 32)).T                 # (32, 64)
    p['end1_b'] = nrm((64,)).reshape(1, 64)
    p['end2_w'] = nrm((1, 64)).T                  # (64, 1)
    p['end2_b'] = nrm((1,)).reshape(1, 1)
    return p


# -------------------------------- forward -----------------------------------

def slmgnn_forward(params, inp, missing_nodes, *, layers):
    # inp: (B, 7, T, N) float32, same convention as the PyTorch module input.
    B = inp.shape[0]
    T = inp.shape[2]
    N = inp.shape[3]
    C = 32
    R = T * B * N                                 # rows ordered (t, b, n)

    M_tbn = jnp.transpose(inp[:, 1, :, :], (1, 0, 2))            # (T, B, N)
    x_sel = inp[:, jnp.array([0, 3, 5, 6]), :, :]                # (B, 4, T, N)
    x4 = jnp.transpose(x_sel, (2, 0, 3, 1)).reshape(R, 4)

    # stem: skip_convs + adaptive adjacency in one kernel
    cur0, adp = _pcall(stem_kernel, (_sds((R, C)), _sds((N, N))),
                       x4, params['nodevec1'], params['nodevec2'],
                       params['skip_w'], params['skip_b'])

    # Block-diagonal node-mixing operator (adp^T per (t, b) block), built once,
    # so the in-kernel GCN hops are plain row-major matmuls.
    # TODO(synk): at production sizes tile the node mix as an (N, B*T*C) matmul
    # with a column grid instead of this (B*T*N)^2 kron operator.
    adp_big = jnp.kron(jnp.eye(T * B, dtype=F32), adp.T)         # (R, R)

    skip = None
    res_prev = cur0
    gnn_prev = None
    g_col = None
    head_col = None

    for i in range(layers):
        lp = params['layers'][i]
        is_first = (i == 0)
        is_last = (i == layers - 1)
        kern = make_spatial_kernel(T, B, N, C, is_first, is_last)

        args = []
        if is_first:
            args.append(cur0)
        else:
            args += [res_prev, gnn_prev, g_col,
                     params['regru_w'], params['regru_b'], skip]
        args += [lp['wfg0'], lp['wfg1'], lp['bfg']]
        if not is_last:
            args += [adp_big, lp['gwa'], lp['gwb'], lp['gwc'], lp['gb'],
                     params['ingru_w'], params['ingru_b']]
        else:
            args += [params['end1_w'], params['end1_b'],
                     params['end2_w'], params['end2_b']]

        if is_last:
            # Final layer: only the TCN + skip feed the module output, so the
            # head is fused here and the dead GCN/GRU tail is skipped.
            head_col = _pcall(kern, _sds((R, 1)), *args)
            break

        out_shapes = [_sds((R, C)), _sds((R, C)), _sds((R, 1))]
        if not is_first:
            out_shapes.append(_sds((R, C)))
        outs = _pcall(kern, tuple(out_shapes), *args)
        if is_first:
            skip, gnn_prev, x_col = outs
            res_next = cur0                      # residual for the next layer
        else:
            skip, gnn_prev, x_col, res_next = outs

        # Masked GRU over time (unrolled, stacked gates).  Tiny (T, B, N)
        # relayouts between the conv-domain and GRU-domain stay in plain JAX.
        gru_out = _pcall(gru_kernel, _sds((T, B, N)),
                         x_col.reshape(T, B, N), M_tbn,
                         params['gru_wx_zr'], params['gru_wh_zr'],
                         params['gru_b_zr'], params['gru_wx_h'],
                         params['gru_wh_h'], params['gru_b_h'])
        g_col = gru_out.reshape(R, 1)
        res_prev = res_next

    # head output column -> (B, N, T) -> gather missing nodes (plain-JAX glue)
    out_bnt = jnp.transpose(head_col.reshape(T, B, N), (1, 2, 0))
    K = missing_nodes.shape[1]
    idx = jnp.broadcast_to(missing_nodes[:, :, None], (B, K, T))
    return jnp.take_along_axis(out_bnt, idx, axis=1)             # (B, K, T)


# --------------------------------- main --------------------------------------

if __name__ == "__main__":
    B, Cin, T, N = 2, 7, 8, 16     # batch, raw channels (>=7), time steps, nodes (= n)
    layers = 2
    K = 5                          # number of missing nodes per batch element

    key = jax.random.PRNGKey(0)
    k_inp, k_mask, k_idx, k_par = jax.random.split(key, 4)

    inp = jax.random.normal(k_inp, (B, Cin, T, N), dtype=F32)
    mask = (jax.random.uniform(k_mask, (B, T, N)) > 0.3).astype(F32)
    inp = inp.at[:, 1, :, :].set(mask)                 # channel 1 is the mask M
    missing_nodes = jax.random.randint(k_idx, (B, K), 0, N, dtype=jnp.int32)

    params = init_params(k_par, N, layers)

    fwd = jax.jit(functools.partial(slmgnn_forward, layers=layers))
    out = fwd(params, inp, missing_nodes)
    out = jax.block_until_ready(out)
    assert out.shape == (B, K, T), out.shape
    print("KERNEL_OK")
</pallas_src>

<mosaic_0001>
module attributes {stable_mosaic.version = 11 : i64} {
  func.func @stem_kernel(%arg0: memref<256x4xf32, #tpu.memory_space<vmem>>, %arg1: memref<16x10xf32, #tpu.memory_space<vmem>>, %arg2: memref<10x16xf32, #tpu.memory_space<vmem>>, %arg3: memref<4x32xf32, #tpu.memory_space<vmem>>, %arg4: memref<1x32xf32, #tpu.memory_space<vmem>>, %arg5: memref<256x32xf32, #tpu.memory_space<vmem>>, %arg6: memref<16x16xf32, #tpu.memory_space<vmem>>) attributes {dimension_semantics = [], scalar_prefetch = 0 : i64, scratch_operands = 0 : i64, tpu.core_type = #tpu.core_type<tc>} {
    %c0 = arith.constant 0 : index
    %c0_0 = arith.constant 0 : index
    %0 = vector.load %arg1[%c0, %c0_0] : memref<16x10xf32, #tpu.memory_space<vmem>>, vector<16x10xf32>
    %c0_1 = arith.constant 0 : index
    %c0_2 = arith.constant 0 : index
    %1 = vector.load %arg2[%c0_1, %c0_2] : memref<10x16xf32, #tpu.memory_space<vmem>>, vector<10x16xf32>
    %cst = arith.constant dense<0.000000e+00> : vector<16x16xf32>
    %2 = tpu.matmul %0, %1, %cst {dimension_numbers = #tpu.dot_dimension_numbers<[1], [0], [0], [1], [0, 0, 1, 1], [], []>} : vector<16x10xf32>, vector<10x16xf32>, vector<16x16xf32> -> vector<16x16xf32>
    %cst_3 = arith.constant 0.000000e+00 : f32
    %3 = vector.broadcast %cst_3 : f32 to vector<16x16xf32>
    %4 = arith.maximumf %2, %3 : vector<16x16xf32>
    %cst_4 = arith.constant dense<0xFF800000> : vector<16xf32>
    %5 = vector.multi_reduction <maximumf>, %4, %cst_4 [1] : vector<16x16xf32> to vector<16xf32>
    %6 = vector.shape_cast %5 : vector<16xf32> to vector<16x1xf32>
    %7 = vector.broadcast %6 : vector<16x1xf32> to vector<16x16xf32>
    %8 = arith.subf %4, %7 : vector<16x16xf32>
    %9 = math.exp %8 : vector<16x16xf32>
    %cst_5 = arith.constant dense<0.000000e+00> : vector<16xf32>
    %10 = vector.multi_reduction <add>, %9, %cst_5 [1] : vector<16x16xf32> to vector<16xf32>
    %11 = vector.shape_cast %10 : vector<16xf32> to vector<16x1xf32>
    %12 = vector.broadcast %11 : vector<16x1xf32> to vector<16x16xf32>
    %13 = arith.divf %9, %12 : vector<16x16xf32>
    %c0_6 = arith.constant 0 : index
    %c0_7 = arith.constant 0 : index
    %14 = vector.load %arg6[%c0_6, %c0_7] : memref<16x16xf32, #tpu.memory_space<vmem>>, vector<16x16xf32>
    tpu.vector_store %arg6[%c0_6, %c0_7], %13 {strides = array<i32>} : memref<16x16xf32, #tpu.memory_space<vmem>>, vector<16x16xf32>,
    %c0_8 = arith.constant 0 : index
    %c0_9 = arith.constant 0 : index
    %15 = vector.load %arg0[%c0_8, %c0_9] : memref<256x4xf32, #tpu.memory_space<vmem>>, vector<256x4xf32>
    %c0_10 = arith.constant 0 : index
    %c0_11 = arith.constant 0 : index
    %16 = vector.load %arg3[%c0_10, %c0_11] : memref<4x32xf32, #tpu.memory_space<vmem>>, vector<4x32xf32>
    %cst_12 = arith.constant dense<0.000000e+00> : vector<256x32xf32>
    %17 = tpu.matmul %15, %16, %cst_12 {dimension_numbers = #tpu.dot_dimension_numbers<[1], [0], [0], [1], [0, 0, 1, 1], [], []>} : vector<256x4xf32>, vector<4x32xf32>, vector<256x32xf32> -> vector<256x32xf32>
    %c0_13 = arith.constant 0 : index
    %c0_14 = arith.constant 0 : index
    %18 = vector.load %arg4[%c0_13, %c0_14] : memref<1x32xf32, #tpu.memory_space<vmem>>, vector<1x32xf32>
    %19 = vector.broadcast %18 : vector<1x32xf32> to vector<256x32xf32>
    %20 = arith.addf %17, %19 : vector<256x32xf32>
    %c0_15 = arith.constant 0 : index
    %c0_16 = arith.constant 0 : index
    %21 = vector.load %arg5[%c0_15, %c0_16] : memref<256x32xf32, #tpu.memory_space<vmem>>, vector<256x32xf32>
    tpu.vector_store %arg5[%c0_15, %c0_16], %20 {strides = array<i32>} : memref<256x32xf32, #tpu.memory_space<vmem>>, vector<256x32xf32>,
    return
  }
}

module attributes {stable_mosaic.version = 11 : i64} {
  func.func @kernel(%arg0: memref<256x32xf32, #tpu.memory_space<vmem>>, %arg1: memref<32x64xf32, #tpu.memory_space<vmem>>, %arg2: memref<32x64xf32, #tpu.memory_space<vmem>>, %arg3: memref<1x64xf32, #tpu.memory_space<vmem>>, %arg4: memref<256x256xf32, #tpu.memory_space<vmem>>, %arg5: memref<32x32xf32, #tpu.memory_space<vmem>>, %arg6: memref<32x32xf32, #tpu.memory_space<vmem>>, %arg7: memref<32x32xf32, #tpu.memory_space<vmem>>, %arg8: memref<1x32xf32, #tpu.memory_space<vmem>>, %arg9: memref<32x1xf32, #tpu.memory_space<vmem>>, %arg10: memref<1x1xf32, #tpu.memory_space<vmem>>, %arg11: memref<256x32xf32, #tpu.memory_space<vmem>>, %arg12: memref<256x32xf32, #tpu.memory_space<vmem>>, %arg13: memref<256x1xf32, #tpu.memory_space<vmem>>) attributes {dimension_semantics = [], scalar_prefetch = 0 : i64, scratch_operands = 0 : i64, tpu.core_type = #tpu.core_type<tc>} {
    %c0 = arith.constant 0 : index
    %c0_0 = arith.constant 0 : index
    %0 = vector.load %arg0[%c0, %c0_0] : memref<256x32xf32, #tpu.memory_space<vmem>>, vector<256x32xf32>
    %c0_1 = arith.constant 0 : index
    %c0_2 = arith.constant 0 : index
    %1 = vector.load %arg1[%c0_1, %c0_2] : memref<32x64xf32, #tpu.memory_space<vmem>>, vector<32x64xf32>
    %c0_3 = arith.constant 0 : index
    %c0_4 = arith.constant 0 : index
    %2 = vector.load %arg2[%c0_3, %c0_4] : memref<32x64xf32, #tpu.memory_space<vmem>>, vector<32x64xf32>
    %c0_5 = arith.constant 0 : index
    %c0_6 = arith.constant 0 : index
    %3 = vector.load %arg3[%c0_5, %c0_6] : memref<1x64xf32, #tpu.memory_space<vmem>>, vector<1x64xf32>
    %c0_7 = arith.constant 0 : index
    %c0_8 = arith.constant 0 : index
    %4 = vector.load %arg4[%c0_7, %c0_8] : memref<256x256xf32, #tpu.memory_space<vmem>>, vector<256x256xf32>
    %c0_9 = arith.constant 0 : index
    %c0_10 = arith.constant 0 : index
    %5 = vector.load %arg5[%c0_9, %c0_10] : memref<32x32xf32, #tpu.memory_space<vmem>>, vector<32x32xf32>
    %c0_11 = arith.constant 0 : index
    %c0_12 = arith.constant 0 : index
    %6 = vector.load %arg6[%c0_11, %c0_12] : memref<32x32xf32, #tpu.memory_space<vmem>>, vector<32x32xf32>
    %c0_13 = arith.constant 0 : index
    %c0_14 = arith.constant 0 : index
    %7 = vector.load %arg7[%c0_13, %c0_14] : memref<32x32xf32, #tpu.memory_space<vmem>>, vector<32x32xf32>
    %c0_15 = arith.constant 0 : index
    %c0_16 = arith.constant 0 : index
    %8 = vector.load %arg8[%c0_15, %c0_16] : memref<1x32xf32, #tpu.memory_space<vmem>>, vector<1x32xf32>
    %c0_17 = arith.constant 0 : index
    %c0_18 = arith.constant 0 : index
    %9 = vector.load %arg9[%c0_17, %c0_18] : memref<32x1xf32, #tpu.memory_space<vmem>>, vector<32x1xf32>
    %c0_19 = arith.constant 0 : index
    %c0_20 = arith.constant 0 : index
    %10 = vector.load %arg10[%c0_19, %c0_20] : memref<1x1xf32, #tpu.memory_space<vmem>>, vector<1x1xf32>
    %cst = arith.constant 0.000000e+00 : f32
    %11 = vector.broadcast %cst : f32 to vector<32x32xf32>
    %12 = vector.extract_strided_slice %0 {offsets = [0, 0], sizes = [224, 32], strides = [1, 1]} : vector<256x32xf32> to vector<224x32xf32>
    %13 = tpu.concatenate %11, %12 in 0 : vector<32x32xf32>, vector<224x32xf32> -> vector<256x32xf32>
    %cst_21 = arith.constant dense<0.000000e+00> : vector<256x64xf32>
    %14 = tpu.matmul %13, %1, %cst_21 {dimension_numbers = #tpu.dot_dimension_numbers<[1], [0], [0], [1], [0, 0, 1, 1], [], []>} : vector<256x32xf32>, vector<32x64xf32>, vector<256x64xf32> -> vector<256x64xf32>
    %cst_22 = arith.constant dense<0.000000e+00> : vector<256x64xf32>
    %15 = tpu.matmul %0, %2, %cst_22 {dimension_numbers = #tpu.dot_dimension_numbers<[1], [0], [0], [1], [0, 0, 1, 1], [], []>} : vector<256x32xf32>, vector<32x64xf32>, vector<256x64xf32> -> vector<256x64xf32>
    %16 = arith.addf %14, %15 : vector<256x64xf32>
    %17 = vector.broadcast %3 : vector<1x64xf32> to vector<256x64xf32>
    %18 = arith.addf %16, %17 : vector<256x64xf32>
    %19 = vector.extract_strided_slice %18 {offsets = [0, 0], sizes = [256, 32], strides = [1, 1]} : vector<256x64xf32> to vector<256x32xf32>
    %20 = math.tanh %19 : vector<256x32xf32>
    %21 = vector.extract_strided_slice %18 {offsets = [0, 32], sizes = [256, 32], strides = [1, 1]} : vector<256x64xf32> to vector<256x32xf32>
    %22 = arith.negf %21 : vector<256x32xf32>
    %23 = math.exp %22 : vector<256x32xf32>
    %cst_23 = arith.constant 1.000000e+00 : f32
    %24 = vector.broadcast %cst_23 : f32 to vector<256x32xf32>
    %25 = arith.addf %24, %23 : vector<256x32xf32>
    %26 = arith.divf %24, %25 : vector<256x32xf32>
    %27 = arith.mulf %20, %26 : vector<256x32xf32>
    %c0_24 = arith.constant 0 : index
    %c0_25 = arith.constant 0 : index
    %28 = vector.load %arg11[%c0_24, %c0_25] : memref<256x32xf32, #tpu.memory_space<vmem>>, vector<256x32xf32>
    tpu.vector_store %arg11[%c0_24, %c0_25], %27 {strides = array<i32>} : memref<256x32xf32, #tpu.memory_space<vmem>>, vector<256x32xf32>,
    %cst_26 = arith.constant dense<0.000000e+00> : vector<256x32xf32>
    %29 = tpu.matmul %4, %27, %cst_26 {dimension_numbers = #tpu.dot_dimension_numbers<[1], [0], [0], [1], [0, 0, 1, 1], [], []>} : vector<256x256xf32>, vector<256x32xf32>, vector<256x32xf32> -> vector<256x32xf32>
    %cst_27 = arith.constant dense<0.000000e+00> : vector<256x32xf32>
    %30 = tpu.matmul %4, %29, %cst_27 {dimension_numbers = #tpu.dot_dimension_numbers<[1], [0], [0], [1], [0, 0, 1, 1], [], []>} : vector<256x256xf32>, vector<256x32xf32>, vector<256x32xf32> -> vector<256x32xf32>
    %cst_28 = arith.constant dense<0.000000e+00> : vector<256x32xf32>
    %31 = tpu.matmul %27, %5, %cst_28 {dimension_numbers = #tpu.dot_dimension_numbers<[1], [0], [0], [1], [0, 0, 1, 1], [], []>} : vector<256x32xf32>, vector<32x32xf32>, vector<256x32xf32> -> vector<256x32xf32>
    %cst_29 = arith.constant dense<0.000000e+00> : vector<256x32xf32>
    %32 = tpu.matmul %29, %6, %cst_29 {dimension_numbers = #tpu.dot_dimension_numbers<[1], [0], [0], [1], [0, 0, 1, 1], [], []>} : vector<256x32xf32>, vector<32x32xf32>, vector<256x32xf32> -> vector<256x32xf32>
    %33 = arith.addf %31, %32 : vector<256x32xf32>
    %cst_30 = arith.constant dense<0.000000e+00> : vector<256x32xf32>
    %34 = tpu.matmul %30, %7, %cst_30 {dimension_numbers = #tpu.dot_dimension_numbers<[1], [0], [0], [1], [0, 0, 1, 1], [], []>} : vector<256x32xf32>, vector<32x32xf32>, vector<256x32xf32> -> vector<256x32xf32>
    %35 = arith.addf %33, %34 : vector<256x32xf32>
    %36 = vector.broadcast %8 : vector<1x32xf32> to vector<256x32xf32>
    %37 = arith.addf %35, %36 : vector<256x32xf32>
    %c0_31 = arith.constant 0 : index
    %c0_32 = arith.constant 0 : index
    %38 = vector.load %arg12[%c0_31, %c0_32] : memref<256x32xf32, #tpu.memory_space<vmem>>, vector<256x32xf32>
    tpu.vector_store %arg12[%c0_31, %c0_32], %37 {strides = array<i32>} : memref<256x32xf32, #tpu.memory_space<vmem>>, vector<256x32xf32>,
    %cst_33 = arith.constant dense<0.000000e+00> : vector<256x1xf32>
    %39 = tpu.matmul %37, %9, %cst_33 {dimension_numbers = #tpu.dot_dimension_numbers<[1], [0], [0], [1], [0, 0, 1, 1], [], []>} : vector<256x32xf32>, vector<32x1xf32>, vector<256x1xf32> -> vector<256x1xf32>
    %40 = vector.broadcast %10 : vector<1x1xf32> to vector<256x1xf32>
    %41 = arith.addf %39, %40 : vector<256x1xf32>
    %c0_34 = arith.constant 0 : index
    %c0_35 = arith.constant 0 : index
    %42 = vector.load %arg13[%c0_34, %c0_35] : memref<256x1xf32, #tpu.memory_space<vmem>>, vector<256x1xf32>
    tpu.vector_store %arg13[%c0_34, %c0_35], %41 {strides = array<i32>} : memref<256x1xf32, #tpu.memory_space<vmem>>, vector<256x1xf32>,
    return
  }
}

module attributes {stable_mosaic.version = 11 : i64} {
  func.func @gru_kernel(%arg0: memref<8x2x16xf32, #tpu.memory_space<vmem>>, %arg1: memref<8x2x16xf32, #tpu.memory_space<vmem>>, %arg2: memref<16x32xf32, #tpu.memory_space<vmem>>, %arg3: memref<16x32xf32, #tpu.memory_space<vmem>>, %arg4: memref<1x32xf32, #tpu.memory_space<vmem>>, %arg5: memref<16x16xf32, #tpu.memory_space<vmem>>, %arg6: memref<16x16xf32, #tpu.memory_space<vmem>>, %arg7: memref<1x16xf32, #tpu.memory_space<vmem>>, %arg8: memref<8x2x16xf32, #tpu.memory_space<vmem>>) attributes {dimension_semantics = [], scalar_prefetch = 0 : i64, scratch_operands = 0 : i64, tpu.core_type = #tpu.core_type<tc>} {
    %c0 = arith.constant 0 : index
    %c0_0 = arith.constant 0 : index
    %0 = vector.load %arg2[%c0, %c0_0] : memref<16x32xf32, #tpu.memory_space<vmem>>, vector<16x32xf32>
    %c0_1 = arith.constant 0 : index
    %c0_2 = arith.constant 0 : index
    %1 = vector.load %arg3[%c0_1, %c0_2] : memref<16x32xf32, #tpu.memory_space<vmem>>, vector<16x32xf32>
    %c0_3 = arith.constant 0 : index
    %c0_4 = arith.constant 0 : index
    %2 = vector.load %arg4[%c0_3, %c0_4] : memref<1x32xf32, #tpu.memory_space<vmem>>, vector<1x32xf32>
    %c0_5 = arith.constant 0 : index
    %c0_6 = arith.constant 0 : index
    %3 = vector.load %arg5[%c0_5, %c0_6] : memref<16x16xf32, #tpu.memory_space<vmem>>, vector<16x16xf32>
    %c0_7 = arith.constant 0 : index
    %c0_8 = arith.constant 0 : index
    %4 = vector.load %arg6[%c0_7, %c0_8] : memref<16x16xf32, #tpu.memory_space<vmem>>, vector<16x16xf32>
    %c0_9 = arith.constant 0 : index
    %c0_10 = arith.constant 0 : index
    %5 = vector.load %arg7[%c0_9, %c0_10] : memref<1x16xf32, #tpu.memory_space<vmem>>, vector<1x16xf32>
    %cst = arith.constant 0.000000e+00 : f32
    %6 = vector.broadcast %cst : f32 to vector<2x16xf32>
    %c0_11 = arith.constant 0 : index
    %c0_12 = arith.constant 0 : index
    %c0_13 = arith.constant 0 : index
    %7 = vector.load %arg1[%c0_11, %c0_12, %c0_13] : memref<8x2x16xf32, #tpu.memory_space<vmem>>, vector<1x2x16xf32>
    %8 = vector.shape_cast %7 : vector<1x2x16xf32> to vector<2x16xf32>
    %c0_14 = arith.constant 0 : index
    %c0_15 = arith.constant 0 : index
    %c0_16 = arith.constant 0 : index
    %9 = vector.load %arg0[%c0_14, %c0_15, %c0_16] : memref<8x2x16xf32, #tpu.memory_space<vmem>>, vector<1x2x16xf32>
    %10 = vector.shape_cast %9 : vector<1x2x16xf32> to vector<2x16xf32>
    %11 = arith.mulf %10, %8 : vector<2x16xf32>
    %cst_17 = arith.constant 1.000000e+00 : f32
    %12 = vector.broadcast %cst_17 : f32 to vector<2x16xf32>
    %13 = arith.subf %12, %8 : vector<2x16xf32>
    %14 = arith.mulf %6, %13 : vector<2x16xf32>
    %15 = arith.addf %11, %14 : vector<2x16xf32>
    %16 = arith.negf %15 : vector<2x16xf32>
    %17 = math.exp %16 : vector<2x16xf32>
    %cst_18 = arith.constant 1.000000e+00 : f32
    %18 = vector.broadcast %cst_18 : f32 to vector<2x16xf32>
    %19 = arith.addf %18, %17 : vector<2x16xf32>
    %20 = arith.divf %18, %19 : vector<2x16xf32>
    %cst_19 = arith.constant dense<0.000000e+00> : vector<2x32xf32>
    %21 = tpu.matmul %20, %0, %cst_19 {dimension_numbers = #tpu.dot_dimension_numbers<[1], [0], [0], [1], [0, 0, 1, 1], [], []>} : vector<2x16xf32>, vector<16x32xf32>, vector<2x32xf32> -> vector<2x32xf32>
    %cst_20 = arith.constant dense<0.000000e+00> : vector<2x32xf32>
    %22 = tpu.matmul %6, %1, %cst_20 {dimension_numbers = #tpu.dot_dimension_numbers<[1], [0], [0], [1], [0, 0, 1, 1], [], []>} : vector<2x16xf32>, vector<16x32xf32>, vector<2x32xf32> -> vector<2x32xf32>
    %23 = arith.addf %21, %22 : vector<2x32xf32>
    %24 = vector.broadcast %2 : vector<1x32xf32> to vector<2x32xf32>
    %25 = arith.addf %23, %24 : vector<2x32xf32>
    %26 = arith.negf %25 : vector<2x32xf32>
    %27 = math.exp %26 : vector<2x32xf32>
    %cst_21 = arith.constant 1.000000e+00 : f32
    %28 = vector.broadcast %cst_21 : f32 to vector<2x32xf32>
    %29 = arith.addf %28, %27 : vector<2x32xf32>
    %30 = arith.divf %28, %29 : vector<2x32xf32>
    %31 = vector.extract_strided_slice %30 {offsets = [0, 0], sizes = [2, 16], strides = [1, 1]} : vector<2x32xf32> to vector<2x16xf32>
    %32 = vector.extract_strided_slice %30 {offsets = [0, 16], sizes = [2, 16], strides = [1, 1]} : vector<2x32xf32> to vector<2x16xf32>
    %cst_22 = arith.constant dense<0.000000e+00> : vector<2x16xf32>
    %33 = tpu.matmul %20, %3, %cst_22 {dimension_numbers = #tpu.dot_dimension_numbers<[1], [0], [0], [1], [0, 0, 1, 1], [], []>} : vector<2x16xf32>, vector<16x16xf32>, vector<2x16xf32> -> vector<2x16xf32>
    %34 = arith.mulf %32, %6 : vector<2x16xf32>
    %cst_23 = arith.constant dense<0.000000e+00> : vector<2x16xf32>
    %35 = tpu.matmul %34, %4, %cst_23 {dimension_numbers = #tpu.dot_dimension_numbers<[1], [0], [0], [1], [0, 0, 1, 1], [], []>} : vector<2x16xf32>, vector<16x16xf32>, vector<2x16xf32> -> vector<2x16xf32>
    %36 = arith.addf %33, %35 : vector<2x16xf32>
    %37 = vector.broadcast %5 : vector<1x16xf32> to vector<2x16xf32>
    %38 = arith.addf %36, %37 : vector<2x16xf32>
    %39 = math.tanh %38 : vector<2x16xf32>
    %cst_24 = arith.constant 1.000000e+00 : f32
    %40 = vector.broadcast %cst_24 : f32 to vector<2x16xf32>
    %41 = arith.subf %40, %31 : vector<2x16xf32>
    %42 = arith.mulf %41, %6 : vector<2x16xf32>
    %43 = arith.mulf %31, %39 : vector<2x16xf32>
    %44 = arith.addf %42, %43 : vector<2x16xf32>
    %c0_25 = arith.constant 0 : index
    %c0_26 = arith.constant 0 : index
    %c0_27 = arith.constant 0 : index
    %45 = vector.load %arg8[%c0_25, %c0_26, %c0_27] : memref<8x2x16xf32, #tpu.memory_space<vmem>>, vector<1x2x16xf32>
    %46 = vector.shape_cast %45 : vector<1x2x16xf32> to vector<2x16xf32>
    %47 = vector.shape_cast %44 : vector<2x16xf32> to vector<1x2x16xf32>
    tpu.vector_store %arg8[%c0_25, %c0_26, %c0_27], %47 {strides = array<i32>} : memref<8x2x16xf32, #tpu.memory_space<vmem>>, vector<1x2x16xf32>,
    %c1 = arith.constant 1 : index
    %c0_28 = arith.constant 0 : index
    %c0_29 = arith.constant 0 : index
    %48 = vector.load %arg1[%c1, %c0_28, %c0_29] : memref<8x2x16xf32, #tpu.memory_space<vmem>>, vector<1x2x16xf32>
    %49 = vector.shape_cast %48 : vector<1x2x16xf32> to vector<2x16xf32>
    %c1_30 = arith.constant 1 : index
    %c0_31 = arith.constant 0 : index
    %c0_32 = arith.constant 0 : index
    %50 = vector.load %arg0[%c1_30, %c0_31, %c0_32] : memref<8x2x16xf32, #tpu.memory_space<vmem>>, vector<1x2x16xf32>
    %51 = vector.shape_cast %50 : vector<1x2x16xf32> to vector<2x16xf32>
    %52 = arith.mulf %51, %49 : vector<2x16xf32>
    %cst_33 = arith.constant 1.000000e+00 : f32
    %53 = vector.broadcast %cst_33 : f32 to vector<2x16xf32>
    %54 = arith.subf %53, %49 : vector<2x16xf32>
    %55 = arith.mulf %44, %54 : vector<2x16xf32>
    %56 = arith.addf %52, %55 : vector<2x16xf32>
    %57 = arith.negf %56 : vector<2x16xf32>
    %58 = math.exp %57 : vector<2x16xf32>
    %cst_34 = arith.constant 1.000000e+00 : f32
    %59 = vector.broadcast %cst_34 : f32 to vector<2x16xf32>
    %60 = arith.addf %59, %58 : vector<2x16xf32>
    %61 = arith.divf %59, %60 : vector<2x16xf32>
    %cst_35 = arith.constant dense<0.000000e+00> : vector<2x32xf32>
    %62 = tpu.matmul %61, %0, %cst_35 {dimension_numbers = #tpu.dot_dimension_numbers<[1], [0], [0], [1], [0, 0, 1, 1], [], []>} : vector<2x16xf32>, vector<16x32xf32>, vector<2x32xf32> -> vector<2x32xf32>
    %cst_36 = arith.constant dense<0.000000e+00> : vector<2x32xf32>
    %63 = tpu.matmul %44, %1, %cst_36 {dimension_numbers = #tpu.dot_dimension_numbers<[1], [0], [0], [1], [0, 0, 1, 1], [], []>} : vector<2x16xf32>, vector<16x32xf32>, vector<2x32xf32> -> vector<2x32xf32>
    %64 = arith.addf %62, %63 : vector<2x32xf32>
    %65 = vector.broadcast %2 : vector<1x32xf32> to vector<2x32xf32>
    %66 = arith.addf %64, %65 : vector<2x32xf32>
    %67 = arith.negf %66 : vector<2x32xf32>
    %68 = math.exp %67 : vector<2x32xf32>
    %cst_37 = arith.constant 1.000000e+00 : f32
    %69 = vector.broadcast %cst_37 : f32 to vector<2x32xf32>
    %70 = arith.addf %69, %68 : vector<2x32xf32>
    %71 = arith.divf %69, %70 : vector<2x32xf32>
    %72 = vector.extract_strided_slice %71 {offsets = [0, 0], sizes = [2, 16], strides = [1, 1]} : vector<2x32xf32> to vector<2x16xf32>
    %73 = vector.extract_strided_slice %71 {offsets = [0, 16], sizes = [2, 16], strides = [1, 1]} : vector<2x32xf32> to vector<2x16xf32>
    %cst_38 = arith.constant dense<0.000000e+00> : vector<2x16xf32>
    %74 = tpu.matmul %61, %3, %cst_38 {dimension_numbers = #tpu.dot_dimension_numbers<[1], [0], [0], [1], [0, 0, 1, 1], [], []>} : vector<2x16xf32>, vector<16x16xf32>, vector<2x16xf32> -> vector<2x16xf32>
    %75 = arith.mulf %73, %44 : vector<2x16xf32>
    %cst_39 = arith.constant dense<0.000000e+00> : vector<2x16xf32>
    %76 = tpu.matmul %75, %4, %cst_39 {dimension_numbers = #tpu.dot_dimension_numbers<[1], [0], [0], [1], [0, 0, 1, 1], [], []>} : vector<2x16xf32>, vector<16x16xf32>, vector<2x16xf32> -> vector<2x16xf32>
    %77 = arith.addf %74, %76 : vector<2x16xf32>
    %78 = vector.broadcast %5 : vector<1x16xf32> to vector<2x16xf32>
    %79 = arith.addf %77, %78 : vector<2x16xf32>
    %80 = math.tanh %79 : vector<2x16xf32>
    %cst_40 = arith.constant 1.000000e+00 : f32
    %81 = vector.broadcast %cst_40 : f32 to vector<2x16xf32>
    %82 = arith.subf %81, %72 : vector<2x16xf32>
    %83 = arith.mulf %82, %44 : vector<2x16xf32>
    %84 = arith.mulf %72, %80 : vector<2x16xf32>
    %85 = arith.addf %83, %84 : vector<2x16xf32>
    %c1_41 = arith.constant 1 : index
    %c0_42 = arith.constant 0 : index
    %c0_43 = arith.constant 0 : index
    %86 = vector.load %arg8[%c1_41, %c0_42, %c0_43] : memref<8x2x16xf32, #tpu.memory_space<vmem>>, vector<1x2x16xf32>
    %87 = vector.shape_cast %86 : vector<1x2x16xf32> to vector<2x16xf32>
    %88 = vector.shape_cast %85 : vector<2x16xf32> to vector<1x2x16xf32>
    tpu.vector_store %arg8[%c1_41, %c0_42, %c0_43], %88 {strides = array<i32>} : memref<8x2x16xf32, #tpu.memory_space<vmem>>, vector<1x2x16xf32>,
    %c2 = arith.constant 2 : index
    %c0_44 = arith.constant 0 : index
    %c0_45 = arith.constant 0 : index
    %89 = vector.load %arg1[%c2, %c0_44, %c0_45] : memref<8x2x16xf32, #tpu.memory_space<vmem>>, vector<1x2x16xf32>
    %90 = vector.shape_cast %89 : vector<1x2x16xf32> to vector<2x16xf32>
    %c2_46 = arith.constant 2 : index
    %c0_47 = arith.constant 0 : index
    %c0_48 = arith.constant 0 : index
    %91 = vector.load %arg0[%c2_46, %c0_47, %c0_48] : memref<8x2x16xf32, #tpu.memory_space<vmem>>, vector<1x2x16xf32>
    %92 = vector.shape_cast %91 : vector<1x2x16xf32> to vector<2x16xf32>
    %93 = arith.mulf %92, %90 : vector<2x16xf32>
    %cst_49 = arith.constant 1.000000e+00 : f32
    %94 = vector.broadcast %cst_49 : f32 to vector<2x16xf32>
    %95 = arith.subf %94, %90 : vector<2x16xf32>
    %96 = arith.mulf %85, %95 : vector<2x16xf32>
    %97 = arith.addf %93, %96 : vector<2x16xf32>
    %98 = arith.negf %97 : vector<2x16xf32>
    %99 = math.exp %98 : vector<2x16xf32>
    %cst_50 = arith.constant 1.000000e+00 : f32
    %100 = vector.broadcast %cst_50 : f32 to vector<2x16xf32>
    %101 = arith.addf %100, %99 : vector<2x16xf32>
    %102 = arith.divf %100, %101 : vector<2x16xf32>
    %cst_51 = arith.constant dense<0.000000e+00> : vector<2x32xf32>
    %103 = tpu.matmul %102, %0, %cst_51 {dimension_numbers = #tpu.dot_dimension_numbers<[1], [0], [0], [1], [0, 0, 1, 1], [], []>} : vector<2x16xf32>, vector<16x32xf32>, vector<2x32xf32> -> vector<2x32xf32>
    %cst_52 = arith.constant dense<0.000000e+00> : vector<2x32xf32>
    %104 = tpu.matmul %85, %1, %cst_52 {dimension_numbers = #tpu.dot_dimension_numbers<[1], [0], [0], [1], [0, 0, 1, 1], [], []>} : vector<2x16xf32>, vector<16x32xf32>, vector<2x32xf32> -> vector<2x32xf32>
    %105 = arith.addf %103, %104 : vector<2x32xf32>
    %106 = vector.broadcast %2 : vector<1x32xf32> to vector<2x32xf32>
    %107 = arith.addf %105, %106 : vector<2x32xf32>
    %108 = arith.negf %107 : vector<2x32xf32>
    %109 = math.exp %108 : vector<2x32xf32>
    %cst_53 = arith.constant 1.000000e+00 : f32
    %110 = vector.broadcast %cst_53 : f32 to vector<2x32xf32>
    %111 = arith.addf %110, %109 : vector<2x32xf32>
    %112 = arith.divf %110, %111 : vector<2x32xf32>
    %113 = vector.extract_strided_slice %112 {offsets = [0, 0], sizes = [2, 16], strides = [1, 1]} : vector<2x32xf32> to vector<2x16xf32>
    %114 = vector.extract_strided_slice %112 {offsets = [0, 16], sizes = [2, 16], strides = [1, 1]} : vector<2x32xf32> to vector<2x16xf32>
    %cst_54 = arith.constant dense<0.000000e+00> : vector<2x16xf32>
    %115 = tpu.matmul %102, %3, %cst_54 {dimension_numbers = #tpu.dot_dimension_numbers<[1], [0], [0], [1], [0, 0, 1, 1], [], []>} : vector<2x16xf32>, vector<16x16xf32>, vector<2x16xf32> -> vector<2x16xf32>
    %116 = arith.mulf %114, %85 : vector<2x16xf32>
    %cst_55 = arith.constant dense<0.000000e+00> : vector<2x16xf32>
    %117 = tpu.matmul %116, %4, %cst_55 {dimension_numbers = #tpu.dot_dimension_numbers<[1], [0], [0], [1], [0, 0, 1, 1], [], []>} : vector<2x16xf32>, vector<16x16xf32>, vector<2x16xf32> -> vector<2x16xf32>
    %118 = arith.addf %115, %117 : vector<2x16xf32>
    %119 = vector.broadcast %5 : vector<1x16xf32> to vector<2x16xf32>
    %120 = arith.addf %118, %119 : vector<2x16xf32>
    %121 = math.tanh %120 : vector<2x16xf32>
    %cst_56 = arith.constant 1.000000e+00 : f32
    %122 = vector.broadcast %cst_56 : f32 to vector<2x16xf32>
    %123 = arith.subf %122, %113 : vector<2x16xf32>
    %124 = arith.mulf %123, %85 : vector<2x16xf32>
    %125 = arith.mulf %113, %121 : vector<2x16xf32>
    %126 = arith.addf %124, %125 : vector<2x16xf32>
    %c2_57 = arith.constant 2 : index
    %c0_58 = arith.constant 0 : index
    %c0_59 = arith.constant 0 : index
    %127 = vector.load %arg8[%c2_57, %c0_58, %c0_59] : memref<8x2x16xf32, #tpu.memory_space<vmem>>, vector<1x2x16xf32>
    %128 = vector.shape_cast %127 : vector<1x2x16xf32> to vector<2x16xf32>
    %129 = vector.shape_cast %126 : vector<2x16xf32> to vector<1x2x16xf32>
    tpu.vector_store %arg8[%c2_57, %c0_58, %c0_59], %129 {strides = array<i32>} : memref<8x2x16xf32, #tpu.memory_space<vmem>>, vector<1x2x16xf32>,
    %c3 = arith.constant 3 : index
    %c0_60 = arith.constant 0 : index
    %c0_61 = arith.constant 0 : index
    %130 = vector.load %arg1[%c3, %c0_60, %c0_61] : memref<8x2x16xf32, #tpu.memory_space<vmem>>, vector<1x2x16xf32>
    %131 = vector.shape_cast %130 : vector<1x2x16xf32> to vector<2x16xf32>
    %c3_62 = arith.constant 3 : index
    %c0_63 = arith.constant 0 : index
    %c0_64 = arith.constant 0 : index
    %132 = vector.load %arg0[%c3_62, %c0_63, %c0_64] : memref<8x2x16xf32, #tpu.memory_space<vmem>>, vector<1x2x16xf32>
    %133 = vector.shape_cast %132 : vector<1x2x16xf32> to vector<2x16xf32>
    %134 = arith.mulf %133, %131 : vector<2x16xf32>
    %cst_65 = arith.constant 1.000000e+00 : f32
    %135 = vector.broadcast %cst_65 : f32 to vector<2x16xf32>
    %136 = arith.subf %135, %131 : vector<2x16xf32>
    %137 = arith.mulf %126, %136 : vector<2x16xf32>
    %138 = arith.addf %134, %137 : vector<2x16xf32>
    %139 = arith.negf %138 : vector<2x16xf32>
    %140 = math.exp %139 : vector<2x16xf32>
    %cst_66 = arith.constant 1.000000e+00 : f32
    %141 = vector.broadcast %cst_66 : f32 to vector<2x16xf32>
    %142 = arith.addf %141, %140 : vector<2x16xf32>
    %143 = arith.divf %141, %142 : vector<2x16xf32>
    %cst_67 = arith.constant dense<0.000000e+00> : vector<2x32xf32>
    %144 = tpu.matmul %143, %0, %cst_67 {dimension_numbers = #tpu.dot_dimension_numbers<[1], [0], [0], [1], [0, 0, 1, 1], [], []>} : vector<2x16xf32>, vector<16x32xf32>, vector<2x32xf32> -> vector<2x32xf32>
    %cst_68 = arith.constant dense<0.000000e+00> : vector<2x32xf32>
    %145 = tpu.matmul %126, %1, %cst_68 {dimension_numbers = #tpu.dot_dimension_numbers<[1], [0], [0], [1], [0, 0, 1, 1], [], []>} : vector<2x16xf32>, vector<16x32xf32>, vector<2x32xf32> -> vector<2x32xf32>
    %146 = arith.addf %144, %145 : vector<2x32xf32>
    %147 = vector.broadcast %2 : vector<1x32xf32> to vector<2x32xf32>
    %148 = arith.addf %146, %147 : vector<2x32xf32>
    %149 = arith.negf %148 : vector<2x32xf32>
    %150 = math.exp %149 : vector<2x32xf32>
    %cst_69 = arith.constant 1.000000e+00 : f32
    %151 = vector.broadcast %cst_69 : f32 to vector<2x32xf32>
    %152 = arith.addf %151, %150 : vector<2x32xf32>
    %153 = arith.divf %151, %152 : vector<2x32xf32>
    %154 = vector.extract_strided_slice %153 {offsets = [0, 0], sizes = [2, 16], strides = [1, 1]} : vector<2x32xf32> to vector<2x16xf32>
    %155 = vector.extract_strided_slice %153 {offsets = [0, 16], sizes = [2, 16], strides = [1, 1]} : vector<2x32xf32> to vector<2x16xf32>
    %cst_70 = arith.constant dense<0.000000e+00> : vector<2x16xf32>
    %156 = tpu.matmul %143, %3, %cst_70 {dimension_numbers = #tpu.dot_dimension_numbers<[1], [0], [0], [1], [0, 0, 1, 1], [], []>} : vector<2x16xf32>, vector<16x16xf32>, vector<2x16xf32> -> vector<2x16xf32>
    %157 = arith.mulf %155, %126 : vector<2x16xf32>
    %cst_71 = arith.constant dense<0.000000e+00> : vector<2x16xf32>
    %158 = tpu.matmul %157, %4, %cst_71 {dimension_numbers = #tpu.dot_dimension_numbers<[1], [0], [0], [1], [0, 0, 1, 1], [], []>} : vector<2x16xf32>, vector<16x16xf32>, vector<2x16xf32> -> vector<2x16xf32>
    %159 = arith.addf %156, %158 : vector<2x16xf32>
    %160 = vector.broadcast %5 : vector<1x16xf32> to vector<2x16xf32>
    %161 = arith.addf %159, %160 : vector<2x16xf32>
    %162 = math.tanh %161 : vector<2x16xf32>
    %cst_72 = arith.constant 1.000000e+00 : f32
    %163 = vector.broadcast %cst_72 : f32 to vector<2x16xf32>
    %164 = arith.subf %163, %154 : vector<2x16xf32>
    %165 = arith.mulf %164, %126 : vector<2x16xf32>
    %166 = arith.mulf %154, %162 : vector<2x16xf32>
    %167 = arith.addf %165, %166 : vector<2x16xf32>
    %c3_73 = arith.constant 3 : index
    %c0_74 = arith.constant 0 : index
    %c0_75 = arith.constant 0 : index
    %168 = vector.load %arg8[%c3_73, %c0_74, %c0_75] : memref<8x2x16xf32, #tpu.memory_space<vmem>>, vector<1x2x16xf32>
    %169 = vector.shape_cast %168 : vector<1x2x16xf32> to vector<2x16xf32>
    %170 = vector.shape_cast %167 : vector<2x16xf32> to vector<1x2x16xf32>
    tpu.vector_store %arg8[%c3_73, %c0_74, %c0_75], %170 {strides = array<i32>} : memref<8x2x16xf32, #tpu.memory_space<vmem>>, vector<1x2x16xf32>,
    %c4 = arith.constant 4 : index
    %c0_76 = arith.constant 0 : index
    %c0_77 = arith.constant 0 : index
    %171 = vector.load %arg1[%c4, %c0_76, %c0_77] : memref<8x2x16xf32, #tpu.memory_space<vmem>>, vector<1x2x16xf32>
    %172 = vector.shape_cast %171 : vector<1x2x16xf32> to vector<2x16xf32>
    %c4_78 = arith.constant 4 : index
    %c0_79 = arith.constant 0 : index
    %c0_80 = arith.constant 0 : index
    %173 = vector.load %arg0[%c4_78, %c0_79, %c0_80] : memref<8x2x16xf32, #tpu.memory_space<vmem>>, vector<1x2x16xf32>
    %174 = vector.shape_cast %173 : vector<1x2x16xf32> to vector<2x16xf32>
    %175 = arith.mulf %174, %172 : vector<2x16xf32>
    %cst_81 = arith.constant 1.000000e+00 : f32
    %176 = vector.broadcast %cst_81 : f32 to vector<2x16xf32>
    %177 = arith.subf %176, %172 : vector<2x16xf32>
    %178 = arith.mulf %167, %177 : vector<2x16xf32>
    %179 = arith.addf %175, %178 : vector<2x16xf32>
    %180 = arith.negf %179 : vector<2x16xf32>
    %181 = math.exp %180 : vector<2x16xf32>
    %cst_82 = arith.constant 1.000000e+00 : f32
    %182 = vector.broadcast %cst_82 : f32 to vector<2x16xf32>
    %183 = arith.addf %182, %181 : vector<2x16xf32>
    %184 = arith.divf %182, %183 : vector<2x16xf32>
    %cst_83 = arith.constant dense<0.000000e+00> : vector<2x32xf32>
    %185 = tpu.matmul %184, %0, %cst_83 {dimension_numbers = #tpu.dot_dimension_numbers<[1], [0], [0], [1], [0, 0, 1, 1], [], []>} : vector<2x16xf32>, vector<16x32xf32>, vector<2x32xf32> -> vector<2x32xf32>
    %cst_84 = arith.constant dense<0.000000e+00> : vector<2x32xf32>
    %186 = tpu.matmul %167, %1, %cst_84 {dimension_numbers = #tpu.dot_dimension_numbers<[1], [0], [0], [1], [0, 0, 1, 1], [], []>} : vector<2x16xf32>, vector<16x32xf32>, vector<2x32xf32> -> vector<2x32xf32>
    %187 = arith.addf %185, %186 : vector<2x32xf32>
    %188 = vector.broadcast %2 : vector<1x32xf32> to vector<2x32xf32>
    %189 = arith.addf %187, %188 : vector<2x32xf32>
    %190 = arith.negf %189 : vector<2x32xf32>
    %191 = math.exp %190 : vector<2x32xf32>
    %cst_85 = arith.constant 1.000000e+00 : f32
    %192 = vector.broadcast %cst_85 : f32 to vector<2x32xf32>
    %193 = arith.addf %192, %191 : vector<2x32xf32>
    %194 = arith.divf %192, %193 : vector<2x32xf32>
    %195 = vector.extract_strided_slice %194 {offsets = [0, 0], sizes = [2, 16], strides = [1, 1]} : vector<2x32xf32> to vector<2x16xf32>
    %196 = vector.extract_strided_slice %194 {offsets = [0, 16], sizes = [2, 16], strides = [1, 1]} : vector<2x32xf32> to vector<2x16xf32>
    %cst_86 = arith.constant dense<0.000000e+00> : vector<2x16xf32>
    %197 = tpu.matmul %184, %3, %cst_86 {dimension_numbers = #tpu.dot_dimension_numbers<[1], [0], [0], [1], [0, 0, 1, 1], [], []>} : vector<2x16xf32>, vector<16x16xf32>, vector<2x16xf32> -> vector<2x16xf32>
    %198 = arith.mulf %196, %167 : vector<2x16xf32>
    %cst_87 = arith.constant dense<0.000000e+00> : vector<2x16xf32>
    %199 = tpu.matmul %198, %4, %cst_87 {dimension_numbers = #tpu.dot_dimension_numbers<[1], [0], [0], [1], [0, 0, 1, 1], [], []>} : vector<2x16xf32>, vector<16x16xf32>, vector<2x16xf32> -> vector<2x16xf32>
    %200 = arith.addf %197, %199 : vector<2x16xf32>
    %201 = vector.broadcast %5 : vector<1x16xf32> to vector<2x16xf32>
    %202 = arith.addf %200, %201 : vector<2x16xf32>
    %203 = math.tanh %202 : vector<2x16xf32>
    %cst_88 = arith.constant 1.000000e+00 : f32
    %204 = vector.broadcast %cst_88 : f32 to vector<2x16xf32>
    %205 = arith.subf %204, %195 : vector<2x16xf32>
    %206 = arith.mulf %205, %167 : vector<2x16xf32>
    %207 = arith.mulf %195, %203 : vector<2x16xf32>
    %208 = arith.addf %206, %207 : vector<2x16xf32>
    %c4_89 = arith.constant 4 : index
    %c0_90 = arith.constant 0 : index
    %c0_91 = arith.constant 0 : index
    %209 = vector.load %arg8[%c4_89, %c0_90, %c0_91] : memref<8x2x16xf32, #tpu.memory_space<vmem>>, vector<1x2x16xf32>
    %210 = vector.shape_cast %209 : vector<1x2x16xf32> to vector<2x16xf32>
    %211 = vector.shape_cast %208 : vector<2x16xf32> to vector<1x2x16xf32>
    tpu.vector_store %arg8[%c4_89, %c0_90, %c0_91], %211 {strides = array<i32>} : memref<8x2x16xf32, #tpu.memory_space<vmem>>, vector<1x2x16xf32>,
    %c5 = arith.constant 5 : index
    %c0_92 = arith.constant 0 : index
    %c0_93 = arith.constant 0 : index
    %212 = vector.load %arg1[%c5, %c0_92, %c0_93] : memref<8x2x16xf32, #tpu.memory_space<vmem>>, vector<1x2x16xf32>
    %213 = vector.shape_cast %212 : vector<1x2x16xf32> to vector<2x16xf32>
    %c5_94 = arith.constant 5 : index
    %c0_95 = arith.constant 0 : index
    %c0_96 = arith.constant 0 : index
    %214 = vector.load %arg0[%c5_94, %c0_95, %c0_96] : memref<8x2x16xf32, #tpu.memory_space<vmem>>, vector<1x2x16xf32>
    %215 = vector.shape_cast %214 : vector<1x2x16xf32> to vector<2x16xf32>
    %216 = arith.mulf %215, %213 : vector<2x16xf32>
    %cst_97 = arith.constant 1.000000e+00 : f32
    %217 = vector.broadcast %cst_97 : f32 to vector<2x16xf32>
    %218 = arith.subf %217, %213 : vector<2x16xf32>
    %219 = arith.mulf %208, %218 : vector<2x16xf32>
    %220 = arith.addf %216, %219 : vector<2x16xf32>
    %221 = arith.negf %220 : vector<2x16xf32>
    %222 = math.exp %221 : vector<2x16xf32>
    %cst_98 = arith.constant 1.000000e+00 : f32
    %223 = vector.broadcast %cst_98 : f32 to vector<2x16xf32>
    %224 = arith.addf %223, %222 : vector<2x16xf32>
    %225 = arith.divf %223, %224 : vector<2x16xf32>
    %cst_99 = arith.constant dense<0.000000e+00> : vector<2x32xf32>
    %226 = tpu.matmul %225, %0, %cst_99 {dimension_numbers = #tpu.dot_dimension_numbers<[1], [0], [0], [1], [0, 0, 1, 1], [], []>} : vector<2x16xf32>, vector<16x32xf32>, vector<2x32xf32> -> vector<2x32xf32>
    %cst_100 = arith.constant dense<0.000000e+00> : vector<2x32xf32>
    %227 = tpu.matmul %208, %1, %cst_100 {dimension_numbers = #tpu.dot_dimension_numbers<[1], [0], [0], [1], [0, 0, 1, 1], [], []>} : vector<2x16xf32>, vector<16x32xf32>, vector<2x32xf32> -> vector<2x32xf32>
    %228 = arith.addf %226, %227 : vector<2x32xf32>
    %229 = vector.broadcast %2 : vector<1x32xf32> to vector<2x32xf32>
    %230 = arith.addf %228, %229 : vector<2x32xf32>
    %231 = arith.negf %230 : vector<2x32xf32>
    %232 = math.exp %231 : vector<2x32xf32>
    %cst_101 = arith.constant 1.000000e+00 : f32
    %233 = vector.broadcast %cst_101 : f32 to vector<2x32xf32>
    %234 = arith.addf %233, %232 : vector<2x32xf32>
    %235 = arith.divf %233, %234 : vector<2x32xf32>
    %236 = vector.extract_strided_slice %235 {offsets = [0, 0], sizes = [2, 16], strides = [1, 1]} : vector<2x32xf32> to vector<2x16xf32>
    %237 = vector.extract_strided_slice %235 {offsets = [0, 16], sizes = [2, 16], strides = [1, 1]} : vector<2x32xf32> to vector<2x16xf32>
    %cst_102 = arith.constant dense<0.000000e+00> : vector<2x16xf32>
    %238 = tpu.matmul %225, %3, %cst_102 {dimension_numbers = #tpu.dot_dimension_numbers<[1], [0], [0], [1], [0, 0, 1, 1], [], []>} : vector<2x16xf32>, vector<16x16xf32>, vector<2x16xf32> -> vector<2x16xf32>
    %239 = arith.mulf %237, %208 : vector<2x16xf32>
    %cst_103 = arith.constant dense<0.000000e+00> : vector<2x16xf32>
    %240 = tpu.matmul %239, %4, %cst_103 {dimension_numbers = #tpu.dot_dimension_numbers<[1], [0], [0], [1], [0, 0, 1, 1], [], []>} : vector<2x16xf32>, vector<16x16xf32>, vector<2x16xf32> -> vector<2x16xf32>
    %241 = arith.addf %238, %240 : vector<2x16xf32>
    %242 = vector.broadcast %5 : vector<1x16xf32> to vector<2x16xf32>
    %243 = arith.addf %241, %242 : vector<2x16xf32>
    %244 = math.tanh %243 : vector<2x16xf32>
    %cst_104 = arith.constant 1.000000e+00 : f32
    %245 = vector.broadcast %cst_104 : f32 to vector<2x16xf32>
    %246 = arith.subf %245, %236 : vector<2x16xf32>
    %247 = arith.mulf %246, %208 : vector<2x16xf32>
    %248 = arith.mulf %236, %244 : vector<2x16xf32>
    %249 = arith.addf %247, %248 : vector<2x16xf32>
    %c5_105 = arith.constant 5 : index
    %c0_106 = arith.constant 0 : index
    %c0_107 = arith.constant 0 : index
    %250 = vector.load %arg8[%c5_105, %c0_106, %c0_107] : memref<8x2x16xf32, #tpu.memory_space<vmem>>, vector<1x2x16xf32>
    %251 = vector.shape_cast %250 : vector<1x2x16xf32> to vector<2x16xf32>
    %252 = vector.shape_cast %249 : vector<2x16xf32> to vector<1x2x16xf32>
    tpu.vector_store %arg8[%c5_105, %c0_106, %c0_107], %252 {strides = array<i32>} : memref<8x2x16xf32, #tpu.memory_space<vmem>>, vector<1x2x16xf32>,
    %c6 = arith.constant 6 : index
    %c0_108 = arith.constant 0 : index
    %c0_109 = arith.constant 0 : index
    %253 = vector.load %arg1[%c6, %c0_108, %c0_109] : memref<8x2x16xf32, #tpu.memory_space<vmem>>, vector<1x2x16xf32>
    %254 = vector.shape_cast %253 : vector<1x2x16xf32> to vector<2x16xf32>
    %c6_110 = arith.constant 6 : index
    %c0_111 = arith.constant 0 : index
    %c0_112 = arith.constant 0 : index
    %255 = vector.load %arg0[%c6_110, %c0_111, %c0_112] : memref<8x2x16xf32, #tpu.memory_space<vmem>>, vector<1x2x16xf32>
    %256 = vector.shape_cast %255 : vector<1x2x16xf32> to vector<2x16xf32>
    %257 = arith.mulf %256, %254 : vector<2x16xf32>
    %cst_113 = arith.constant 1.000000e+00 : f32
    %258 = vector.broadcast %cst_113 : f32 to vector<2x16xf32>
    %259 = arith.subf %258, %254 : vector<2x16xf32>
    %260 = arith.mulf %249, %259 : vector<2x16xf32>
    %261 = arith.addf %257, %260 : vector<2x16xf32>
    %262 = arith.negf %261 : vector<2x16xf32>
    %263 = math.exp %262 : vector<2x16xf32>
    %cst_114 = arith.constant 1.000000e+00 : f32
    %264 = vector.broadcast %cst_114 : f32 to vector<2x16xf32>
    %265 = arith.addf %264, %263 : vector<2x16xf32>
    %266 = arith.divf %264, %265 : vector<2x16xf32>
    %cst_115 = arith.constant dense<0.000000e+00> : vector<2x32xf32>
    %267 = tpu.matmul %266, %0, %cst_115 {dimension_numbers = #tpu.dot_dimension_numbers<[1], [0], [0], [1], [0, 0, 1, 1], [], []>} : vector<2x16xf32>, vector<16x32xf32>, vector<2x32xf32> -> vector<2x32xf32>
    %cst_116 = arith.constant dense<0.000000e+00> : vector<2x32xf32>
    %268 = tpu.matmul %249, %1, %cst_116 {dimension_numbers = #tpu.dot_dimension_numbers<[1], [0], [0], [1], [0, 0, 1, 1], [], []>} : vector<2x16xf32>, vector<16x32xf32>, vector<2x32xf32> -> vector<2x32xf32>
    %269 = arith.addf %267, %268 : vector<2x32xf32>
    %270 = vector.broadcast %2 : vector<1x32xf32> to vector<2x32xf32>
    %271 = arith.addf %269, %270 : vector<2x32xf32>
    %272 = arith.negf %271 : vector<2x32xf32>
    %273 = math.exp %272 : vector<2x32xf32>
    %cst_117 = arith.constant 1.000000e+00 : f32
    %274 = vector.broadcast %cst_117 : f32 to vector<2x32xf32>
    %275 = arith.addf %274, %273 : vector<2x32xf32>
    %276 = arith.divf %274, %275 : vector<2x32xf32>
    %277 = vector.extract_strided_slice %276 {offsets = [0, 0], sizes = [2, 16], strides = [1, 1]} : vector<2x32xf32> to vector<2x16xf32>
    %278 = vector.extract_strided_slice %276 {offsets = [0, 16], sizes = [2, 16], strides = [1, 1]} : vector<2x32xf32> to vector<2x16xf32>
    %cst_118 = arith.constant dense<0.000000e+00> : vector<2x16xf32>
    %279 = tpu.matmul %266, %3, %cst_118 {dimension_numbers = #tpu.dot_dimension_numbers<[1], [0], [0], [1], [0, 0, 1, 1], [], []>} : vector<2x16xf32>, vector<16x16xf32>, vector<2x16xf32> -> vector<2x16xf32>
    %280 = arith.mulf %278, %249 : vector<2x16xf32>
    %cst_119 = arith.constant dense<0.000000e+00> : vector<2x16xf32>
    %281 = tpu.matmul %280, %4, %cst_119 {dimension_numbers = #tpu.dot_dimension_numbers<[1], [0], [0], [1], [0, 0, 1, 1], [], []>} : vector<2x16xf32>, vector<16x16xf32>, vector<2x16xf32> -> vector<2x16xf32>
    %282 = arith.addf %279, %281 : vector<2x16xf32>
    %283 = vector.broadcast %5 : vector<1x16xf32> to vector<2x16xf32>
    %284 = arith.addf %282, %283 : vector<2x16xf32>
    %285 = math.tanh %284 : vector<2x16xf32>
    %cst_120 = arith.constant 1.000000e+00 : f32
    %286 = vector.broadcast %cst_120 : f32 to vector<2x16xf32>
    %287 = arith.subf %286, %277 : vector<2x16xf32>
    %288 = arith.mulf %287, %249 : vector<2x16xf32>
    %289 = arith.mulf %277, %285 : vector<2x16xf32>
    %290 = arith.addf %288, %289 : vector<2x16xf32>
    %c6_121 = arith.constant 6 : index
    %c0_122 = arith.constant 0 : index
    %c0_123 = arith.constant 0 : index
    %291 = vector.load %arg8[%c6_121, %c0_122, %c0_123] : memref<8x2x16xf32, #tpu.memory_space<vmem>>, vector<1x2x16xf32>
    %292 = vector.shape_cast %291 : vector<1x2x16xf32> to vector<2x16xf32>
    %293 = vector.shape_cast %290 : vector<2x16xf32> to vector<1x2x16xf32>
    tpu.vector_store %arg8[%c6_121, %c0_122, %c0_123], %293 {strides = array<i32>} : memref<8x2x16xf32, #tpu.memory_space<vmem>>, vector<1x2x16xf32>,
    %c7 = arith.constant 7 : index
    %c0_124 = arith.constant 0 : index
    %c0_125 = arith.constant 0 : index
    %294 = vector.load %arg1[%c7, %c0_124, %c0_125] : memref<8x2x16xf32, #tpu.memory_space<vmem>>, vector<1x2x16xf32>
    %295 = vector.shape_cast %294 : vector<1x2x16xf32> to vector<2x16xf32>
    %c7_126 = arith.constant 7 : index
    %c0_127 = arith.constant 0 : index
    %c0_128 = arith.constant 0 : index
    %296 = vector.load %arg0[%c7_126, %c0_127, %c0_128] : memref<8x2x16xf32, #tpu.memory_space<vmem>>, vector<1x2x16xf32>
    %297 = vector.shape_cast %296 : vector<1x2x16xf32> to vector<2x16xf32>
    %298 = arith.mulf %297, %295 : vector<2x16xf32>
    %cst_129 = arith.constant 1.000000e+00 : f32
    %299 = vector.broadcast %cst_129 : f32 to vector<2x16xf32>
    %300 = arith.subf %299, %295 : vector<2x16xf32>
    %301 = arith.mulf %290, %300 : vector<2x16xf32>
    %302 = arith.addf %298, %301 : vector<2x16xf32>
    %303 = arith.negf %302 : vector<2x16xf32>
    %304 = math.exp %303 : vector<2x16xf32>
    %cst_130 = arith.constant 1.000000e+00 : f32
    %305 = vector.broadcast %cst_130 : f32 to vector<2x16xf32>
    %306 = arith.addf %305, %304 : vector<2x16xf32>
    %307 = arith.divf %305, %306 : vector<2x16xf32>
    %cst_131 = arith.constant dense<0.000000e+00> : vector<2x32xf32>
    %308 = tpu.matmul %307, %0, %cst_131 {dimension_numbers = #tpu.dot_dimension_numbers<[1], [0], [0], [1], [0, 0, 1, 1], [], []>} : vector<2x16xf32>, vector<16x32xf32>, vector<2x32xf32> -> vector<2x32xf32>
    %cst_132 = arith.constant dense<0.000000e+00> : vector<2x32xf32>
    %309 = tpu.matmul %290, %1, %cst_132 {dimension_numbers = #tpu.dot_dimension_numbers<[1], [0], [0], [1], [0, 0, 1, 1], [], []>} : vector<2x16xf32>, vector<16x32xf32>, vector<2x32xf32> -> vector<2x32xf32>
    %310 = arith.addf %308, %309 : vector<2x32xf32>
    %311 = vector.broadcast %2 : vector<1x32xf32> to vector<2x32xf32>
    %312 = arith.addf %310, %311 : vector<2x32xf32>
    %313 = arith.negf %312 : vector<2x32xf32>
    %314 = math.exp %313 : vector<2x32xf32>
    %cst_133 = arith.constant 1.000000e+00 : f32
    %315 = vector.broadcast %cst_133 : f32 to vector<2x32xf32>
    %316 = arith.addf %315, %314 : vector<2x32xf32>
    %317 = arith.divf %315, %316 : vector<2x32xf32>
    %318 = vector.extract_strided_slice %317 {offsets = [0, 0], sizes = [2, 16], strides = [1, 1]} : vector<2x32xf32> to vector<2x16xf32>
    %319 = vector.extract_strided_slice %317 {offsets = [0, 16], sizes = [2, 16], strides = [1, 1]} : vector<2x32xf32> to vector<2x16xf32>
    %cst_134 = arith.constant dense<0.000000e+00> : vector<2x16xf32>
    %320 = tpu.matmul %307, %3, %cst_134 {dimension_numbers = #tpu.dot_dimension_numbers<[1], [0], [0], [1], [0, 0, 1, 1], [], []>} : vector<2x16xf32>, vector<16x16xf32>, vector<2x16xf32> -> vector<2x16xf32>
    %321 = arith.mulf %319, %290 : vector<2x16xf32>
    %cst_135 = arith.constant dense<0.000000e+00> : vector<2x16xf32>
    %322 = tpu.matmul %321, %4, %cst_135 {dimension_numbers = #tpu.dot_dimension_numbers<[1], [0], [0], [1], [0, 0, 1, 1], [], []>} : vector<2x16xf32>, vector<16x16xf32>, vector<2x16xf32> -> vector<2x16xf32>
    %323 = arith.addf %320, %322 : vector<2x16xf32>
    %324 = vector.broadcast %5 : vector<1x16xf32> to vector<2x16xf32>
    %325 = arith.addf %323, %324 : vector<2x16xf32>
    %326 = math.tanh %325 : vector<2x16xf32>
    %cst_136 = arith.constant 1.000000e+00 : f32
    %327 = vector.broadcast %cst_136 : f32 to vector<2x16xf32>
    %328 = arith.subf %327, %318 : vector<2x16xf32>
    %329 = arith.mulf %328, %290 : vector<2x16xf32>
    %330 = arith.mulf %318, %326 : vector<2x16xf32>
    %331 = arith.addf %329, %330 : vector<2x16xf32>
    %c7_137 = arith.constant 7 : index
    %c0_138 = arith.constant 0 : index
    %c0_139 = arith.constant 0 : index
    %332 = vector.load %arg8[%c7_137, %c0_138, %c0_139] : memref<8x2x16xf32, #tpu.memory_space<vmem>>, vector<1x2x16xf32>
    %333 = vector.shape_cast %332 : vector<1x2x16xf32> to vector<2x16xf32>
    %334 = vector.shape_cast %331 : vector<2x16xf32> to vector<1x2x16xf32>
    tpu.vector_store %arg8[%c7_137, %c0_138, %c0_139], %334 {strides = array<i32>} : memref<8x2x16xf32, #tpu.memory_space<vmem>>, vector<1x2x16xf32>,
    return
  }
}

module attributes {stable_mosaic.version = 11 : i64} {
  func.func @kernel(%arg0: memref<256x32xf32, #tpu.memory_space<vmem>>, %arg1: memref<256x32xf32, #tpu.memory_space<vmem>>, %arg2: memref<256x1xf32, #tpu.memory_space<vmem>>, %arg3: memref<1x32xf32, #tpu.memory_space<vmem>>, %arg4: memref<1x32xf32, #tpu.memory_space<vmem>>, %arg5: memref<256x32xf32, #tpu.memory_space<vmem>>, %arg6: memref<32x64xf32, #tpu.memory_space<vmem>>, %arg7: memref<32x64xf32, #tpu.memory_space<vmem>>, %arg8: memref<1x64xf32, #tpu.memory_space<vmem>>, %arg9: memref<32x64xf32, #tpu.memory_space<vmem>>, %arg10: memref<1x64xf32, #tpu.memory_space<vmem>>, %arg11: memref<64x1xf32, #tpu.memory_space<vmem>>, %arg12: memref<1x1xf32, #tpu.memory_space<vmem>>, %arg13: memref<256x1xf32, #tpu.memory_space<vmem>>) attributes {dimension_semantics = [], scalar_prefetch = 0 : i64, scratch_operands = 0 : i64, tpu.core_type = #tpu.core_type<tc>} {
    %c0 = arith.constant 0 : index
    %c0_0 = arith.constant 0 : index
    %0 = vector.load %arg0[%c0, %c0_0] : memref<256x32xf32, #tpu.memory_space<vmem>>, vector<256x32xf32>
    %c0_1 = arith.constant 0 : index
    %c0_2 = arith.constant 0 : index
    %1 = vector.load %arg1[%c0_1, %c0_2] : memref<256x32xf32, #tpu.memory_space<vmem>>, vector<256x32xf32>
    %c0_3 = arith.constant 0 : index
    %c0_4 = arith.constant 0 : index
    %2 = vector.load %arg2[%c0_3, %c0_4] : memref<256x1xf32, #tpu.memory_space<vmem>>, vector<256x1xf32>
    %c0_5 = arith.constant 0 : index
    %c0_6 = arith.constant 0 : index
    %3 = vector.load %arg3[%c0_5, %c0_6] : memref<1x32xf32, #tpu.memory_space<vmem>>, vector<1x32xf32>
    %c0_7 = arith.constant 0 : index
    %c0_8 = arith.constant 0 : index
    %4 = vector.load %arg4[%c0_7, %c0_8] : memref<1x32xf32, #tpu.memory_space<vmem>>, vector<1x32xf32>
    %c0_9 = arith.constant 0 : index
    %c0_10 = arith.constant 0 : index
    %5 = vector.load %arg5[%c0_9, %c0_10] : memref<256x32xf32, #tpu.memory_space<vmem>>, vector<256x32xf32>
    %6 = vector.broadcast %2 : vector<256x1xf32> to vector<256x32xf32>
    %7 = vector.broadcast %3 : vector<1x32xf32> to vector<256x32xf32>
    %8 = arith.mulf %6, %7 : vector<256x32xf32>
    %9 = vector.broadcast %4 : vector<1x32xf32> to vector<256x32xf32>
    %10 = arith.addf %8, %9 : vector<256x32xf32>
    %11 = arith.addf %10, %0 : vector<256x32xf32>
    %12 = arith.addf %11, %1 : vector<256x32xf32>
    %c0_11 = arith.constant 0 : index
    %c0_12 = arith.constant 0 : index
    %13 = vector.load %arg6[%c0_11, %c0_12] : memref<32x64xf32, #tpu.memory_space<vmem>>, vector<32x64xf32>
    %c0_13 = arith.constant 0 : index
    %c0_14 = arith.constant 0 : index
    %14 = vector.load %arg7[%c0_13, %c0_14] : memref<32x64xf32, #tpu.memory_space<vmem>>, vector<32x64xf32>
    %c0_15 = arith.constant 0 : index
    %c0_16 = arith.constant 0 : index
    %15 = vector.load %arg8[%c0_15, %c0_16] : memref<1x64xf32, #tpu.memory_space<vmem>>, vector<1x64xf32>
    %c0_17 = arith.constant 0 : index
    %c0_18 = arith.constant 0 : index
    %16 = vector.load %arg9[%c0_17, %c0_18] : memref<32x64xf32, #tpu.memory_space<vmem>>, vector<32x64xf32>
    %c0_19 = arith.constant 0 : index
    %c0_20 = arith.constant 0 : index
    %17 = vector.load %arg10[%c0_19, %c0_20] : memref<1x64xf32, #tpu.memory_space<vmem>>, vector<1x64xf32>
    %c0_21 = arith.constant 0 : index
    %c0_22 = arith.constant 0 : index
    %18 = vector.load %arg11[%c0_21, %c0_22] : memref<64x1xf32, #tpu.memory_space<vmem>>, vector<64x1xf32>
    %c0_23 = arith.constant 0 : index
    %c0_24 = arith.constant 0 : index
    %19 = vector.load %arg12[%c0_23, %c0_24] : memref<1x1xf32, #tpu.memory_space<vmem>>, vector<1x1xf32>
    %cst = arith.constant 0.000000e+00 : f32
    %20 = vector.broadcast %cst : f32 to vector<32x32xf32>
    %21 = vector.extract_strided_slice %12 {offsets = [0, 0], sizes = [224, 32], strides = [1, 1]} : vector<256x32xf32> to vector<224x32xf32>
    %22 = tpu.concatenate %20, %21 in 0 : vector<32x32xf32>, vector<224x32xf32> -> vector<256x32xf32>
    %cst_25 = arith.constant dense<0.000000e+00> : vector<256x64xf32>
    %23 = tpu.matmul %22, %13, %cst_25 {dimension_numbers = #tpu.dot_dimension_numbers<[1], [0], [0], [1], [0, 0, 1, 1], [], []>} : vector<256x32xf32>, vector<32x64xf32>, vector<256x64xf32> -> vector<256x64xf32>
    %cst_26 = arith.constant dense<0.000000e+00> : vector<256x64xf32>
    %24 = tpu.matmul %12, %14, %cst_26 {dimension_numbers = #tpu.dot_dimension_numbers<[1], [0], [0], [1], [0, 0, 1, 1], [], []>} : vector<256x32xf32>, vector<32x64xf32>, vector<256x64xf32> -> vector<256x64xf32>
    %25 = arith.addf %23, %24 : vector<256x64xf32>
    %26 = vector.broadcast %15 : vector<1x64xf32> to vector<256x64xf32>
    %27 = arith.addf %25, %26 : vector<256x64xf32>
    %28 = vector.extract_strided_slice %27 {offsets = [0, 0], sizes = [256, 32], strides = [1, 1]} : vector<256x64xf32> to vector<256x32xf32>
    %29 = math.tanh %28 : vector<256x32xf32>
    %30 = vector.extract_strided_slice %27 {offsets = [0, 32], sizes = [256, 32], strides = [1, 1]} : vector<256x64xf32> to vector<256x32xf32>
    %31 = arith.negf %30 : vector<256x32xf32>
    %32 = math.exp %31 : vector<256x32xf32>
    %cst_27 = arith.constant 1.000000e+00 : f32
    %33 = vector.broadcast %cst_27 : f32 to vector<256x32xf32>
    %34 = arith.addf %33, %32 : vector<256x32xf32>
    %35 = arith.divf %33, %34 : vector<256x32xf32>
    %36 = arith.mulf %29, %35 : vector<256x32xf32>
    %37 = arith.addf %36, %5 : vector<256x32xf32>
    %cst_28 = arith.constant 0.000000e+00 : f32
    %38 = vector.broadcast %cst_28 : f32 to vector<256x32xf32>
    %39 = arith.maximumf %37, %38 : vector<256x32xf32>
    %cst_29 = arith.constant dense<0.000000e+00> : vector<256x64xf32>
    %40 = tpu.matmul %39, %16, %cst_29 {dimension_numbers = #tpu.dot_dimension_numbers<[1], [0], [0], [1], [0, 0, 1, 1], [], []>} : vector<256x32xf32>, vector<32x64xf32>, vector<256x64xf32> -> vector<256x64xf32>
    %41 = vector.broadcast %17 : vector<1x64xf32> to vector<256x64xf32>
    %42 = arith.addf %40, %41 : vector<256x64xf32>
    %cst_30 = arith.constant 0.000000e+00 : f32
    %43 = vector.broadcast %cst_30 : f32 to vector<256x64xf32>
    %44 = arith.maximumf %42, %43 : vector<256x64xf32>
    %cst_31 = arith.constant dense<0.000000e+00> : vector<256x1xf32>
    %45 = tpu.matmul %44, %18, %cst_31 {dimension_numbers = #tpu.dot_dimension_numbers<[1], [0], [0], [1], [0, 0, 1, 1], [], []>} : vector<256x64xf32>, vector<64x1xf32>, vector<256x1xf32> -> vector<256x1xf32>
    %46 = vector.broadcast %19 : vector<1x1xf32> to vector<256x1xf32>
    %47 = arith.addf %45, %46 : vector<256x1xf32>
    %c0_32 = arith.constant 0 : index
    %c0_33 = arith.constant 0 : index
    %48 = vector.load %arg13[%c0_32, %c0_33] : memref<256x1xf32, #tpu.memory_space<vmem>>, vector<256x1xf32>
    tpu.vector_store %arg13[%c0_32, %c0_33], %47 {strides = array<i32>} : memref<256x1xf32, #tpu.memory_space<vmem>>, vector<256x1xf32>,
    return
  }
}

</mosaic_0001>

<llo_original>
// kernel: slmgnn_forward.4
$region0: #{slmgnn_forward.4}
  #allocation0 [shape = 'u32[]', space=smem, size = 0x4, offset = 0x4, fixed_abs, tag = 'smem constant byte address 0x4 - core index']
  #allocation1 [shape = 'u32[144,128]{1,0:T(1,128)}', space=vmem, size = 0x12000, scoped, tag = 'internal scratch']
  %s0 = inlined_call_operand.vmem [shape: f32[256,4], index: 0, kind: input, shape index: {}]
  %s1 = inlined_call_operand.hbm [shape: f32[16,10], index: 1, kind: input, shape index: {}]
  %s2 = inlined_call_operand.hbm [shape: f32[10,16], index: 2, kind: input, shape index: {}]
  %s3 = inlined_call_operand.hbm [shape: f32[4,32], index: 3, kind: input, shape index: {}]
  %s4 = inlined_call_operand.hbm [shape: f32[1,32], index: 4, kind: input, shape index: {}]
  %s5 = inlined_call_operand.vmem [shape: f32[256,32], index: 5, kind: output, shape index: {0}]
  %s6 = inlined_call_operand.vmem [shape: f32[16,16], index: 6, kind: output, shape index: {1}]
  %7 = xla_tuple %s5, %s6
  %s8 = sld [smem:[#allocation0]]
  $region54: #{slmgnn_forward.4} parent=0
    _
  %s10 = ssub.s32 1, %s8
  %s11 = scalar_select 0, %s10, %s8
  $region1: #{slmgnn_forward.4} parent=0
    #allocation2 [shape = 'u8[8192]{0}', space=vmem, size = 0x2000, scoped, tag = 'input window, operand 1, single buffered']
    #allocation3 [shape = 's32[1]{0}', space=sflag, size = 0x4, scoped, tag = 'scoped memory for slmgnn_forward.4']
    #allocation4 [shape = 'u8[8192]{0}', space=vmem, size = 0x2000, scoped, tag = 'input window, operand 2, single buffered']
    #allocation5 [shape = 's32[1]{0}', space=sflag, size = 0x4, scoped, tag = 'scoped memory for slmgnn_forward.4']
    #allocation6 [shape = 'u8[2048]{0}', space=vmem, size = 0x800, scoped, tag = 'input window, operand 3, single buffered']
    #allocation7 [shape = 'u8[512]{0}', space=vmem, size = 0x400, scoped, tag = 'input window, operand 4, single buffered']
    #allocation8 [shape = 's32[1]{0}', space=sflag, size = 0x4, scoped, tag = 'scoped memory for slmgnn_forward.4']
    %12 = vsyncpa [#allocation3], 0
    %13 = vsyncpa [#allocation5], 0
    %14 = vsyncpa [#allocation8], 0
    // Predicated region
    $region2: #{slmgnn_forward.4} parent=1 // pred_check
      _
    $region3: #{slmgnn_forward.4} parent=1 // pred_check_branch
      %16 = sbr.rel (0) target = $region5
    $region4: #{slmgnn_forward.4} parent=1 // pred_region
      _
    $region5: #{slmgnn_forward.4} parent=1 // pred_fallthru
      _
    // Predicated region
    $region6: #{slmgnn_forward.4} parent=1 // pred_check
      _
    $region7: #{slmgnn_forward.4} parent=1 // pred_check_branch
      %18 = sbr.rel (0) target = $region9
    $region8: #{slmgnn_forward.4} parent=1 // pred_region
      %s20 = ssub.s32 256, 256
      %21 = vsyncadd [#allocation3], %s20
      %s22 = sshll.u32 [#allocation2], 4
      %s23 = int_to_ptr.vmem [resolvable:$true] %s22
      %28 = dma.hbm_to_vmem [thread:$0]  %s1, 256, %s23, [#allocation3], 128, 128, 8
    $region9: #{slmgnn_forward.4} parent=1 // pred_fallthru
      _
    // Predicated region
    $region10: #{slmgnn_forward.4} parent=1 // pred_check
      _
    $region11: #{slmgnn_forward.4} parent=1 // pred_check_branch
      %30 = sbr.rel (0) target = $region13
    $region12: #{slmgnn_forward.4} parent=1 // pred_region
      %s32 = ssub.s32 256, 256
      %33 = vsyncadd [#allocation5], %s32
      %s34 = sshll.u32 [#allocation4], 4
      %s35 = int_to_ptr.vmem [resolvable:$true] %s34
      %40 = dma.hbm_to_vmem [thread:$0]  %s2, 256, %s35, [#allocation5], 128, 128, 8
    $region13: #{slmgnn_forward.4} parent=1 // pred_fallthru
      _
    // Predicated region
    $region14: #{slmgnn_forward.4} parent=1 // pred_check
      _
    $region15: #{slmgnn_forward.4} parent=1 // pred_check_branch
      %42 = sbr.rel (0) target = $region17
    $region16: #{slmgnn_forward.4} parent=1 // pred_region
      %s44 = ssub.s32 64, 64
      %45 = vsyncadd [#allocation5], %s44
      %s47 = sshll.u32 [#allocation6], 4
      %s48 = int_to_ptr.vmem [resolvable:$true] %s47
      %50 = dma.hbm_to_vmem [thread:$0]  %s3, 64, %s48, [#allocation5]
    $region17: #{slmgnn_forward.4} parent=1 // pred_fallthru
      _
    // Predicated region
    $region18: #{slmgnn_forward.4} parent=1 // pred_check
      _
    $region19: #{slmgnn_forward.4} parent=1 // pred_check_branch
      %52 = sbr.rel (0) target = $region21
    $region20: #{slmgnn_forward.4} parent=1 // pred_region
      %s54 = ssub.s32 16, 16
      %55 = vsyncadd [#allocation8], %s54
      %s57 = sshll.u32 [#allocation7], 4
      %s58 = int_to_ptr.vmem [resolvable:$true] %s57
      %60 = dma.hbm_to_vmem [thread:$0]  %s4, 16, %s58, [#allocation8]
    $region21: #{slmgnn_forward.4} parent=1 // pred_fallthru
      _
    // Predicated region
    $region22: #{slmgnn_forward.4} parent=1 // pred_check
      _
    $region23: #{slmgnn_forward.4} parent=1 // pred_check_branch
      %62 = sbr.rel (0) target = $region25
    $region24: #{slmgnn_forward.4} parent=1 // pred_region
      %63 = dma.done [#allocation3], 256
    $region25: #{slmgnn_forward.4} parent=1 // pred_fallthru
      _
    // Predicated region
    $region26: #{slmgnn_forward.4} parent=1 // pred_check
      _
    $region27: #{slmgnn_forward.4} parent=1 // pred_check_branch
      %65 = sbr.rel (0) target = $region29
    $region28: #{slmgnn_forward.4} parent=1 // pred_region
      %66 = dma.done [#allocation5], 256
    $region29: #{slmgnn_forward.4} parent=1 // pred_fallthru
      _
    // Predicated region
    $region30: #{slmgnn_forward.4} parent=1 // pred_check
      _
    $region31: #{slmgnn_forward.4} parent=1 // pred_check_branch
      %68 = sbr.rel (0) target = $region33
    $region32: #{slmgnn_forward.4} parent=1 // pred_region
      %69 = dma.done [#allocation5], 64
    $region33: #{slmgnn_forward.4} parent=1 // pred_fallthru
      _
    // Predicated region
    $region34: #{slmgnn_forward.4} parent=1 // pred_check
      _
    $region35: #{slmgnn_forward.4} parent=1 // pred_check_branch
      %71 = sbr.rel (0) target = $region37
    $region36: #{slmgnn_forward.4} parent=1 // pred_region
      %72 = dma.done [#allocation8], 16
    $region37: #{slmgnn_forward.4} parent=1 // pred_fallthru
      _
    %v73 = vld [vmem:[#allocation2] sm:$0xff]
    %v74 = vld [vmem:[#allocation2 + $0x8] sm:$0xff]
    %v75 = vld [vmem:[#allocation4] sm:$0xff]
    %v76 = vld [vmem:[#allocation4 + $0x8] sm:$0x3]
    %vm77 = vcmask 80896
    %v79 = vsel %vm77, %v73, 0
    %v82 = vsel %vm77, %v74, 0
    %vm84 = vcmask 1041408
    %v86 = vsel %vm84, %v76, 0
    %88 = vmatprep.subr.mxu0 0.0
    %89 = vmatpush1.msra.mxu0 0.0
    %90 = vmatprep.subr.mxu0 0.0
    %91 = vmatpush1.msra.mxu0 0.0
    %92 = vmatprep.subr.mxu0 0.0
    %93 = vmatpush1.msra.mxu0 0.0
    %94 = vmatprep.subr.mxu0 0.0
    %95 = vmatpush1.msra.mxu0 0.0
    %96 = vmatprep.subr.mxu0 0.0
    %97 = vmatpush1.msra.mxu0 0.0
    %98 = vmatprep.subr.mxu0 0.0
    %99 = vmatpush1.msra.mxu0 0.0
    %100 = vmatprep.subr.mxu0 0.0
    %101 = vmatpush1.msra.mxu0 0.0
    %102 = vmatprep.subr.mxu0 0.0
    %103 = vmatpush1.msra.mxu0 0.0
    %104 = vmatprep.subr.mxu0 0.0
    %105 = vmatpush1.msra.mxu0 0.0
    %106 = vmatprep.subr.mxu0 0.0
    %107 = vmatpush1.msra.mxu0 0.0
    %108 = vmatprep.subr.mxu0 0.0
    %109 = vmatpush1.msra.mxu0 0.0
    %110 = vmatprep.subr.mxu0 0.0
    %111 = vmatpush1.msra.mxu0 0.0
    %112 = vmatprep.subr.mxu0 0.0
    %113 = vmatpush1.msra.mxu0 0.0
    %114 = vmatprep.subr.mxu0 0.0
    %115 = vmatpush1.msra.mxu0 0.0
    %116 = vmatprep.subr.mxu0 0.0
    %117 = vmatpush1.msra.mxu0 %v86
    %118 = vmatprep.subr.mxu0 0.0
    %119 = vmatpush1.msra.mxu0 %v75
    %120 = vmatprep.subr.mxu0 0.0
    %121 = vmatpush2.msra.mxu0 0.0
    %122 = vmatprep.subr.mxu0 0.0
    %123 = vmatpush2.msra.mxu0 0.0
    %124 = vmatprep.subr.mxu0 0.0
    %125 = vmatpush2.msra.mxu0 0.0
    %126 = vmatprep.subr.mxu0 0.0
    %127 = vmatpush2.msra.mxu0 0.0
    %128 = vmatprep.subr.mxu0 0.0
    %129 = vmatpush2.msra.mxu0 0.0
    %130 = vmatprep.subr.mxu0 0.0
    %131 = vmatpush2.msra.mxu0 0.0
    %132 = vmatprep.subr.mxu0 0.0
    %133 = vmatpush2.msra.mxu0 0.0
    %134 = vmatprep.subr.mxu0 0.0
    %135 = vmatpush2.msra.mxu0 0.0
    %136 = vmatprep.subr.mxu0 0.0
    %137 = vmatpush2.msra.mxu0 0.0
    %138 = vmatprep.subr.mxu0 0.0
    %139 = vmatpush2.msra.mxu0 0.0
    %140 = vmatprep.subr.mxu0 0.0
    %141 = vmatpush2.msra.mxu0 0.0
    %142 = vmatprep.subr.mxu0 0.0
    %143 = vmatpush2.msra.mxu0 0.0
    %144 = vmatprep.subr.mxu0 0.0
    %145 = vmatpush2.msra.mxu0 0.0
    %146 = vmatprep.subr.mxu0 0.0
    %147 = vmatpush2.msra.mxu0 0.0
    %148 = vmatprep.subr.mxu0 0.0
    %149 = vmatpush2.msra.mxu0 0.0
    %150 = vmatprep.subr.mxu0 0.0
    %151 = vmatpush2.msra.mxu0 0.0
    %152 = vmatprep.mubr.f32.mxu0 0.0
    %153 = vmatmul.mubr.f32.gmra.mxu0 %v79
    %v154 = vpop.f32.mrf.mxu0
    %v155 = vadd.f32 0.0, %v154
    %v156 = vpop.f32.mrf.mxu0
    %157 = vmatprep.mubr.f32.mxu0 0.0
    %158 = vmatmul.mubr.f32.gmra.mxu0 %v82
    %v159 = vpop.f32.mrf.mxu0
    %v160 = vadd.f32 0.0, %v159
    %v161 = vpop.f32.mrf.mxu0
    %162 = vdwg.mxu0
    %v163 = vmax.f32 %v155, 0.0
    %v164 = vmax.f32 %v160, 0.0
    %vm165 = vcmask 130048
    %v166 = vsel %vm165, %v163, -inf
    %167 = vmax.xlane.f32.xlu0 %v166
    %v168 = vpop.xlane.xlu0 %167
    %v169 = vsel %vm165, %v164, -inf
    %170 = vmax.xlane.f32.xlu0 %v169
    %v171 = vpop.xlane.xlu0 %170
    %v172 = vsub.f32 %v163, %v168
    %v173 = vsub.f32 %v164, %v171
    %v174 = vmul.f32 %v172, 1.442695
    %v175 = vpow.pop %v174
    %v176 = vmul.f32 %v173, 1.442695
    %v177 = vpow.pop %v176
    %v178 = vsel %vm165, %v175, 0.0
    %179 = vadd.xlane.f32.xlu0 %v178
    %v180 = vpop.xlane.xlu0 %179
    %v181 = vsel %vm165, %v177, 0.0
    %182 = vadd.xlane.f32.xlu0 %v181
    %v183 = vpop.xlane.xlu0 %182
    %v184 = vrcp.pop %v180
    %v185 = vmul.f32 %v175, %v184
    %v186 = vrcp.pop %v183
    %v187 = vmul.f32 %v177, %v186
    %188 = vst.msk [vmem:[%s6] sm:$0xff] %vm165, %v185
    %189 = vst.msk [vmem:[%s6 + $0x8] sm:$0xff] %vm165, %v187
    %v190 = vld [vmem:[%s0] sm:$0xff]
    %v191 = vld [vmem:[%s0 + $0x8] sm:$0xff]
    %v192 = vld [vmem:[%s0 + $0x10] sm:$0xff]
    %v193 = vld [vmem:[%s0 + $0x18] sm:$0xff]
    %v194 = vld [vmem:[%s0 + $0x20] sm:$0xff]
    %v195 = vld [vmem:[%s0 + $0x28] sm:$0xff]
    %v196 = vld [vmem:[%s0 + $0x30] sm:$0xff]
    %v197 = vld [vmem:[%s0 + $0x38] sm:$0xff]
    %v198 = vld [vmem:[%s0 + $0x40] sm:$0xff]
    %v199 = vld [vmem:[%s0 + $0x48] sm:$0xff]
    %v200 = vld [vmem:[%s0 + $0x50] sm:$0xff]
    %v201 = vld [vmem:[%s0 + $0x58] sm:$0xff]
    %v202 = vld [vmem:[%s0 + $0x60] sm:$0xff]
    %v203 = vld [vmem:[%s0 + $0x68] sm:$0xff]
    %v204 = vld [vmem:[%s0 + $0x70] sm:$0xff]
    %v205 = vld [vmem:[%s0 + $0x78] sm:$0xff]
    %v206 = vld [vmem:[%s0 + $0x80] sm:$0xff]
    %v207 = vld [vmem:[%s0 + $0x88] sm:$0xff]
    %v208 = vld [vmem:[%s0 + $0x90] sm:$0xff]
    %v209 = vld [vmem:[%s0 + $0x98] sm:$0xff]
    %v210 = vld [vmem:[%s0 + $0xa0] sm:$0xff]
    %v211 = vld [vmem:[%s0 + $0xa8] sm:$0xff]
    %v212 = vld [vmem:[%s0 + $0xb0] sm:$0xff]
    %v213 = vld [vmem:[%s0 + $0xb8] sm:$0xff]
    %v214 = vld [vmem:[%s0 + $0xc0] sm:$0xff]
    %v215 = vld [vmem:[%s0 + $0xc8] sm:$0xff]
    %v216 = vld [vmem:[%s0 + $0xd0] sm:$0xff]
    %v217 = vld [vmem:[%s0 + $0xd8] sm:$0xff]
    %v218 = vld [vmem:[%s0 + $0xe0] sm:$0xff]
    %v219 = vld [vmem:[%s0 + $0xe8] sm:$0xff]
    %v220 = vld [vmem:[%s0 + $0xf0] sm:$0xff]
    %v221 = vld [vmem:[%s0 + $0xf8] sm:$0xff]
    %v222 = vld [vmem:[#allocation6] sm:$0xf]
    %v223 = vld [vmem:[#allocation7] sm:$0x1]
    %v225 = vlaneseq
    %v226 = vshrl.u32 %v225, 7
    %v227 = vsub.s32 0, %v226
    %v228 = vrot.slane %v223, %v227
    %vm230 = vcmask 31744
    %v232 = vsel %vm230, %v190, 0
    %v235 = vsel %vm230, %v191, 0
    %v238 = vsel %vm230, %v192, 0
    %v241 = vsel %vm230, %v193, 0
    %v244 = vsel %vm230, %v194, 0
    %v247 = vsel %vm230, %v195, 0
    %v250 = vsel %vm230, %v196, 0
    %v253 = vsel %vm230, %v197, 0
    %v256 = vsel %vm230, %v198, 0
    %v259 = vsel %vm230, %v199, 0
    %v262 = vsel %vm230, %v200, 0
    %v265 = vsel %vm230, %v201, 0
    %v268 = vsel %vm230, %v202, 0
    %v271 = vsel %vm230, %v203, 0
    %v274 = vsel %vm230, %v204, 0
    %v277 = vsel %vm230, %v205, 0
    %v280 = vsel %vm230, %v206, 0
    %v283 = vsel %vm230, %v207, 0
    %v286 = vsel %vm230, %v208, 0
    %v289 = vsel %vm230, %v209, 0
    %v292 = vsel %vm230, %v210, 0
    %v295 = vsel %vm230, %v211, 0
    %v298 = vsel %vm230, %v212, 0
    %v301 = vsel %vm230, %v213, 0
    %v304 = vsel %vm230, %v214, 0
    %v307 = vsel %vm230, %v215, 0
    %v310 = vsel %vm230, %v216, 0
    %v313 = vsel %vm230, %v217, 0
    %v316 = vsel %vm230, %v218, 0
    %v319 = vsel %vm230, %v219, 0
    %v322 = vsel %vm230, %v220, 0
    %v325 = vsel %vm230, %v221, 0
    %vm327 = vcmask 1043456
    %v329 = vsel %vm327, %v222, 0
    %331 = vmatprep.subr.mxu0 0.0
    %332 = vmatpush1.msra.mxu0 0.0
    %333 = vmatprep.subr.mxu0 0.0
    %334 = vmatpush1.msra.mxu0 0.0
    %335 = vmatprep.subr.mxu0 0.0
    %336 = vmatpush1.msra.mxu0 0.0
    %337 = vmatprep.subr.mxu0 0.0
    %338 = vmatpush1.msra.mxu0 0.0
    %339 = vmatprep.subr.mxu0 0.0
    %340 = vmatpush1.msra.mxu0 0.0
    %341 = vmatprep.subr.mxu0 0.0
    %342 = vmatpush1.msra.mxu0 0.0
    %343 = vmatprep.subr.mxu0 0.0
    %344 = vmatpush1.msra.mxu0 0.0
    %345 = vmatprep.subr.mxu0 0.0
    %346 = vmatpush1.msra.mxu0 0.0
    %347 = vmatprep.subr.mxu0 0.0
    %348 = vmatpush1.msra.mxu0 0.0
    %349 = vmatprep.subr.mxu0 0.0
    %350 = vmatpush1.msra.mxu0 0.0
    %351 = vmatprep.subr.mxu0 0.0
    %352 = vmatpush1.msra.mxu0 0.0
    %353 = vmatprep.subr.mxu0 0.0
    %354 = vmatpush1.msra.mxu0 0.0
    %355 = vmatprep.subr.mxu0 0.0
    %356 = vmatpush1.msra.mxu0 0.0
    %357 = vmatprep.subr.mxu0 0.0
    %358 = vmatpush1.msra.mxu0 0.0
    %359 = vmatprep.subr.mxu0 0.0
    %360 = vmatpush1.msra.mxu0 0.0
    %361 = vmatprep.subr.mxu0 0.0
    %362 = vmatpush1.msra.mxu0 %v329
    %363 = vmatprep.subr.mxu0 0.0
    %364 = vmatpush2.msra.mxu0 0.0
    %365 = vmatprep.subr.mxu0 0.0
    %366 = vmatpush2.msra.mxu0 0.0
    %367 = vmatprep.subr.mxu0 0.0
    %368 = vmatpush2.msra.mxu0 0.0
    %369 = vmatprep.subr.mxu0 0.0
    %370 = vmatpush2.msra.mxu0 0.0
    %371 = vmatprep.subr.mxu0 0.0
    %372 = vmatpush2.msra.mxu0 0.0
    %373 = vmatprep.subr.mxu0 0.0
    %374 = vmatpush2.msra.mxu0 0.0
    %375 = vmatprep.subr.mxu0 0.0
    %376 = vmatpush2.msra.mxu0 0.0
    %377 = vmatprep.subr.mxu0 0.0
    %378 = vmatpush2.msra.mxu0 0.0
    %379 = vmatprep.subr.mxu0 0.0
    %380 = vmatpush2.msra.mxu0 0.0
    %381 = vmatprep.subr.mxu0 0.0
    %382 = vmatpush2.msra.mxu0 0.0
    %383 = vmatprep.subr.mxu0 0.0
    %384 = vmatpush2.msra.mxu0 0.0
    %385 = vmatprep.subr.mxu0 0.0
    %386 = vmatpush2.msra.mxu0 0.0
    %387 = vmatprep.subr.mxu0 0.0
    %388 = vmatpush2.msra.mxu0 0.0
    %389 = vmatprep.subr.mxu0 0.0
    %390 = vmatpush2.msra.mxu0 0.0
    %391 = vmatprep.subr.mxu0 0.0
    %392 = vmatpush2.msra.mxu0 0.0
    %393 = vmatprep.subr.mxu0 0.0
    %394 = vmatpush2.msra.mxu0 0.0
    %395 = vmatprep.mubr.f32.mxu0 0.0
    %396 = vmatmul.mubr.f32.gmra.mxu0 %v232
    %v397 = vpop.f32.mrf.mxu0
    %v398 = vadd.f32 %v228, %v397
    %v399 = vpop.f32.mrf.mxu0
    %400 = vmatprep.mubr.f32.mxu0 0.0
    %401 = vmatmul.mubr.f32.gmra.mxu0 %v235
    %v402 = vpop.f32.mrf.mxu0
    %v403 = vadd.f32 %v228, %v402
    %v404 = vpop.f32.mrf.mxu0
    %405 = vmatprep.mubr.f32.mxu0 0.0
    %406 = vmatmul.mubr.f32.gmra.mxu0 %v238
    %v407 = vpop.f32.mrf.mxu0
    %v408 = vadd.f32 %v228, %v407
    %v409 = vpop.f32.mrf.mxu0
    %410 = vmatprep.mubr.f32.mxu0 0.0
    %411 = vmatmul.mubr.f32.gmra.mxu0 %v241
    %v412 = vpop.f32.mrf.mxu0
    %v413 = vadd.f32 %v228, %v412
    %v414 = vpop.f32.mrf.mxu0
    %415 = vmatprep.mubr.f32.mxu0 0.0
    %416 = vmatmul.mubr.f32.gmra.mxu0 %v244
    %v417 = vpop.f32.mrf.mxu0
    %v418 = vadd.f32 %v228, %v417
    %v419 = vpop.f32.mrf.mxu0
    %420 = vmatprep.mubr.f32.mxu0 0.0
    %421 = vmatmul.mubr.f32.gmra.mxu0 %v247
    %v422 = vpop.f32.mrf.mxu0
    %v423 = vadd.f32 %v228, %v422
    %v424 = vpop.f32.mrf.mxu0
    %425 = vmatprep.mubr.f32.mxu0 0.0
    %426 = vmatmul.mubr.f32.gmra.mxu0 %v250
    %v427 = vpop.f32.mrf.mxu0
    %v428 = vadd.f32 %v228, %v427
    %v429 = vpop.f32.mrf.mxu0
    %430 = vmatprep.mubr.f32.mxu0 0.0
    %431 = vmatmul.mubr.f32.gmra.mxu0 %v253
    %v432 = vpop.f32.mrf.mxu0
    %v433 = vadd.f32 %v228, %v432
    %v434 = vpop.f32.mrf.mxu0
    %435 = vmatprep.mubr.f32.mxu0 0.0
    %436 = vmatmul.mubr.f32.gmra.mxu0 %v256
    %v437 = vpop.f32.mrf.mxu0
    %v438 = vadd.f32 %v228, %v437
    %v439 = vpop.f32.mrf.mxu0
    %440 = vmatprep.mubr.f32.mxu0 0.0
    %441 = vmatmul.mubr.f32.gmra.mxu0 %v259
    %v442 = vpop.f32.mrf.mxu0
    %v443 = vadd.f32 %v228, %v442
    %v444 = vpop.f32.mrf.mxu0
    %445 = vmatprep.mubr.f32.mxu0 0.0
    %446 = vmatmul.mubr.f32.gmra.mxu0 %v262
    %v447 = vpop.f32.mrf.mxu0
    %v448 = vadd.f32 %v228, %v447
    %v449 = vpop.f32.mrf.mxu0
    %450 = vmatprep.mubr.f32.mxu0 0.0
    %451 = vmatmul.mubr.f32.gmra.mxu0 %v265
    %v452 = vpop.f32.mrf.mxu0
    %v453 = vadd.f32 %v228, %v452
    %v454 = vpop.f32.mrf.mxu0
    %455 = vmatprep.mubr.f32.mxu0 0.0
    %456 = vmatmul.mubr.f32.gmra.mxu0 %v268
    %v457 = vpop.f32.mrf.mxu0
    %v458 = vadd.f32 %v228, %v457
    %v459 = vpop.f32.mrf.mxu0
    %460 = vmatprep.mubr.f32.mxu0 0.0
    %461 = vmatmul.mubr.f32.gmra.mxu0 %v271
    %v462 = vpop.f32.mrf.mxu0
    %v463 = vadd.f32 %v228, %v462
    %v464 = vpop.f32.mrf.mxu0
    %465 = vmatprep.mubr.f32.mxu0 0.0
    %466 = vmatmul.mubr.f32.gmra.mxu0 %v274
    %v467 = vpop.f32.mrf.mxu0
    %v468 = vadd.f32 %v228, %v467
    %v469 = vpop.f32.mrf.mxu0
    %470 = vmatprep.mubr.f32.mxu0 0.0
    %471 = vmatmul.mubr.f32.gmra.mxu0 %v277
    %v472 = vpop.f32.mrf.mxu0
    %v473 = vadd.f32 %v228, %v472
    %v474 = vpop.f32.mrf.mxu0
    %475 = vmatprep.mubr.f32.mxu0 0.0
    %476 = vmatmul.mubr.f32.gmra.mxu0 %v280
    %v477 = vpop.f32.mrf.mxu0
    %v478 = vadd.f32 %v228, %v477
    %v479 = vpop.f32.mrf.mxu0
    %480 = vmatprep.mubr.f32.mxu0 0.0
    %481 = vmatmul.mubr.f32.gmra.mxu0 %v283
    %v482 = vpop.f32.mrf.mxu0
    %v483 = vadd.f32 %v228, %v482
    %v484 = vpop.f32.mrf.mxu0
    %485 = vmatprep.mubr.f32.mxu0 0.0
    %486 = vmatmul.mubr.f32.gmra.mxu0 %v286
    %v487 = vpop.f32.mrf.mxu0
    %v488 = vadd.f32 %v228, %v487
    %v489 = vpop.f32.mrf.mxu0
    %490 = vmatprep.mubr.f32.mxu0 0.0
    %491 = vmatmul.mubr.f32.gmra.mxu0 %v289
    %v492 = vpop.f32.mrf.mxu0
    %v493 = vadd.f32 %v228, %v492
    %v494 = vpop.f32.mrf.mxu0
    %495 = vmatprep.mubr.f32.mxu0 0.0
    %496 = vmatmul.mubr.f32.gmra.mxu0 %v292
    %v497 = vpop.f32.mrf.mxu0
    %v498 = vadd.f32 %v228, %v497
    %v499 = vpop.f32.mrf.mxu0
    %500 = vmatprep.mubr.f32.mxu0 0.0
    %501 = vmatmul.mubr.f32.gmra.mxu0 %v295
    %v502 = vpop.f32.mrf.mxu0
    %v503 = vadd.f32 %v228, %v502
    %v504 = vpop.f32.mrf.mxu0
    %505 = vmatprep.mubr.f32.mxu0 0.0
    %506 = vmatmul.mubr.f32.gmra.mxu0 %v298
    %v507 = vpop.f32.mrf.mxu0
    %v508 = vadd.f32 %v228, %v507
    %v509 = vpop.f32.mrf.mxu0
    %510 = vmatprep.mubr.f32.mxu0 0.0
    %511 = vmatmul.mubr.f32.gmra.mxu0 %v301
    %v512 = vpop.f32.mrf.mxu0
    %v513 = vadd.f32 %v228, %v512
    %v514 = vpop.f32.mrf.mxu0
    %515 = vmatprep.mubr.f32.mxu0 0.0
    %516 = vmatmul.mubr.f32.gmra.mxu0 %v304
    %v517 = vpop.f32.mrf.mxu0
    %v518 = vadd.f32 %v228, %v517
    %v519 = vpop.f32.mrf.mxu0
    %520 = vmatprep.mubr.f32.mxu0 0.0
    %521 = vmatmul.mubr.f32.gmra.mxu0 %v307
    %v522 = vpop.f32.mrf.mxu0
    %v523 = vadd.f32 %v228, %v522
    %v524 = vpop.f32.mrf.mxu0
    %525 = vmatprep.mubr.f32.mxu0 0.0
    %526 = vmatmul.mubr.f32.gmra.mxu0 %v310
    %v527 = vpop.f32.mrf.mxu0
    %v528 = vadd.f32 %v228, %v527
    %v529 = vpop.f32.mrf.mxu0
    %530 = vmatprep.mubr.f32.mxu0 0.0
    %531 = vmatmul.mubr.f32.gmra.mxu0 %v313
    %v532 = vpop.f32.mrf.mxu0
    %v533 = vadd.f32 %v228, %v532
    %v534 = vpop.f32.mrf.mxu0
    %535 = vmatprep.mubr.f32.mxu0 0.0
    %536 = vmatmul.mubr.f32.gmra.mxu0 %v316
    %v537 = vpop.f32.mrf.mxu0
    %v538 = vadd.f32 %v228, %v537
    %v539 = vpop.f32.mrf.mxu0
    %540 = vmatprep.mubr.f32.mxu0 0.0
    %541 = vmatmul.mubr.f32.gmra.mxu0 %v319
    %v542 = vpop.f32.mrf.mxu0
    %v543 = vadd.f32 %v228, %v542
    %v544 = vpop.f32.mrf.mxu0
    %545 = vmatprep.mubr.f32.mxu0 0.0
    %546 = vmatmul.mubr.f32.gmra.mxu0 %v322
    %v547 = vpop.f32.mrf.mxu0
    %v548 = vadd.f32 %v228, %v547
    %v549 = vpop.f32.mrf.mxu0
    %550 = vmatprep.mubr.f32.mxu0 0.0
    %551 = vmatmul.mubr.f32.gmra.mxu0 %v325
    %v552 = vpop.f32.mrf.mxu0
    %v553 = vadd.f32 %v228, %v552
    %v554 = vpop.f32.mrf.mxu0
    %555 = vdwg.mxu0
    %vm556 = vcmask 261120
    %557 = vst.msk [vmem:[%s5] sm:$0xff] %vm556, %v398
    %558 = vst.msk [vmem:[%s5 + $0x8] sm:$0xff] %vm556, %v403
    %559 = vst.msk [vmem:[%s5 + $0x10] sm:$0xff] %vm556, %v408
    %560 = vst.msk [vmem:[%s5 + $0x18] sm:$0xff] %vm556, %v413
    %561 = vst.msk [vmem:[%s5 + $0x20] sm:$0xff] %vm556, %v418
    %562 = vst.msk [vmem:[%s5 + $0x28] sm:$0xff] %vm556, %v423
    %563 = vst.msk [vmem:[%s5 + $0x30] sm:$0xff] %vm556, %v428
    %564 = vst.msk [vmem:[%s5 + $0x38] sm:$0xff] %vm556, %v433
    %565 = vst.msk [vmem:[%s5 + $0x40] sm:$0xff] %vm556, %v438
    %566 = vst.msk [vmem:[%s5 + $0x48] sm:$0xff] %vm556, %v443
    %567 = vst.msk [vmem:[%s5 + $0x50] sm:$0xff] %vm556, %v448
    %568 = vst.msk [vmem:[%s5 + $0x58] sm:$0xff] %vm556, %v453
    %569 = vst.msk [vmem:[%s5 + $0x60] sm:$0xff] %vm556, %v458
    %570 = vst.msk [vmem:[%s5 + $0x68] sm:$0xff] %vm556, %v463
    %571 = vst.msk [vmem:[%s5 + $0x70] sm:$0xff] %vm556, %v468
    %572 = vst.msk [vmem:[%s5 + $0x78] sm:$0xff] %vm556, %v473
    %573 = vst.msk [vmem:[%s5 + $0x80] sm:$0xff] %vm556, %v478
    %574 = vst.msk [vmem:[%s5 + $0x88] sm:$0xff] %vm556, %v483
    %575 = vst.msk [vmem:[%s5 + $0x90] sm:$0xff] %vm556, %v488
    %576 = vst.msk [vmem:[%s5 + $0x98] sm:$0xff] %vm556, %v493
    %577 = vst.msk [vmem:[%s5 + $0xa0] sm:$0xff] %vm556, %v498
    %578 = vst.msk [vmem:[%s5 + $0xa8] sm:$0xff] %vm556, %v503
    %579 = vst.msk [vmem:[%s5 + $0xb0] sm:$0xff] %vm556, %v508
    %580 = vst.msk [vmem:[%s5 + $0xb8] sm:$0xff] %vm556, %v513
    %581 = vst.msk [vmem:[%s5 + $0xc0] sm:$0xff] %vm556, %v518
    %582 = vst.msk [vmem:[%s5 + $0xc8] sm:$0xff] %vm556, %v523
    %583 = vst.msk [vmem:[%s5 + $0xd0] sm:$0xff] %vm556, %v528
    %584 = vst.msk [vmem:[%s5 + $0xd8] sm:$0xff] %vm556, %v533
    %585 = vst.msk [vmem:[%s5 + $0xe0] sm:$0xff] %vm556, %v538
    %586 = vst.msk [vmem:[%s5 + $0xe8] sm:$0xff] %vm556, %v543
    %587 = vst.msk [vmem:[%s5 + $0xf0] sm:$0xff] %vm556, %v548
    %588 = vst.msk [vmem:[%s5 + $0xf8] sm:$0xff] %vm556, %v553
    // Predicated region
    $region38: #{slmgnn_forward.4} parent=1 // pred_check
      _
    $region39: #{slmgnn_forward.4} parent=1 // pred_check_branch
      %590 = sbr.rel (0) target = $region41
    $region40: #{slmgnn_forward.4} parent=1 // pred_region
      _
    $region41: #{slmgnn_forward.4} parent=1 // pred_fallthru
      _
    // Predicated region
    $region42: #{slmgnn_forward.4} parent=1 // pred_check
      _
    $region43: #{slmgnn_forward.4} parent=1 // pred_check_branch
      %592 = sbr.rel (0) target = $region45
    $region44: #{slmgnn_forward.4} parent=1 // pred_region
      _
    $region45: #{slmgnn_forward.4} parent=1 // pred_fallthru
      _
    // Predicated region
    $region46: #{slmgnn_forward.4} parent=1 // pred_check
      _
    $region47: #{slmgnn_forward.4} parent=1 // pred_check_branch
      %594 = sbr.rel (0) target = $region49
    $region48: #{slmgnn_forward.4} parent=1 // pred_region
      _
    $region49: #{slmgnn_forward.4} parent=1 // pred_fallthru
      _
    // Predicated region
    $region50: #{slmgnn_forward.4} parent=1 // pred_check
      _
    $region51: #{slmgnn_forward.4} parent=1 // pred_check_branch
      %596 = sbr.rel (0) target = $region53
    $region52: #{slmgnn_forward.4} parent=1 // pred_region
      _
    $region53: #{slmgnn_forward.4} parent=1 // pred_fallthru
      _
    %597 = vsyncpa [#allocation3], 1
    %598 = vsyncpa [#allocation5], 1
    %599 = vsyncpa [#allocation8], 1

// kernel: slmgnn_forward.5
$region0: #{slmgnn_forward.5}
  #allocation0 [shape = 'u32[]', space=smem, size = 0x4, offset = 0x4, fixed_abs, tag = 'smem constant byte address 0x4 - core index']
  #allocation1 [shape = 'u32[144,128]{1,0:T(1,128)}', space=vmem, size = 0x12000, scoped, tag = 'internal scratch']
  #allocation2 [shape = 'f32[1,1]{1,0:T(1,128)S(1)}', space=vmem, size = 0x200, scoped, tag = 'scoped memory for slmgnn_forward.5']
  %s0 = inlined_call_operand.vmem [shape: f32[256,32], index: 0, kind: input, shape index: {}]
  %s1 = inlined_call_operand.vmem [shape: f32[32,64], index: 1, kind: input, shape index: {}]
  %s2 = inlined_call_operand.vmem [shape: f32[32,64], index: 2, kind: input, shape index: {}]
  %s3 = inlined_call_operand.vmem [shape: f32[1,64], index: 3, kind: input, shape index: {}]
  %s4 = inlined_call_operand.vmem [shape: f32[256,256], index: 4, kind: input, shape index: {}]
  %s5 = inlined_call_operand.vmem [shape: f32[32,32], index: 5, kind: input, shape index: {}]
  %s6 = inlined_call_operand.vmem [shape: f32[32,32], index: 6, kind: input, shape index: {}]
  %s7 = inlined_call_operand.vmem [shape: f32[32,32], index: 7, kind: input, shape index: {}]
  %s8 = inlined_call_operand.vmem [shape: f32[1,32], index: 8, kind: input, shape index: {}]
  %s9 = inlined_call_operand.vmem [shape: f32[32,1], index: 9, kind: input, shape index: {}]
  %s10 = inlined_call_operand.<no memory space> [shape: f32[1,1], index: 10, kind: input, shape index: {}]
  %s11 = inlined_call_operand.vmem [shape: f32[256,32], index: 11, kind: output, shape index: {0}]
  %s12 = inlined_call_operand.vmem [shape: f32[256,32], index: 12, kind: output, shape index: {1}]
  %s13 = inlined_call_operand.vmem [shape: f32[256,1], index: 13, kind: output, shape index: {2}]
  %14 = xla_tuple %s11, %s12, %s13
  %s15 = sld [smem:[#allocation0]]
  $region70: #{slmgnn_forward.5} parent=0
    _
  %s17 = ssub.s32 1, %s15
  %s18 = scalar_select 0, %s17, %s15
  %v19 = vstv %s10
  %20 = vst [vmem:[#allocation2] sm:$0x1] %v19
  // Predicated region
  $region2: #{slmgnn_forward.5} parent=0 // pred_check
    _
  $region3: #{slmgnn_forward.5} parent=0 // pred_check_branch
    %22 = sbr.rel (0) target = $region5
  $region4: #{slmgnn_forward.5} parent=0 // pred_region
    _
  $region5: #{slmgnn_forward.5} parent=0 // pred_fallthru
    _
  // Predicated region
  $region6: #{slmgnn_forward.5} parent=0 // pred_check
    _
  $region7: #{slmgnn_forward.5} parent=0 // pred_check_branch
    %24 = sbr.rel (0) target = $region9
  $region8: #{slmgnn_forward.5} parent=0 // pred_region
    _
  $region9: #{slmgnn_forward.5} parent=0 // pred_fallthru
    _
  // Predicated region
  $region10: #{slmgnn_forward.5} parent=0 // pred_check
    _
  $region11: #{slmgnn_forward.5} parent=0 // pred_check_branch
    %26 = sbr.rel (0) target = $region13
  $region12: #{slmgnn_forward.5} parent=0 // pred_region
    _
  $region13: #{slmgnn_forward.5} parent=0 // pred_fallthru
    _
  // Predicated region
  $region14: #{slmgnn_forward.5} parent=0 // pred_check
    _
  $region15: #{slmgnn_forward.5} parent=0 // pred_check_branch
    %28 = sbr.rel (0) target = $region17
  $region16: #{slmgnn_forward.5} parent=0 // pred_region
    _
  $region17: #{slmgnn_forward.5} parent=0 // pred_fallthru
    _
  // Predicated region
  $region18: #{slmgnn_forward.5} parent=0 // pred_check
    _
  $region19: #{slmgnn_forward.5} parent=0 // pred_check_branch
    %30 = sbr.rel (0) target = $region21
  $region20: #{slmgnn_forward.5} parent=0 // pred_region
    _
  $region21: #{slmgnn_forward.5} parent=0 // pred_fallthru
    _
  // Predicated region
  $region22: #{slmgnn_forward.5} parent=0 // pred_check
    _
  $region23: #{slmgnn_forward.5} parent=0 // pred_check_branch
    %32 = sbr.rel (0) target = $region25
  $region24: #{slmgnn_forward.5} parent=0 // pred_region
    _
  $region25: #{slmgnn_forward.5} parent=0 // pred_fallthru
    _
  // Predicated region
  $region26: #{slmgnn_forward.5} parent=0 // pred_check
    _
  $region27: #{slmgnn_forward.5} parent=0 // pred_check_branch
    %34 = sbr.rel (0) target = $region29
  $region28: #{slmgnn_forward.5} parent=0 // pred_region
    _
  $region29: #{slmgnn_forward.5} parent=0 // pred_fallthru
    _
  // Predicated region
  $region30: #{slmgnn_forward.5} parent=0 // pred_check
    _
  $region31: #{slmgnn_forward.5} parent=0 // pred_check_branch
    %36 = sbr.rel (0) target = $region33
  $region32: #{slmgnn_forward.5} parent=0 // pred_region
    _
  $region33: #{slmgnn_forward.5} parent=0 // pred_fallthru
    _
  // Predicated region
  $region34: #{slmgnn_forward.5} parent=0 // pred_check
    _
  $region35: #{slmgnn_forward.5} parent=0 // pred_check_branch
    %38 = sbr.rel (0) target = $region37
  $region36: #{slmgnn_forward.5} parent=0 // pred_region
    _
  $region37: #{slmgnn_forward.5} parent=0 // pred_fallthru
    _
  // Predicated region
  $region38: #{slmgnn_forward.5} parent=0 // pred_check
    _
  $region39: #{slmgnn_forward.5} parent=0 // pred_check_branch
    %40 = sbr.rel (0) target = $region41
  $region40: #{slmgnn_forward.5} parent=0 // pred_region
    _
  $region41: #{slmgnn_forward.5} parent=0 // pred_fallthru
    _
  // Predicated region
  $region42: #{slmgnn_forward.5} parent=0 // pred_check
    _
  $region43: #{slmgnn_forward.5} parent=0 // pred_check_branch
    %42 = sbr.rel (0) target = $region45
  $region44: #{slmgnn_forward.5} parent=0 // pred_region
    _
  $region45: #{slmgnn_forward.5} parent=0 // pred_fallthru
    _
  %v43 = vld [vmem:[%s0] sm:$0xff]
  %v44 = vld [vmem:[%s0 + $0x8] sm:$0xff]
  %v45 = vld [vmem:[%s0 + $0x10] sm:$0xff]
  %v46 = vld [vmem:[%s0 + $0x18] sm:$0xff]
  %v47 = vld [vmem:[%s0 + $0x20] sm:$0xff]
  %v48 = vld [vmem:[%s0 + $0x28] sm:$0xff]
  %v49 = vld [vmem:[%s0 + $0x30] sm:$0xff]
  %v50 = vld [vmem:[%s0 + $0x38] sm:$0xff]
  %v51 = vld [vmem:[%s0 + $0x40] sm:$0xff]
  %v52 = vld [vmem:[%s0 + $0x48] sm:$0xff]
  %v53 = vld [vmem:[%s0 + $0x50] sm:$0xff]
  %v54 = vld [vmem:[%s0 + $0x58] sm:$0xff]
  %v55 = vld [vmem:[%s0 + $0x60] sm:$0xff]
  %v56 = vld [vmem:[%s0 + $0x68] sm:$0xff]
  %v57 = vld [vmem:[%s0 + $0x70] sm:$0xff]
  %v58 = vld [vmem:[%s0 + $0x78] sm:$0xff]
  %v59 = vld [vmem:[%s0 + $0x80] sm:$0xff]
  %v60 = vld [vmem:[%s0 + $0x88] sm:$0xff]
  %v61 = vld [vmem:[%s0 + $0x90] sm:$0xff]
  %v62 = vld [vmem:[%s0 + $0x98] sm:$0xff]
  %v63 = vld [vmem:[%s0 + $0xa0] sm:$0xff]
  %v64 = vld [vmem:[%s0 + $0xa8] sm:$0xff]
  %v65 = vld [vmem:[%s0 + $0xb0] sm:$0xff]
  %v66 = vld [vmem:[%s0 + $0xb8] sm:$0xff]
  %v67 = vld [vmem:[%s0 + $0xc0] sm:$0xff]
  %v68 = vld [vmem:[%s0 + $0xc8] sm:$0xff]
  %v69 = vld [vmem:[%s0 + $0xd0] sm:$0xff]
  %v70 = vld [vmem:[%s0 + $0xd8] sm:$0xff]
  %v71 = vld [vmem:[%s0 + $0xe0] sm:$0xff]
  %v72 = vld [vmem:[%s0 + $0xe8] sm:$0xff]
  %v73 = vld [vmem:[%s0 + $0xf0] sm:$0xff]
  %v74 = vld [vmem:[%s0 + $0xf8] sm:$0xff]
  %v75 = vld [vmem:[%s1] sm:$0xff]
  %v76 = vld [vmem:[%s1 + $0x8] sm:$0xff]
  %v77 = vld [vmem:[%s1 + $0x10] sm:$0xff]
  %v78 = vld [vmem:[%s1 + $0x18] sm:$0xff]
  %v79 = vld [vmem:[%s2] sm:$0xff]
  %v80 = vld [vmem:[%s2 + $0x8] sm:$0xff]
  %v81 = vld [vmem:[%s2 + $0x10] sm:$0xff]
  %v82 = vld [vmem:[%s2 + $0x18] sm:$0xff]
  %v83 = vld [vmem:[%s3] sm:$0x1]
  %v84 = vld [vmem:[%s4] sm:$0xff]
  %v85 = vld [vmem:[%s4 + $0x8] sm:$0xff]
  %v86 = vld [vmem:[%s4 + $0x10] sm:$0xff]
  %v87 = vld [vmem:[%s4 + $0x18] sm:$0xff]
  %v88 = vld [vmem:[%s4 + $0x20] sm:$0xff]
  %v89 = vld [vmem:[%s4 + $0x28] sm:$0xff]
  %v90 = vld [vmem:[%s4 + $0x30] sm:$0xff]
  %v91 = vld [vmem:[%s4 + $0x38] sm:$0xff]
  %v92 = vld [vmem:[%s4 + $0x40] sm:$0xff]
  %v93 = vld [vmem:[%s4 + $0x48] sm:$0xff]
  %v94 = vld [vmem:[%s4 + $0x50] sm:$0xff]
  %v95 = vld [vmem:[%s4 + $0x58] sm:$0xff]
  %v96 = vld [vmem:[%s4 + $0x60] sm:$0xff]
  %v97 = vld [vmem:[%s4 + $0x68] sm:$0xff]
  %v98 = vld [vmem:[%s4 + $0x70] sm:$0xff]
  %v99 = vld [vmem:[%s4 + $0x78] sm:$0xff]
  %v100 = vld [vmem:[%s4 + $0x80] sm:$0xff]
  %v101 = vld [vmem:[%s4 + $0x88] sm:$0xff]
  %v102 = vld [vmem:[%s4 + $0x90] sm:$0xff]
  %v103 = vld [vmem:[%s4 + $0x98] sm:$0xff]
  %v104 = vld [vmem:[%s4 + $0xa0] sm:$0xff]
  %v105 = vld [vmem:[%s4 + $0xa8] sm:$0xff]
  %v106 = vld [vmem:[%s4 + $0xb0] sm:$0xff]
  %v107 = vld [vmem:[%s4 + $0xb8] sm:$0xff]
  %v108 = vld [vmem:[%s4 + $0xc0] sm:$0xff]
  %v109 = vld [vmem:[%s4 + $0xc8] sm:$0xff]
  %v110 = vld [vmem:[%s4 + $0xd0] sm:$0xff]
  %v111 = vld [vmem:[%s4 + $0xd8] sm:$0xff]
  %v112 = vld [vmem:[%s4 + $0xe0] sm:$0xff]
  %v113 = vld [vmem:[%s4 + $0xe8] sm:$0xff]
  %v114 = vld [vmem:[%s4 + $0xf0] sm:$0xff]
  %v115 = vld [vmem:[%s4 + $0xf8] sm:$0xff]
  %v116 = vld [vmem:[%s4 + $0x100] sm:$0xff]
  %v117 = vld [vmem:[%s4 + $0x108] sm:$0xff]
  %v118 = vld [vmem:[%s4 + $0x110] sm:$0xff]
  %v119 = vld [vmem:[%s4 + $0x118] sm:$0xff]
  %v120 = vld [vmem:[%s4 + $0x120] sm:$0xff]
  %v121 = vld [vmem:[%s4 + $0x128] sm:$0xff]
  %v122 = vld [vmem:[%s4 + $0x130] sm:$0xff]
  %v123 = vld [vmem:[%s4 + $0x138] sm:$0xff]
  %v124 = vld [vmem:[%s4 + $0x140] sm:$0xff]
  %v125 = vld [vmem:[%s4 + $0x148] sm:$0xff]
  %v126 = vld [vmem:[%s4 + $0x150] sm:$0xff]
  %v127 = vld [vmem:[%s4 + $0x158] sm:$0xff]
  %v128 = vld [vmem:[%s4 + $0x160] sm:$0xff]
  %v129 = vld [vmem:[%s4 + $0x168] sm:$0xff]
  %v130 = vld [vmem:[%s4 + $0x170] sm:$0xff]
  %v131 = vld [vmem:[%s4 + $0x178] sm:$0xff]
  %v132 = vld [vmem:[%s4 + $0x180] sm:$0xff]
  %v133 = vld [vmem:[%s4 + $0x188] sm:$0xff]
  %v134 = vld [vmem:[%s4 + $0x190] sm:$0xff]
  %v135 = vld [vmem:[%s4 + $0x198] sm:$0xff]
  %v136 = vld [vmem:[%s4 + $0x1a0] sm:$0xff]
  %v137 = vld [vmem:[%s4 + $0x1a8] sm:$0xff]
  %v138 = vld [vmem:[%s4 + $0x1b0] sm:$0xff]
  %v139 = vld [vmem:[%s4 + $0x1b8] sm:$0xff]
  %v140 = vld [vmem:[%s4 + $0x1c0] sm:$0xff]
  %v141 = vld [vmem:[%s4 + $0x1c8] sm:$0xff]
  %v142 = vld [vmem:[%s4 + $0x1d0] sm:$0xff]
  %v143 = vld [vmem:[%s4 + $0x1d8] sm:$0xff]
  %v144 = vld [vmem:[%s4 + $0x1e0] sm:$0xff]
  %v145 = vld [vmem:[%s4 + $0x1e8] sm:$0xff]
  %v146 = vld [vmem:[%s4 + $0x1f0] sm:$0xff]
  %v147 = vld [vmem:[%s4 + $0x1f8] sm:$0xff]
  %v148 = vld [vmem:[%s5] sm:$0xff]
  %v149 = vld [vmem:[%s5 + $0x8] sm:$0xff]
  %v150 = vld [vmem:[%s5 + $0x10] sm:$0xff]
  %v151 = vld [vmem:[%s5 + $0x18] sm:$0xff]
  %v152 = vld [vmem:[%s6] sm:$0xff]
  %v153 = vld [vmem:[%s6 + $0x8] sm:$0xff]
  %v154 = vld [vmem:[%s6 + $0x10] sm:$0xff]
  %v155 = vld [vmem:[%s6 + $0x18] sm:$0xff]
  %v156 = vld [vmem:[%s7] sm:$0xff]
  %v157 = vld [vmem:[%s7 + $0x8] sm:$0xff]
  %v158 = vld [vmem:[%s7 + $0x10] sm:$0xff]
  %v159 = vld [vmem:[%s7 + $0x18] sm:$0xff]
  %v160 = vld [vmem:[%s8] sm:$0x1]
  %v161 = vld [vmem:[%s9] sm:$0xff]
  %v162 = vld [vmem:[%s9 + $0x8] sm:$0xff]
  %v163 = vld [vmem:[%s9 + $0x10] sm:$0xff]
  %v164 = vld [vmem:[%s9 + $0x18] sm:$0xff]
  %v165 = vld [vmem:[#allocation2] sm:$0x1]
  %vm166 = vcmask 261120
  %v168 = vsel %vm166, %v43, 0
  %v171 = vsel %vm166, %v44, 0
  %v174 = vsel %vm166, %v45, 0
  %v177 = vsel %vm166, %v46, 0
  %v180 = vsel %vm166, %v47, 0
  %v183 = vsel %vm166, %v48, 0
  %v186 = vsel %vm166, %v49, 0
  %v189 = vsel %vm166, %v50, 0
  %v192 = vsel %vm166, %v51, 0
  %v195 = vsel %vm166, %v52, 0
  %v198 = vsel %vm166, %v53, 0
  %v201 = vsel %vm166, %v54, 0
  %v204 = vsel %vm166, %v55, 0
  %v207 = vsel %vm166, %v56, 0
  %v210 = vsel %vm166, %v57, 0
  %v213 = vsel %vm166, %v58, 0
  %v216 = vsel %vm166, %v59, 0
  %v219 = vsel %vm166, %v60, 0
  %v222 = vsel %vm166, %v61, 0
  %v225 = vsel %vm166, %v62, 0
  %v228 = vsel %vm166, %v63, 0
  %v231 = vsel %vm166, %v64, 0
  %v234 = vsel %vm166, %v65, 0
  %v237 = vsel %vm166, %v66, 0
  %v240 = vsel %vm166, %v67, 0
  %v243 = vsel %vm166, %v68, 0
  %v246 = vsel %vm166, %v69, 0
  %v249 = vsel %vm166, %v70, 0
  %v252 = vsel %vm166, %v71, 0
  %v255 = vsel %vm166, %v72, 0
  %v258 = vsel %vm166, %v73, 0
  %v261 = vsel %vm166, %v74, 0
  %263 = vmatprep.subr.mxu0 0.0
  %264 = vmatpush1.msra.mxu0 0.0
  %265 = vmatprep.subr.mxu0 0.0
  %266 = vmatpush1.msra.mxu0 0.0
  %267 = vmatprep.subr.mxu0 0.0
  %268 = vmatpush1.msra.mxu0 0.0
  %269 = vmatprep.subr.mxu0 0.0
  %270 = vmatpush1.msra.mxu0 0.0
  %271 = vmatprep.subr.mxu0 0.0
  %272 = vmatpush1.msra.mxu0 0.0
  %273 = vmatprep.subr.mxu0 0.0
  %274 = vmatpush1.msra.mxu0 0.0
  %275 = vmatprep.subr.mxu0 0.0
  %276 = vmatpush1.msra.mxu0 0.0
  %277 = vmatprep.subr.mxu0 0.0
  %278 = vmatpush1.msra.mxu0 0.0
  %279 = vmatprep.subr.mxu0 0.0
  %280 = vmatpush1.msra.mxu0 0.0
  %281 = vmatprep.subr.mxu0 0.0
  %282 = vmatpush1.msra.mxu0 0.0
  %283 = vmatprep.subr.mxu0 0.0
  %284 = vmatpush1.msra.mxu0 0.0
  %285 = vmatprep.subr.mxu0 0.0
  %286 = vmatpush1.msra.mxu0 0.0
  %287 = vmatprep.subr.mxu0 0.0
  %288 = vmatpush1.msra.mxu0 %v82
  %289 = vmatprep.subr.mxu0 0.0
  %290 = vmatpush1.msra.mxu0 %v81
  %291 = vmatprep.subr.mxu0 0.0
  %292 = vmatpush1.msra.mxu0 %v80
  %293 = vmatprep.subr.mxu0 0.0
  %294 = vmatpush1.msra.mxu0 %v79
  %295 = vmatprep.subr.mxu0 0.0
  %296 = vmatpush2.msra.mxu0 0.0
  %297 = vmatprep.subr.mxu0 0.0
  %298 = vmatpush2.msra.mxu0 0.0
  %299 = vmatprep.subr.mxu0 0.0
  %300 = vmatpush2.msra.mxu0 0.0
  %301 = vmatprep.subr.mxu0 0.0
  %302 = vmatpush2.msra.mxu0 0.0
  %303 = vmatprep.subr.mxu0 0.0
  %304 = vmatpush2.msra.mxu0 0.0
  %305 = vmatprep.subr.mxu0 0.0
  %306 = vmatpush2.msra.mxu0 0.0
  %307 = vmatprep.subr.mxu0 0.0
  %308 = vmatpush2.msra.mxu0 0.0
  %309 = vmatprep.subr.mxu0 0.0
  %310 = vmatpush2.msra.mxu0 0.0
  %311 = vmatprep.subr.mxu0 0.0
  %312 = vmatpush2.msra.mxu0 0.0
  %313 = vmatprep.subr.mxu0 0.0
  %314 = vmatpush2.msra.mxu0 0.0
  %315 = vmatprep.subr.mxu0 0.0
  %316 = vmatpush2.msra.mxu0 0.0
  %317 = vmatprep.subr.mxu0 0.0
  %318 = vmatpush2.msra.mxu0 0.0
  %319 = vmatprep.subr.mxu0 0.0
  %320 = vmatpush2.msra.mxu0 0.0
  %321 = vmatprep.subr.mxu0 0.0
  %322 = vmatpush2.msra.mxu0 0.0
  %323 = vmatprep.subr.mxu0 0.0
  %324 = vmatpush2.msra.mxu0 0.0
  %325 = vmatprep.subr.mxu0 0.0
  %326 = vmatpush2.msra.mxu0 0.0
  %327 = vmatprep.mubr.f32.mxu0 0.0
  %328 = vmatmul.mubr.f32.gmra.mxu0 %v168
  %v329 = vpop.f32.mrf.mxu0
  %v330 = vadd.f32 0.0, %v329
  %v331 = vpop.f32.mrf.mxu0
  %332 = vmatprep.mubr.f32.mxu0 0.0
  %333 = vmatmul.mubr.f32.gmra.mxu0 %v171
  %v334 = vpop.f32.mrf.mxu0
  %v335 = vadd.f32 0.0, %v334
  %v336 = vpop.f32.mrf.mxu0
  %337 = vmatprep.mubr.f32.mxu0 0.0
  %338 = vmatmul.mubr.f32.gmra.mxu0 %v174
  %v339 = vpop.f32.mrf.mxu0
  %v340 = vadd.f32 0.0, %v339
  %v341 = vpop.f32.mrf.mxu0
  %342 = vmatprep.mubr.f32.mxu0 0.0
  %343 = vmatmul.mubr.f32.gmra.mxu0 %v177
  %v344 = vpop.f32.mrf.mxu0
  %v345 = vadd.f32 0.0, %v344
  %v346 = vpop.f32.mrf.mxu0
  %347 = vmatprep.mubr.f32.mxu0 0.0
  %348 = vmatmul.mubr.f32.gmra.mxu0 %v180
  %v349 = vpop.f32.mrf.mxu0
  %v350 = vadd.f32 0.0, %v349
  %v351 = vpop.f32.mrf.mxu0
  %352 = vmatprep.mubr.f32.mxu0 0.0
  %353 = vmatmul.mubr.f32.gmra.mxu0 %v183
  %v354 = vpop.f32.mrf.mxu0
  %v355 = vadd.f32 0.0, %v354
  %v356 = vpop.f32.mrf.mxu0
  %357 = vmatprep.mubr.f32.mxu0 0.0
  %358 = vmatmul.mubr.f32.gmra.mxu0 %v186
  %v359 = vpop.f32.mrf.mxu0
  %v360 = vadd.f32 0.0, %v359
  %v361 = vpop.f32.mrf.mxu0
  %362 = vmatprep.mubr.f32.mxu0 0.0
  %363 = vmatmul.mubr.f32.gmra.mxu0 %v189
  %v364 = vpop.f32.mrf.mxu0
  %v365 = vadd.f32 0.0, %v364
  %v366 = vpop.f32.mrf.mxu0
  %367 = vmatprep.mubr.f32.mxu0 0.0
  %368 = vmatmul.mubr.f32.gmra.mxu0 %v192
  %v369 = vpop.f32.mrf.mxu0
  %v370 = vadd.f32 0.0, %v369
  %v371 = vpop.f32.mrf.mxu0
  %372 = vmatprep.mubr.f32.mxu0 0.0
  %373 = vmatmul.mubr.f32.gmra.mxu0 %v195
  %v374 = vpop.f32.mrf.mxu0
  %v375 = vadd.f32 0.0, %v374
  %v376 = vpop.f32.mrf.mxu0
  %377 = vmatprep.mubr.f32.mxu0 0.0
  %378 = vmatmul.mubr.f32.gmra.mxu0 %v198
  %v379 = vpop.f32.mrf.mxu0
  %v380 = vadd.f32 0.0, %v379
  %v381 = vpop.f32.mrf.mxu0
  %382 = vmatprep.mubr.f32.mxu0 0.0
  %383 = vmatmul.mubr.f32.gmra.mxu0 %v201
  %v384 = vpop.f32.mrf.mxu0
  %v385 = vadd.f32 0.0, %v384
  %v386 = vpop.f32.mrf.mxu0
  %387 = vmatprep.mubr.f32.mxu0 0.0
  %388 = vmatmul.mubr.f32.gmra.mxu0 %v204
  %v389 = vpop.f32.mrf.mxu0
  %v390 = vadd.f32 0.0, %v389
  %v391 = vpop.f32.mrf.mxu0
  %392 = vmatprep.mubr.f32.mxu0 0.0
  %393 = vmatmul.mubr.f32.gmra.mxu0 %v207
  %v394 = vpop.f32.mrf.mxu0
  %v395 = vadd.f32 0.0, %v394
  %v396 = vpop.f32.mrf.mxu0
  %397 = vmatprep.mubr.f32.mxu0 0.0
  %398 = vmatmul.mubr.f32.gmra.mxu0 %v210
  %v399 = vpop.f32.mrf.mxu0
  %v400 = vadd.f32 0.0, %v399
  %v401 = vpop.f32.mrf.mxu0
  %402 = vmatprep.mubr.f32.mxu0 0.0
  %403 = vmatmul.mubr.f32.gmra.mxu0 %v213
  %v404 = vpop.f32.mrf.mxu0
  %v405 = vadd.f32 0.0, %v404
  %v406 = vpop.f32.mrf.mxu0
  %407 = vmatprep.mubr.f32.mxu0 0.0
  %408 = vmatmul.mubr.f32.gmra.mxu0 %v216
  %v409 = vpop.f32.mrf.mxu0
  %v410 = vadd.f32 0.0, %v409
  %v411 = vpop.f32.mrf.mxu0
  %412 = vmatprep.mubr.f32.mxu0 0.0
  %413 = vmatmul.mubr.f32.gmra.mxu0 %v219
  %v414 = vpop.f32.mrf.mxu0
  %v415 = vadd.f32 0.0, %v414
  %v416 = vpop.f32.mrf.mxu0
  %417 = vmatprep.mubr.f32.mxu0 0.0
  %418 = vmatmul.mubr.f32.gmra.mxu0 %v222
  %v419 = vpop.f32.mrf.mxu0
  %v420 = vadd.f32 0.0, %v419
  %v421 = vpop.f32.mrf.mxu0
  %422 = vmatprep.mubr.f32.mxu0 0.0
  %423 = vmatmul.mubr.f32.gmra.mxu0 %v225
  %v424 = vpop.f32.mrf.mxu0
  %v425 = vadd.f32 0.0, %v424
  %v426 = vpop.f32.mrf.mxu0
  %427 = vmatprep.mubr.f32.mxu0 0.0
  %428 = vmatmul.mubr.f32.gmra.mxu0 %v228
  %v429 = vpop.f32.mrf.mxu0
  %v430 = vadd.f32 0.0, %v429
  %v431 = vpop.f32.mrf.mxu0
  %432 = vmatprep.mubr.f32.mxu0 0.0
  %433 = vmatmul.mubr.f32.gmra.mxu0 %v231
  %v434 = vpop.f32.mrf.mxu0
  %v435 = vadd.f32 0.0, %v434
  %v436 = vpop.f32.mrf.mxu0
  %437 = vmatprep.mubr.f32.mxu0 0.0
  %438 = vmatmul.mubr.f32.gmra.mxu0 %v234
  %v439 = vpop.f32.mrf.mxu0
  %v440 = vadd.f32 0.0, %v439
  %v441 = vpop.f32.mrf.mxu0
  %442 = vmatprep.mubr.f32.mxu0 0.0
  %443 = vmatmul.mubr.f32.gmra.mxu0 %v237
  %v444 = vpop.f32.mrf.mxu0
  %v445 = vadd.f32 0.0, %v444
  %v446 = vpop.f32.mrf.mxu0
  %447 = vmatprep.mubr.f32.mxu0 0.0
  %448 = vmatmul.mubr.f32.gmra.mxu0 %v240
  %v449 = vpop.f32.mrf.mxu0
  %v450 = vadd.f32 0.0, %v449
  %v451 = vpop.f32.mrf.mxu0
  %452 = vmatprep.mubr.f32.mxu0 0.0
  %453 = vmatmul.mubr.f32.gmra.mxu0 %v243
  %v454 = vpop.f32.mrf.mxu0
  %v455 = vadd.f32 0.0, %v454
  %v456 = vpop.f32.mrf.mxu0
  %457 = vmatprep.mubr.f32.mxu0 0.0
  %458 = vmatmul.mubr.f32.gmra.mxu0 %v246
  %v459 = vpop.f32.mrf.mxu0
  %v460 = vadd.f32 0.0, %v459
  %v461 = vpop.f32.mrf.mxu0
  %462 = vmatprep.mubr.f32.mxu0 0.0
  %463 = vmatmul.mubr.f32.gmra.mxu0 %v249
  %v464 = vpop.f32.mrf.mxu0
  %v465 = vadd.f32 0.0, %v464
  %v466 = vpop.f32.mrf.mxu0
  %467 = vmatprep.mubr.f32.mxu0 0.0
  %468 = vmatmul.mubr.f32.gmra.mxu0 %v252
  %v469 = vpop.f32.mrf.mxu0
  %v470 = vadd.f32 0.0, %v469
  %v471 = vpop.f32.mrf.mxu0
  %472 = vmatprep.mubr.f32.mxu0 0.0
  %473 = vmatmul.mubr.f32.gmra.mxu0 %v255
  %v474 = vpop.f32.mrf.mxu0
  %v475 = vadd.f32 0.0, %v474
  %v476 = vpop.f32.mrf.mxu0
  %477 = vmatprep.mubr.f32.mxu0 0.0
  %478 = vmatmul.mubr.f32.gmra.mxu0 %v258
  %v479 = vpop.f32.mrf.mxu0
  %v480 = vadd.f32 0.0, %v479
  %v481 = vpop.f32.mrf.mxu0
  %482 = vmatprep.mubr.f32.mxu0 0.0
  %483 = vmatmul.mubr.f32.gmra.mxu0 %v261
  %v484 = vpop.f32.mrf.mxu0
  %v485 = vadd.f32 0.0, %v484
  %v486 = vpop.f32.mrf.mxu0
  %487 = vdwg.mxu0
  %v489 = vsel %vm166, 0.0, 0
  %491 = vmatprep.subr.mxu0 0.0
  %492 = vmatpush1.msra.mxu0 0.0
  %493 = vmatprep.subr.mxu0 0.0
  %494 = vmatpush1.msra.mxu0 0.0
  %495 = vmatprep.subr.mxu0 0.0
  %496 = vmatpush1.msra.mxu0 0.0
  %497 = vmatprep.subr.mxu0 0.0
  %498 = vmatpush1.msra.mxu0 0.0
  %499 = vmatprep.subr.mxu0 0.0
  %500 = vmatpush1.msra.mxu0 0.0
  %501 = vmatprep.subr.mxu0 0.0
  %502 = vmatpush1.msra.mxu0 0.0
  %503 = vmatprep.subr.mxu0 0.0
  %504 = vmatpush1.msra.mxu0 0.0
  %505 = vmatprep.subr.mxu0 0.0
  %506 = vmatpush1.msra.mxu0 0.0
  %507 = vmatprep.subr.mxu0 0.0
  %508 = vmatpush1.msra.mxu0 0.0
  %509 = vmatprep.subr.mxu0 0.0
  %510 = vmatpush1.msra.mxu0 0.0
  %511 = vmatprep.subr.mxu0 0.0
  %512 = vmatpush1.msra.mxu0 0.0
  %513 = vmatprep.subr.mxu0 0.0
  %514 = vmatpush1.msra.mxu0 0.0
  %515 = vmatprep.subr.mxu0 0.0
  %516 = vmatpush1.msra.mxu0 %v78
  %517 = vmatprep.subr.mxu0 0.0
  %518 = vmatpush1.msra.mxu0 %v77
  %519 = vmatprep.subr.mxu0 0.0
  %520 = vmatpush1.msra.mxu0 %v76
  %521 = vmatprep.subr.mxu0 0.0
  %522 = vmatpush1.msra.mxu0 %v75
  %523 = vmatprep.subr.mxu0 0.0
  %524 = vmatpush2.msra.mxu0 0.0
  %525 = vmatprep.subr.mxu0 0.0
  %526 = vmatpush2.msra.mxu0 0.0
  %527 = vmatprep.subr.mxu0 0.0
  %528 = vmatpush2.msra.mxu0 0.0
  %529 = vmatprep.subr.mxu0 0.0
  %530 = vmatpush2.msra.mxu0 0.0
  %531 = vmatprep.subr.mxu0 0.0
  %532 = vmatpush2.msra.mxu0 0.0
  %533 = vmatprep.subr.mxu0 0.0
  %534 = vmatpush2.msra.mxu0 0.0
  %535 = vmatprep.subr.mxu0 0.0
  %536 = vmatpush2.msra.mxu0 0.0
  %537 = vmatprep.subr.mxu0 0.0
  %538 = vmatpush2.msra.mxu0 0.0
  %539 = vmatprep.subr.mxu0 0.0
  %540 = vmatpush2.msra.mxu0 0.0
  %541 = vmatprep.subr.mxu0 0.0
  %542 = vmatpush2.msra.mxu0 0.0
  %543 = vmatprep.subr.mxu0 0.0
  %544 = vmatpush2.msra.mxu0 0.0
  %545 = vmatprep.subr.mxu0 0.0
  %546 = vmatpush2.msra.mxu0 0.0
  %547 = vmatprep.subr.mxu0 0.0
  %548 = vmatpush2.msra.mxu0 0.0
  %549 = vmatprep.subr.mxu0 0.0
  %550 = vmatpush2.msra.mxu0 0.0
  %551 = vmatprep.subr.mxu0 0.0
  %552 = vmatpush2.msra.mxu0 0.0
  %553 = vmatprep.subr.mxu0 0.0
  %554 = vmatpush2.msra.mxu0 0.0
  %555 = vmatprep.mubr.f32.mxu0 0.0
  %556 = vmatmul.mubr.f32.gmra.mxu0 %v489
  %v557 = vpop.f32.mrf.mxu0
  %v558 = vadd.f32 %v330, %v557
  %v559 = vpop.f32.mrf.mxu0
  %560 = vmatprep.mubr.f32.mxu0 0.0
  %561 = vmatmul.mubr.f32.gmra.mxu0 %v489
  %v562 = vpop.f32.mrf.mxu0
  %v563 = vadd.f32 %v335, %v562
  %v564 = vpop.f32.mrf.mxu0
  %565 = vmatprep.mubr.f32.mxu0 0.0
  %566 = vmatmul.mubr.f32.gmra.mxu0 %v489
  %v567 = vpop.f32.mrf.mxu0
  %v568 = vadd.f32 %v340, %v567
  %v569 = vpop.f32.mrf.mxu0
  %570 = vmatprep.mubr.f32.mxu0 0.0
  %571 = vmatmul.mubr.f32.gmra.mxu0 %v489
  %v572 = vpop.f32.mrf.mxu0
  %v573 = vadd.f32 %v345, %v572
  %v574 = vpop.f32.mrf.mxu0
  %575 = vmatprep.mubr.f32.mxu0 0.0
  %576 = vmatmul.mubr.f32.gmra.mxu0 %v168
  %v577 = vpop.f32.mrf.mxu0
  %v578 = vadd.f32 %v350, %v577
  %v579 = vpop.f32.mrf.mxu0
  %580 = vmatprep.mubr.f32.mxu0 0.0
  %581 = vmatmul.mubr.f32.gmra.mxu0 %v171
  %v582 = vpop.f32.mrf.mxu0
  %v583 = vadd.f32 %v355, %v582
  %v584 = vpop.f32.mrf.mxu0
  %585 = vmatprep.mubr.f32.mxu0 0.0
  %586 = vmatmul.mubr.f32.gmra.mxu0 %v174
  %v587 = vpop.f32.mrf.mxu0
  %v588 = vadd.f32 %v360, %v587
  %v589 = vpop.f32.mrf.mxu0
  %590 = vmatprep.mubr.f32.mxu0 0.0
  %591 = vmatmul.mubr.f32.gmra.mxu0 %v177
  %v592 = vpop.f32.mrf.mxu0
  %v593 = vadd.f32 %v365, %v592
  %v594 = vpop.f32.mrf.mxu0
  %595 = vmatprep.mubr.f32.mxu0 0.0
  %596 = vmatmul.mubr.f32.gmra.mxu0 %v180
  %v597 = vpop.f32.mrf.mxu0
  %v598 = vadd.f32 %v370, %v597
  %v599 = vpop.f32.mrf.mxu0
  %600 = vmatprep.mubr.f32.mxu0 0.0
  %601 = vmatmul.mubr.f32.gmra.mxu0 %v183
  %v602 = vpop.f32.mrf.mxu0
  %v603 = vadd.f32 %v375, %v602
  %v604 = vpop.f32.mrf.mxu0
  %605 = vmatprep.mubr.f32.mxu0 0.0
  %606 = vmatmul.mubr.f32.gmra.mxu0 %v186
  %v607 = vpop.f32.mrf.mxu0
  %v608 = vadd.f32 %v380, %v607
  %v609 = vpop.f32.mrf.mxu0
  %610 = vmatprep.mubr.f32.mxu0 0.0
  %611 = vmatmul.mubr.f32.gmra.mxu0 %v189
  %v612 = vpop.f32.mrf.mxu0
  %v613 = vadd.f32 %v385, %v612
  %v614 = vpop.f32.mrf.mxu0
  %615 = vmatprep.mubr.f32.mxu0 0.0
  %616 = vmatmul.mubr.f32.gmra.mxu0 %v192
  %v617 = vpop.f32.mrf.mxu0
  %v618 = vadd.f32 %v390, %v617
  %v619 = vpop.f32.mrf.mxu0
  %620 = vmatprep.mubr.f32.mxu0 0.0
  %621 = vmatmul.mubr.f32.gmra.mxu0 %v195
  %v622 = vpop.f32.mrf.mxu0
  %v623 = vadd.f32 %v395, %v622
  %v624 = vpop.f32.mrf.mxu0
  %625 = vmatprep.mubr.f32.mxu0 0.0
  %626 = vmatmul.mubr.f32.gmra.mxu0 %v198
  %v627 = vpop.f32.mrf.mxu0
  %v628 = vadd.f32 %v400, %v627
  %v629 = vpop.f32.mrf.mxu0
  %630 = vmatprep.mubr.f32.mxu0 0.0
  %631 = vmatmul.mubr.f32.gmra.mxu0 %v201
  %v632 = vpop.f32.mrf.mxu0
  %v633 = vadd.f32 %v405, %v632
  %v634 = vpop.f32.mrf.mxu0
  %635 = vmatprep.mubr.f32.mxu0 0.0
  %636 = vmatmul.mubr.f32.gmra.mxu0 %v204
  %v637 = vpop.f32.mrf.mxu0
  %v638 = vadd.f32 %v410, %v637
  %v639 = vpop.f32.mrf.mxu0
  %640 = vmatprep.mubr.f32.mxu0 0.0
  %641 = vmatmul.mubr.f32.gmra.mxu0 %v207
  %v642 = vpop.f32.mrf.mxu0
  %v643 = vadd.f32 %v415, %v642
  %v644 = vpop.f32.mrf.mxu0
  %645 = vmatprep.mubr.f32.mxu0 0.0
  %646 = vmatmul.mubr.f32.gmra.mxu0 %v210
  %v647 = vpop.f32.mrf.mxu0
  %v648 = vadd.f32 %v420, %v647
  %v649 = vpop.f32.mrf.mxu0
  %650 = vmatprep.mubr.f32.mxu0 0.0
  %651 = vmatmul.mubr.f32.gmra.mxu0 %v213
  %v652 = vpop.f32.mrf.mxu0
  %v653 = vadd.f32 %v425, %v652
  %v654 = vpop.f32.mrf.mxu0
  %655 = vmatprep.mubr.f32.mxu0 0.0
  %656 = vmatmul.mubr.f32.gmra.mxu0 %v216
  %v657 = vpop.f32.mrf.mxu0
  %v658 = vadd.f32 %v430, %v657
  %v659 = vpop.f32.mrf.mxu0
  %660 = vmatprep.mubr.f32.mxu0 0.0
  %661 = vmatmul.mubr.f32.gmra.mxu0 %v219
  %v662 = vpop.f32.mrf.mxu0
  %v663 = vadd.f32 %v435, %v662
  %v664 = vpop.f32.mrf.mxu0
  %665 = vmatprep.mubr.f32.mxu0 0.0
  %666 = vmatmul.mubr.f32.gmra.mxu0 %v222
  %v667 = vpop.f32.mrf.mxu0
  %v668 = vadd.f32 %v440, %v667
  %v669 = vpop.f32.mrf.mxu0
  %670 = vmatprep.mubr.f32.mxu0 0.0
  %671 = vmatmul.mubr.f32.gmra.mxu0 %v225
  %v672 = vpop.f32.mrf.mxu0
  %v673 = vadd.f32 %v445, %v672
  %v674 = vpop.f32.mrf.mxu0
  %675 = vmatprep.mubr.f32.mxu0 0.0
  %676 = vmatmul.mubr.f32.gmra.mxu0 %v228
  %v677 = vpop.f32.mrf.mxu0
  %v678 = vadd.f32 %v450, %v677
  %v679 = vpop.f32.mrf.mxu0
  %680 = vmatprep.mubr.f32.mxu0 0.0
  %681 = vmatmul.mubr.f32.gmra.mxu0 %v231
  %v682 = vpop.f32.mrf.mxu0
  %v683 = vadd.f32 %v455, %v682
  %v684 = vpop.f32.mrf.mxu0
  %685 = vmatprep.mubr.f32.mxu0 0.0
  %686 = vmatmul.mubr.f32.gmra.mxu0 %v234
  %v687 = vpop.f32.mrf.mxu0
  %v688 = vadd.f32 %v460, %v687
  %v689 = vpop.f32.mrf.mxu0
  %690 = vmatprep.mubr.f32.mxu0 0.0
  %691 = vmatmul.mubr.f32.gmra.mxu0 %v237
  %v692 = vpop.f32.mrf.mxu0
  %v693 = vadd.f32 %v465, %v692
  %v694 = vpop.f32.mrf.mxu0
  %695 = vmatprep.mubr.f32.mxu0 0.0
  %696 = vmatmul.mubr.f32.gmra.mxu0 %v240
  %v697 = vpop.f32.mrf.mxu0
  %v698 = vadd.f32 %v470, %v697
  %v699 = vpop.f32.mrf.mxu0
  %700 = vmatprep.mubr.f32.mxu0 0.0
  %701 = vmatmul.mubr.f32.gmra.mxu0 %v243
  %v702 = vpop.f32.mrf.mxu0
  %v703 = vadd.f32 %v475, %v702
  %v704 = vpop.f32.mrf.mxu0
  %705 = vmatprep.mubr.f32.mxu0 0.0
  %706 = vmatmul.mubr.f32.gmra.mxu0 %v246
  %v707 = vpop.f32.mrf.mxu0
  %v708 = vadd.f32 %v480, %v707
  %v709 = vpop.f32.mrf.mxu0
  %710 = vmatprep.mubr.f32.mxu0 0.0
  %711 = vmatmul.mubr.f32.gmra.mxu0 %v249
  %v712 = vpop.f32.mrf.mxu0
  %v713 = vadd.f32 %v485, %v712
  %v714 = vpop.f32.mrf.mxu0
  %715 = vdwg.mxu0
  %v717 = vlaneseq
  %v718 = vshrl.u32 %v717, 7
  %v719 = vsub.s32 0, %v718
  %v720 = vrot.slane %v83, %v719
  %v722 = vadd.f32 %v558, %v720
  %v723 = vadd.f32 %v563, %v720
  %v724 = vadd.f32 %v568, %v720
  %v725 = vadd.f32 %v573, %v720
  %v726 = vadd.f32 %v578, %v720
  %v727 = vadd.f32 %v583, %v720
  %v728 = vadd.f32 %v588, %v720
  %v729 = vadd.f32 %v593, %v720
  %v730 = vadd.f32 %v598, %v720
  %v731 = vadd.f32 %v603, %v720
  %v732 = vadd.f32 %v608, %v720
  %v733 = vadd.f32 %v613, %v720
  %v734 = vadd.f32 %v618, %v720
  %v735 = vadd.f32 %v623, %v720
  %v736 = vadd.f32 %v628, %v720
  %v737 = vadd.f32 %v633, %v720
  %v738 = vadd.f32 %v638, %v720
  %v739 = vadd.f32 %v643, %v720
  %v740 = vadd.f32 %v648, %v720
  %v741 = vadd.f32 %v653, %v720
  %v742 = vadd.f32 %v658, %v720
  %v743 = vadd.f32 %v663, %v720
  %v744 = vadd.f32 %v668, %v720
  %v745 = vadd.f32 %v673, %v720
  %v746 = vadd.f32 %v678, %v720
  %v747 = vadd.f32 %v683, %v720
  %v748 = vadd.f32 %v688, %v720
  %v749 = vadd.f32 %v693, %v720
  %v750 = vadd.f32 %v698, %v720
  %v751 = vadd.f32 %v703, %v720
  %v752 = vadd.f32 %v708, %v720
  %v753 = vadd.f32 %v713, %v720
  %v754 = vtanh.pop %v722
  %v755 = vtanh.pop %v723
  %v756 = vtanh.pop %v724
  %v757 = vtanh.pop %v725
  %v758 = vtanh.pop %v726
  %v759 = vtanh.pop %v727
  %v760 = vtanh.pop %v728
  %v761 = vtanh.pop %v729
  %v762 = vtanh.pop %v730
  %v763 = vtanh.pop %v731
  %v764 = vtanh.pop %v732
  %v765 = vtanh.pop %v733
  %v766 = vtanh.pop %v734
  %v767 = vtanh.pop %v735
  %v768 = vtanh.pop %v736
  %v769 = vtanh.pop %v737
  %v770 = vtanh.pop %v738
  %v771 = vtanh.pop %v739
  %v772 = vtanh.pop %v740
  %v773 = vtanh.pop %v741
  %v774 = vtanh.pop %v742
  %v775 = vtanh.pop %v743
  %v776 = vtanh.pop %v744
  %v777 = vtanh.pop %v745
  %v778 = vtanh.pop %v746
  %v779 = vtanh.pop %v747
  %v780 = vtanh.pop %v748
  %v781 = vtanh.pop %v749
  %v782 = vtanh.pop %v750
  %v783 = vtanh.pop %v751
  %v784 = vtanh.pop %v752
  %v785 = vtanh.pop %v753
  %v786 = vxor.u32 %v722, 2147483648
  %v787 = vxor.u32 %v723, 2147483648
  %v788 = vxor.u32 %v724, 2147483648
  %v789 = vxor.u32 %v725, 2147483648
  %v790 = vxor.u32 %v726, 2147483648
  %v791 = vxor.u32 %v727, 2147483648
  %v792 = vxor.u32 %v728, 2147483648
  %v793 = vxor.u32 %v729, 2147483648
  %v794 = vxor.u32 %v730, 2147483648
  %v795 = vxor.u32 %v731, 2147483648
  %v796 = vxor.u32 %v732, 2147483648
  %v797 = vxor.u32 %v733, 2147483648
  %v798 = vxor.u32 %v734, 2147483648
  %v799 = vxor.u32 %v735, 2147483648
  %v800 = vxor.u32 %v736, 2147483648
  %v801 = vxor.u32 %v737, 2147483648
  %v802 = vxor.u32 %v738, 2147483648
  %v803 = vxor.u32 %v739, 2147483648
  %v804 = vxor.u32 %v740, 2147483648
  %v805 = vxor.u32 %v741, 2147483648
  %v806 = vxor.u32 %v742, 2147483648
  %v807 = vxor.u32 %v743, 2147483648
  %v808 = vxor.u32 %v744, 2147483648
  %v809 = vxor.u32 %v745, 2147483648
  %v810 = vxor.u32 %v746, 2147483648
  %v811 = vxor.u32 %v747, 2147483648
  %v812 = vxor.u32 %v748, 2147483648
  %v813 = vxor.u32 %v749, 2147483648
  %v814 = vxor.u32 %v750, 2147483648
  %v815 = vxor.u32 %v751, 2147483648
  %v816 = vxor.u32 %v752, 2147483648
  %v817 = vxor.u32 %v753, 2147483648
  %v818 = vmul.f32 %v786, 1.442695
  %v819 = vpow.pop %v818
  %v820 = vmul.f32 %v787, 1.442695
  %v821 = vpow.pop %v820
  %v822 = vmul.f32 %v788, 1.442695
  %v823 = vpow.pop %v822
  %v824 = vmul.f32 %v789, 1.442695
  %v825 = vpow.pop %v824
  %v826 = vmul.f32 %v790, 1.442695
  %v827 = vpow.pop %v826
  %v828 = vmul.f32 %v791, 1.442695
  %v829 = vpow.pop %v828
  %v830 = vmul.f32 %v792, 1.442695
  %v831 = vpow.pop %v830
  %v832 = vmul.f32 %v793, 1.442695
  %v833 = vpow.pop %v832
  %v834 = vmul.f32 %v794, 1.442695
  %v835 = vpow.pop %v834
  %v836 = vmul.f32 %v795, 1.442695
  %v837 = vpow.pop %v836
  %v838 = vmul.f32 %v796, 1.442695
  %v839 = vpow.pop %v838
  %v840 = vmul.f32 %v797, 1.442695
  %v841 = vpow.pop %v840
  %v842 = vmul.f32 %v798, 1.442695
  %v843 = vpow.pop %v842
  %v844 = vmul.f32 %v799, 1.442695
  %v845 = vpow.pop %v844
  %v846 = vmul.f32 %v800, 1.442695
  %v847 = vpow.pop %v846
  %v848 = vmul.f32 %v801, 1.442695
  %v849 = vpow.pop %v848
  %v850 = vmul.f32 %v802, 1.442695
  %v851 = vpow.pop %v850
  %v852 = vmul.f32 %v803, 1.442695
  %v853 = vpow.pop %v852
  %v854 = vmul.f32 %v804, 1.442695
  %v855 = vpow.pop %v854
  %v856 = vmul.f32 %v805, 1.442695
  %v857 = vpow.pop %v856
  %v858 = vmul.f32 %v806, 1.442695
  %v859 = vpow.pop %v858
  %v860 = vmul.f32 %v807, 1.442695
  %v861 = vpow.pop %v860
  %v862 = vmul.f32 %v808, 1.442695
  %v863 = vpow.pop %v862
  %v864 = vmul.f32 %v809, 1.442695
  %v865 = vpow.pop %v864
  %v866 = vmul.f32 %v810, 1.442695
  %v867 = vpow.pop %v866
  %v868 = vmul.f32 %v811, 1.442695
  %v869 = vpow.pop %v868
  %v870 = vmul.f32 %v812, 1.442695
  %v871 = vpow.pop %v870
  %v872 = vmul.f32 %v813, 1.442695
  %v873 = vpow.pop %v872
  %v874 = vmul.f32 %v814, 1.442695
  %v875 = vpow.pop %v874
  %v876 = vmul.f32 %v815, 1.442695
  %v877 = vpow.pop %v876
  %v878 = vmul.f32 %v816, 1.442695
  %v879 = vpow.pop %v878
  %v880 = vmul.f32 %v817, 1.442695
  %v881 = vpow.pop %v880
  %v882 = vadd.f32 %v819, 1.0
  %v883 = vadd.f32 %v821, 1.0
  %v884 = vadd.f32 %v823, 1.0
  %v885 = vadd.f32 %v825, 1.0
  %v886 = vadd.f32 %v827, 1.0
  %v887 = vadd.f32 %v829, 1.0
  %v888 = vadd.f32 %v831, 1.0
  %v889 = vadd.f32 %v833, 1.0
  %v890 = vadd.f32 %v835, 1.0
  %v891 = vadd.f32 %v837, 1.0
  %v892 = vadd.f32 %v839, 1.0
  %v893 = vadd.f32 %v841, 1.0
  %v894 = vadd.f32 %v843, 1.0
  %v895 = vadd.f32 %v845, 1.0
  %v896 = vadd.f32 %v847, 1.0
  %v897 = vadd.f32 %v849, 1.0
  %v898 = vadd.f32 %v851, 1.0
  %v899 = vadd.f32 %v853, 1.0
  %v900 = vadd.f32 %v855, 1.0
  %v901 = vadd.f32 %v857, 1.0
  %v902 = vadd.f32 %v859, 1.0
  %v903 = vadd.f32 %v861, 1.0
  %v904 = vadd.f32 %v863, 1.0
  %v905 = vadd.f32 %v865, 1.0
  %v906 = vadd.f32 %v867, 1.0
  %v907 = vadd.f32 %v869, 1.0
  %v908 = vadd.f32 %v871, 1.0
  %v909 = vadd.f32 %v873, 1.0
  %v910 = vadd.f32 %v875, 1.0
  %v911 = vadd.f32 %v877, 1.0
  %v912 = vadd.f32 %v879, 1.0
  %v913 = vadd.f32 %v881, 1.0
  %v914 = vrcp.pop %v882
  %v915 = vmul.f32 1.0, %v914
  %v916 = vrcp.pop %v883
  %v917 = vmul.f32 1.0, %v916
  %v918 = vrcp.pop %v884
  %v919 = vmul.f32 1.0, %v918
  %v920 = vrcp.pop %v885
  %v921 = vmul.f32 1.0, %v920
  %v922 = vrcp.pop %v886
  %v923 = vmul.f32 1.0, %v922
  %v924 = vrcp.pop %v887
  %v925 = vmul.f32 1.0, %v924
  %v926 = vrcp.pop %v888
  %v927 = vmul.f32 1.0, %v926
  %v928 = vrcp.pop %v889
  %v929 = vmul.f32 1.0, %v928
  %v930 = vrcp.pop %v890
  %v931 = vmul.f32 1.0, %v930
  %v932 = vrcp.pop %v891
  %v933 = vmul.f32 1.0, %v932
  %v934 = vrcp.pop %v892
  %v935 = vmul.f32 1.0, %v934
  %v936 = vrcp.pop %v893
  %v937 = vmul.f32 1.0, %v936
  %v938 = vrcp.pop %v894
  %v939 = vmul.f32 1.0, %v938
  %v940 = vrcp.pop %v895
  %v941 = vmul.f32 1.0, %v940
  %v942 = vrcp.pop %v896
  %v943 = vmul.f32 1.0, %v942
  %v944 = vrcp.pop %v897
  %v945 = vmul.f32 1.0, %v944
  %v946 = vrcp.pop %v898
  %v947 = vmul.f32 1.0, %v946
  %v948 = vrcp.pop %v899
  %v949 = vmul.f32 1.0, %v948
  %v950 = vrcp.pop %v900
  %v951 = vmul.f32 1.0, %v950
  %v952 = vrcp.pop %v901
  %v953 = vmul.f32 1.0, %v952
  %v954 = vrcp.pop %v902
  %v955 = vmul.f32 1.0, %v954
  %v956 = vrcp.pop %v903
  %v957 = vmul.f32 1.0, %v956
  %v958 = vrcp.pop %v904
  %v959 = vmul.f32 1.0, %v958
  %v960 = vrcp.pop %v905
  %v961 = vmul.f32 1.0, %v960
  %v962 = vrcp.pop %v906
  %v963 = vmul.f32 1.0, %v962
  %v964 = vrcp.pop %v907
  %v965 = vmul.f32 1.0, %v964
  %v966 = vrcp.pop %v908
  %v967 = vmul.f32 1.0, %v966
  %v968 = vrcp.pop %v909
  %v969 = vmul.f32 1.0, %v968
  %v970 = vrcp.pop %v910
  %v971 = vmul.f32 1.0, %v970
  %v972 = vrcp.pop %v911
  %v973 = vmul.f32 1.0, %v972
  %v974 = vrcp.pop %v912
  %v975 = vmul.f32 1.0, %v974
  %v976 = vrcp.pop %v913
  %v977 = vmul.f32 1.0, %v976
  %1010 = vrot.lane.b32.xlu0 %v915, 96
  %v1011 = vpop.permute.xlu0 %1010
  %1012 = vrot.lane.b32.xlu0 %v917, 96
  %v1013 = vpop.permute.xlu0 %1012
  %1014 = vrot.lane.b32.xlu0 %v919, 96
  %v1015 = vpop.permute.xlu0 %1014
  %1016 = vrot.lane.b32.xlu0 %v921, 96
  %v1017 = vpop.permute.xlu0 %1016
  %1018 = vrot.lane.b32.xlu0 %v923, 96
  %v1019 = vpop.permute.xlu0 %1018
  %1020 = vrot.lane.b32.xlu0 %v925, 96
  %v1021 = vpop.permute.xlu0 %1020
  %1022 = vrot.lane.b32.xlu0 %v927, 96
  %v1023 = vpop.permute.xlu0 %1022
  %1024 = vrot.lane.b32.xlu0 %v929, 96
  %v1025 = vpop.permute.xlu0 %1024
  %1026 = vrot.lane.b32.xlu0 %v931, 96
  %v1027 = vpop.permute.xlu0 %1026
  %1028 = vrot.lane.b32.xlu0 %v933, 96
  %v1029 = vpop.permute.xlu0 %1028
  %1030 = vrot.lane.b32.xlu0 %v935, 96
  %v1031 = vpop.permute.xlu0 %1030
  %1032 = vrot.lane.b32.xlu0 %v937, 96
  %v1033 = vpop.permute.xlu0 %1032
  %1034 = vrot.lane.b32.xlu0 %v939, 96
  %v1035 = vpop.permute.xlu0 %1034
  %1036 = vrot.lane.b32.xlu0 %v941, 96
  %v1037 = vpop.permute.xlu0 %1036
  %1038 = vrot.lane.b32.xlu0 %v943, 96
  %v1039 = vpop.permute.xlu0 %1038
  %1040 = vrot.lane.b32.xlu0 %v945, 96
  %v1041 = vpop.permute.xlu0 %1040
  %1042 = vrot.lane.b32.xlu0 %v947, 96
  %v1043 = vpop.permute.xlu0 %1042
  %1044 = vrot.lane.b32.xlu0 %v949, 96
  %v1045 = vpop.permute.xlu0 %1044
  %1046 = vrot.lane.b32.xlu0 %v951, 96
  %v1047 = vpop.permute.xlu0 %1046
  %1048 = vrot.lane.b32.xlu0 %v953, 96
  %v1049 = vpop.permute.xlu0 %1048
  %1050 = vrot.lane.b32.xlu0 %v955, 96
  %v1051 = vpop.permute.xlu0 %1050
  %1052 = vrot.lane.b32.xlu0 %v957, 96
  %v1053 = vpop.permute.xlu0 %1052
  %1054 = vrot.lane.b32.xlu0 %v959, 96
  %v1055 = vpop.permute.xlu0 %1054
  %1056 = vrot.lane.b32.xlu0 %v961, 96
  %v1057 = vpop.permute.xlu0 %1056
  %1058 = vrot.lane.b32.xlu0 %v963, 96
  %v1059 = vpop.permute.xlu0 %1058
  %1060 = vrot.lane.b32.xlu0 %v965, 96
  %v1061 = vpop.permute.xlu0 %1060
  %1062 = vrot.lane.b32.xlu0 %v967, 96
  %v1063 = vpop.permute.xlu0 %1062
  %1064 = vrot.lane.b32.xlu0 %v969, 96
  %v1065 = vpop.permute.xlu0 %1064
  %1066 = vrot.lane.b32.xlu0 %v971, 96
  %v1067 = vpop.permute.xlu0 %1066
  %1068 = vrot.lane.b32.xlu0 %v973, 96
  %v1069 = vpop.permute.xlu0 %1068
  %1070 = vrot.lane.b32.xlu0 %v975, 96
  %v1071 = vpop.permute.xlu0 %1070
  %1072 = vrot.lane.b32.xlu0 %v977, 96
  %v1073 = vpop.permute.xlu0 %1072
  %v1106 = vmul.f32 %v754, %v1011
  %v1107 = vmul.f32 %v755, %v1013
  %v1108 = vmul.f32 %v756, %v1015
  %v1109 = vmul.f32 %v757, %v1017
  %v1110 = vmul.f32 %v758, %v1019
  %v1111 = vmul.f32 %v759, %v1021
  %v1112 = vmul.f32 %v760, %v1023
  %v1113 = vmul.f32 %v761, %v1025
  %v1114 = vmul.f32 %v762, %v1027
  %v1115 = vmul.f32 %v763, %v1029
  %v1116 = vmul.f32 %v764, %v1031
  %v1117 = vmul.f32 %v765, %v1033
  %v1118 = vmul.f32 %v766, %v1035
  %v1119 = vmul.f32 %v767, %v1037
  %v1120 = vmul.f32 %v768, %v1039
  %v1121 = vmul.f32 %v769, %v1041
  %v1122 = vmul.f32 %v770, %v1043
  %v1123 = vmul.f32 %v771, %v1045
  %v1124 = vmul.f32 %v772, %v1047
  %v1125 = vmul.f32 %v773, %v1049
  %v1126 = vmul.f32 %v774, %v1051
  %v1127 = vmul.f32 %v775, %v1053
  %v1128 = vmul.f32 %v776, %v1055
  %v1129 = vmul.f32 %v777, %v1057
  %v1130 = vmul.f32 %v778, %v1059
  %v1131 = vmul.f32 %v779, %v1061
  %v1132 = vmul.f32 %v780, %v1063
  %v1133 = vmul.f32 %v781, %v1065
  %v1134 = vmul.f32 %v782, %v1067
  %v1135 = vmul.f32 %v783, %v1069
  %v1136 = vmul.f32 %v784, %v1071
  %v1137 = vmul.f32 %v785, %v1073
  %1138 = vst.msk [vmem:[%s11] sm:$0xff] %vm166, %v1106
  %1139 = vst.msk [vmem:[%s11 + $0x8] sm:$0xff] %vm166, %v1107
  %1140 = vst.msk [vmem:[%s11 + $0x10] sm:$0xff] %vm166, %v1108
  %1141 = vst.msk [vmem:[%s11 + $0x18] sm:$0xff] %vm166, %v1109
  %1142 = vst.msk [vmem:[%s11 + $0x20] sm:$0xff] %vm166, %v1110
  %1143 = vst.msk [vmem:[%s11 + $0x28] sm:$0xff] %vm166, %v1111
  %1144 = vst.msk [vmem:[%s11 + $0x30] sm:$0xff] %vm166, %v1112
  %1145 = vst.msk [vmem:[%s11 + $0x38] sm:$0xff] %vm166, %v1113
  %1146 = vst.msk [vmem:[%s11 + $0x40] sm:$0xff] %vm166, %v1114
  %1147 = vst.msk [vmem:[%s11 + $0x48] sm:$0xff] %vm166, %v1115
  %1148 = vst.msk [vmem:[%s11 + $0x50] sm:$0xff] %vm166, %v1116
  %1149 = vst.msk [vmem:[%s11 + $0x58] sm:$0xff] %vm166, %v1117
  %1150 = vst.msk [vmem:[%s11 + $0x60] sm:$0xff] %vm166, %v1118
  %1151 = vst.msk [vmem:[%s11 + $0x68] sm:$0xff] %vm166, %v1119
  %1152 = vst.msk [vmem:[%s11 + $0x70] sm:$0xff] %vm166, %v1120
  %1153 = vst.msk [vmem:[%s11 + $0x78] sm:$0xff] %vm166, %v1121
  %1154 = vst.msk [vmem:[%s11 + $0x80] sm:$0xff] %vm166, %v1122
  %1155 = vst.msk [vmem:[%s11 + $0x88] sm:$0xff] %vm166, %v1123
  %1156 = vst.msk [vmem:[%s11 + $0x90] sm:$0xff] %vm166, %v1124
  %1157 = vst.msk [vmem:[%s11 + $0x98] sm:$0xff] %vm166, %v1125
  %1158 = vst.msk [vmem:[%s11 + $0xa0] sm:$0xff] %vm166, %v1126
  %1159 = vst.msk [vmem:[%s11 + $0xa8] sm:$0xff] %vm166, %v1127
  %1160 = vst.msk [vmem:[%s11 + $0xb0] sm:$0xff] %vm166, %v1128
  %1161 = vst.msk [vmem:[%s11 + $0xb8] sm:$0xff] %vm166, %v1129
  %1162 = vst.msk [vmem:[%s11 + $0xc0] sm:$0xff] %vm166, %v1130
  %1163 = vst.msk [vmem:[%s11 + $0xc8] sm:$0xff] %vm166, %v1131
  %1164 = vst.msk [vmem:[%s11 + $0xd0] sm:$0xff] %vm166, %v1132
  %1165 = vst.msk [vmem:[%s11 + $0xd8] sm:$0xff] %vm166, %v1133
  %1166 = vst.msk [vmem:[%s11 + $0xe0] sm:$0xff] %vm166, %v1134
  %1167 = vst.msk [vmem:[%s11 + $0xe8] sm:$0xff] %vm166, %v1135
  %1168 = vst.msk [vmem:[%s11 + $0xf0] sm:$0xff] %vm166, %v1136
  %1169 = vst.msk [vmem:[%s11 + $0xf8] sm:$0xff] %vm166, %v1137
  %1170 = vmatprep.subr.mxu0 0.0
  %1171 = vmatpush1.msra.mxu0 %v1121
  %1172 = vmatprep.subr.mxu0 0.0
  %1173 = vmatpush1.msra.mxu0 %v1120
  %1174 = vmatprep.subr.mxu0 0.0
  %1175 = vmatpush1.msra.mxu0 %v1119
  %1176 = vmatprep.subr.mxu0 0.0
  %1177 = vmatpush1.msra.mxu0 %v1118
  %1178 = vmatprep.subr.mxu0 0.0
  %1179 = vmatpush1.msra.mxu0 %v1117
  %1180 = vmatprep.subr.mxu0 0.0
  %1181 = vmatpush1.msra.mxu0 %v1116
  %1182 = vmatprep.subr.mxu0 0.0
  %1183 = vmatpush1.msra.mxu0 %v1115
  %1184 = vmatprep.subr.mxu0 0.0
  %1185 = vmatpush1.msra.mxu0 %v1114
  %1186 = vmatprep.subr.mxu0 0.0
  %1187 = vmatpush1.msra.mxu0 %v1113
  %1188 = vmatprep.subr.mxu0 0.0
  %1189 = vmatpush1.msra.mxu0 %v1112
  %1190 = vmatprep.subr.mxu0 0.0
  %1191 = vmatpush1.msra.mxu0 %v1111
  %1192 = vmatprep.subr.mxu0 0.0
  %1193 = vmatpush1.msra.mxu0 %v1110
  %1194 = vmatprep.subr.mxu0 0.0
  %1195 = vmatpush1.msra.mxu0 %v1109
  %1196 = vmatprep.subr.mxu0 0.0
  %1197 = vmatpush1.msra.mxu0 %v1108
  %1198 = vmatprep.subr.mxu0 0.0
  %1199 = vmatpush1.msra.mxu0 %v1107
  %1200 = vmatprep.subr.mxu0 0.0
  %1201 = vmatpush1.msra.mxu0 %v1106
  %1202 = vmatprep.subr.mxu0 0.0
  %1203 = vmatpush2.msra.mxu0 %v1137
  %1204 = vmatprep.subr.mxu0 0.0
  %1205 = vmatpush2.msra.mxu0 %v1136
  %1206 = vmatprep.subr.mxu0 0.0
  %1207 = vmatpush2.msra.mxu0 %v1135
  %1208 = vmatprep.subr.mxu0 0.0
  %1209 = vmatpush2.msra.mxu0 %v1134
  %1210 = vmatprep.subr.mxu0 0.0
  %1211 = vmatpush2.msra.mxu0 %v1133
  %1212 = vmatprep.subr.mxu0 0.0
  %1213 = vmatpush2.msra.mxu0 %v1132
  %1214 = vmatprep.subr.mxu0 0.0
  %1215 = vmatpush2.msra.mxu0 %v1131
  %1216 = vmatprep.subr.mxu0 0.0
  %1217 = vmatpush2.msra.mxu0 %v1130
  %1218 = vmatprep.subr.mxu0 0.0
  %1219 = vmatpush2.msra.mxu0 %v1129
  %1220 = vmatprep.subr.mxu0 0.0
  %1221 = vmatpush2.msra.mxu0 %v1128
  %1222 = vmatprep.subr.mxu0 0.0
  %1223 = vmatpush2.msra.mxu0 %v1127
  %1224 = vmatprep.subr.mxu0 0.0
  %1225 = vmatpush2.msra.mxu0 %v1126
  %1226 = vmatprep.subr.mxu0 0.0
  %1227 = vmatpush2.msra.mxu0 %v1125
  %1228 = vmatprep.subr.mxu0 0.0
  %1229 = vmatpush2.msra.mxu0 %v1124
  %1230 = vmatprep.subr.mxu0 0.0
  %1231 = vmatpush2.msra.mxu0 %v1123
  %1232 = vmatprep.subr.mxu0 0.0
  %1233 = vmatpush2.msra.mxu0 %v1122
  %1234 = vmatprep.mubr.f32.mxu0 %v85
  %1235 = vmatmul.mubr.f32.gmra.mxu0 %v84
  %v1236 = vpop.f32.mrf.mxu0
  %v1237 = vadd.f32 0.0, %v1236
  %v1238 = vpop.f32.mrf.mxu0
  %1239 = vmatprep.mubr.f32.mxu0 %v87
  %1240 = vmatmul.mubr.f32.gmra.mxu0 %v86
  %v1241 = vpop.f32.mrf.mxu0
  %v1242 = vadd.f32 0.0, %v1241
  %v1243 = vpop.f32.mrf.mxu0
  %1244 = vmatprep.mubr.f32.mxu0 %v89
  %1245 = vmatmul.mubr.f32.gmra.mxu0 %v88
  %v1246 = vpop.f32.mrf.mxu0
  %v1247 = vadd.f32 0.0, %v1246
  %v1248 = vpop.f32.mrf.mxu0
  %1249 = vmatprep.mubr.f32.mxu0 %v91
  %1250 = vmatmul.mubr.f32.gmra.mxu0 %v90
  %v1251 = vpop.f32.mrf.mxu0
  %v1252 = vadd.f32 0.0, %v1251
  %v1253 = vpop.f32.mrf.mxu0
  %1254 = vmatprep.mubr.f32.mxu0 %v93
  %1255 = vmatmul.mubr.f32.gmra.mxu0 %v92
  %v1256 = vpop.f32.mrf.mxu0
  %v1257 = vadd.f32 0.0, %v1256
  %v1258 = vpop.f32.mrf.mxu0
  %1259 = vmatprep.mubr.f32.mxu0 %v95
  %1260 = vmatmul.mubr.f32.gmra.mxu0 %v94
  %v1261 = vpop.f32.mrf.mxu0
  %v1262 = vadd.f32 0.0, %v1261
  %v1263 = vpop.f32.mrf.mxu0
  %1264 = vmatprep.mubr.f32.mxu0 %v97
  %1265 = vmatmul.mubr.f32.gmra.mxu0 %v96
  %v1266 = vpop.f32.mrf.mxu0
  %v1267 = vadd.f32 0.0, %v1266
  %v1268 = vpop.f32.mrf.mxu0
  %1269 = vmatprep.mubr.f32.mxu0 %v99
  %1270 = vmatmul.mubr.f32.gmra.mxu0 %v98
  %v1271 = vpop.f32.mrf.mxu0
  %v1272 = vadd.f32 0.0, %v1271
  %v1273 = vpop.f32.mrf.mxu0
  %1274 = vmatprep.mubr.f32.mxu0 %v101
  %1275 = vmatmul.mubr.f32.gmra.mxu0 %v100
  %v1276 = vpop.f32.mrf.mxu0
  %v1277 = vadd.f32 0.0, %v1276
  %v1278 = vpop.f32.mrf.mxu0
  %1279 = vmatprep.mubr.f32.mxu0 %v103
  %1280 = vmatmul.mubr.f32.gmra.mxu0 %v102
  %v1281 = vpop.f32.mrf.mxu0
  %v1282 = vadd.f32 0.0, %v1281
  %v1283 = vpop.f32.mrf.mxu0
  %1284 = vmatprep.mubr.f32.mxu0 %v105
  %1285 = vmatmul.mubr.f32.gmra.mxu0 %v104
  %v1286 = vpop.f32.mrf.mxu0
  %v1287 = vadd.f32 0.0, %v1286
  %v1288 = vpop.f32.mrf.mxu0
  %1289 = vmatprep.mubr.f32.mxu0 %v107
  %1290 = vmatmul.mubr.f32.gmra.mxu0 %v106
  %v1291 = vpop.f32.mrf.mxu0
  %v1292 = vadd.f32 0.0, %v1291
  %v1293 = vpop.f32.mrf.mxu0
  %1294 = vmatprep.mubr.f32.mxu0 %v109
  %1295 = vmatmul.mubr.f32.gmra.mxu0 %v108
  %v1296 = vpop.f32.mrf.mxu0
  %v1297 = vadd.f32 0.0, %v1296
  %v1298 = vpop.f32.mrf.mxu0
  %1299 = vmatprep.mubr.f32.mxu0 %v111
  %1300 = vmatmul.mubr.f32.gmra.mxu0 %v110
  %v1301 = vpop.f32.mrf.mxu0
  %v1302 = vadd.f32 0.0, %v1301
  %v1303 = vpop.f32.mrf.mxu0
  %1304 = vmatprep.mubr.f32.mxu0 %v113
  %1305 = vmatmul.mubr.f32.gmra.mxu0 %v112
  %v1306 = vpop.f32.mrf.mxu0
  %v1307 = vadd.f32 0.0, %v1306
  %v1308 = vpop.f32.mrf.mxu0
  %1309 = vmatprep.mubr.f32.mxu0 %v115
  %1310 = vmatmul.mubr.f32.gmra.mxu0 %v114
  %v1311 = vpop.f32.mrf.mxu0
  %v1312 = vadd.f32 0.0, %v1311
  %v1313 = vpop.f32.mrf.mxu0
  %1314 = vmatprep.mubr.f32.mxu0 %v117
  %1315 = vmatmul.mubr.f32.gmra.mxu0 %v116
  %v1316 = vpop.f32.mrf.mxu0
  %v1317 = vadd.f32 0.0, %v1316
  %v1318 = vpop.f32.mrf.mxu0
  %1319 = vmatprep.mubr.f32.mxu0 %v119
  %1320 = vmatmul.mubr.f32.gmra.mxu0 %v118
  %v1321 = vpop.f32.mrf.mxu0
  %v1322 = vadd.f32 0.0, %v1321
  %v1323 = vpop.f32.mrf.mxu0
  %1324 = vmatprep.mubr.f32.mxu0 %v121
  %1325 = vmatmul.mubr.f32.gmra.mxu0 %v120
  %v1326 = vpop.f32.mrf.mxu0
  %v1327 = vadd.f32 0.0, %v1326
  %v1328 = vpop.f32.mrf.mxu0
  %1329 = vmatprep.mubr.f32.mxu0 %v123
  %1330 = vmatmul.mubr.f32.gmra.mxu0 %v122
  %v1331 = vpop.f32.mrf.mxu0
  %v1332 = vadd.f32 0.0, %v1331
  %v1333 = vpop.f32.mrf.mxu0
  %1334 = vmatprep.mubr.f32.mxu0 %v125
  %1335 = vmatmul.mubr.f32.gmra.mxu0 %v124
  %v1336 = vpop.f32.mrf.mxu0
  %v1337 = vadd.f32 0.0, %v1336
  %v1338 = vpop.f32.mrf.mxu0
  %1339 = vmatprep.mubr.f32.mxu0 %v127
  %1340 = vmatmul.mubr.f32.gmra.mxu0 %v126
  %v1341 = vpop.f32.mrf.mxu0
  %v1342 = vadd.f32 0.0, %v1341
  %v1343 = vpop.f32.mrf.mxu0
  %1344 = vmatprep.mubr.f32.mxu0 %v129
  %1345 = vmatmul.mubr.f32.gmra.mxu0 %v128
  %v1346 = vpop.f32.mrf.mxu0
  %v1347 = vadd.f32 0.0, %v1346
  %v1348 = vpop.f32.mrf.mxu0
  %1349 = vmatprep.mubr.f32.mxu0 %v131
  %1350 = vmatmul.mubr.f32.gmra.mxu0 %v130
  %v1351 = vpop.f32.mrf.mxu0
  %v1352 = vadd.f32 0.0, %v1351
  %v1353 = vpop.f32.mrf.mxu0
  %1354 = vmatprep.mubr.f32.mxu0 %v133
  %1355 = vmatmul.mubr.f32.gmra.mxu0 %v132
  %v1356 = vpop.f32.mrf.mxu0
  %v1357 = vadd.f32 0.0, %v1356
  %v1358 = vpop.f32.mrf.mxu0
  %1359 = vmatprep.mubr.f32.mxu0 %v135
  %1360 = vmatmul.mubr.f32.gmra.mxu0 %v134
  %v1361 = vpop.f32.mrf.mxu0
  %v1362 = vadd.f32 0.0, %v1361
  %v1363 = vpop.f32.mrf.mxu0
  %1364 = vmatprep.mubr.f32.mxu0 %v137
  %1365 = vmatmul.mubr.f32.gmra.mxu0 %v136
  %v1366 = vpop.f32.mrf.mxu0
  %v1367 = vadd.f32 0.0, %v1366
  %v1368 = vpop.f32.mrf.mxu0
  %1369 = vmatprep.mubr.f32.mxu0 %v139
  %1370 = vmatmul.mubr.f32.gmra.mxu0 %v138
  %v1371 = vpop.f32.mrf.mxu0
  %v1372 = vadd.f32 0.0, %v1371
  %v1373 = vpop.f32.mrf.mxu0
  %1374 = vmatprep.mubr.f32.mxu0 %v141
  %1375 = vmatmul.mubr.f32.gmra.mxu0 %v140
  %v1376 = vpop.f32.mrf.mxu0
  %v1377 = vadd.f32 0.0, %v1376
  %v1378 = vpop.f32.mrf.mxu0
  %1379 = vmatprep.mubr.f32.mxu0 %v143
  %1380 = vmatmul.mubr.f32.gmra.mxu0 %v142
  %v1381 = vpop.f32.mrf.mxu0
  %v1382 = vadd.f32 0.0, %v1381
  %v1383 = vpop.f32.mrf.mxu0
  %1384 = vmatprep.mubr.f32.mxu0 %v145
  %1385 = vmatmul.mubr.f32.gmra.mxu0 %v144
  %v1386 = vpop.f32.mrf.mxu0
  %v1387 = vadd.f32 0.0, %v1386
  %v1388 = vpop.f32.mrf.mxu0
  %1389 = vmatprep.mubr.f32.mxu0 %v147
  %1390 = vmatmul.mubr.f32.gmra.mxu0 %v146
  %v1391 = vpop.f32.mrf.mxu0
  %v1392 = vadd.f32 0.0, %v1391
  %v1393 = vpop.f32.mrf.mxu0
  %1394 = vdwg.mxu0
  %1395 = vmatprep.subr.mxu0 0.0
  %1396 = vmatpush1.msra.mxu0 %v1312
  %1397 = vmatprep.subr.mxu0 0.0
  %1398 = vmatpush1.msra.mxu0 %v1307
  %1399 = vmatprep.subr.mxu0 0.0
  %1400 = vmatpush1.msra.mxu0 %v1302
  %1401 = vmatprep.subr.mxu0 0.0
  %1402 = vmatpush1.msra.mxu0 %v1297
  %1403 = vmatprep.subr.mxu0 0.0
  %1404 = vmatpush1.msra.mxu0 %v1292
  %1405 = vmatprep.subr.mxu0 0.0
  %1406 = vmatpush1.msra.mxu0 %v1287
  %1407 = vmatprep.subr.mxu0 0.0
  %1408 = vmatpush1.msra.mxu0 %v1282
  %1409 = vmatprep.subr.mxu0 0.0
  %1410 = vmatpush1.msra.mxu0 %v1277
  %1411 = vmatprep.subr.mxu0 0.0
  %1412 = vmatpush1.msra.mxu0 %v1272
  %1413 = vmatprep.subr.mxu0 0.0
  %1414 = vmatpush1.msra.mxu0 %v1267
  %1415 = vmatprep.subr.mxu0 0.0
  %1416 = vmatpush1.msra.mxu0 %v1262
  %1417 = vmatprep.subr.mxu0 0.0
  %1418 = vmatpush1.msra.mxu0 %v1257
  %1419 = vmatprep.subr.mxu0 0.0
  %1420 = vmatpush1.msra.mxu0 %v1252
  %1421 = vmatprep.subr.mxu0 0.0
  %1422 = vmatpush1.msra.mxu0 %v1247
  %1423 = vmatprep.subr.mxu0 0.0
  %1424 = vmatpush1.msra.mxu0 %v1242
  %1425 = vmatprep.subr.mxu0 0.0
  %1426 = vmatpush1.msra.mxu0 %v1237
  %1427 = vmatprep.subr.mxu0 0.0
  %1428 = vmatpush2.msra.mxu0 %v1392
  %1429 = vmatprep.subr.mxu0 0.0
  %1430 = vmatpush2.msra.mxu0 %v1387
  %1431 = vmatprep.subr.mxu0 0.0
  %1432 = vmatpush2.msra.mxu0 %v1382
  %1433 = vmatprep.subr.mxu0 0.0
  %1434 = vmatpush2.msra.mxu0 %v1377
  %1435 = vmatprep.subr.mxu0 0.0
  %1436 = vmatpush2.msra.mxu0 %v1372
  %1437 = vmatprep.subr.mxu0 0.0
  %1438 = vmatpush2.msra.mxu0 %v1367
  %1439 = vmatprep.subr.mxu0 0.0
  %1440 = vmatpush2.msra.mxu0 %v1362
  %1441 = vmatprep.subr.mxu0 0.0
  %1442 = vmatpush2.msra.mxu0 %v1357
  %1443 = vmatprep.subr.mxu0 0.0
  %1444 = vmatpush2.msra.mxu0 %v1352
  %1445 = vmatprep.subr.mxu0 0.0
  %1446 = vmatpush2.msra.mxu0 %v1347
  %1447 = vmatprep.subr.mxu0 0.0
  %1448 = vmatpush2.msra.mxu0 %v1342
  %1449 = vmatprep.subr.mxu0 0.0
  %1450 = vmatpush2.msra.mxu0 %v1337
  %1451 = vmatprep.subr.mxu0 0.0
  %1452 = vmatpush2.msra.mxu0 %v1332
  %1453 = vmatprep.subr.mxu0 0.0
  %1454 = vmatpush2.msra.mxu0 %v1327
  %1455 = vmatprep.subr.mxu0 0.0
  %1456 = vmatpush2.msra.mxu0 %v1322
  %1457 = vmatprep.subr.mxu0 0.0
  %1458 = vmatpush2.msra.mxu0 %v1317
  %1459 = vmatprep.mubr.f32.mxu0 %v85
  %1460 = vmatmul.mubr.f32.gmra.mxu0 %v84
  %v1461 = vpop.f32.mrf.mxu0
  %v1462 = vadd.f32 0.0, %v1461
  %v1463 = vpop.f32.mrf.mxu0
  %1464 = vmatprep.mubr.f32.mxu0 %v87
  %1465 = vmatmul.mubr.f32.gmra.mxu0 %v86
  %v1466 = vpop.f32.mrf.mxu0
  %v1467 = vadd.f32 0.0, %v1466
  %v1468 = vpop.f32.mrf.mxu0
  %1469 = vmatprep.mubr.f32.mxu0 %v89
  %1470 = vmatmul.mubr.f32.gmra.mxu0 %v88
  %v1471 = vpop.f32.mrf.mxu0
  %v1472 = vadd.f32 0.0, %v1471
  %v1473 = vpop.f32.mrf.mxu0
  %1474 = vmatprep.mubr.f32.mxu0 %v91
  %1475 = vmatmul.mubr.f32.gmra.mxu0 %v90
  %v1476 = vpop.f32.mrf.mxu0
  %v1477 = vadd.f32 0.0, %v1476
  %v1478 = vpop.f32.mrf.mxu0
  %1479 = vmatprep.mubr.f32.mxu0 %v93
  %1480 = vmatmul.mubr.f32.gmra.mxu0 %v92
  %v1481 = vpop.f32.mrf.mxu0
  %v1482 = vadd.f32 0.0, %v1481
  %v1483 = vpop.f32.mrf.mxu0
  %1484 = vmatprep.mubr.f32.mxu0 %v95
  %1485 = vmatmul.mubr.f32.gmra.mxu0 %v94
  %v1486 = vpop.f32.mrf.mxu0
  %v1487 = vadd.f32 0.0, %v1486
  %v1488 = vpop.f32.mrf.mxu0
  %1489 = vmatprep.mubr.f32.mxu0 %v97
  %1490 = vmatmul.mubr.f32.gmra.mxu0 %v96
  %v1491 = vpop.f32.mrf.mxu0
  %v1492 = vadd.f32 0.0, %v1491
  %v1493 = vpop.f32.mrf.mxu0
  %1494 = vmatprep.mubr.f32.mxu0 %v99
  %1495 = vmatmul.mubr.f32.gmra.mxu0 %v98
  %v1496 = vpop.f32.mrf.mxu0
  %v1497 = vadd.f32 0.0, %v1496
  %v1498 = vpop.f32.mrf.mxu0
  %1499 = vmatprep.mubr.f32.mxu0 %v101
  %1500 = vmatmul.mubr.f32.gmra.mxu0 %v100
  %v1501 = vpop.f32.mrf.mxu0
  %v1502 = vadd.f32 0.0, %v1501
  %v1503 = vpop.f32.mrf.mxu0
  %1504 = vmatprep.mubr.f32.mxu0 %v103
  %1505 = vmatmul.mubr.f32.gmra.mxu0 %v102
  %v1506 = vpop.f32.mrf.mxu0
  %v1507 = vadd.f32 0.0, %v1506
  %v1508 = vpop.f32.mrf.mxu0
  %1509 = vmatprep.mubr.f32.mxu0 %v105
  %1510 = vmatmul.mubr.f32.gmra.mxu0 %v104
  %v1511 = vpop.f32.mrf.mxu0
  %v1512 = vadd.f32 0.0, %v1511
  %v1513 = vpop.f32.mrf.mxu0
  %1514 = vmatprep.mubr.f32.mxu0 %v107
  %1515 = vmatmul.mubr.f32.gmra.mxu0 %v106
  %v1516 = vpop.f32.mrf.mxu0
  %v1517 = vadd.f32 0.0, %v1516
  %v1518 = vpop.f32.mrf.mxu0
  %1519 = vmatprep.mubr.f32.mxu0 %v109
  %1520 = vmatmul.mubr.f32.gmra.mxu0 %v108
  %v1521 = vpop.f32.mrf.mxu0
  %v1522 = vadd.f32 0.0, %v1521
  %v1523 = vpop.f32.mrf.mxu0
  %1524 = vmatprep.mubr.f32.mxu0 %v111
  %1525 = vmatmul.mubr.f32.gmra.mxu0 %v110
  %v1526 = vpop.f32.mrf.mxu0
  %v1527 = vadd.f32 0.0, %v1526
  %v1528 = vpop.f32.mrf.mxu0
  %1529 = vmatprep.mubr.f32.mxu0 %v113
  %1530 = vmatmul.mubr.f32.gmra.mxu0 %v112
  %v1531 = vpop.f32.mrf.mxu0
  %v1532 = vadd.f32 0.0, %v1531
  %v1533 = vpop.f32.mrf.mxu0
  %1534 = vmatprep.mubr.f32.mxu0 %v115
  %1535 = vmatmul.mubr.f32.gmra.mxu0 %v114
  %v1536 = vpop.f32.mrf.mxu0
  %v1537 = vadd.f32 0.0, %v1536
  %v1538 = vpop.f32.mrf.mxu0
  %1539 = vmatprep.mubr.f32.mxu0 %v117
  %1540 = vmatmul.mubr.f32.gmra.mxu0 %v116
  %v1541 = vpop.f32.mrf.mxu0
  %v1542 = vadd.f32 0.0, %v1541
  %v1543 = vpop.f32.mrf.mxu0
  %1544 = vmatprep.mubr.f32.mxu0 %v119
  %1545 = vmatmul.mubr.f32.gmra.mxu0 %v118
  %v1546 = vpop.f32.mrf.mxu0
  %v1547 = vadd.f32 0.0, %v1546
  %v1548 = vpop.f32.mrf.mxu0
  %1549 = vmatprep.mubr.f32.mxu0 %v121
  %1550 = vmatmul.mubr.f32.gmra.mxu0 %v120
  %v1551 = vpop.f32.mrf.mxu0
  %v1552 = vadd.f32 0.0, %v1551
  %v1553 = vpop.f32.mrf.mxu0
  %1554 = vmatprep.mubr.f32.mxu0 %v123
  %1555 = vmatmul.mubr.f32.gmra.mxu0 %v122
  %v1556 = vpop.f32.mrf.mxu0
  %v1557 = vadd.f32 0.0, %v1556
  %v1558 = vpop.f32.mrf.mxu0
  %1559 = vmatprep.mubr.f32.mxu0 %v125
  %1560 = vmatmul.mubr.f32.gmra.mxu0 %v124
  %v1561 = vpop.f32.mrf.mxu0
  %v1562 = vadd.f32 0.0, %v1561
  %v1563 = vpop.f32.mrf.mxu0
  %1564 = vmatprep.mubr.f32.mxu0 %v127
  %1565 = vmatmul.mubr.f32.gmra.mxu0 %v126
  %v1566 = vpop.f32.mrf.mxu0
  %v1567 = vadd.f32 0.0, %v1566
  %v1568 = vpop.f32.mrf.mxu0
  %1569 = vmatprep.mubr.f32.mxu0 %v129
  %1570 = vmatmul.mubr.f32.gmra.mxu0 %v128
  %v1571 = vpop.f32.mrf.mxu0
  %v1572 = vadd.f32 0.0, %v1571
  %v1573 = vpop.f32.mrf.mxu0
  %1574 = vmatprep.mubr.f32.mxu0 %v131
  %1575 = vmatmul.mubr.f32.gmra.mxu0 %v130
  %v1576 = vpop.f32.mrf.mxu0
  %v1577 = vadd.f32 0.0, %v1576
  %v1578 = vpop.f32.mrf.mxu0
  %1579 = vmatprep.mubr.f32.mxu0 %v133
  %1580 = vmatmul.mubr.f32.gmra.mxu0 %v132
  %v1581 = vpop.f32.mrf.mxu0
  %v1582 = vadd.f32 0.0, %v1581
  %v1583 = vpop.f32.mrf.mxu0
  %1584 = vmatprep.mubr.f32.mxu0 %v135
  %1585 = vmatmul.mubr.f32.gmra.mxu0 %v134
  %v1586 = vpop.f32.mrf.mxu0
  %v1587 = vadd.f32 0.0, %v1586
  %v1588 = vpop.f32.mrf.mxu0
  %1589 = vmatprep.mubr.f32.mxu0 %v137
  %1590 = vmatmul.mubr.f32.gmra.mxu0 %v136
  %v1591 = vpop.f32.mrf.mxu0
  %v1592 = vadd.f32 0.0, %v1591
  %v1593 = vpop.f32.mrf.mxu0
  %1594 = vmatprep.mubr.f32.mxu0 %v139
  %1595 = vmatmul.mubr.f32.gmra.mxu0 %v138
  %v1596 = vpop.f32.mrf.mxu0
  %v1597 = vadd.f32 0.0, %v1596
  %v1598 = vpop.f32.mrf.mxu0
  %1599 = vmatprep.mubr.f32.mxu0 %v141
  %1600 = vmatmul.mubr.f32.gmra.mxu0 %v140
  %v1601 = vpop.f32.mrf.mxu0
  %v1602 = vadd.f32 0.0, %v1601
  %v1603 = vpop.f32.mrf.mxu0
  %1604 = vmatprep.mubr.f32.mxu0 %v143
  %1605 = vmatmul.mubr.f32.gmra.mxu0 %v142
  %v1606 = vpop.f32.mrf.mxu0
  %v1607 = vadd.f32 0.0, %v1606
  %v1608 = vpop.f32.mrf.mxu0
  %1609 = vmatprep.mubr.f32.mxu0 %v145
  %1610 = vmatmul.mubr.f32.gmra.mxu0 %v144
  %v1611 = vpop.f32.mrf.mxu0
  %v1612 = vadd.f32 0.0, %v1611
  %v1613 = vpop.f32.mrf.mxu0
  %1614 = vmatprep.mubr.f32.mxu0 %v147
  %1615 = vmatmul.mubr.f32.gmra.mxu0 %v146
  %v1616 = vpop.f32.mrf.mxu0
  %v1617 = vadd.f32 0.0, %v1616
  %v1618 = vpop.f32.mrf.mxu0
  %1619 = vdwg.mxu0
  %v1621 = vsel %vm166, %v1237, 0
  %v1624 = vsel %vm166, %v1242, 0
  %v1627 = vsel %vm166, %v1247, 0
  %v1630 = vsel %vm166, %v1252, 0
  %v1633 = vsel %vm166, %v1257, 0
  %v1636 = vsel %vm166, %v1262, 0
  %v1639 = vsel %vm166, %v1267, 0
  %v1642 = vsel %vm166, %v1272, 0
  %v1645 = vsel %vm166, %v1277, 0
  %v1648 = vsel %vm166, %v1282, 0
  %v1651 = vsel %vm166, %v1287, 0
  %v1654 = vsel %vm166, %v1292, 0
  %v1657 = vsel %vm166, %v1297, 0
  %v1660 = vsel %vm166, %v1302, 0
  %v1663 = vsel %vm166, %v1307, 0
  %v1666 = vsel %vm166, %v1312, 0
  %v1669 = vsel %vm166, %v1317, 0
  %v1672 = vsel %vm166, %v1322, 0
  %v1675 = vsel %vm166, %v1327, 0
  %v1678 = vsel %vm166, %v1332, 0
  %v1681 = vsel %vm166, %v1337, 0
  %v1684 = vsel %vm166, %v1342, 0
  %v1687 = vsel %vm166, %v1347, 0
  %v1690 = vsel %vm166, %v1352, 0
  %v1693 = vsel %vm166, %v1357, 0
  %v1696 = vsel %vm166, %v1362, 0
  %v1699 = vsel %vm166, %v1367, 0
  %v1702 = vsel %vm166, %v1372, 0
  %v1705 = vsel %vm166, %v1377, 0
  %v1708 = vsel %vm166, %v1382, 0
  %v1711 = vsel %vm166, %v1387, 0
  %v1714 = vsel %vm166, %v1392, 0
  %1716 = vmatprep.subr.mxu0 0.0
  %1717 = vmatpush1.msra.mxu0 0.0
  %1718 = vmatprep.subr.mxu0 0.0
  %1719 = vmatpush1.msra.mxu0 0.0
  %1720 = vmatprep.subr.mxu0 0.0
  %1721 = vmatpush1.msra.mxu0 0.0
  %1722 = vmatprep.subr.mxu0 0.0
  %1723 = vmatpush1.msra.mxu0 0.0
  %1724 = vmatprep.subr.mxu0 0.0
  %1725 = vmatpush1.msra.mxu0 0.0
  %1726 = vmatprep.subr.mxu0 0.0
  %1727 = vmatpush1.msra.mxu0 0.0
  %1728 = vmatprep.subr.mxu0 0.0
  %1729 = vmatpush1.msra.mxu0 0.0
  %1730 = vmatprep.subr.mxu0 0.0
  %1731 = vmatpush1.msra.mxu0 0.0
  %1732 = vmatprep.subr.mxu0 0.0
  %1733 = vmatpush1.msra.mxu0 0.0
  %1734 = vmatprep.subr.mxu0 0.0
  %1735 = vmatpush1.msra.mxu0 0.0
  %1736 = vmatprep.subr.mxu0 0.0
  %1737 = vmatpush1.msra.mxu0 0.0
  %1738 = vmatprep.subr.mxu0 0.0
  %1739 = vmatpush1.msra.mxu0 0.0
  %1740 = vmatprep.subr.mxu0 0.0
  %1741 = vmatpush1.msra.mxu0 %v155
  %1742 = vmatprep.subr.mxu0 0.0
  %1743 = vmatpush1.msra.mxu0 %v154
  %1744 = vmatprep.subr.mxu0 0.0
  %1745 = vmatpush1.msra.mxu0 %v153
  %1746 = vmatprep.subr.mxu0 0.0
  %1747 = vmatpush1.msra.mxu0 %v152
  %1748 = vmatprep.subr.mxu0 0.0
  %1749 = vmatpush2.msra.mxu0 0.0
  %1750 = vmatprep.subr.mxu0 0.0
  %1751 = vmatpush2.msra.mxu0 0.0
  %1752 = vmatprep.subr.mxu0 0.0
  %1753 = vmatpush2.msra.mxu0 0.0
  %1754 = vmatprep.subr.mxu0 0.0
  %1755 = vmatpush2.msra.mxu0 0.0
  %1756 = vmatprep.subr.mxu0 0.0
  %1757 = vmatpush2.msra.mxu0 0.0
  %1758 = vmatprep.subr.mxu0 0.0
  %1759 = vmatpush2.msra.mxu0 0.0
  %1760 = vmatprep.subr.mxu0 0.0
  %1761 = vmatpush2.msra.mxu0 0.0
  %1762 = vmatprep.subr.mxu0 0.0
  %1763 = vmatpush2.msra.mxu0 0.0
  %1764 = vmatprep.subr.mxu0 0.0
  %1765 = vmatpush2.msra.mxu0 0.0
  %1766 = vmatprep.subr.mxu0 0.0
  %1767 = vmatpush2.msra.mxu0 0.0
  %1768 = vmatprep.subr.mxu0 0.0
  %1769 = vmatpush2.msra.mxu0 0.0
  %1770 = vmatprep.subr.mxu0 0.0
  %1771 = vmatpush2.msra.mxu0 0.0
  %1772 = vmatprep.subr.mxu0 0.0
  %1773 = vmatpush2.msra.mxu0 0.0
  %1774 = vmatprep.subr.mxu0 0.0
  %1775 = vmatpush2.msra.mxu0 0.0
  %1776 = vmatprep.subr.mxu0 0.0
  %1777 = vmatpush2.msra.mxu0 0.0
  %1778 = vmatprep.subr.mxu0 0.0
  %1779 = vmatpush2.msra.mxu0 0.0
  %1780 = vmatprep.mubr.f32.mxu0 0.0
  %1781 = vmatmul.mubr.f32.gmra.mxu0 %v1621
  %v1782 = vpop.f32.mrf.mxu0
  %v1783 = vadd.f32 0.0, %v1782
  %v1784 = vpop.f32.mrf.mxu0
  %1785 = vmatprep.mubr.f32.mxu0 0.0
  %1786 = vmatmul.mubr.f32.gmra.mxu0 %v1624
  %v1787 = vpop.f32.mrf.mxu0
  %v1788 = vadd.f32 0.0, %v1787
  %v1789 = vpop.f32.mrf.mxu0
  %1790 = vmatprep.mubr.f32.mxu0 0.0
  %1791 = vmatmul.mubr.f32.gmra.mxu0 %v1627
  %v1792 = vpop.f32.mrf.mxu0
  %v1793 = vadd.f32 0.0, %v1792
  %v1794 = vpop.f32.mrf.mxu0
  %1795 = vmatprep.mubr.f32.mxu0 0.0
  %1796 = vmatmul.mubr.f32.gmra.mxu0 %v1630
  %v1797 = vpop.f32.mrf.mxu0
  %v1798 = vadd.f32 0.0, %v1797
  %v1799 = vpop.f32.mrf.mxu0
  %1800 = vmatprep.mubr.f32.mxu0 0.0
  %1801 = vmatmul.mubr.f32.gmra.mxu0 %v1633
  %v1802 = vpop.f32.mrf.mxu0
  %v1803 = vadd.f32 0.0, %v1802
  %v1804 = vpop.f32.mrf.mxu0
  %1805 = vmatprep.mubr.f32.mxu0 0.0
  %1806 = vmatmul.mubr.f32.gmra.mxu0 %v1636
  %v1807 = vpop.f32.mrf.mxu0
  %v1808 = vadd.f32 0.0, %v1807
  %v1809 = vpop.f32.mrf.mxu0
  %1810 = vmatprep.mubr.f32.mxu0 0.0
  %1811 = vmatmul.mubr.f32.gmra.mxu0 %v1639
  %v1812 = vpop.f32.mrf.mxu0
  %v1813 = vadd.f32 0.0, %v1812
  %v1814 = vpop.f32.mrf.mxu0
  %1815 = vmatprep.mubr.f32.mxu0 0.0
  %1816 = vmatmul.mubr.f32.gmra.mxu0 %v1642
  %v1817 = vpop.f32.mrf.mxu0
  %v1818 = vadd.f32 0.0, %v1817
  %v1819 = vpop.f32.mrf.mxu0
  %1820 = vmatprep.mubr.f32.mxu0 0.0
  %1821 = vmatmul.mubr.f32.gmra.mxu0 %v1645
  %v1822 = vpop.f32.mrf.mxu0
  %v1823 = vadd.f32 0.0, %v1822
  %v1824 = vpop.f32.mrf.mxu0
  %1825 = vmatprep.mubr.f32.mxu0 0.0
  %1826 = vmatmul.mubr.f32.gmra.mxu0 %v1648
  %v1827 = vpop.f32.mrf.mxu0
  %v1828 = vadd.f32 0.0, %v1827
  %v1829 = vpop.f32.mrf.mxu0
  %1830 = vmatprep.mubr.f32.mxu0 0.0
  %1831 = vmatmul.mubr.f32.gmra.mxu0 %v1651
  %v1832 = vpop.f32.mrf.mxu0
  %v1833 = vadd.f32 0.0, %v1832
  %v1834 = vpop.f32.mrf.mxu0
  %1835 = vmatprep.mubr.f32.mxu0 0.0
  %1836 = vmatmul.mubr.f32.gmra.mxu0 %v1654
  %v1837 = vpop.f32.mrf.mxu0
  %v1838 = vadd.f32 0.0, %v1837
  %v1839 = vpop.f32.mrf.mxu0
  %1840 = vmatprep.mubr.f32.mxu0 0.0
  %1841 = vmatmul.mubr.f32.gmra.mxu0 %v1657
  %v1842 = vpop.f32.mrf.mxu0
  %v1843 = vadd.f32 0.0, %v1842
  %v1844 = vpop.f32.mrf.mxu0
  %1845 = vmatprep.mubr.f32.mxu0 0.0
  %1846 = vmatmul.mubr.f32.gmra.mxu0 %v1660
  %v1847 = vpop.f32.mrf.mxu0
  %v1848 = vadd.f32 0.0, %v1847
  %v1849 = vpop.f32.mrf.mxu0
  %1850 = vmatprep.mubr.f32.mxu0 0.0
  %1851 = vmatmul.mubr.f32.gmra.mxu0 %v1663
  %v1852 = vpop.f32.mrf.mxu0
  %v1853 = vadd.f32 0.0, %v1852
  %v1854 = vpop.f32.mrf.mxu0
  %1855 = vmatprep.mubr.f32.mxu0 0.0
  %1856 = vmatmul.mubr.f32.gmra.mxu0 %v1666
  %v1857 = vpop.f32.mrf.mxu0
  %v1858 = vadd.f32 0.0, %v1857
  %v1859 = vpop.f32.mrf.mxu0
  %1860 = vmatprep.mubr.f32.mxu0 0.0
  %1861 = vmatmul.mubr.f32.gmra.mxu0 %v1669
  %v1862 = vpop.f32.mrf.mxu0
  %v1863 = vadd.f32 0.0, %v1862
  %v1864 = vpop.f32.mrf.mxu0
  %1865 = vmatprep.mubr.f32.mxu0 0.0
  %1866 = vmatmul.mubr.f32.gmra.mxu0 %v1672
  %v1867 = vpop.f32.mrf.mxu0
  %v1868 = vadd.f32 0.0, %v1867
  %v1869 = vpop.f32.mrf.mxu0
  %1870 = vmatprep.mubr.f32.mxu0 0.0
  %1871 = vmatmul.mubr.f32.gmra.mxu0 %v1675
  %v1872 = vpop.f32.mrf.mxu0
  %v1873 = vadd.f32 0.0, %v1872
  %v1874 = vpop.f32.mrf.mxu0
  %1875 = vmatprep.mubr.f32.mxu0 0.0
  %1876 = vmatmul.mubr.f32.gmra.mxu0 %v1678
  %v1877 = vpop.f32.mrf.mxu0
  %v1878 = vadd.f32 0.0, %v1877
  %v1879 = vpop.f32.mrf.mxu0
  %1880 = vmatprep.mubr.f32.mxu0 0.0
  %1881 = vmatmul.mubr.f32.gmra.mxu0 %v1681
  %v1882 = vpop.f32.mrf.mxu0
  %v1883 = vadd.f32 0.0, %v1882
  %v1884 = vpop.f32.mrf.mxu0
  %1885 = vmatprep.mubr.f32.mxu0 0.0
  %1886 = vmatmul.mubr.f32.gmra.mxu0 %v1684
  %v1887 = vpop.f32.mrf.mxu0
  %v1888 = vadd.f32 0.0, %v1887
  %v1889 = vpop.f32.mrf.mxu0
  %1890 = vmatprep.mubr.f32.mxu0 0.0
  %1891 = vmatmul.mubr.f32.gmra.mxu0 %v1687
  %v1892 = vpop.f32.mrf.mxu0
  %v1893 = vadd.f32 0.0, %v1892
  %v1894 = vpop.f32.mrf.mxu0
  %1895 = vmatprep.mubr.f32.mxu0 0.0
  %1896 = vmatmul.mubr.f32.gmra.mxu0 %v1690
  %v1897 = vpop.f32.mrf.mxu0
  %v1898 = vadd.f32 0.0, %v1897
  %v1899 = vpop.f32.mrf.mxu0
  %1900 = vmatprep.mubr.f32.mxu0 0.0
  %1901 = vmatmul.mubr.f32.gmra.mxu0 %v1693
  %v1902 = vpop.f32.mrf.mxu0
  %v1903 = vadd.f32 0.0, %v1902
  %v1904 = vpop.f32.mrf.mxu0
  %1905 = vmatprep.mubr.f32.mxu0 0.0
  %1906 = vmatmul.mubr.f32.gmra.mxu0 %v1696
  %v1907 = vpop.f32.mrf.mxu0
  %v1908 = vadd.f32 0.0, %v1907
  %v1909 = vpop.f32.mrf.mxu0
  %1910 = vmatprep.mubr.f32.mxu0 0.0
  %1911 = vmatmul.mubr.f32.gmra.mxu0 %v1699
  %v1912 = vpop.f32.mrf.mxu0
  %v1913 = vadd.f32 0.0, %v1912
  %v1914 = vpop.f32.mrf.mxu0
  %1915 = vmatprep.mubr.f32.mxu0 0.0
  %1916 = vmatmul.mubr.f32.gmra.mxu0 %v1702
  %v1917 = vpop.f32.mrf.mxu0
  %v1918 = vadd.f32 0.0, %v1917
  %v1919 = vpop.f32.mrf.mxu0
  %1920 = vmatprep.mubr.f32.mxu0 0.0
  %1921 = vmatmul.mubr.f32.gmra.mxu0 %v1705
  %v1922 = vpop.f32.mrf.mxu0
  %v1923 = vadd.f32 0.0, %v1922
  %v1924 = vpop.f32.mrf.mxu0
  %1925 = vmatprep.mubr.f32.mxu0 0.0
  %1926 = vmatmul.mubr.f32.gmra.mxu0 %v1708
  %v1927 = vpop.f32.mrf.mxu0
  %v1928 = vadd.f32 0.0, %v1927
  %v1929 = vpop.f32.mrf.mxu0
  %1930 = vmatprep.mubr.f32.mxu0 0.0
  %1931 = vmatmul.mubr.f32.gmra.mxu0 %v1711
  %v1932 = vpop.f32.mrf.mxu0
  %v1933 = vadd.f32 0.0, %v1932
  %v1934 = vpop.f32.mrf.mxu0
  %1935 = vmatprep.mubr.f32.mxu0 0.0
  %1936 = vmatmul.mubr.f32.gmra.mxu0 %v1714
  %v1937 = vpop.f32.mrf.mxu0
  %v1938 = vadd.f32 0.0, %v1937
  %v1939 = vpop.f32.mrf.mxu0
  %1940 = vdwg.mxu0
  %v1942 = vsel %vm166, %v1106, 0
  %v1945 = vsel %vm166, %v1107, 0
  %v1948 = vsel %vm166, %v1108, 0
  %v1951 = vsel %vm166, %v1109, 0
  %v1954 = vsel %vm166, %v1110, 0
  %v1957 = vsel %vm166, %v1111, 0
  %v1960 = vsel %vm166, %v1112, 0
  %v1963 = vsel %vm166, %v1113, 0
  %v1966 = vsel %vm166, %v1114, 0
  %v1969 = vsel %vm166, %v1115, 0
  %v1972 = vsel %vm166, %v1116, 0
  %v1975 = vsel %vm166, %v1117, 0
  %v1978 = vsel %vm166, %v1118, 0
  %v1981 = vsel %vm166, %v1119, 0
  %v1984 = vsel %vm166, %v1120, 0
  %v1987 = vsel %vm166, %v1121, 0
  %v1990 = vsel %vm166, %v1122, 0
  %v1993 = vsel %vm166, %v1123, 0
  %v1996 = vsel %vm166, %v1124, 0
  %v1999 = vsel %vm166, %v1125, 0
  %v2002 = vsel %vm166, %v1126, 0
  %v2005 = vsel %vm166, %v1127, 0
  %v2008 = vsel %vm166, %v1128, 0
  %v2011 = vsel %vm166, %v1129, 0
  %v2014 = vsel %vm166, %v1130, 0
  %v2017 = vsel %vm166, %v1131, 0
  %v2020 = vsel %vm166, %v1132, 0
  %v2023 = vsel %vm166, %v1133, 0
  %v2026 = vsel %vm166, %v1134, 0
  %v2029 = vsel %vm166, %v1135, 0
  %v2032 = vsel %vm166, %v1136, 0
  %v2035 = vsel %vm166, %v1137, 0
  %2037 = vmatprep.subr.mxu0 0.0
  %2038 = vmatpush1.msra.mxu0 0.0
  %2039 = vmatprep.subr.mxu0 0.0
  %2040 = vmatpush1.msra.mxu0 0.0
  %2041 = vmatprep.subr.mxu0 0.0
  %2042 = vmatpush1.msra.mxu0 0.0
  %2043 = vmatprep.subr.mxu0 0.0
  %2044 = vmatpush1.msra.mxu0 0.0
  %2045 = vmatprep.subr.mxu0 0.0
  %2046 = vmatpush1.msra.mxu0 0.0
  %2047 = vmatprep.subr.mxu0 0.0
  %2048 = vmatpush1.msra.mxu0 0.0
  %2049 = vmatprep.subr.mxu0 0.0
  %2050 = vmatpush1.msra.mxu0 0.0
  %2051 = vmatprep.subr.mxu0 0.0
  %2052 = vmatpush1.msra.mxu0 0.0
  %2053 = vmatprep.subr.mxu0 0.0
  %2054 = vmatpush1.msra.mxu0 0.0
  %2055 = vmatprep.subr.mxu0 0.0
  %2056 = vmatpush1.msra.mxu0 0.0
  %2057 = vmatprep.subr.mxu0 0.0
  %2058 = vmatpush1.msra.mxu0 0.0
  %2059 = vmatprep.subr.mxu0 0.0
  %2060 = vmatpush1.msra.mxu0 0.0
  %2061 = vmatprep.subr.mxu0 0.0
  %2062 = vmatpush1.msra.mxu0 %v151
  %2063 = vmatprep.subr.mxu0 0.0
  %2064 = vmatpush1.msra.mxu0 %v150
  %2065 = vmatprep.subr.mxu0 0.0
  %2066 = vmatpush1.msra.mxu0 %v149
  %2067 = vmatprep.subr.mxu0 0.0
  %2068 = vmatpush1.msra.mxu0 %v148
  %2069 = vmatprep.subr.mxu0 0.0
  %2070 = vmatpush2.msra.mxu0 0.0
  %2071 = vmatprep.subr.mxu0 0.0
  %2072 = vmatpush2.msra.mxu0 0.0
  %2073 = vmatprep.subr.mxu0 0.0
  %2074 = vmatpush2.msra.mxu0 0.0
  %2075 = vmatprep.subr.mxu0 0.0
  %2076 = vmatpush2.msra.mxu0 0.0
  %2077 = vmatprep.subr.mxu0 0.0
  %2078 = vmatpush2.msra.mxu0 0.0
  %2079 = vmatprep.subr.mxu0 0.0
  %2080 = vmatpush2.msra.mxu0 0.0
  %2081 = vmatprep.subr.mxu0 0.0
  %2082 = vmatpush2.msra.mxu0 0.0
  %2083 = vmatprep.subr.mxu0 0.0
  %2084 = vmatpush2.msra.mxu0 0.0
  %2085 = vmatprep.subr.mxu0 0.0
  %2086 = vmatpush2.msra.mxu0 0.0
  %2087 = vmatprep.subr.mxu0 0.0
  %2088 = vmatpush2.msra.mxu0 0.0
  %2089 = vmatprep.subr.mxu0 0.0
  %2090 = vmatpush2.msra.mxu0 0.0
  %2091 = vmatprep.subr.mxu0 0.0
  %2092 = vmatpush2.msra.mxu0 0.0
  %2093 = vmatprep.subr.mxu0 0.0
  %2094 = vmatpush2.msra.mxu0 0.0
  %2095 = vmatprep.subr.mxu0 0.0
  %2096 = vmatpush2.msra.mxu0 0.0
  %2097 = vmatprep.subr.mxu0 0.0
  %2098 = vmatpush2.msra.mxu0 0.0
  %2099 = vmatprep.subr.mxu0 0.0
  %2100 = vmatpush2.msra.mxu0 0.0
  %2101 = vmatprep.mubr.f32.mxu0 0.0
  %2102 = vmatmul.mubr.f32.gmra.mxu0 %v1942
  %v2103 = vpop.f32.mrf.mxu0
  %v2104 = vadd.f32 %v1783, %v2103
  %v2105 = vpop.f32.mrf.mxu0
  %2106 = vmatprep.mubr.f32.mxu0 0.0
  %2107 = vmatmul.mubr.f32.gmra.mxu0 %v1945
  %v2108 = vpop.f32.mrf.mxu0
  %v2109 = vadd.f32 %v1788, %v2108
  %v2110 = vpop.f32.mrf.mxu0
  %2111 = vmatprep.mubr.f32.mxu0 0.0
  %2112 = vmatmul.mubr.f32.gmra.mxu0 %v1948
  %v2113 = vpop.f32.mrf.mxu0
  %v2114 = vadd.f32 %v1793, %v2113
  %v2115 = vpop.f32.mrf.mxu0
  %2116 = vmatprep.mubr.f32.mxu0 0.0
  %2117 = vmatmul.mubr.f32.gmra.mxu0 %v1951
  %v2118 = vpop.f32.mrf.mxu0
  %v2119 = vadd.f32 %v1798, %v2118
  %v2120 = vpop.f32.mrf.mxu0
  %2121 = vmatprep.mubr.f32.mxu0 0.0
  %2122 = vmatmul.mubr.f32.gmra.mxu0 %v1954
  %v2123 = vpop.f32.mrf.mxu0
  %v2124 = vadd.f32 %v1803, %v2123
  %v2125 = vpop.f32.mrf.mxu0
  %2126 = vmatprep.mubr.f32.mxu0 0.0
  %2127 = vmatmul.mubr.f32.gmra.mxu0 %v1957
  %v2128 = vpop.f32.mrf.mxu0
  %v2129 = vadd.f32 %v1808, %v2128
  %v2130 = vpop.f32.mrf.mxu0
  %2131 = vmatprep.mubr.f32.mxu0 0.0
  %2132 = vmatmul.mubr.f32.gmra.mxu0 %v1960
  %v2133 = vpop.f32.mrf.mxu0
  %v2134 = vadd.f32 %v1813, %v2133
  %v2135 = vpop.f32.mrf.mxu0
  %2136 = vmatprep.mubr.f32.mxu0 0.0
  %2137 = vmatmul.mubr.f32.gmra.mxu0 %v1963
  %v2138 = vpop.f32.mrf.mxu0
  %v2139 = vadd.f32 %v1818, %v2138
  %v2140 = vpop.f32.mrf.mxu0
  %2141 = vmatprep.mubr.f32.mxu0 0.0
  %2142 = vmatmul.mubr.f32.gmra.mxu0 %v1966
  %v2143 = vpop.f32.mrf.mxu0
  %v2144 = vadd.f32 %v1823, %v2143
  %v2145 = vpop.f32.mrf.mxu0
  %2146 = vmatprep.mubr.f32.mxu0 0.0
  %2147 = vmatmul.mubr.f32.gmra.mxu0 %v1969
  %v2148 = vpop.f32.mrf.mxu0
  %v2149 = vadd.f32 %v1828, %v2148
  %v2150 = vpop.f32.mrf.mxu0
  %2151 = vmatprep.mubr.f32.mxu0 0.0
  %2152 = vmatmul.mubr.f32.gmra.mxu0 %v1972
  %v2153 = vpop.f32.mrf.mxu0
  %v2154 = vadd.f32 %v1833, %v2153
  %v2155 = vpop.f32.mrf.mxu0
  %2156 = vmatprep.mubr.f32.mxu0 0.0
  %2157 = vmatmul.mubr.f32.gmra.mxu0 %v1975
  %v2158 = vpop.f32.mrf.mxu0
  %v2159 = vadd.f32 %v1838, %v2158
  %v2160 = vpop.f32.mrf.mxu0
  %2161 = vmatprep.mubr.f32.mxu0 0.0
  %2162 = vmatmul.mubr.f32.gmra.mxu0 %v1978
  %v2163 = vpop.f32.mrf.mxu0
  %v2164 = vadd.f32 %v1843, %v2163
  %v2165 = vpop.f32.mrf.mxu0
  %2166 = vmatprep.mubr.f32.mxu0 0.0
  %2167 = vmatmul.mubr.f32.gmra.mxu0 %v1981
  %v2168 = vpop.f32.mrf.mxu0
  %v2169 = vadd.f32 %v1848, %v2168
  %v2170 = vpop.f32.mrf.mxu0
  %2171 = vmatprep.mubr.f32.mxu0 0.0
  %2172 = vmatmul.mubr.f32.gmra.mxu0 %v1984
  %v2173 = vpop.f32.mrf.mxu0
  %v2174 = vadd.f32 %v1853, %v2173
  %v2175 = vpop.f32.mrf.mxu0
  %2176 = vmatprep.mubr.f32.mxu0 0.0
  %2177 = vmatmul.mubr.f32.gmra.mxu0 %v1987
  %v2178 = vpop.f32.mrf.mxu0
  %v2179 = vadd.f32 %v1858, %v2178
  %v2180 = vpop.f32.mrf.mxu0
  %2181 = vmatprep.mubr.f32.mxu0 0.0
  %2182 = vmatmul.mubr.f32.gmra.mxu0 %v1990
  %v2183 = vpop.f32.mrf.mxu0
  %v2184 = vadd.f32 %v1863, %v2183
  %v2185 = vpop.f32.mrf.mxu0
  %2186 = vmatprep.mubr.f32.mxu0 0.0
  %2187 = vmatmul.mubr.f32.gmra.mxu0 %v1993
  %v2188 = vpop.f32.mrf.mxu0
  %v2189 = vadd.f32 %v1868, %v2188
  %v2190 = vpop.f32.mrf.mxu0
  %2191 = vmatprep.mubr.f32.mxu0 0.0
  %2192 = vmatmul.mubr.f32.gmra.mxu0 %v1996
  %v2193 = vpop.f32.mrf.mxu0
  %v2194 = vadd.f32 %v1873, %v2193
  %v2195 = vpop.f32.mrf.mxu0
  %2196 = vmatprep.mubr.f32.mxu0 0.0
  %2197 = vmatmul.mubr.f32.gmra.mxu0 %v1999
  %v2198 = vpop.f32.mrf.mxu0
  %v2199 = vadd.f32 %v1878, %v2198
  %v2200 = vpop.f32.mrf.mxu0
  %2201 = vmatprep.mubr.f32.mxu0 0.0
  %2202 = vmatmul.mubr.f32.gmra.mxu0 %v2002
  %v2203 = vpop.f32.mrf.mxu0
  %v2204 = vadd.f32 %v1883, %v2203
  %v2205 = vpop.f32.mrf.mxu0
  %2206 = vmatprep.mubr.f32.mxu0 0.0
  %2207 = vmatmul.mubr.f32.gmra.mxu0 %v2005
  %v2208 = vpop.f32.mrf.mxu0
  %v2209 = vadd.f32 %v1888, %v2208
  %v2210 = vpop.f32.mrf.mxu0
  %2211 = vmatprep.mubr.f32.mxu0 0.0
  %2212 = vmatmul.mubr.f32.gmra.mxu0 %v2008
  %v2213 = vpop.f32.mrf.mxu0
  %v2214 = vadd.f32 %v1893, %v2213
  %v2215 = vpop.f32.mrf.mxu0
  %2216 = vmatprep.mubr.f32.mxu0 0.0
  %2217 = vmatmul.mubr.f32.gmra.mxu0 %v2011
  %v2218 = vpop.f32.mrf.mxu0
  %v2219 = vadd.f32 %v1898, %v2218
  %v2220 = vpop.f32.mrf.mxu0
  %2221 = vmatprep.mubr.f32.mxu0 0.0
  %2222 = vmatmul.mubr.f32.gmra.mxu0 %v2014
  %v2223 = vpop.f32.mrf.mxu0
  %v2224 = vadd.f32 %v1903, %v2223
  %v2225 = vpop.f32.mrf.mxu0
  %2226 = vmatprep.mubr.f32.mxu0 0.0
  %2227 = vmatmul.mubr.f32.gmra.mxu0 %v2017
  %v2228 = vpop.f32.mrf.mxu0
  %v2229 = vadd.f32 %v1908, %v2228
  %v2230 = vpop.f32.mrf.mxu0
  %2231 = vmatprep.mubr.f32.mxu0 0.0
  %2232 = vmatmul.mubr.f32.gmra.mxu0 %v2020
  %v2233 = vpop.f32.mrf.mxu0
  %v2234 = vadd.f32 %v1913, %v2233
  %v2235 = vpop.f32.mrf.mxu0
  %2236 = vmatprep.mubr.f32.mxu0 0.0
  %2237 = vmatmul.mubr.f32.gmra.mxu0 %v2023
  %v2238 = vpop.f32.mrf.mxu0
  %v2239 = vadd.f32 %v1918, %v2238
  %v2240 = vpop.f32.mrf.mxu0
  %2241 = vmatprep.mubr.f32.mxu0 0.0
  %2242 = vmatmul.mubr.f32.gmra.mxu0 %v2026
  %v2243 = vpop.f32.mrf.mxu0
  %v2244 = vadd.f32 %v1923, %v2243
  %v2245 = vpop.f32.mrf.mxu0
  %2246 = vmatprep.mubr.f32.mxu0 0.0
  %2247 = vmatmul.mubr.f32.gmra.mxu0 %v2029
  %v2248 = vpop.f32.mrf.mxu0
  %v2249 = vadd.f32 %v1928, %v2248
  %v2250 = vpop.f32.mrf.mxu0
  %2251 = vmatprep.mubr.f32.mxu0 0.0
  %2252 = vmatmul.mubr.f32.gmra.mxu0 %v2032
  %v2253 = vpop.f32.mrf.mxu0
  %v2254 = vadd.f32 %v1933, %v2253
  %v2255 = vpop.f32.mrf.mxu0
  %2256 = vmatprep.mubr.f32.mxu0 0.0
  %2257 = vmatmul.mubr.f32.gmra.mxu0 %v2035
  %v2258 = vpop.f32.mrf.mxu0
  %v2259 = vadd.f32 %v1938, %v2258
  %v2260 = vpop.f32.mrf.mxu0
  %2261 = vdwg.mxu0
  %v2263 = vsel %vm166, %v1462, 0
  %v2266 = vsel %vm166, %v1467, 0
  %v2269 = vsel %vm166, %v1472, 0
  %v2272 = vsel %vm166, %v1477, 0
  %v2275 = vsel %vm166, %v1482, 0
  %v2278 = vsel %vm166, %v1487, 0
  %v2281 = vsel %vm166, %v1492, 0
  %v2284 = vsel %vm166, %v1497, 0
  %v2287 = vsel %vm166, %v1502, 0
  %v2290 = vsel %vm166, %v1507, 0
  %v2293 = vsel %vm166, %v1512, 0
  %v2296 = vsel %vm166, %v1517, 0
  %v2299 = vsel %vm166, %v1522, 0
  %v2302 = vsel %vm166, %v1527, 0
  %v2305 = vsel %vm166, %v1532, 0
  %v2308 = vsel %vm166, %v1537, 0
  %v2311 = vsel %vm166, %v1542, 0
  %v2314 = vsel %vm166, %v1547, 0
  %v2317 = vsel %vm166, %v1552, 0
  %v2320 = vsel %vm166, %v1557, 0
  %v2323 = vsel %vm166, %v1562, 0
  %v2326 = vsel %vm166, %v1567, 0
  %v2329 = vsel %vm166, %v1572, 0
  %v2332 = vsel %vm166, %v1577, 0
  %v2335 = vsel %vm166, %v1582, 0
  %v2338 = vsel %vm166, %v1587, 0
  %v2341 = vsel %vm166, %v1592, 0
  %v2344 = vsel %vm166, %v1597, 0
  %v2347 = vsel %vm166, %v1602, 0
  %v2350 = vsel %vm166, %v1607, 0
  %v2353 = vsel %vm166, %v1612, 0
  %v2356 = vsel %vm166, %v1617, 0
  %2358 = vmatprep.subr.mxu0 0.0
  %2359 = vmatpush1.msra.mxu0 0.0
  %2360 = vmatprep.subr.mxu0 0.0
  %2361 = vmatpush1.msra.mxu0 0.0
  %2362 = vmatprep.subr.mxu0 0.0
  %2363 = vmatpush1.msra.mxu0 0.0
  %2364 = vmatprep.subr.mxu0 0.0
  %2365 = vmatpush1.msra.mxu0 0.0
  %2366 = vmatprep.subr.mxu0 0.0
  %2367 = vmatpush1.msra.mxu0 0.0
  %2368 = vmatprep.subr.mxu0 0.0
  %2369 = vmatpush1.msra.mxu0 0.0
  %2370 = vmatprep.subr.mxu0 0.0
  %2371 = vmatpush1.msra.mxu0 0.0
  %2372 = vmatprep.subr.mxu0 0.0
  %2373 = vmatpush1.msra.mxu0 0.0
  %2374 = vmatprep.subr.mxu0 0.0
  %2375 = vmatpush1.msra.mxu0 0.0
  %2376 = vmatprep.subr.mxu0 0.0
  %2377 = vmatpush1.msra.mxu0 0.0
  %2378 = vmatprep.subr.mxu0 0.0
  %2379 = vmatpush1.msra.mxu0 0.0
  %2380 = vmatprep.subr.mxu0 0.0
  %2381 = vmatpush1.msra.mxu0 0.0
  %2382 = vmatprep.subr.mxu0 0.0
  %2383 = vmatpush1.msra.mxu0 %v159
  %2384 = vmatprep.subr.mxu0 0.0
  %2385 = vmatpush1.msra.mxu0 %v158
  %2386 = vmatprep.subr.mxu0 0.0
  %2387 = vmatpush1.msra.mxu0 %v157
  %2388 = vmatprep.subr.mxu0 0.0
  %2389 = vmatpush1.msra.mxu0 %v156
  %2390 = vmatprep.subr.mxu0 0.0
  %2391 = vmatpush2.msra.mxu0 0.0
  %2392 = vmatprep.subr.mxu0 0.0
  %2393 = vmatpush2.msra.mxu0 0.0
  %2394 = vmatprep.subr.mxu0 0.0
  %2395 = vmatpush2.msra.mxu0 0.0
  %2396 = vmatprep.subr.mxu0 0.0
  %2397 = vmatpush2.msra.mxu0 0.0
  %2398 = vmatprep.subr.mxu0 0.0
  %2399 = vmatpush2.msra.mxu0 0.0
  %2400 = vmatprep.subr.mxu0 0.0
  %2401 = vmatpush2.msra.mxu0 0.0
  %2402 = vmatprep.subr.mxu0 0.0
  %2403 = vmatpush2.msra.mxu0 0.0
  %2404 = vmatprep.subr.mxu0 0.0
  %2405 = vmatpush2.msra.mxu0 0.0
  %2406 = vmatprep.subr.mxu0 0.0
  %2407 = vmatpush2.msra.mxu0 0.0
  %2408 = vmatprep.subr.mxu0 0.0
  %2409 = vmatpush2.msra.mxu0 0.0
  %2410 = vmatprep.subr.mxu0 0.0
  %2411 = vmatpush2.msra.mxu0 0.0
  %2412 = vmatprep.subr.mxu0 0.0
  %2413 = vmatpush2.msra.mxu0 0.0
  %2414 = vmatprep.subr.mxu0 0.0
  %2415 = vmatpush2.msra.mxu0 0.0
  %2416 = vmatprep.subr.mxu0 0.0
  %2417 = vmatpush2.msra.mxu0 0.0
  %2418 = vmatprep.subr.mxu0 0.0
  %2419 = vmatpush2.msra.mxu0 0.0
  %2420 = vmatprep.subr.mxu0 0.0
  %2421 = vmatpush2.msra.mxu0 0.0
  %2422 = vmatprep.mubr.f32.mxu0 0.0
  %2423 = vmatmul.mubr.f32.gmra.mxu0 %v2263
  %v2424 = vpop.f32.mrf.mxu0
  %v2425 = vadd.f32 0.0, %v2424
  %v2426 = vpop.f32.mrf.mxu0
  %2427 = vmatprep.mubr.f32.mxu0 0.0
  %2428 = vmatmul.mubr.f32.gmra.mxu0 %v2266
  %v2429 = vpop.f32.mrf.mxu0
  %v2430 = vadd.f32 0.0, %v2429
  %v2431 = vpop.f32.mrf.mxu0
  %2432 = vmatprep.mubr.f32.mxu0 0.0
  %2433 = vmatmul.mubr.f32.gmra.mxu0 %v2269
  %v2434 = vpop.f32.mrf.mxu0
  %v2435 = vadd.f32 0.0, %v2434
  %v2436 = vpop.f32.mrf.mxu0
  %2437 = vmatprep.mubr.f32.mxu0 0.0
  %2438 = vmatmul.mubr.f32.gmra.mxu0 %v2272
  %v2439 = vpop.f32.mrf.mxu0
  %v2440 = vadd.f32 0.0, %v2439
  %v2441 = vpop.f32.mrf.mxu0
  %2442 = vmatprep.mubr.f32.mxu0 0.0
  %2443 = vmatmul.mubr.f32.gmra.mxu0 %v2275
  %v2444 = vpop.f32.mrf.mxu0
  %v2445 = vadd.f32 0.0, %v2444
  %v2446 = vpop.f32.mrf.mxu0
  %2447 = vmatprep.mubr.f32.mxu0 0.0
  %2448 = vmatmul.mubr.f32.gmra.mxu0 %v2278
  %v2449 = vpop.f32.mrf.mxu0
  %v2450 = vadd.f32 0.0, %v2449
  %v2451 = vpop.f32.mrf.mxu0
  %2452 = vmatprep.mubr.f32.mxu0 0.0
  %2453 = vmatmul.mubr.f32.gmra.mxu0 %v2281
  %v2454 = vpop.f32.mrf.mxu0
  %v2455 = vadd.f32 0.0, %v2454
  %v2456 = vpop.f32.mrf.mxu0
  %2457 = vmatprep.mubr.f32.mxu0 0.0
  %2458 = vmatmul.mubr.f32.gmra.mxu0 %v2284
  %v2459 = vpop.f32.mrf.mxu0
  %v2460 = vadd.f32 0.0, %v2459
  %v2461 = vpop.f32.mrf.mxu0
  %2462 = vmatprep.mubr.f32.mxu0 0.0
  %2463 = vmatmul.mubr.f32.gmra.mxu0 %v2287
  %v2464 = vpop.f32.mrf.mxu0
  %v2465 = vadd.f32 0.0, %v2464
  %v2466 = vpop.f32.mrf.mxu0
  %2467 = vmatprep.mubr.f32.mxu0 0.0
  %2468 = vmatmul.mubr.f32.gmra.mxu0 %v2290
  %v2469 = vpop.f32.mrf.mxu0
  %v2470 = vadd.f32 0.0, %v2469
  %v2471 = vpop.f32.mrf.mxu0
  %2472 = vmatprep.mubr.f32.mxu0 0.0
  %2473 = vmatmul.mubr.f32.gmra.mxu0 %v2293
  %v2474 = vpop.f32.mrf.mxu0
  %v2475 = vadd.f32 0.0, %v2474
  %v2476 = vpop.f32.mrf.mxu0
  %2477 = vmatprep.mubr.f32.mxu0 0.0
  %2478 = vmatmul.mubr.f32.gmra.mxu0 %v2296
  %v2479 = vpop.f32.mrf.mxu0
  %v2480 = vadd.f32 0.0, %v2479
  %v2481 = vpop.f32.mrf.mxu0
  %2482 = vmatprep.mubr.f32.mxu0 0.0
  %2483 = vmatmul.mubr.f32.gmra.mxu0 %v2299
  %v2484 = vpop.f32.mrf.mxu0
  %v2485 = vadd.f32 0.0, %v2484
  %v2486 = vpop.f32.mrf.mxu0
  %2487 = vmatprep.mubr.f32.mxu0 0.0
  %2488 = vmatmul.mubr.f32.gmra.mxu0 %v2302
  %v2489 = vpop.f32.mrf.mxu0
  %v2490 = vadd.f32 0.0, %v2489
  %v2491 = vpop.f32.mrf.mxu0
  %2492 = vmatprep.mubr.f32.mxu0 0.0
  %2493 = vmatmul.mubr.f32.gmra.mxu0 %v2305
  %v2494 = vpop.f32.mrf.mxu0
  %v2495 = vadd.f32 0.0, %v2494
  %v2496 = vpop.f32.mrf.mxu0
  %2497 = vmatprep.mubr.f32.mxu0 0.0
  %2498 = vmatmul.mubr.f32.gmra.mxu0 %v2308
  %v2499 = vpop.f32.mrf.mxu0
  %v2500 = vadd.f32 0.0, %v2499
  %v2501 = vpop.f32.mrf.mxu0
  %2502 = vmatprep.mubr.f32.mxu0 0.0
  %2503 = vmatmul.mubr.f32.gmra.mxu0 %v2311
  %v2504 = vpop.f32.mrf.mxu0
  %v2505 = vadd.f32 0.0, %v2504
  %v2506 = vpop.f32.mrf.mxu0
  %2507 = vmatprep.mubr.f32.mxu0 0.0
  %2508 = vmatmul.mubr.f32.gmra.mxu0 %v2314
  %v2509 = vpop.f32.mrf.mxu0
  %v2510 = vadd.f32 0.0, %v2509
  %v2511 = vpop.f32.mrf.mxu0
  %2512 = vmatprep.mubr.f32.mxu0 0.0
  %2513 = vmatmul.mubr.f32.gmra.mxu0 %v2317
  %v2514 = vpop.f32.mrf.mxu0
  %v2515 = vadd.f32 0.0, %v2514
  %v2516 = vpop.f32.mrf.mxu0
  %2517 = vmatprep.mubr.f32.mxu0 0.0
  %2518 = vmatmul.mubr.f32.gmra.mxu0 %v2320
  %v2519 = vpop.f32.mrf.mxu0
  %v2520 = vadd.f32 0.0, %v2519
  %v2521 = vpop.f32.mrf.mxu0
  %2522 = vmatprep.mubr.f32.mxu0 0.0
  %2523 = vmatmul.mubr.f32.gmra.mxu0 %v2323
  %v2524 = vpop.f32.mrf.mxu0
  %v2525 = vadd.f32 0.0, %v2524
  %v2526 = vpop.f32.mrf.mxu0
  %2527 = vmatprep.mubr.f32.mxu0 0.0
  %2528 = vmatmul.mubr.f32.gmra.mxu0 %v2326
  %v2529 = vpop.f32.mrf.mxu0
  %v2530 = vadd.f32 0.0, %v2529
  %v2531 = vpop.f32.mrf.mxu0
  %2532 = vmatprep.mubr.f32.mxu0 0.0
  %2533 = vmatmul.mubr.f32.gmra.mxu0 %v2329
  %v2534 = vpop.f32.mrf.mxu0
  %v2535 = vadd.f32 0.0, %v2534
  %v2536 = vpop.f32.mrf.mxu0
  %2537 = vmatprep.mubr.f32.mxu0 0.0
  %2538 = vmatmul.mubr.f32.gmra.mxu0 %v2332
  %v2539 = vpop.f32.mrf.mxu0
  %v2540 = vadd.f32 0.0, %v2539
  %v2541 = vpop.f32.mrf.mxu0
  %2542 = vmatprep.mubr.f32.mxu0 0.0
  %2543 = vmatmul.mubr.f32.gmra.mxu0 %v2335
  %v2544 = vpop.f32.mrf.mxu0
  %v2545 = vadd.f32 0.0, %v2544
  %v2546 = vpop.f32.mrf.mxu0
  %2547 = vmatprep.mubr.f32.mxu0 0.0
  %2548 = vmatmul.mubr.f32.gmra.mxu0 %v2338
  %v2549 = vpop.f32.mrf.mxu0
  %v2550 = vadd.f32 0.0, %v2549
  %v2551 = vpop.f32.mrf.mxu0
  %2552 = vmatprep.mubr.f32.mxu0 0.0
  %2553 = vmatmul.mubr.f32.gmra.mxu0 %v2341
  %v2554 = vpop.f32.mrf.mxu0
  %v2555 = vadd.f32 0.0, %v2554
  %v2556 = vpop.f32.mrf.mxu0
  %2557 = vmatprep.mubr.f32.mxu0 0.0
  %2558 = vmatmul.mubr.f32.gmra.mxu0 %v2344
  %v2559 = vpop.f32.mrf.mxu0
  %v2560 = vadd.f32 0.0, %v2559
  %v2561 = vpop.f32.mrf.mxu0
  %2562 = vmatprep.mubr.f32.mxu0 0.0
  %2563 = vmatmul.mubr.f32.gmra.mxu0 %v2347
  %v2564 = vpop.f32.mrf.mxu0
  %v2565 = vadd.f32 0.0, %v2564
  %v2566 = vpop.f32.mrf.mxu0
  %2567 = vmatprep.mubr.f32.mxu0 0.0
  %2568 = vmatmul.mubr.f32.gmra.mxu0 %v2350
  %v2569 = vpop.f32.mrf.mxu0
  %v2570 = vadd.f32 0.0, %v2569
  %v2571 = vpop.f32.mrf.mxu0
  %2572 = vmatprep.mubr.f32.mxu0 0.0
  %2573 = vmatmul.mubr.f32.gmra.mxu0 %v2353
  %v2574 = vpop.f32.mrf.mxu0
  %v2575 = vadd.f32 0.0, %v2574
  %v2576 = vpop.f32.mrf.mxu0
  %2577 = vmatprep.mubr.f32.mxu0 0.0
  %2578 = vmatmul.mubr.f32.gmra.mxu0 %v2356
  %v2579 = vpop.f32.mrf.mxu0
  %v2580 = vadd.f32 0.0, %v2579
  %v2581 = vpop.f32.mrf.mxu0
  %2582 = vdwg.mxu0
  %v2583 = vadd.f32 %v2104, %v2425
  %v2584 = vadd.f32 %v2109, %v2430
  %v2585 = vadd.f32 %v2114, %v2435
  %v2586 = vadd.f32 %v2119, %v2440
  %v2587 = vadd.f32 %v2124, %v2445
  %v2588 = vadd.f32 %v2129, %v2450
  %v2589 = vadd.f32 %v2134, %v2455
  %v2590 = vadd.f32 %v2139, %v2460
  %v2591 = vadd.f32 %v2144, %v2465
  %v2592 = vadd.f32 %v2149, %v2470
  %v2593 = vadd.f32 %v2154, %v2475
  %v2594 = vadd.f32 %v2159, %v2480
  %v2595 = vadd.f32 %v2164, %v2485
  %v2596 = vadd.f32 %v2169, %v2490
  %v2597 = vadd.f32 %v2174, %v2495
  %v2598 = vadd.f32 %v2179, %v2500
  %v2599 = vadd.f32 %v2184, %v2505
  %v2600 = vadd.f32 %v2189, %v2510
  %v2601 = vadd.f32 %v2194, %v2515
  %v2602 = vadd.f32 %v2199, %v2520
  %v2603 = vadd.f32 %v2204, %v2525
  %v2604 = vadd.f32 %v2209, %v2530
  %v2605 = vadd.f32 %v2214, %v2535
  %v2606 = vadd.f32 %v2219, %v2540
  %v2607 = vadd.f32 %v2224, %v2545
  %v2608 = vadd.f32 %v2229, %v2550
  %v2609 = vadd.f32 %v2234, %v2555
  %v2610 = vadd.f32 %v2239, %v2560
  %v2611 = vadd.f32 %v2244, %v2565
  %v2612 = vadd.f32 %v2249, %v2570
  %v2613 = vadd.f32 %v2254, %v2575
  %v2614 = vadd.f32 %v2259, %v2580
  %v2616 = vlaneseq
  %v2617 = vshrl.u32 %v2616, 7
  %v2618 = vsub.s32 0, %v2617
  %v2619 = vrot.slane %v160, %v2618
  %v2621 = vadd.f32 %v2583, %v2619
  %v2622 = vadd.f32 %v2584, %v2619
  %v2623 = vadd.f32 %v2585, %v2619
  %v2624 = vadd.f32 %v2586, %v2619
  %v2625 = vadd.f32 %v2587, %v2619
  %v2626 = vadd.f32 %v2588, %v2619
  %v2627 = vadd.f32 %v2589, %v2619
  %v2628 = vadd.f32 %v2590, %v2619
  %v2629 = vadd.f32 %v2591, %v2619
  %v2630 = vadd.f32 %v2592, %v2619
  %v2631 = vadd.f32 %v2593, %v2619
  %v2632 = vadd.f32 %v2594, %v2619
  %v2633 = vadd.f32 %v2595, %v2619
  %v2634 = vadd.f32 %v2596, %v2619
  %v2635 = vadd.f32 %v2597, %v2619
  %v2636 = vadd.f32 %v2598, %v2619
  %v2637 = vadd.f32 %v2599, %v2619
  %v2638 = vadd.f32 %v2600, %v2619
  %v2639 = vadd.f32 %v2601, %v2619
  %v2640 = vadd.f32 %v2602, %v2619
  %v2641 = vadd.f32 %v2603, %v2619
  %v2642 = vadd.f32 %v2604, %v2619
  %v2643 = vadd.f32 %v2605, %v2619
  %v2644 = vadd.f32 %v2606, %v2619
  %v2645 = vadd.f32 %v2607, %v2619
  %v2646 = vadd.f32 %v2608, %v2619
  %v2647 = vadd.f32 %v2609, %v2619
  %v2648 = vadd.f32 %v2610, %v2619
  %v2649 = vadd.f32 %v2611, %v2619
  %v2650 = vadd.f32 %v2612, %v2619
  %v2651 = vadd.f32 %v2613, %v2619
  %v2652 = vadd.f32 %v2614, %v2619
  %2653 = vst.msk [vmem:[%s12] sm:$0xff] %vm166, %v2621
  %2654 = vst.msk [vmem:[%s12 + $0x8] sm:$0xff] %vm166, %v2622
  %2655 = vst.msk [vmem:[%s12 + $0x10] sm:$0xff] %vm166, %v2623
  %2656 = vst.msk [vmem:[%s12 + $0x18] sm:$0xff] %vm166, %v2624
  %2657 = vst.msk [vmem:[%s12 + $0x20] sm:$0xff] %vm166, %v2625
  %2658 = vst.msk [vmem:[%s12 + $0x28] sm:$0xff] %vm166, %v2626
  %2659 = vst.msk [vmem:[%s12 + $0x30] sm:$0xff] %vm166, %v2627
  %2660 = vst.msk [vmem:[%s12 + $0x38] sm:$0xff] %vm166, %v2628
  %2661 = vst.msk [vmem:[%s12 + $0x40] sm:$0xff] %vm166, %v2629
  %2662 = vst.msk [vmem:[%s12 + $0x48] sm:$0xff] %vm166, %v2630
  %2663 = vst.msk [vmem:[%s12 + $0x50] sm:$0xff] %vm166, %v2631
  %2664 = vst.msk [vmem:[%s12 + $0x58] sm:$0xff] %vm166, %v2632
  %2665 = vst.msk [vmem:[%s12 + $0x60] sm:$0xff] %vm166, %v2633
  %2666 = vst.msk [vmem:[%s12 + $0x68] sm:$0xff] %vm166, %v2634
  %2667 = vst.msk [vmem:[%s12 + $0x70] sm:$0xff] %vm166, %v2635
  %2668 = vst.msk [vmem:[%s12 + $0x78] sm:$0xff] %vm166, %v2636
  %2669 = vst.msk [vmem:[%s12 + $0x80] sm:$0xff] %vm166, %v2637
  %2670 = vst.msk [vmem:[%s12 + $0x88] sm:$0xff] %vm166, %v2638
  %2671 = vst.msk [vmem:[%s12 + $0x90] sm:$0xff] %vm166, %v2639
  %2672 = vst.msk [vmem:[%s12 + $0x98] sm:$0xff] %vm166, %v2640
  %2673 = vst.msk [vmem:[%s12 + $0xa0] sm:$0xff] %vm166, %v2641
  %2674 = vst.msk [vmem:[%s12 + $0xa8] sm:$0xff] %vm166, %v2642
  %2675 = vst.msk [vmem:[%s12 + $0xb0] sm:$0xff] %vm166, %v2643
  %2676 = vst.msk [vmem:[%s12 + $0xb8] sm:$0xff] %vm166, %v2644
  %2677 = vst.msk [vmem:[%s12 + $0xc0] sm:$0xff] %vm166, %v2645
  %2678 = vst.msk [vmem:[%s12 + $0xc8] sm:$0xff] %vm166, %v2646
  %2679 = vst.msk [vmem:[%s12 + $0xd0] sm:$0xff] %vm166, %v2647
  %2680 = vst.msk [vmem:[%s12 + $0xd8] sm:$0xff] %vm166, %v2648
  %2681 = vst.msk [vmem:[%s12 + $0xe0] sm:$0xff] %vm166, %v2649
  %2682 = vst.msk [vmem:[%s12 + $0xe8] sm:$0xff] %vm166, %v2650
  %2683 = vst.msk [vmem:[%s12 + $0xf0] sm:$0xff] %vm166, %v2651
  %2684 = vst.msk [vmem:[%s12 + $0xf8] sm:$0xff] %vm166, %v2652
  %v2686 = vlaneseq
  %v2687 = vshrl.u32 %v2686, 7
  %v2688 = vsub.s32 0, %v2687
  %v2689 = vrot.slane %v165, %v2688
  %v2692 = vsel %vm166, %v2621, 0
  %v2695 = vsel %vm166, %v2622, 0
  %v2698 = vsel %vm166, %v2623, 0
  %v2701 = vsel %vm166, %v2624, 0
  %v2704 = vsel %vm166, %v2625, 0
  %v2707 = vsel %vm166, %v2626, 0
  %v2710 = vsel %vm166, %v2627, 0
  %v2713 = vsel %vm166, %v2628, 0
  %v2716 = vsel %vm166, %v2629, 0
  %v2719 = vsel %vm166, %v2630, 0
  %v2722 = vsel %vm166, %v2631, 0
  %v2725 = vsel %vm166, %v2632, 0
  %v2728 = vsel %vm166, %v2633, 0
  %v2731 = vsel %vm166, %v2634, 0
  %v2734 = vsel %vm166, %v2635, 0
  %v2737 = vsel %vm166, %v2636, 0
  %v2740 = vsel %vm166, %v2637, 0
  %v2743 = vsel %vm166, %v2638, 0
  %v2746 = vsel %vm166, %v2639, 0
  %v2749 = vsel %vm166, %v2640, 0
  %v2752 = vsel %vm166, %v2641, 0
  %v2755 = vsel %vm166, %v2642, 0
  %v2758 = vsel %vm166, %v2643, 0
  %v2761 = vsel %vm166, %v2644, 0
  %v2764 = vsel %vm166, %v2645, 0
  %v2767 = vsel %vm166, %v2646, 0
  %v2770 = vsel %vm166, %v2647, 0
  %v2773 = vsel %vm166, %v2648, 0
  %v2776 = vsel %vm166, %v2649, 0
  %v2779 = vsel %vm166, %v2650, 0
  %v2782 = vsel %vm166, %v2651, 0
  %v2785 = vsel %vm166, %v2652, 0
  %2787 = vmatprep.subr.mxu0 0.0
  %2788 = vmatpush1.msra.mxu0 0.0
  %2789 = vmatprep.subr.mxu0 0.0
  %2790 = vmatpush1.msra.mxu0 0.0
  %2791 = vmatprep.subr.mxu0 0.0
  %2792 = vmatpush1.msra.mxu0 0.0
  %2793 = vmatprep.subr.mxu0 0.0
  %2794 = vmatpush1.msra.mxu0 0.0
  %2795 = vmatprep.subr.mxu0 0.0
  %2796 = vmatpush1.msra.mxu0 0.0
  %2797 = vmatprep.subr.mxu0 0.0
  %2798 = vmatpush1.msra.mxu0 0.0
  %2799 = vmatprep.subr.mxu0 0.0
  %2800 = vmatpush1.msra.mxu0 0.0
  %2801 = vmatprep.subr.mxu0 0.0
  %2802 = vmatpush1.msra.mxu0 0.0
  %2803 = vmatprep.subr.mxu0 0.0
  %2804 = vmatpush1.msra.mxu0 0.0
  %2805 = vmatprep.subr.mxu0 0.0
  %2806 = vmatpush1.msra.mxu0 0.0
  %2807 = vmatprep.subr.mxu0 0.0
  %2808 = vmatpush1.msra.mxu0 0.0
  %2809 = vmatprep.subr.mxu0 0.0
  %2810 = vmatpush1.msra.mxu0 0.0
  %2811 = vmatprep.subr.mxu0 0.0
  %2812 = vmatpush1.msra.mxu0 %v164
  %2813 = vmatprep.subr.mxu0 0.0
  %2814 = vmatpush1.msra.mxu0 %v163
  %2815 = vmatprep.subr.mxu0 0.0
  %2816 = vmatpush1.msra.mxu0 %v162
  %2817 = vmatprep.subr.mxu0 0.0
  %2818 = vmatpush1.msra.mxu0 %v161
  %2819 = vmatprep.subr.mxu0 0.0
  %2820 = vmatpush2.msra.mxu0 0.0
  %2821 = vmatprep.subr.mxu0 0.0
  %2822 = vmatpush2.msra.mxu0 0.0
  %2823 = vmatprep.subr.mxu0 0.0
  %2824 = vmatpush2.msra.mxu0 0.0
  %2825 = vmatprep.subr.mxu0 0.0
  %2826 = vmatpush2.msra.mxu0 0.0
  %2827 = vmatprep.subr.mxu0 0.0
  %2828 = vmatpush2.msra.mxu0 0.0
  %2829 = vmatprep.subr.mxu0 0.0
  %2830 = vmatpush2.msra.mxu0 0.0
  %2831 = vmatprep.subr.mxu0 0.0
  %2832 = vmatpush2.msra.mxu0 0.0
  %2833 = vmatprep.subr.mxu0 0.0
  %2834 = vmatpush2.msra.mxu0 0.0
  %2835 = vmatprep.subr.mxu0 0.0
  %2836 = vmatpush2.msra.mxu0 0.0
  %2837 = vmatprep.subr.mxu0 0.0
  %2838 = vmatpush2.msra.mxu0 0.0
  %2839 = vmatprep.subr.mxu0 0.0
  %2840 = vmatpush2.msra.mxu0 0.0
  %2841 = vmatprep.subr.mxu0 0.0
  %2842 = vmatpush2.msra.mxu0 0.0
  %2843 = vmatprep.subr.mxu0 0.0
  %2844 = vmatpush2.msra.mxu0 0.0
  %2845 = vmatprep.subr.mxu0 0.0
  %2846 = vmatpush2.msra.mxu0 0.0
  %2847 = vmatprep.subr.mxu0 0.0
  %2848 = vmatpush2.msra.mxu0 0.0
  %2849 = vmatprep.subr.mxu0 0.0
  %2850 = vmatpush2.msra.mxu0 0.0
  %2851 = vmatprep.mubr.f32.mxu0 0.0
  %2852 = vmatmul.mubr.f32.gmra.mxu0 %v2692
  %v2853 = vpop.f32.mrf.mxu0
  %v2854 = vadd.f32 %v2689, %v2853
  %v2855 = vpop.f32.mrf.mxu0
  %2856 = vmatprep.mubr.f32.mxu0 0.0
  %2857 = vmatmul.mubr.f32.gmra.mxu0 %v2695
  %v2858 = vpop.f32.mrf.mxu0
  %v2859 = vadd.f32 %v2689, %v2858
  %v2860 = vpop.f32.mrf.mxu0
  %2861 = vmatprep.mubr.f32.mxu0 0.0
  %2862 = vmatmul.mubr.f32.gmra.mxu0 %v2698
  %v2863 = vpop.f32.mrf.mxu0
  %v2864 = vadd.f32 %v2689, %v2863
  %v2865 = vpop.f32.mrf.mxu0
  %2866 = vmatprep.mubr.f32.mxu0 0.0
  %2867 = vmatmul.mubr.f32.gmra.mxu0 %v2701
  %v2868 = vpop.f32.mrf.mxu0
  %v2869 = vadd.f32 %v2689, %v2868
  %v2870 = vpop.f32.mrf.mxu0
  %2871 = vmatprep.mubr.f32.mxu0 0.0
  %2872 = vmatmul.mubr.f32.gmra.mxu0 %v2704
  %v2873 = vpop.f32.mrf.mxu0
  %v2874 = vadd.f32 %v2689, %v2873
  %v2875 = vpop.f32.mrf.mxu0
  %2876 = vmatprep.mubr.f32.mxu0 0.0
  %2877 = vmatmul.mubr.f32.gmra.mxu0 %v2707
  %v2878 = vpop.f32.mrf.mxu0
  %v2879 = vadd.f32 %v2689, %v2878
  %v2880 = vpop.f32.mrf.mxu0
  %2881 = vmatprep.mubr.f32.mxu0 0.0
  %2882 = vmatmul.mubr.f32.gmra.mxu0 %v2710
  %v2883 = vpop.f32.mrf.mxu0
  %v2884 = vadd.f32 %v2689, %v2883
  %v2885 = vpop.f32.mrf.mxu0
  %2886 = vmatprep.mubr.f32.mxu0 0.0
  %2887 = vmatmul.mubr.f32.gmra.mxu0 %v2713
  %v2888 = vpop.f32.mrf.mxu0
  %v2889 = vadd.f32 %v2689, %v2888
  %v2890 = vpop.f32.mrf.mxu0
  %2891 = vmatprep.mubr.f32.mxu0 0.0
  %2892 = vmatmul.mubr.f32.gmra.mxu0 %v2716
  %v2893 = vpop.f32.mrf.mxu0
  %v2894 = vadd.f32 %v2689, %v2893
  %v2895 = vpop.f32.mrf.mxu0
  %2896 = vmatprep.mubr.f32.mxu0 0.0
  %2897 = vmatmul.mubr.f32.gmra.mxu0 %v2719
  %v2898 = vpop.f32.mrf.mxu0
  %v2899 = vadd.f32 %v2689, %v2898
  %v2900 = vpop.f32.mrf.mxu0
  %2901 = vmatprep.mubr.f32.mxu0 0.0
  %2902 = vmatmul.mubr.f32.gmra.mxu0 %v2722
  %v2903 = vpop.f32.mrf.mxu0
  %v2904 = vadd.f32 %v2689, %v2903
  %v2905 = vpop.f32.mrf.mxu0
  %2906 = vmatprep.mubr.f32.mxu0 0.0
  %2907 = vmatmul.mubr.f32.gmra.mxu0 %v2725
  %v2908 = vpop.f32.mrf.mxu0
  %v2909 = vadd.f32 %v2689, %v2908
  %v2910 = vpop.f32.mrf.mxu0
  %2911 = vmatprep.mubr.f32.mxu0 0.0
  %2912 = vmatmul.mubr.f32.gmra.mxu0 %v2728
  %v2913 = vpop.f32.mrf.mxu0
  %v2914 = vadd.f32 %v2689, %v2913
  %v2915 = vpop.f32.mrf.mxu0
  %2916 = vmatprep.mubr.f32.mxu0 0.0
  %2917 = vmatmul.mubr.f32.gmra.mxu0 %v2731
  %v2918 = vpop.f32.mrf.mxu0
  %v2919 = vadd.f32 %v2689, %v2918
  %v2920 = vpop.f32.mrf.mxu0
  %2921 = vmatprep.mubr.f32.mxu0 0.0
  %2922 = vmatmul.mubr.f32.gmra.mxu0 %v2734
  %v2923 = vpop.f32.mrf.mxu0
  %v2924 = vadd.f32 %v2689, %v2923
  %v2925 = vpop.f32.mrf.mxu0
  %2926 = vmatprep.mubr.f32.mxu0 0.0
  %2927 = vmatmul.mubr.f32.gmra.mxu0 %v2737
  %v2928 = vpop.f32.mrf.mxu0
  %v2929 = vadd.f32 %v2689, %v2928
  %v2930 = vpop.f32.mrf.mxu0
  %2931 = vmatprep.mubr.f32.mxu0 0.0
  %2932 = vmatmul.mubr.f32.gmra.mxu0 %v2740
  %v2933 = vpop.f32.mrf.mxu0
  %v2934 = vadd.f32 %v2689, %v2933
  %v2935 = vpop.f32.mrf.mxu0
  %2936 = vmatprep.mubr.f32.mxu0 0.0
  %2937 = vmatmul.mubr.f32.gmra.mxu0 %v2743
  %v2938 = vpop.f32.mrf.mxu0
  %v2939 = vadd.f32 %v2689, %v2938
  %v2940 = vpop.f32.mrf.mxu0
  %2941 = vmatprep.mubr.f32.mxu0 0.0
  %2942 = vmatmul.mubr.f32.gmra.mxu0 %v2746
  %v2943 = vpop.f32.mrf.mxu0
  %v2944 = vadd.f32 %v2689, %v2943
  %v2945 = vpop.f32.mrf.mxu0
  %2946 = vmatprep.mubr.f32.mxu0 0.0
  %2947 = vmatmul.mubr.f32.gmra.mxu0 %v2749
  %v2948 = vpop.f32.mrf.mxu0
  %v2949 = vadd.f32 %v2689, %v2948
  %v2950 = vpop.f32.mrf.mxu0
  %2951 = vmatprep.mubr.f32.mxu0 0.0
  %2952 = vmatmul.mubr.f32.gmra.mxu0 %v2752
  %v2953 = vpop.f32.mrf.mxu0
  %v2954 = vadd.f32 %v2689, %v2953
  %v2955 = vpop.f32.mrf.mxu0
  %2956 = vmatprep.mubr.f32.mxu0 0.0
  %2957 = vmatmul.mubr.f32.gmra.mxu0 %v2755
  %v2958 = vpop.f32.mrf.mxu0
  %v2959 = vadd.f32 %v2689, %v2958
  %v2960 = vpop.f32.mrf.mxu0
  %2961 = vmatprep.mubr.f32.mxu0 0.0
  %2962 = vmatmul.mubr.f32.gmra.mxu0 %v2758
  %v2963 = vpop.f32.mrf.mxu0
  %v2964 = vadd.f32 %v2689, %v2963
  %v2965 = vpop.f32.mrf.mxu0
  %2966 = vmatprep.mubr.f32.mxu0 0.0
  %2967 = vmatmul.mubr.f32.gmra.mxu0 %v2761
  %v2968 = vpop.f32.mrf.mxu0
  %v2969 = vadd.f32 %v2689, %v2968
  %v2970 = vpop.f32.mrf.mxu0
  %2971 = vmatprep.mubr.f32.mxu0 0.0
  %2972 = vmatmul.mubr.f32.gmra.mxu0 %v2764
  %v2973 = vpop.f32.mrf.mxu0
  %v2974 = vadd.f32 %v2689, %v2973
  %v2975 = vpop.f32.mrf.mxu0
  %2976 = vmatprep.mubr.f32.mxu0 0.0
  %2977 = vmatmul.mubr.f32.gmra.mxu0 %v2767
  %v2978 = vpop.f32.mrf.mxu0
  %v2979 = vadd.f32 %v2689, %v2978
  %v2980 = vpop.f32.mrf.mxu0
  %2981 = vmatprep.mubr.f32.mxu0 0.0
  %2982 = vmatmul.mubr.f32.gmra.mxu0 %v2770
  %v2983 = vpop.f32.mrf.mxu0
  %v2984 = vadd.f32 %v2689, %v2983
  %v2985 = vpop.f32.mrf.mxu0
  %2986 = vmatprep.mubr.f32.mxu0 0.0
  %2987 = vmatmul.mubr.f32.gmra.mxu0 %v2773
  %v2988 = vpop.f32.mrf.mxu0
  %v2989 = vadd.f32 %v2689, %v2988
  %v2990 = vpop.f32.mrf.mxu0
  %2991 = vmatprep.mubr.f32.mxu0 0.0
  %2992 = vmatmul.mubr.f32.gmra.mxu0 %v2776
  %v2993 = vpop.f32.mrf.mxu0
  %v2994 = vadd.f32 %v2689, %v2993
  %v2995 = vpop.f32.mrf.mxu0
  %2996 = vmatprep.mubr.f32.mxu0 0.0
  %2997 = vmatmul.mubr.f32.gmra.mxu0 %v2779
  %v2998 = vpop.f32.mrf.mxu0
  %v2999 = vadd.f32 %v2689, %v2998
  %v3000 = vpop.f32.mrf.mxu0
  %3001 = vmatprep.mubr.f32.mxu0 0.0
  %3002 = vmatmul.mubr.f32.gmra.mxu0 %v2782
  %v3003 = vpop.f32.mrf.mxu0
  %v3004 = vadd.f32 %v2689, %v3003
  %v3005 = vpop.f32.mrf.mxu0
  %3006 = vmatprep.mubr.f32.mxu0 0.0
  %3007 = vmatmul.mubr.f32.gmra.mxu0 %v2785
  %v3008 = vpop.f32.mrf.mxu0
  %v3009 = vadd.f32 %v2689, %v3008
  %v3010 = vpop.f32.mrf.mxu0
  %3011 = vdwg.mxu0
  %vm3012 = vcmask 7168
  %3013 = vst.msk [vmem:[%s13] sm:$0xff] %vm3012, %v2854
  %3014 = vst.msk [vmem:[%s13 + $0x8] sm:$0xff] %vm3012, %v2859
  %3015 = vst.msk [vmem:[%s13 + $0x10] sm:$0xff] %vm3012, %v2864
  %3016 = vst.msk [vmem:[%s13 + $0x18] sm:$0xff] %vm3012, %v2869
  %3017 = vst.msk [vmem:[%s13 + $0x20] sm:$0xff] %vm3012, %v2874
  %3018 = vst.msk [vmem:[%s13 + $0x28] sm:$0xff] %vm3012, %v2879
  %3019 = vst.msk [vmem:[%s13 + $0x30] sm:$0xff] %vm3012, %v2884
  %3020 = vst.msk [vmem:[%s13 + $0x38] sm:$0xff] %vm3012, %v2889
  %3021 = vst.msk [vmem:[%s13 + $0x40] sm:$0xff] %vm3012, %v2894
  %3022 = vst.msk [vmem:[%s13 + $0x48] sm:$0xff] %vm3012, %v2899
  %3023 = vst.msk [vmem:[%s13 + $0x50] sm:$0xff] %vm3012, %v2904
  %3024 = vst.msk [vmem:[%s13 + $0x58] sm:$0xff] %vm3012, %v2909
  %3025 = vst.msk [vmem:[%s13 + $0x60] sm:$0xff] %vm3012, %v2914
  %3026 = vst.msk [vmem:[%s13 + $0x68] sm:$0xff] %vm3012, %v2919
  %3027 = vst.msk [vmem:[%s13 + $0x70] sm:$0xff] %vm3012, %v2924
  %3028 = vst.msk [vmem:[%s13 + $0x78] sm:$0xff] %vm3012, %v2929
  %3029 = vst.msk [vmem:[%s13 + $0x80] sm:$0xff] %vm3012, %v2934
  %3030 = vst.msk [vmem:[%s13 + $0x88] sm:$0xff] %vm3012, %v2939
  %3031 = vst.msk [vmem:[%s13 + $0x90] sm:$0xff] %vm3012, %v2944
  %3032 = vst.msk [vmem:[%s13 + $0x98] sm:$0xff] %vm3012, %v2949
  %3033 = vst.msk [vmem:[%s13 + $0xa0] sm:$0xff] %vm3012, %v2954
  %3034 = vst.msk [vmem:[%s13 + $0xa8] sm:$0xff] %vm3012, %v2959
  %3035 = vst.msk [vmem:[%s13 + $0xb0] sm:$0xff] %vm3012, %v2964
  %3036 = vst.msk [vmem:[%s13 + $0xb8] sm:$0xff] %vm3012, %v2969
  %3037 = vst.msk [vmem:[%s13 + $0xc0] sm:$0xff] %vm3012, %v2974
  %3038 = vst.msk [vmem:[%s13 + $0xc8] sm:$0xff] %vm3012, %v2979
  %3039 = vst.msk [vmem:[%s13 + $0xd0] sm:$0xff] %vm3012, %v2984
  %3040 = vst.msk [vmem:[%s13 + $0xd8] sm:$0xff] %vm3012, %v2989
  %3041 = vst.msk [vmem:[%s13 + $0xe0] sm:$0xff] %vm3012, %v2994
  %3042 = vst.msk [vmem:[%s13 + $0xe8] sm:$0xff] %vm3012, %v2999
  %3043 = vst.msk [vmem:[%s13 + $0xf0] sm:$0xff] %vm3012, %v3004
  %3044 = vst.msk [vmem:[%s13 + $0xf8] sm:$0xff] %vm3012, %v3009
  // Predicated region
  $region46: #{slmgnn_forward.5} parent=0 // pred_check
    _
  $region47: #{slmgnn_forward.5} parent=0 // pred_check_branch
    %3046 = sbr.rel (0) target = $region49
  $region48: #{slmgnn_forward.5} parent=0 // pred_region
    _
  $region49: #{slmgnn_forward.5} parent=0 // pred_fallthru
    _
  // Predicated region
  $region50: #{slmgnn_forward.5} parent=0 // pred_check
    _
  $region51: #{slmgnn_forward.5} parent=0 // pred_check_branch
    %3048 = sbr.rel (0) target = $region53
  $region52: #{slmgnn_forward.5} parent=0 // pred_region
    _
  $region53: #{slmgnn_forward.5} parent=0 // pred_fallthru
    _
  // Predicated region
  $region54: #{slmgnn_forward.5} parent=0 // pred_check
    _
  $region55: #{slmgnn_forward.5} parent=0 // pred_check_branch
    %3050 = sbr.rel (0) target = $region57
  $region56: #{slmgnn_forward.5} parent=0 // pred_region
    _
  $region57: #{slmgnn_forward.5} parent=0 // pred_fallthru
    _
  // Predicated region
  $region58: #{slmgnn_forward.5} parent=0 // pred_check
    _
  $region59: #{slmgnn_forward.5} parent=0 // pred_check_branch
    %3052 = sbr.rel (0) target = $region61
  $region60: #{slmgnn_forward.5} parent=0 // pred_region
    _
  $region61: #{slmgnn_forward.5} parent=0 // pred_fallthru
    _
  // Predicated region
  $region62: #{slmgnn_forward.5} parent=0 // pred_check
    _
  $region63: #{slmgnn_forward.5} parent=0 // pred_check_branch
    %3054 = sbr.rel (0) target = $region65
  $region64: #{slmgnn_forward.5} parent=0 // pred_region
    _
  $region65: #{slmgnn_forward.5} parent=0 // pred_fallthru
    _
  // Predicated region
  $region66: #{slmgnn_forward.5} parent=0 // pred_check
    _
  $region67: #{slmgnn_forward.5} parent=0 // pred_check_branch
    %3056 = sbr.rel (0) target = $region69
  $region68: #{slmgnn_forward.5} parent=0 // pred_region
    _
  $region69: #{slmgnn_forward.5} parent=0 // pred_fallthru
    _

// kernel: slmgnn_forward.6
$region0: #{slmgnn_forward.6}
  #allocation0 [shape = 'u32[]', space=smem, size = 0x4, offset = 0x4, fixed_abs, tag = 'smem constant byte address 0x4 - core index']
  #allocation1 [shape = 'u32[144,128]{1,0:T(1,128)}', space=vmem, size = 0x12000, scoped, tag = 'internal scratch']
  %s0 = inlined_call_operand.vmem [shape: f32[8,2,16], index: 0, kind: input, shape index: {}]
  %s1 = inlined_call_operand.vmem [shape: f32[8,2,16], index: 1, kind: input, shape index: {}]
  %s2 = inlined_call_operand.vmem [shape: f32[16,32], index: 2, kind: input, shape index: {}]
  %s3 = inlined_call_operand.vmem [shape: f32[16,32], index: 3, kind: input, shape index: {}]
  %s4 = inlined_call_operand.vmem [shape: f32[1,32], index: 4, kind: input, shape index: {}]
  %s5 = inlined_call_operand.vmem [shape: f32[16,16], index: 5, kind: input, shape index: {}]
  %s6 = inlined_call_operand.vmem [shape: f32[16,16], index: 6, kind: input, shape index: {}]
  %s7 = inlined_call_operand.vmem [shape: f32[1,16], index: 7, kind: input, shape index: {}]
  %s8 = inlined_call_operand.vmem [shape: f32[8,2,16], index: 8, kind: output, shape index: {}]
  %s9 = sld [smem:[#allocation0]]
  $region42: #{slmgnn_forward.6} parent=0
    _
  %s11 = ssub.s32 1, %s9
  %s12 = scalar_select 0, %s11, %s9
  // Predicated region
  $region2: #{slmgnn_forward.6} parent=0 // pred_check
    _
  $region3: #{slmgnn_forward.6} parent=0 // pred_check_branch
    %14 = sbr.rel (0) target = $region5
  $region4: #{slmgnn_forward.6} parent=0 // pred_region
    _
  $region5: #{slmgnn_forward.6} parent=0 // pred_fallthru
    _
  // Predicated region
  $region6: #{slmgnn_forward.6} parent=0 // pred_check
    _
  $region7: #{slmgnn_forward.6} parent=0 // pred_check_branch
    %16 = sbr.rel (0) target = $region9
  $region8: #{slmgnn_forward.6} parent=0 // pred_region
    _
  $region9: #{slmgnn_forward.6} parent=0 // pred_fallthru
    _
  // Predicated region
  $region10: #{slmgnn_forward.6} parent=0 // pred_check
    _
  $region11: #{slmgnn_forward.6} parent=0 // pred_check_branch
    %18 = sbr.rel (0) target = $region13
  $region12: #{slmgnn_forward.6} parent=0 // pred_region
    _
  $region13: #{slmgnn_forward.6} parent=0 // pred_fallthru
    _
  // Predicated region
  $region14: #{slmgnn_forward.6} parent=0 // pred_check
    _
  $region15: #{slmgnn_forward.6} parent=0 // pred_check_branch
    %20 = sbr.rel (0) target = $region17
  $region16: #{slmgnn_forward.6} parent=0 // pred_region
    _
  $region17: #{slmgnn_forward.6} parent=0 // pred_fallthru
    _
  // Predicated region
  $region18: #{slmgnn_forward.6} parent=0 // pred_check
    _
  $region19: #{slmgnn_forward.6} parent=0 // pred_check_branch
    %22 = sbr.rel (0) target = $region21
  $region20: #{slmgnn_forward.6} parent=0 // pred_region
    _
  $region21: #{slmgnn_forward.6} parent=0 // pred_fallthru
    _
  // Predicated region
  $region22: #{slmgnn_forward.6} parent=0 // pred_check
    _
  $region23: #{slmgnn_forward.6} parent=0 // pred_check_branch
    %24 = sbr.rel (0) target = $region25
  $region24: #{slmgnn_forward.6} parent=0 // pred_region
    _
  $region25: #{slmgnn_forward.6} parent=0 // pred_fallthru
    _
  // Predicated region
  $region26: #{slmgnn_forward.6} parent=0 // pred_check
    _
  $region27: #{slmgnn_forward.6} parent=0 // pred_check_branch
    %26 = sbr.rel (0) target = $region29
  $region28: #{slmgnn_forward.6} parent=0 // pred_region
    _
  $region29: #{slmgnn_forward.6} parent=0 // pred_fallthru
    _
  // Predicated region
  $region30: #{slmgnn_forward.6} parent=0 // pred_check
    _
  $region31: #{slmgnn_forward.6} parent=0 // pred_check_branch
    %28 = sbr.rel (0) target = $region33
  $region32: #{slmgnn_forward.6} parent=0 // pred_region
    _
  $region33: #{slmgnn_forward.6} parent=0 // pred_fallthru
    _
  %v29 = vld [vmem:[%s2] sm:$0xff]
  %v30 = vld [vmem:[%s2 + $0x8] sm:$0xff]
  %v31 = vld [vmem:[%s3] sm:$0xff]
  %v32 = vld [vmem:[%s3 + $0x8] sm:$0xff]
  %v33 = vld [vmem:[%s4] sm:$0x1]
  %v34 = vld [vmem:[%s5] sm:$0xff]
  %v35 = vld [vmem:[%s5 + $0x8] sm:$0xff]
  %v36 = vld [vmem:[%s6] sm:$0xff]
  %v37 = vld [vmem:[%s6 + $0x8] sm:$0xff]
  %v38 = vld [vmem:[%s7] sm:$0x1]
  %v39 = vld [vmem:[%s1] sm:$0x3]
  %v40 = vld [vmem:[%s0] sm:$0x3]
  %v41 = vmul.f32 %v40, %v39
  %v42 = vsub.f32 1.0, %v39
  %v43 = vmul.f32 %v42, 0.0
  %v44 = vadd.f32 %v41, %v43
  %v45 = vxor.u32 %v44, 2147483648
  %v46 = vmul.f32 %v45, 1.442695
  %v47 = vpow.pop %v46
  %v48 = vadd.f32 %v47, 1.0
  %v49 = vrcp.pop %v48
  %v50 = vmul.f32 1.0, %v49
  %vm51 = vcmask 130048
  %v53 = vsel %vm51, 0.0, 0
  %55 = vmatprep.subr.mxu0 0.0
  %56 = vmatpush1.msra.mxu0 0.0
  %57 = vmatprep.subr.mxu0 0.0
  %58 = vmatpush1.msra.mxu0 0.0
  %59 = vmatprep.subr.mxu0 0.0
  %60 = vmatpush1.msra.mxu0 0.0
  %61 = vmatprep.subr.mxu0 0.0
  %62 = vmatpush1.msra.mxu0 0.0
  %63 = vmatprep.subr.mxu0 0.0
  %64 = vmatpush1.msra.mxu0 0.0
  %65 = vmatprep.subr.mxu0 0.0
  %66 = vmatpush1.msra.mxu0 0.0
  %67 = vmatprep.subr.mxu0 0.0
  %68 = vmatpush1.msra.mxu0 0.0
  %69 = vmatprep.subr.mxu0 0.0
  %70 = vmatpush1.msra.mxu0 0.0
  %71 = vmatprep.subr.mxu0 0.0
  %72 = vmatpush1.msra.mxu0 0.0
  %73 = vmatprep.subr.mxu0 0.0
  %74 = vmatpush1.msra.mxu0 0.0
  %75 = vmatprep.subr.mxu0 0.0
  %76 = vmatpush1.msra.mxu0 0.0
  %77 = vmatprep.subr.mxu0 0.0
  %78 = vmatpush1.msra.mxu0 0.0
  %79 = vmatprep.subr.mxu0 0.0
  %80 = vmatpush1.msra.mxu0 0.0
  %81 = vmatprep.subr.mxu0 0.0
  %82 = vmatpush1.msra.mxu0 0.0
  %83 = vmatprep.subr.mxu0 0.0
  %84 = vmatpush1.msra.mxu0 %v32
  %85 = vmatprep.subr.mxu0 0.0
  %86 = vmatpush1.msra.mxu0 %v31
  %87 = vmatprep.subr.mxu0 0.0
  %88 = vmatpush2.msra.mxu0 0.0
  %89 = vmatprep.subr.mxu0 0.0
  %90 = vmatpush2.msra.mxu0 0.0
  %91 = vmatprep.subr.mxu0 0.0
  %92 = vmatpush2.msra.mxu0 0.0
  %93 = vmatprep.subr.mxu0 0.0
  %94 = vmatpush2.msra.mxu0 0.0
  %95 = vmatprep.subr.mxu0 0.0
  %96 = vmatpush2.msra.mxu0 0.0
  %97 = vmatprep.subr.mxu0 0.0
  %98 = vmatpush2.msra.mxu0 0.0
  %99 = vmatprep.subr.mxu0 0.0
  %100 = vmatpush2.msra.mxu0 0.0
  %101 = vmatprep.subr.mxu0 0.0
  %102 = vmatpush2.msra.mxu0 0.0
  %103 = vmatprep.subr.mxu0 0.0
  %104 = vmatpush2.msra.mxu0 0.0
  %105 = vmatprep.subr.mxu0 0.0
  %106 = vmatpush2.msra.mxu0 0.0
  %107 = vmatprep.subr.mxu0 0.0
  %108 = vmatpush2.msra.mxu0 0.0
  %109 = vmatprep.subr.mxu0 0.0
  %110 = vmatpush2.msra.mxu0 0.0
  %111 = vmatprep.subr.mxu0 0.0
  %112 = vmatpush2.msra.mxu0 0.0
  %113 = vmatprep.subr.mxu0 0.0
  %114 = vmatpush2.msra.mxu0 0.0
  %115 = vmatprep.subr.mxu0 0.0
  %116 = vmatpush2.msra.mxu0 0.0
  %117 = vmatprep.subr.mxu0 0.0
  %118 = vmatpush2.msra.mxu0 0.0
  %119 = vmatprep.mubr.f32.mxu0 0.0
  %120 = vmatmul.mubr.f32.gmra.mxu0 %v53
  %v121 = vpop.f32.mrf.mxu0
  %v122 = vadd.f32 0.0, %v121
  %v123 = vpop.f32.mrf.mxu0
  %124 = vdwg.mxu0
  %v126 = vsel %vm51, %v50, 0
  %128 = vmatprep.subr.mxu0 0.0
  %129 = vmatpush1.msra.mxu0 0.0
  %130 = vmatprep.subr.mxu0 0.0
  %131 = vmatpush1.msra.mxu0 0.0
  %132 = vmatprep.subr.mxu0 0.0
  %133 = vmatpush1.msra.mxu0 0.0
  %134 = vmatprep.subr.mxu0 0.0
  %135 = vmatpush1.msra.mxu0 0.0
  %136 = vmatprep.subr.mxu0 0.0
  %137 = vmatpush1.msra.mxu0 0.0
  %138 = vmatprep.subr.mxu0 0.0
  %139 = vmatpush1.msra.mxu0 0.0
  %140 = vmatprep.subr.mxu0 0.0
  %141 = vmatpush1.msra.mxu0 0.0
  %142 = vmatprep.subr.mxu0 0.0
  %143 = vmatpush1.msra.mxu0 0.0
  %144 = vmatprep.subr.mxu0 0.0
  %145 = vmatpush1.msra.mxu0 0.0
  %146 = vmatprep.subr.mxu0 0.0
  %147 = vmatpush1.msra.mxu0 0.0
  %148 = vmatprep.subr.mxu0 0.0
  %149 = vmatpush1.msra.mxu0 0.0
  %150 = vmatprep.subr.mxu0 0.0
  %151 = vmatpush1.msra.mxu0 0.0
  %152 = vmatprep.subr.mxu0 0.0
  %153 = vmatpush1.msra.mxu0 0.0
  %154 = vmatprep.subr.mxu0 0.0
  %155 = vmatpush1.msra.mxu0 0.0
  %156 = vmatprep.subr.mxu0 0.0
  %157 = vmatpush1.msra.mxu0 %v30
  %158 = vmatprep.subr.mxu0 0.0
  %159 = vmatpush1.msra.mxu0 %v29
  %160 = vmatprep.subr.mxu0 0.0
  %161 = vmatpush2.msra.mxu0 0.0
  %162 = vmatprep.subr.mxu0 0.0
  %163 = vmatpush2.msra.mxu0 0.0
  %164 = vmatprep.subr.mxu0 0.0
  %165 = vmatpush2.msra.mxu0 0.0
  %166 = vmatprep.subr.mxu0 0.0
  %167 = vmatpush2.msra.mxu0 0.0
  %168 = vmatprep.subr.mxu0 0.0
  %169 = vmatpush2.msra.mxu0 0.0
  %170 = vmatprep.subr.mxu0 0.0
  %171 = vmatpush2.msra.mxu0 0.0
  %172 = vmatprep.subr.mxu0 0.0
  %173 = vmatpush2.msra.mxu0 0.0
  %174 = vmatprep.subr.mxu0 0.0
  %175 = vmatpush2.msra.mxu0 0.0
  %176 = vmatprep.subr.mxu0 0.0
  %177 = vmatpush2.msra.mxu0 0.0
  %178 = vmatprep.subr.mxu0 0.0
  %179 = vmatpush2.msra.mxu0 0.0
  %180 = vmatprep.subr.mxu0 0.0
  %181 = vmatpush2.msra.mxu0 0.0
  %182 = vmatprep.subr.mxu0 0.0
  %183 = vmatpush2.msra.mxu0 0.0
  %184 = vmatprep.subr.mxu0 0.0
  %185 = vmatpush2.msra.mxu0 0.0
  %186 = vmatprep.subr.mxu0 0.0
  %187 = vmatpush2.msra.mxu0 0.0
  %188 = vmatprep.subr.mxu0 0.0
  %189 = vmatpush2.msra.mxu0 0.0
  %190 = vmatprep.subr.mxu0 0.0
  %191 = vmatpush2.msra.mxu0 0.0
  %192 = vmatprep.mubr.f32.mxu0 0.0
  %193 = vmatmul.mubr.f32.gmra.mxu0 %v126
  %v194 = vpop.f32.mrf.mxu0
  %v195 = vadd.f32 %v122, %v194
  %v196 = vpop.f32.mrf.mxu0
  %197 = vdwg.mxu0
  %v199 = vlaneseq
  %v200 = vshrl.u32 %v199, 7
  %v201 = vsub.s32 0, %v200
  %v202 = vrot.slane %v33, %v201
  %v204 = vadd.f32 %v195, %v202
  %v205 = vxor.u32 %v204, 2147483648
  %v206 = vmul.f32 %v205, 1.442695
  %v207 = vpow.pop %v206
  %v208 = vadd.f32 %v207, 1.0
  %v209 = vrcp.pop %v208
  %v210 = vmul.f32 1.0, %v209
  %v211 = vmul.f32 %v210, 0.0
  %213 = vrot.lane.b32.xlu0 %v211, 112
  %v214 = vpop.permute.xlu0 %213
  %v215 = vsel %vm51, %v214, 0
  %217 = vmatprep.subr.mxu0 0.0
  %218 = vmatpush1.msra.mxu0 0.0
  %219 = vmatprep.subr.mxu0 0.0
  %220 = vmatpush1.msra.mxu0 0.0
  %221 = vmatprep.subr.mxu0 0.0
  %222 = vmatpush1.msra.mxu0 0.0
  %223 = vmatprep.subr.mxu0 0.0
  %224 = vmatpush1.msra.mxu0 0.0
  %225 = vmatprep.subr.mxu0 0.0
  %226 = vmatpush1.msra.mxu0 0.0
  %227 = vmatprep.subr.mxu0 0.0
  %228 = vmatpush1.msra.mxu0 0.0
  %229 = vmatprep.subr.mxu0 0.0
  %230 = vmatpush1.msra.mxu0 0.0
  %231 = vmatprep.subr.mxu0 0.0
  %232 = vmatpush1.msra.mxu0 0.0
  %233 = vmatprep.subr.mxu0 0.0
  %234 = vmatpush1.msra.mxu0 0.0
  %235 = vmatprep.subr.mxu0 0.0
  %236 = vmatpush1.msra.mxu0 0.0
  %237 = vmatprep.subr.mxu0 0.0
  %238 = vmatpush1.msra.mxu0 0.0
  %239 = vmatprep.subr.mxu0 0.0
  %240 = vmatpush1.msra.mxu0 0.0
  %241 = vmatprep.subr.mxu0 0.0
  %242 = vmatpush1.msra.mxu0 0.0
  %243 = vmatprep.subr.mxu0 0.0
  %244 = vmatpush1.msra.mxu0 0.0
  %245 = vmatprep.subr.mxu0 0.0
  %246 = vmatpush1.msra.mxu0 %v37
  %247 = vmatprep.subr.mxu0 0.0
  %248 = vmatpush1.msra.mxu0 %v36
  %249 = vmatprep.subr.mxu0 0.0
  %250 = vmatpush2.msra.mxu0 0.0
  %251 = vmatprep.subr.mxu0 0.0
  %252 = vmatpush2.msra.mxu0 0.0
  %253 = vmatprep.subr.mxu0 0.0
  %254 = vmatpush2.msra.mxu0 0.0
  %255 = vmatprep.subr.mxu0 0.0
  %256 = vmatpush2.msra.mxu0 0.0
  %257 = vmatprep.subr.mxu0 0.0
  %258 = vmatpush2.msra.mxu0 0.0
  %259 = vmatprep.subr.mxu0 0.0
  %260 = vmatpush2.msra.mxu0 0.0
  %261 = vmatprep.subr.mxu0 0.0
  %262 = vmatpush2.msra.mxu0 0.0
  %263 = vmatprep.subr.mxu0 0.0
  %264 = vmatpush2.msra.mxu0 0.0
  %265 = vmatprep.subr.mxu0 0.0
  %266 = vmatpush2.msra.mxu0 0.0
  %267 = vmatprep.subr.mxu0 0.0
  %268 = vmatpush2.msra.mxu0 0.0
  %269 = vmatprep.subr.mxu0 0.0
  %270 = vmatpush2.msra.mxu0 0.0
  %271 = vmatprep.subr.mxu0 0.0
  %272 = vmatpush2.msra.mxu0 0.0
  %273 = vmatprep.subr.mxu0 0.0
  %274 = vmatpush2.msra.mxu0 0.0
  %275 = vmatprep.subr.mxu0 0.0
  %276 = vmatpush2.msra.mxu0 0.0
  %277 = vmatprep.subr.mxu0 0.0
  %278 = vmatpush2.msra.mxu0 0.0
  %279 = vmatprep.subr.mxu0 0.0
  %280 = vmatpush2.msra.mxu0 0.0
  %281 = vmatprep.mubr.f32.mxu0 0.0
  %282 = vmatmul.mubr.f32.gmra.mxu0 %v215
  %v283 = vpop.f32.mrf.mxu0
  %v284 = vadd.f32 0.0, %v283
  %v285 = vpop.f32.mrf.mxu0
  %286 = vdwg.mxu0
  %287 = vmatprep.subr.mxu0 0.0
  %288 = vmatpush1.msra.mxu0 0.0
  %289 = vmatprep.subr.mxu0 0.0
  %290 = vmatpush1.msra.mxu0 0.0
  %291 = vmatprep.subr.mxu0 0.0
  %292 = vmatpush1.msra.mxu0 0.0
  %293 = vmatprep.subr.mxu0 0.0
  %294 = vmatpush1.msra.mxu0 0.0
  %295 = vmatprep.subr.mxu0 0.0
  %296 = vmatpush1.msra.mxu0 0.0
  %297 = vmatprep.subr.mxu0 0.0
  %298 = vmatpush1.msra.mxu0 0.0
  %299 = vmatprep.subr.mxu0 0.0
  %300 = vmatpush1.msra.mxu0 0.0
  %301 = vmatprep.subr.mxu0 0.0
  %302 = vmatpush1.msra.mxu0 0.0
  %303 = vmatprep.subr.mxu0 0.0
  %304 = vmatpush1.msra.mxu0 0.0
  %305 = vmatprep.subr.mxu0 0.0
  %306 = vmatpush1.msra.mxu0 0.0
  %307 = vmatprep.subr.mxu0 0.0
  %308 = vmatpush1.msra.mxu0 0.0
  %309 = vmatprep.subr.mxu0 0.0
  %310 = vmatpush1.msra.mxu0 0.0
  %311 = vmatprep.subr.mxu0 0.0
  %312 = vmatpush1.msra.mxu0 0.0
  %313 = vmatprep.subr.mxu0 0.0
  %314 = vmatpush1.msra.mxu0 0.0
  %315 = vmatprep.subr.mxu0 0.0
  %316 = vmatpush1.msra.mxu0 %v35
  %317 = vmatprep.subr.mxu0 0.0
  %318 = vmatpush1.msra.mxu0 %v34
  %319 = vmatprep.subr.mxu0 0.0
  %320 = vmatpush2.msra.mxu0 0.0
  %321 = vmatprep.subr.mxu0 0.0
  %322 = vmatpush2.msra.mxu0 0.0
  %323 = vmatprep.subr.mxu0 0.0
  %324 = vmatpush2.msra.mxu0 0.0
  %325 = vmatprep.subr.mxu0 0.0
  %326 = vmatpush2.msra.mxu0 0.0
  %327 = vmatprep.subr.mxu0 0.0
  %328 = vmatpush2.msra.mxu0 0.0
  %329 = vmatprep.subr.mxu0 0.0
  %330 = vmatpush2.msra.mxu0 0.0
  %331 = vmatprep.subr.mxu0 0.0
  %332 = vmatpush2.msra.mxu0 0.0
  %333 = vmatprep.subr.mxu0 0.0
  %334 = vmatpush2.msra.mxu0 0.0
  %335 = vmatprep.subr.mxu0 0.0
  %336 = vmatpush2.msra.mxu0 0.0
  %337 = vmatprep.subr.mxu0 0.0
  %338 = vmatpush2.msra.mxu0 0.0
  %339 = vmatprep.subr.mxu0 0.0
  %340 = vmatpush2.msra.mxu0 0.0
  %341 = vmatprep.subr.mxu0 0.0
  %342 = vmatpush2.msra.mxu0 0.0
  %343 = vmatprep.subr.mxu0 0.0
  %344 = vmatpush2.msra.mxu0 0.0
  %345 = vmatprep.subr.mxu0 0.0
  %346 = vmatpush2.msra.mxu0 0.0
  %347 = vmatprep.subr.mxu0 0.0
  %348 = vmatpush2.msra.mxu0 0.0
  %349 = vmatprep.subr.mxu0 0.0
  %350 = vmatpush2.msra.mxu0 0.0
  %351 = vmatprep.mubr.f32.mxu0 0.0
  %352 = vmatmul.mubr.f32.gmra.mxu0 %v126
  %v353 = vpop.f32.mrf.mxu0
  %v354 = vadd.f32 %v284, %v353
  %v355 = vpop.f32.mrf.mxu0
  %356 = vdwg.mxu0
  %v358 = vlaneseq
  %v359 = vshrl.u32 %v358, 7
  %v360 = vsub.s32 0, %v359
  %v361 = vrot.slane %v38, %v360
  %v363 = vadd.f32 %v354, %v361
  %v364 = vtanh.pop %v363
  %v365 = vsub.f32 1.0, %v210
  %v366 = vmul.f32 %v365, 0.0
  %v367 = vmul.f32 %v210, %v364
  %v368 = vadd.f32 %v366, %v367
  %vm369 = vcmask 123904
  %370 = vst.msk [vmem:[%s8] sm:$0x3] %vm369, %v368
  %s371 = scalar_lea.vmem %s1, 2
  %v372 = vld [vmem:[%s371] sm:$0x3]
  %s373 = scalar_lea.vmem %s0, 2
  %v374 = vld [vmem:[%s373] sm:$0x3]
  %v375 = vmul.f32 %v374, %v372
  %v376 = vsub.f32 1.0, %v372
  %v377 = vmul.f32 %v368, %v376
  %v378 = vadd.f32 %v375, %v377
  %v379 = vxor.u32 %v378, 2147483648
  %v380 = vmul.f32 %v379, 1.442695
  %v381 = vpow.pop %v380
  %v382 = vadd.f32 %v381, 1.0
  %v383 = vrcp.pop %v382
  %v384 = vmul.f32 1.0, %v383
  %v386 = vsel %vm51, %v368, 0
  %388 = vmatprep.subr.mxu0 0.0
  %389 = vmatpush1.msra.mxu0 0.0
  %390 = vmatprep.subr.mxu0 0.0
  %391 = vmatpush1.msra.mxu0 0.0
  %392 = vmatprep.subr.mxu0 0.0
  %393 = vmatpush1.msra.mxu0 0.0
  %394 = vmatprep.subr.mxu0 0.0
  %395 = vmatpush1.msra.mxu0 0.0
  %396 = vmatprep.subr.mxu0 0.0
  %397 = vmatpush1.msra.mxu0 0.0
  %398 = vmatprep.subr.mxu0 0.0
  %399 = vmatpush1.msra.mxu0 0.0
  %400 = vmatprep.subr.mxu0 0.0
  %401 = vmatpush1.msra.mxu0 0.0
  %402 = vmatprep.subr.mxu0 0.0
  %403 = vmatpush1.msra.mxu0 0.0
  %404 = vmatprep.subr.mxu0 0.0
  %405 = vmatpush1.msra.mxu0 0.0
  %406 = vmatprep.subr.mxu0 0.0
  %407 = vmatpush1.msra.mxu0 0.0
  %408 = vmatprep.subr.mxu0 0.0
  %409 = vmatpush1.msra.mxu0 0.0
  %410 = vmatprep.subr.mxu0 0.0
  %411 = vmatpush1.msra.mxu0 0.0
  %412 = vmatprep.subr.mxu0 0.0
  %413 = vmatpush1.msra.mxu0 0.0
  %414 = vmatprep.subr.mxu0 0.0
  %415 = vmatpush1.msra.mxu0 0.0
  %416 = vmatprep.subr.mxu0 0.0
  %417 = vmatpush1.msra.mxu0 %v32
  %418 = vmatprep.subr.mxu0 0.0
  %419 = vmatpush1.msra.mxu0 %v31
  %420 = vmatprep.subr.mxu0 0.0
  %421 = vmatpush2.msra.mxu0 0.0
  %422 = vmatprep.subr.mxu0 0.0
  %423 = vmatpush2.msra.mxu0 0.0
  %424 = vmatprep.subr.mxu0 0.0
  %425 = vmatpush2.msra.mxu0 0.0
  %426 = vmatprep.subr.mxu0 0.0
  %427 = vmatpush2.msra.mxu0 0.0
  %428 = vmatprep.subr.mxu0 0.0
  %429 = vmatpush2.msra.mxu0 0.0
  %430 = vmatprep.subr.mxu0 0.0
  %431 = vmatpush2.msra.mxu0 0.0
  %432 = vmatprep.subr.mxu0 0.0
  %433 = vmatpush2.msra.mxu0 0.0
  %434 = vmatprep.subr.mxu0 0.0
  %435 = vmatpush2.msra.mxu0 0.0
  %436 = vmatprep.subr.mxu0 0.0
  %437 = vmatpush2.msra.mxu0 0.0
  %438 = vmatprep.subr.mxu0 0.0
  %439 = vmatpush2.msra.mxu0 0.0
  %440 = vmatprep.subr.mxu0 0.0
  %441 = vmatpush2.msra.mxu0 0.0
  %442 = vmatprep.subr.mxu0 0.0
  %443 = vmatpush2.msra.mxu0 0.0
  %444 = vmatprep.subr.mxu0 0.0
  %445 = vmatpush2.msra.mxu0 0.0
  %446 = vmatprep.subr.mxu0 0.0
  %447 = vmatpush2.msra.mxu0 0.0
  %448 = vmatprep.subr.mxu0 0.0
  %449 = vmatpush2.msra.mxu0 0.0
  %450 = vmatprep.subr.mxu0 0.0
  %451 = vmatpush2.msra.mxu0 0.0
  %452 = vmatprep.mubr.f32.mxu0 0.0
  %453 = vmatmul.mubr.f32.gmra.mxu0 %v386
  %v454 = vpop.f32.mrf.mxu0
  %v455 = vadd.f32 0.0, %v454
  %v456 = vpop.f32.mrf.mxu0
  %457 = vdwg.mxu0
  %v459 = vsel %vm51, %v384, 0
  %461 = vmatprep.subr.mxu0 0.0
  %462 = vmatpush1.msra.mxu0 0.0
  %463 = vmatprep.subr.mxu0 0.0
  %464 = vmatpush1.msra.mxu0 0.0
  %465 = vmatprep.subr.mxu0 0.0
  %466 = vmatpush1.msra.mxu0 0.0
  %467 = vmatprep.subr.mxu0 0.0
  %468 = vmatpush1.msra.mxu0 0.0
  %469 = vmatprep.subr.mxu0 0.0
  %470 = vmatpush1.msra.mxu0 0.0
  %471 = vmatprep.subr.mxu0 0.0
  %472 = vmatpush1.msra.mxu0 0.0
  %473 = vmatprep.subr.mxu0 0.0
  %474 = vmatpush1.msra.mxu0 0.0
  %475 = vmatprep.subr.mxu0 0.0
  %476 = vmatpush1.msra.mxu0 0.0
  %477 = vmatprep.subr.mxu0 0.0
  %478 = vmatpush1.msra.mxu0 0.0
  %479 = vmatprep.subr.mxu0 0.0
  %480 = vmatpush1.msra.mxu0 0.0
  %481 = vmatprep.subr.mxu0 0.0
  %482 = vmatpush1.msra.mxu0 0.0
  %483 = vmatprep.subr.mxu0 0.0
  %484 = vmatpush1.msra.mxu0 0.0
  %485 = vmatprep.subr.mxu0 0.0
  %486 = vmatpush1.msra.mxu0 0.0
  %487 = vmatprep.subr.mxu0 0.0
  %488 = vmatpush1.msra.mxu0 0.0
  %489 = vmatprep.subr.mxu0 0.0
  %490 = vmatpush1.msra.mxu0 %v30
  %491 = vmatprep.subr.mxu0 0.0
  %492 = vmatpush1.msra.mxu0 %v29
  %493 = vmatprep.subr.mxu0 0.0
  %494 = vmatpush2.msra.mxu0 0.0
  %495 = vmatprep.subr.mxu0 0.0
  %496 = vmatpush2.msra.mxu0 0.0
  %497 = vmatprep.subr.mxu0 0.0
  %498 = vmatpush2.msra.mxu0 0.0
  %499 = vmatprep.subr.mxu0 0.0
  %500 = vmatpush2.msra.mxu0 0.0
  %501 = vmatprep.subr.mxu0 0.0
  %502 = vmatpush2.msra.mxu0 0.0
  %503 = vmatprep.subr.mxu0 0.0
  %504 = vmatpush2.msra.mxu0 0.0
  %505 = vmatprep.subr.mxu0 0.0
  %506 = vmatpush2.msra.mxu0 0.0
  %507 = vmatprep.subr.mxu0 0.0
  %508 = vmatpush2.msra.mxu0 0.0
  %509 = vmatprep.subr.mxu0 0.0
  %510 = vmatpush2.msra.mxu0 0.0
  %511 = vmatprep.subr.mxu0 0.0
  %512 = vmatpush2.msra.mxu0 0.0
  %513 = vmatprep.subr.mxu0 0.0
  %514 = vmatpush2.msra.mxu0 0.0
  %515 = vmatprep.subr.mxu0 0.0
  %516 = vmatpush2.msra.mxu0 0.0
  %517 = vmatprep.subr.mxu0 0.0
  %518 = vmatpush2.msra.mxu0 0.0
  %519 = vmatprep.subr.mxu0 0.0
  %520 = vmatpush2.msra.mxu0 0.0
  %521 = vmatprep.subr.mxu0 0.0
  %522 = vmatpush2.msra.mxu0 0.0
  %523 = vmatprep.subr.mxu0 0.0
  %524 = vmatpush2.msra.mxu0 0.0
  %525 = vmatprep.mubr.f32.mxu0 0.0
  %526 = vmatmul.mubr.f32.gmra.mxu0 %v459
  %v527 = vpop.f32.mrf.mxu0
  %v528 = vadd.f32 %v455, %v527
  %v529 = vpop.f32.mrf.mxu0
  %530 = vdwg.mxu0
  %v531 = vadd.f32 %v528, %v202
  %v532 = vxor.u32 %v531, 2147483648
  %v533 = vmul.f32 %v532, 1.442695
  %v534 = vpow.pop %v533
  %v535 = vadd.f32 %v534, 1.0
  %v536 = vrcp.pop %v535
  %v537 = vmul.f32 1.0, %v536
  %538 = vrot.lane.b32.xlu0 %v368, 16
  %v539 = vpop.permute.xlu0 %538
  %v541 = vmul.f32 %v537, %v539
  %543 = vrot.lane.b32.xlu0 %v541, 112
  %v544 = vpop.permute.xlu0 %543
  %v545 = vsel %vm51, %v544, 0
  %547 = vmatprep.subr.mxu0 0.0
  %548 = vmatpush1.msra.mxu0 0.0
  %549 = vmatprep.subr.mxu0 0.0
  %550 = vmatpush1.msra.mxu0 0.0
  %551 = vmatprep.subr.mxu0 0.0
  %552 = vmatpush1.msra.mxu0 0.0
  %553 = vmatprep.subr.mxu0 0.0
  %554 = vmatpush1.msra.mxu0 0.0
  %555 = vmatprep.subr.mxu0 0.0
  %556 = vmatpush1.msra.mxu0 0.0
  %557 = vmatprep.subr.mxu0 0.0
  %558 = vmatpush1.msra.mxu0 0.0
  %559 = vmatprep.subr.mxu0 0.0
  %560 = vmatpush1.msra.mxu0 0.0
  %561 = vmatprep.subr.mxu0 0.0
  %562 = vmatpush1.msra.mxu0 0.0
  %563 = vmatprep.subr.mxu0 0.0
  %564 = vmatpush1.msra.mxu0 0.0
  %565 = vmatprep.subr.mxu0 0.0
  %566 = vmatpush1.msra.mxu0 0.0
  %567 = vmatprep.subr.mxu0 0.0
  %568 = vmatpush1.msra.mxu0 0.0
  %569 = vmatprep.subr.mxu0 0.0
  %570 = vmatpush1.msra.mxu0 0.0
  %571 = vmatprep.subr.mxu0 0.0
  %572 = vmatpush1.msra.mxu0 0.0
  %573 = vmatprep.subr.mxu0 0.0
  %574 = vmatpush1.msra.mxu0 0.0
  %575 = vmatprep.subr.mxu0 0.0
  %576 = vmatpush1.msra.mxu0 %v37
  %577 = vmatprep.subr.mxu0 0.0
  %578 = vmatpush1.msra.mxu0 %v36
  %579 = vmatprep.subr.mxu0 0.0
  %580 = vmatpush2.msra.mxu0 0.0
  %581 = vmatprep.subr.mxu0 0.0
  %582 = vmatpush2.msra.mxu0 0.0
  %583 = vmatprep.subr.mxu0 0.0
  %584 = vmatpush2.msra.mxu0 0.0
  %585 = vmatprep.subr.mxu0 0.0
  %586 = vmatpush2.msra.mxu0 0.0
  %587 = vmatprep.subr.mxu0 0.0
  %588 = vmatpush2.msra.mxu0 0.0
  %589 = vmatprep.subr.mxu0 0.0
  %590 = vmatpush2.msra.mxu0 0.0
  %591 = vmatprep.subr.mxu0 0.0
  %592 = vmatpush2.msra.mxu0 0.0
  %593 = vmatprep.subr.mxu0 0.0
  %594 = vmatpush2.msra.mxu0 0.0
  %595 = vmatprep.subr.mxu0 0.0
  %596 = vmatpush2.msra.mxu0 0.0
  %597 = vmatprep.subr.mxu0 0.0
  %598 = vmatpush2.msra.mxu0 0.0
  %599 = vmatprep.subr.mxu0 0.0
  %600 = vmatpush2.msra.mxu0 0.0
  %601 = vmatprep.subr.mxu0 0.0
  %602 = vmatpush2.msra.mxu0 0.0
  %603 = vmatprep.subr.mxu0 0.0
  %604 = vmatpush2.msra.mxu0 0.0
  %605 = vmatprep.subr.mxu0 0.0
  %606 = vmatpush2.msra.mxu0 0.0
  %607 = vmatprep.subr.mxu0 0.0
  %608 = vmatpush2.msra.mxu0 0.0
  %609 = vmatprep.subr.mxu0 0.0
  %610 = vmatpush2.msra.mxu0 0.0
  %611 = vmatprep.mubr.f32.mxu0 0.0
  %612 = vmatmul.mubr.f32.gmra.mxu0 %v545
  %v613 = vpop.f32.mrf.mxu0
  %v614 = vadd.f32 0.0, %v613
  %v615 = vpop.f32.mrf.mxu0
  %616 = vdwg.mxu0
  %617 = vmatprep.subr.mxu0 0.0
  %618 = vmatpush1.msra.mxu0 0.0
  %619 = vmatprep.subr.mxu0 0.0
  %620 = vmatpush1.msra.mxu0 0.0
  %621 = vmatprep.subr.mxu0 0.0
  %622 = vmatpush1.msra.mxu0 0.0
  %623 = vmatprep.subr.mxu0 0.0
  %624 = vmatpush1.msra.mxu0 0.0
  %625 = vmatprep.subr.mxu0 0.0
  %626 = vmatpush1.msra.mxu0 0.0
  %627 = vmatprep.subr.mxu0 0.0
  %628 = vmatpush1.msra.mxu0 0.0
  %629 = vmatprep.subr.mxu0 0.0
  %630 = vmatpush1.msra.mxu0 0.0
  %631 = vmatprep.subr.mxu0 0.0
  %632 = vmatpush1.msra.mxu0 0.0
  %633 = vmatprep.subr.mxu0 0.0
  %634 = vmatpush1.msra.mxu0 0.0
  %635 = vmatprep.subr.mxu0 0.0
  %636 = vmatpush1.msra.mxu0 0.0
  %637 = vmatprep.subr.mxu0 0.0
  %638 = vmatpush1.msra.mxu0 0.0
  %639 = vmatprep.subr.mxu0 0.0
  %640 = vmatpush1.msra.mxu0 0.0
  %641 = vmatprep.subr.mxu0 0.0
  %642 = vmatpush1.msra.mxu0 0.0
  %643 = vmatprep.subr.mxu0 0.0
  %644 = vmatpush1.msra.mxu0 0.0
  %645 = vmatprep.subr.mxu0 0.0
  %646 = vmatpush1.msra.mxu0 %v35
  %647 = vmatprep.subr.mxu0 0.0
  %648 = vmatpush1.msra.mxu0 %v34
  %649 = vmatprep.subr.mxu0 0.0
  %650 = vmatpush2.msra.mxu0 0.0
  %651 = vmatprep.subr.mxu0 0.0
  %652 = vmatpush2.msra.mxu0 0.0
  %653 = vmatprep.subr.mxu0 0.0
  %654 = vmatpush2.msra.mxu0 0.0
  %655 = vmatprep.subr.mxu0 0.0
  %656 = vmatpush2.msra.mxu0 0.0
  %657 = vmatprep.subr.mxu0 0.0
  %658 = vmatpush2.msra.mxu0 0.0
  %659 = vmatprep.subr.mxu0 0.0
  %660 = vmatpush2.msra.mxu0 0.0
  %661 = vmatprep.subr.mxu0 0.0
  %662 = vmatpush2.msra.mxu0 0.0
  %663 = vmatprep.subr.mxu0 0.0
  %664 = vmatpush2.msra.mxu0 0.0
  %665 = vmatprep.subr.mxu0 0.0
  %666 = vmatpush2.msra.mxu0 0.0
  %667 = vmatprep.subr.mxu0 0.0
  %668 = vmatpush2.msra.mxu0 0.0
  %669 = vmatprep.subr.mxu0 0.0
  %670 = vmatpush2.msra.mxu0 0.0
  %671 = vmatprep.subr.mxu0 0.0
  %672 = vmatpush2.msra.mxu0 0.0
  %673 = vmatprep.subr.mxu0 0.0
  %674 = vmatpush2.msra.mxu0 0.0
  %675 = vmatprep.subr.mxu0 0.0
  %676 = vmatpush2.msra.mxu0 0.0
  %677 = vmatprep.subr.mxu0 0.0
  %678 = vmatpush2.msra.mxu0 0.0
  %679 = vmatprep.subr.mxu0 0.0
  %680 = vmatpush2.msra.mxu0 0.0
  %681 = vmatprep.mubr.f32.mxu0 0.0
  %682 = vmatmul.mubr.f32.gmra.mxu0 %v459
  %v683 = vpop.f32.mrf.mxu0
  %v684 = vadd.f32 %v614, %v683
  %v685 = vpop.f32.mrf.mxu0
  %686 = vdwg.mxu0
  %v687 = vadd.f32 %v684, %v361
  %v688 = vtanh.pop %v687
  %v689 = vsub.f32 1.0, %v537
  %v690 = vmul.f32 %v689, %v368
  %v691 = vmul.f32 %v537, %v688
  %v692 = vadd.f32 %v690, %v691
  %s693 = scalar_lea.vmem %s8, 2
  %694 = vst.msk [vmem:[%s693] sm:$0x3] %vm369, %v692
  %s695 = scalar_lea.vmem %s1, 4
  %v696 = vld [vmem:[%s695] sm:$0x3]
  %s697 = scalar_lea.vmem %s0, 4
  %v698 = vld [vmem:[%s697] sm:$0x3]
  %v699 = vmul.f32 %v698, %v696
  %v700 = vsub.f32 1.0, %v696
  %v701 = vmul.f32 %v692, %v700
  %v702 = vadd.f32 %v699, %v701
  %v703 = vxor.u32 %v702, 2147483648
  %v704 = vmul.f32 %v703, 1.442695
  %v705 = vpow.pop %v704
  %v706 = vadd.f32 %v705, 1.0
  %v707 = vrcp.pop %v706
  %v708 = vmul.f32 1.0, %v707
  %v710 = vsel %vm51, %v692, 0
  %712 = vmatprep.subr.mxu0 0.0
  %713 = vmatpush1.msra.mxu0 0.0
  %714 = vmatprep.subr.mxu0 0.0
  %715 = vmatpush1.msra.mxu0 0.0
  %716 = vmatprep.subr.mxu0 0.0
  %717 = vmatpush1.msra.mxu0 0.0
  %718 = vmatprep.subr.mxu0 0.0
  %719 = vmatpush1.msra.mxu0 0.0
  %720 = vmatprep.subr.mxu0 0.0
  %721 = vmatpush1.msra.mxu0 0.0
  %722 = vmatprep.subr.mxu0 0.0
  %723 = vmatpush1.msra.mxu0 0.0
  %724 = vmatprep.subr.mxu0 0.0
  %725 = vmatpush1.msra.mxu0 0.0
  %726 = vmatprep.subr.mxu0 0.0
  %727 = vmatpush1.msra.mxu0 0.0
  %728 = vmatprep.subr.mxu0 0.0
  %729 = vmatpush1.msra.mxu0 0.0
  %730 = vmatprep.subr.mxu0 0.0
  %731 = vmatpush1.msra.mxu0 0.0
  %732 = vmatprep.subr.mxu0 0.0
  %733 = vmatpush1.msra.mxu0 0.0
  %734 = vmatprep.subr.mxu0 0.0
  %735 = vmatpush1.msra.mxu0 0.0
  %736 = vmatprep.subr.mxu0 0.0
  %737 = vmatpush1.msra.mxu0 0.0
  %738 = vmatprep.subr.mxu0 0.0
  %739 = vmatpush1.msra.mxu0 0.0
  %740 = vmatprep.subr.mxu0 0.0
  %741 = vmatpush1.msra.mxu0 %v32
  %742 = vmatprep.subr.mxu0 0.0
  %743 = vmatpush1.msra.mxu0 %v31
  %744 = vmatprep.subr.mxu0 0.0
  %745 = vmatpush2.msra.mxu0 0.0
  %746 = vmatprep.subr.mxu0 0.0
  %747 = vmatpush2.msra.mxu0 0.0
  %748 = vmatprep.subr.mxu0 0.0
  %749 = vmatpush2.msra.mxu0 0.0
  %750 = vmatprep.subr.mxu0 0.0
  %751 = vmatpush2.msra.mxu0 0.0
  %752 = vmatprep.subr.mxu0 0.0
  %753 = vmatpush2.msra.mxu0 0.0
  %754 = vmatprep.subr.mxu0 0.0
  %755 = vmatpush2.msra.mxu0 0.0
  %756 = vmatprep.subr.mxu0 0.0
  %757 = vmatpush2.msra.mxu0 0.0
  %758 = vmatprep.subr.mxu0 0.0
  %759 = vmatpush2.msra.mxu0 0.0
  %760 = vmatprep.subr.mxu0 0.0
  %761 = vmatpush2.msra.mxu0 0.0
  %762 = vmatprep.subr.mxu0 0.0
  %763 = vmatpush2.msra.mxu0 0.0
  %764 = vmatprep.subr.mxu0 0.0
  %765 = vmatpush2.msra.mxu0 0.0
  %766 = vmatprep.subr.mxu0 0.0
  %767 = vmatpush2.msra.mxu0 0.0
  %768 = vmatprep.subr.mxu0 0.0
  %769 = vmatpush2.msra.mxu0 0.0
  %770 = vmatprep.subr.mxu0 0.0
  %771 = vmatpush2.msra.mxu0 0.0
  %772 = vmatprep.subr.mxu0 0.0
  %773 = vmatpush2.msra.mxu0 0.0
  %774 = vmatprep.subr.mxu0 0.0
  %775 = vmatpush2.msra.mxu0 0.0
  %776 = vmatprep.mubr.f32.mxu0 0.0
  %777 = vmatmul.mubr.f32.gmra.mxu0 %v710
  %v778 = vpop.f32.mrf.mxu0
  %v779 = vadd.f32 0.0, %v778
  %v780 = vpop.f32.mrf.mxu0
  %781 = vdwg.mxu0
  %v783 = vsel %vm51, %v708, 0
  %785 = vmatprep.subr.mxu0 0.0
  %786 = vmatpush1.msra.mxu0 0.0
  %787 = vmatprep.subr.mxu0 0.0
  %788 = vmatpush1.msra.mxu0 0.0
  %789 = vmatprep.subr.mxu0 0.0
  %790 = vmatpush1.msra.mxu0 0.0
  %791 = vmatprep.subr.mxu0 0.0
  %792 = vmatpush1.msra.mxu0 0.0
  %793 = vmatprep.subr.mxu0 0.0
  %794 = vmatpush1.msra.mxu0 0.0
  %795 = vmatprep.subr.mxu0 0.0
  %796 = vmatpush1.msra.mxu0 0.0
  %797 = vmatprep.subr.mxu0 0.0
  %798 = vmatpush1.msra.mxu0 0.0
  %799 = vmatprep.subr.mxu0 0.0
  %800 = vmatpush1.msra.mxu0 0.0
  %801 = vmatprep.subr.mxu0 0.0
  %802 = vmatpush1.msra.mxu0 0.0
  %803 = vmatprep.subr.mxu0 0.0
  %804 = vmatpush1.msra.mxu0 0.0
  %805 = vmatprep.subr.mxu0 0.0
  %806 = vmatpush1.msra.mxu0 0.0
  %807 = vmatprep.subr.mxu0 0.0
  %808 = vmatpush1.msra.mxu0 0.0
  %809 = vmatprep.subr.mxu0 0.0
  %810 = vmatpush1.msra.mxu0 0.0
  %811 = vmatprep.subr.mxu0 0.0
  %812 = vmatpush1.msra.mxu0 0.0
  %813 = vmatprep.subr.mxu0 0.0
  %814 = vmatpush1.msra.mxu0 %v30
  %815 = vmatprep.subr.mxu0 0.0
  %816 = vmatpush1.msra.mxu0 %v29
  %817 = vmatprep.subr.mxu0 0.0
  %818 = vmatpush2.msra.mxu0 0.0
  %819 = vmatprep.subr.mxu0 0.0
  %820 = vmatpush2.msra.mxu0 0.0
  %821 = vmatprep.subr.mxu0 0.0
  %822 = vmatpush2.msra.mxu0 0.0
  %823 = vmatprep.subr.mxu0 0.0
  %824 = vmatpush2.msra.mxu0 0.0
  %825 = vmatprep.subr.mxu0 0.0
  %826 = vmatpush2.msra.mxu0 0.0
  %827 = vmatprep.subr.mxu0 0.0
  %828 = vmatpush2.msra.mxu0 0.0
  %829 = vmatprep.subr.mxu0 0.0
  %830 = vmatpush2.msra.mxu0 0.0
  %831 = vmatprep.subr.mxu0 0.0
  %832 = vmatpush2.msra.mxu0 0.0
  %833 = vmatprep.subr.mxu0 0.0
  %834 = vmatpush2.msra.mxu0 0.0
  %835 = vmatprep.subr.mxu0 0.0
  %836 = vmatpush2.msra.mxu0 0.0
  %837 = vmatprep.subr.mxu0 0.0
  %838 = vmatpush2.msra.mxu0 0.0
  %839 = vmatprep.subr.mxu0 0.0
  %840 = vmatpush2.msra.mxu0 0.0
  %841 = vmatprep.subr.mxu0 0.0
  %842 = vmatpush2.msra.mxu0 0.0
  %843 = vmatprep.subr.mxu0 0.0
  %844 = vmatpush2.msra.mxu0 0.0
  %845 = vmatprep.subr.mxu0 0.0
  %846 = vmatpush2.msra.mxu0 0.0
  %847 = vmatprep.subr.mxu0 0.0
  %848 = vmatpush2.msra.mxu0 0.0
  %849 = vmatprep.mubr.f32.mxu0 0.0
  %850 = vmatmul.mubr.f32.gmra.mxu0 %v783
  %v851 = vpop.f32.mrf.mxu0
  %v852 = vadd.f32 %v779, %v851
  %v853 = vpop.f32.mrf.mxu0
  %854 = vdwg.mxu0
  %v855 = vadd.f32 %v852, %v202
  %v856 = vxor.u32 %v855, 2147483648
  %v857 = vmul.f32 %v856, 1.442695
  %v858 = vpow.pop %v857
  %v859 = vadd.f32 %v858, 1.0
  %v860 = vrcp.pop %v859
  %v861 = vmul.f32 1.0, %v860
  %862 = vrot.lane.b32.xlu0 %v692, 16
  %v863 = vpop.permute.xlu0 %862
  %v865 = vmul.f32 %v861, %v863
  %867 = vrot.lane.b32.xlu0 %v865, 112
  %v868 = vpop.permute.xlu0 %867
  %v869 = vsel %vm51, %v868, 0
  %871 = vmatprep.subr.mxu0 0.0
  %872 = vmatpush1.msra.mxu0 0.0
  %873 = vmatprep.subr.mxu0 0.0
  %874 = vmatpush1.msra.mxu0 0.0
  %875 = vmatprep.subr.mxu0 0.0
  %876 = vmatpush1.msra.mxu0 0.0
  %877 = vmatprep.subr.mxu0 0.0
  %878 = vmatpush1.msra.mxu0 0.0
  %879 = vmatprep.subr.mxu0 0.0
  %880 = vmatpush1.msra.mxu0 0.0
  %881 = vmatprep.subr.mxu0 0.0
  %882 = vmatpush1.msra.mxu0 0.0
  %883 = vmatprep.subr.mxu0 0.0
  %884 = vmatpush1.msra.mxu0 0.0
  %885 = vmatprep.subr.mxu0 0.0
  %886 = vmatpush1.msra.mxu0 0.0
  %887 = vmatprep.subr.mxu0 0.0
  %888 = vmatpush1.msra.mxu0 0.0
  %889 = vmatprep.subr.mxu0 0.0
  %890 = vmatpush1.msra.mxu0 0.0
  %891 = vmatprep.subr.mxu0 0.0
  %892 = vmatpush1.msra.mxu0 0.0
  %893 = vmatprep.subr.mxu0 0.0
  %894 = vmatpush1.msra.mxu0 0.0
  %895 = vmatprep.subr.mxu0 0.0
  %896 = vmatpush1.msra.mxu0 0.0
  %897 = vmatprep.subr.mxu0 0.0
  %898 = vmatpush1.msra.mxu0 0.0
  %899 = vmatprep.subr.mxu0 0.0
  %900 = vmatpush1.msra.mxu0 %v37
  %901 = vmatprep.subr.mxu0 0.0
  %902 = vmatpush1.msra.mxu0 %v36
  %903 = vmatprep.subr.mxu0 0.0
  %904 = vmatpush2.msra.mxu0 0.0
  %905 = vmatprep.subr.mxu0 0.0
  %906 = vmatpush2.msra.mxu0 0.0
  %907 = vmatprep.subr.mxu0 0.0
  %908 = vmatpush2.msra.mxu0 0.0
  %909 = vmatprep.subr.mxu0 0.0
  %910 = vmatpush2.msra.mxu0 0.0
  %911 = vmatprep.subr.mxu0 0.0
  %912 = vmatpush2.msra.mxu0 0.0
  %913 = vmatprep.subr.mxu0 0.0
  %914 = vmatpush2.msra.mxu0 0.0
  %915 = vmatprep.subr.mxu0 0.0
  %916 = vmatpush2.msra.mxu0 0.0
  %917 = vmatprep.subr.mxu0 0.0
  %918 = vmatpush2.msra.mxu0 0.0
  %919 = vmatprep.subr.mxu0 0.0
  %920 = vmatpush2.msra.mxu0 0.0
  %921 = vmatprep.subr.mxu0 0.0
  %922 = vmatpush2.msra.mxu0 0.0
  %923 = vmatprep.subr.mxu0 0.0
  %924 = vmatpush2.msra.mxu0 0.0
  %925 = vmatprep.subr.mxu0 0.0
  %926 = vmatpush2.msra.mxu0 0.0
  %927 = vmatprep.subr.mxu0 0.0
  %928 = vmatpush2.msra.mxu0 0.0
  %929 = vmatprep.subr.mxu0 0.0
  %930 = vmatpush2.msra.mxu0 0.0
  %931 = vmatprep.subr.mxu0 0.0
  %932 = vmatpush2.msra.mxu0 0.0
  %933 = vmatprep.subr.mxu0 0.0
  %934 = vmatpush2.msra.mxu0 0.0
  %935 = vmatprep.mubr.f32.mxu0 0.0
  %936 = vmatmul.mubr.f32.gmra.mxu0 %v869
  %v937 = vpop.f32.mrf.mxu0
  %v938 = vadd.f32 0.0, %v937
  %v939 = vpop.f32.mrf.mxu0
  %940 = vdwg.mxu0
  %941 = vmatprep.subr.mxu0 0.0
  %942 = vmatpush1.msra.mxu0 0.0
  %943 = vmatprep.subr.mxu0 0.0
  %944 = vmatpush1.msra.mxu0 0.0
  %945 = vmatprep.subr.mxu0 0.0
  %946 = vmatpush1.msra.mxu0 0.0
  %947 = vmatprep.subr.mxu0 0.0
  %948 = vmatpush1.msra.mxu0 0.0
  %949 = vmatprep.subr.mxu0 0.0
  %950 = vmatpush1.msra.mxu0 0.0
  %951 = vmatprep.subr.mxu0 0.0
  %952 = vmatpush1.msra.mxu0 0.0
  %953 = vmatprep.subr.mxu0 0.0
  %954 = vmatpush1.msra.mxu0 0.0
  %955 = vmatprep.subr.mxu0 0.0
  %956 = vmatpush1.msra.mxu0 0.0
  %957 = vmatprep.subr.mxu0 0.0
  %958 = vmatpush1.msra.mxu0 0.0
  %959 = vmatprep.subr.mxu0 0.0
  %960 = vmatpush1.msra.mxu0 0.0
  %961 = vmatprep.subr.mxu0 0.0
  %962 = vmatpush1.msra.mxu0 0.0
  %963 = vmatprep.subr.mxu0 0.0
  %964 = vmatpush1.msra.mxu0 0.0
  %965 = vmatprep.subr.mxu0 0.0
  %966 = vmatpush1.msra.mxu0 0.0
  %967 = vmatprep.subr.mxu0 0.0
  %968 = vmatpush1.msra.mxu0 0.0
  %969 = vmatprep.subr.mxu0 0.0
  %970 = vmatpush1.msra.mxu0 %v35
  %971 = vmatprep.subr.mxu0 0.0
  %972 = vmatpush1.msra.mxu0 %v34
  %973 = vmatprep.subr.mxu0 0.0
  %974 = vmatpush2.msra.mxu0 0.0
  %975 = vmatprep.subr.mxu0 0.0
  %976 = vmatpush2.msra.mxu0 0.0
  %977 = vmatprep.subr.mxu0 0.0
  %978 = vmatpush2.msra.mxu0 0.0
  %979 = vmatprep.subr.mxu0 0.0
  %980 = vmatpush2.msra.mxu0 0.0
  %981 = vmatprep.subr.mxu0 0.0
  %982 = vmatpush2.msra.mxu0 0.0
  %983 = vmatprep.subr.mxu0 0.0
  %984 = vmatpush2.msra.mxu0 0.0
  %985 = vmatprep.subr.mxu0 0.0
  %986 = vmatpush2.msra.mxu0 0.0
  %987 = vmatprep.subr.mxu0 0.0
  %988 = vmatpush2.msra.mxu0 0.0
  %989 = vmatprep.subr.mxu0 0.0
  %990 = vmatpush2.msra.mxu0 0.0
  %991 = vmatprep.subr.mxu0 0.0
  %992 = vmatpush2.msra.mxu0 0.0
  %993 = vmatprep.subr.mxu0 0.0
  %994 = vmatpush2.msra.mxu0 0.0
  %995 = vmatprep.subr.mxu0 0.0
  %996 = vmatpush2.msra.mxu0 0.0
  %997 = vmatprep.subr.mxu0 0.0
  %998 = vmatpush2.msra.mxu0 0.0
  %999 = vmatprep.subr.mxu0 0.0
  %1000 = vmatpush2.msra.mxu0 0.0
  %1001 = vmatprep.subr.mxu0 0.0
  %1002 = vmatpush2.msra.mxu0 0.0
  %1003 = vmatprep.subr.mxu0 0.0
  %1004 = vmatpush2.msra.mxu0 0.0
  %1005 = vmatprep.mubr.f32.mxu0 0.0
  %1006 = vmatmul.mubr.f32.gmra.mxu0 %v783
  %v1007 = vpop.f32.mrf.mxu0
  %v1008 = vadd.f32 %v938, %v1007
  %v1009 = vpop.f32.mrf.mxu0
  %1010 = vdwg.mxu0
  %v1011 = vadd.f32 %v1008, %v361
  %v1012 = vtanh.pop %v1011
  %v1013 = vsub.f32 1.0, %v861
  %v1014 = vmul.f32 %v1013, %v692
  %v1015 = vmul.f32 %v861, %v1012
  %v1016 = vadd.f32 %v1014, %v1015
  %s1017 = scalar_lea.vmem %s8, 4
  %1018 = vst.msk [vmem:[%s1017] sm:$0x3] %vm369, %v1016
  %s1019 = scalar_lea.vmem %s1, 6
  %v1020 = vld [vmem:[%s1019] sm:$0x3]
  %s1021 = scalar_lea.vmem %s0, 6
  %v1022 = vld [vmem:[%s1021] sm:$0x3]
  %v1023 = vmul.f32 %v1022, %v1020
  %v1024 = vsub.f32 1.0, %v1020
  %v1025 = vmul.f32 %v1016, %v1024
  %v1026 = vadd.f32 %v1023, %v1025
  %v1027 = vxor.u32 %v1026, 2147483648
  %v1028 = vmul.f32 %v1027, 1.442695
  %v1029 = vpow.pop %v1028
  %v1030 = vadd.f32 %v1029, 1.0
  %v1031 = vrcp.pop %v1030
  %v1032 = vmul.f32 1.0, %v1031
  %v1034 = vsel %vm51, %v1016, 0
  %1036 = vmatprep.subr.mxu0 0.0
  %1037 = vmatpush1.msra.mxu0 0.0
  %1038 = vmatprep.subr.mxu0 0.0
  %1039 = vmatpush1.msra.mxu0 0.0
  %1040 = vmatprep.subr.mxu0 0.0
  %1041 = vmatpush1.msra.mxu0 0.0
  %1042 = vmatprep.subr.mxu0 0.0
  %1043 = vmatpush1.msra.mxu0 0.0
  %1044 = vmatprep.subr.mxu0 0.0
  %1045 = vmatpush1.msra.mxu0 0.0
  %1046 = vmatprep.subr.mxu0 0.0
  %1047 = vmatpush1.msra.mxu0 0.0
  %1048 = vmatprep.subr.mxu0 0.0
  %1049 = vmatpush1.msra.mxu0 0.0
  %1050 = vmatprep.subr.mxu0 0.0
  %1051 = vmatpush1.msra.mxu0 0.0
  %1052 = vmatprep.subr.mxu0 0.0
  %1053 = vmatpush1.msra.mxu0 0.0
  %1054 = vmatprep.subr.mxu0 0.0
  %1055 = vmatpush1.msra.mxu0 0.0
  %1056 = vmatprep.subr.mxu0 0.0
  %1057 = vmatpush1.msra.mxu0 0.0
  %1058 = vmatprep.subr.mxu0 0.0
  %1059 = vmatpush1.msra.mxu0 0.0
  %1060 = vmatprep.subr.mxu0 0.0
  %1061 = vmatpush1.msra.mxu0 0.0
  %1062 = vmatprep.subr.mxu0 0.0
  %1063 = vmatpush1.msra.mxu0 0.0
  %1064 = vmatprep.subr.mxu0 0.0
  %1065 = vmatpush1.msra.mxu0 %v32
  %1066 = vmatprep.subr.mxu0 0.0
  %1067 = vmatpush1.msra.mxu0 %v31
  %1068 = vmatprep.subr.mxu0 0.0
  %1069 = vmatpush2.msra.mxu0 0.0
  %1070 = vmatprep.subr.mxu0 0.0
  %1071 = vmatpush2.msra.mxu0 0.0
  %1072 = vmatprep.subr.mxu0 0.0
  %1073 = vmatpush2.msra.mxu0 0.0
  %1074 = vmatprep.subr.mxu0 0.0
  %1075 = vmatpush2.msra.mxu0 0.0
  %1076 = vmatprep.subr.mxu0 0.0
  %1077 = vmatpush2.msra.mxu0 0.0
  %1078 = vmatprep.subr.mxu0 0.0
  %1079 = vmatpush2.msra.mxu0 0.0
  %1080 = vmatprep.subr.mxu0 0.0
  %1081 = vmatpush2.msra.mxu0 0.0
  %1082 = vmatprep.subr.mxu0 0.0
  %1083 = vmatpush2.msra.mxu0 0.0
  %1084 = vmatprep.subr.mxu0 0.0
  %1085 = vmatpush2.msra.mxu0 0.0
  %1086 = vmatprep.subr.mxu0 0.0
  %1087 = vmatpush2.msra.mxu0 0.0
  %1088 = vmatprep.subr.mxu0 0.0
  %1089 = vmatpush2.msra.mxu0 0.0
  %1090 = vmatprep.subr.mxu0 0.0
  %1091 = vmatpush2.msra.mxu0 0.0
  %1092 = vmatprep.subr.mxu0 0.0
  %1093 = vmatpush2.msra.mxu0 0.0
  %1094 = vmatprep.subr.mxu0 0.0
  %1095 = vmatpush2.msra.mxu0 0.0
  %1096 = vmatprep.subr.mxu0 0.0
  %1097 = vmatpush2.msra.mxu0 0.0
  %1098 = vmatprep.subr.mxu0 0.0
  %1099 = vmatpush2.msra.mxu0 0.0
  %1100 = vmatprep.mubr.f32.mxu0 0.0
  %1101 = vmatmul.mubr.f32.gmra.mxu0 %v1034
  %v1102 = vpop.f32.mrf.mxu0
  %v1103 = vadd.f32 0.0, %v1102
  %v1104 = vpop.f32.mrf.mxu0
  %1105 = vdwg.mxu0
  %v1107 = vsel %vm51, %v1032, 0
  %1109 = vmatprep.subr.mxu0 0.0
  %1110 = vmatpush1.msra.mxu0 0.0
  %1111 = vmatprep.subr.mxu0 0.0
  %1112 = vmatpush1.msra.mxu0 0.0
  %1113 = vmatprep.subr.mxu0 0.0
  %1114 = vmatpush1.msra.mxu0 0.0
  %1115 = vmatprep.subr.mxu0 0.0
  %1116 = vmatpush1.msra.mxu0 0.0
  %1117 = vmatprep.subr.mxu0 0.0
  %1118 = vmatpush1.msra.mxu0 0.0
  %1119 = vmatprep.subr.mxu0 0.0
  %1120 = vmatpush1.msra.mxu0 0.0
  %1121 = vmatprep.subr.mxu0 0.0
  %1122 = vmatpush1.msra.mxu0 0.0
  %1123 = vmatprep.subr.mxu0 0.0
  %1124 = vmatpush1.msra.mxu0 0.0
  %1125 = vmatprep.subr.mxu0 0.0
  %1126 = vmatpush1.msra.mxu0 0.0
  %1127 = vmatprep.subr.mxu0 0.0
  %1128 = vmatpush1.msra.mxu0 0.0
  %1129 = vmatprep.subr.mxu0 0.0
  %1130 = vmatpush1.msra.mxu0 0.0
  %1131 = vmatprep.subr.mxu0 0.0
  %1132 = vmatpush1.msra.mxu0 0.0
  %1133 = vmatprep.subr.mxu0 0.0
  %1134 = vmatpush1.msra.mxu0 0.0
  %1135 = vmatprep.subr.mxu0 0.0
  %1136 = vmatpush1.msra.mxu0 0.0
  %1137 = vmatprep.subr.mxu0 0.0
  %1138 = vmatpush1.msra.mxu0 %v30
  %1139 = vmatprep.subr.mxu0 0.0
  %1140 = vmatpush1.msra.mxu0 %v29
  %1141 = vmatprep.subr.mxu0 0.0
  %1142 = vmatpush2.msra.mxu0 0.0
  %1143 = vmatprep.subr.mxu0 0.0
  %1144 = vmatpush2.msra.mxu0 0.0
  %1145 = vmatprep.subr.mxu0 0.0
  %1146 = vmatpush2.msra.mxu0 0.0
  %1147 = vmatprep.subr.mxu0 0.0
  %1148 = vmatpush2.msra.mxu0 0.0
  %1149 = vmatprep.subr.mxu0 0.0
  %1150 = vmatpush2.msra.mxu0 0.0
  %1151 = vmatprep.subr.mxu0 0.0
  %1152 = vmatpush2.msra.mxu0 0.0
  %1153 = vmatprep.subr.mxu0 0.0
  %1154 = vmatpush2.msra.mxu0 0.0
  %1155 = vmatprep.subr.mxu0 0.0
  %1156 = vmatpush2.msra.mxu0 0.0
  %1157 = vmatprep.subr.mxu0 0.0
  %1158 = vmatpush2.msra.mxu0 0.0
  %1159 = vmatprep.subr.mxu0 0.0
  %1160 = vmatpush2.msra.mxu0 0.0
  %1161 = vmatprep.subr.mxu0 0.0
  %1162 = vmatpush2.msra.mxu0 0.0
  %1163 = vmatprep.subr.mxu0 0.0
  %1164 = vmatpush2.msra.mxu0 0.0
  %1165 = vmatprep.subr.mxu0 0.0
  %1166 = vmatpush2.msra.mxu0 0.0
  %1167 = vmatprep.subr.mxu0 0.0
  %1168 = vmatpush2.msra.mxu0 0.0
  %1169 = vmatprep.subr.mxu0 0.0
  %1170 = vmatpush2.msra.mxu0 0.0
  %1171 = vmatprep.subr.mxu0 0.0
  %1172 = vmatpush2.msra.mxu0 0.0
  %1173 = vmatprep.mubr.f32.mxu0 0.0
  %1174 = vmatmul.mubr.f32.gmra.mxu0 %v1107
  %v1175 = vpop.f32.mrf.mxu0
  %v1176 = vadd.f32 %v1103, %v1175
  %v1177 = vpop.f32.mrf.mxu0
  %1178 = vdwg.mxu0
  %v1179 = vadd.f32 %v1176, %v202
  %v1180 = vxor.u32 %v1179, 2147483648
  %v1181 = vmul.f32 %v1180, 1.442695
  %v1182 = vpow.pop %v1181
  %v1183 = vadd.f32 %v1182, 1.0
  %v1184 = vrcp.pop %v1183
  %v1185 = vmul.f32 1.0, %v1184
  %1186 = vrot.lane.b32.xlu0 %v1016, 16
  %v1187 = vpop.permute.xlu0 %1186
  %v1189 = vmul.f32 %v1185, %v1187
  %1191 = vrot.lane.b32.xlu0 %v1189, 112
  %v1192 = vpop.permute.xlu0 %1191
  %v1193 = vsel %vm51, %v1192, 0
  %1195 = vmatprep.subr.mxu0 0.0
  %1196 = vmatpush1.msra.mxu0 0.0
  %1197 = vmatprep.subr.mxu0 0.0
  %1198 = vmatpush1.msra.mxu0 0.0
  %1199 = vmatprep.subr.mxu0 0.0
  %1200 = vmatpush1.msra.mxu0 0.0
  %1201 = vmatprep.subr.mxu0 0.0
  %1202 = vmatpush1.msra.mxu0 0.0
  %1203 = vmatprep.subr.mxu0 0.0
  %1204 = vmatpush1.msra.mxu0 0.0
  %1205 = vmatprep.subr.mxu0 0.0
  %1206 = vmatpush1.msra.mxu0 0.0
  %1207 = vmatprep.subr.mxu0 0.0
  %1208 = vmatpush1.msra.mxu0 0.0
  %1209 = vmatprep.subr.mxu0 0.0
  %1210 = vmatpush1.msra.mxu0 0.0
  %1211 = vmatprep.subr.mxu0 0.0
  %1212 = vmatpush1.msra.mxu0 0.0
  %1213 = vmatprep.subr.mxu0 0.0
  %1214 = vmatpush1.msra.mxu0 0.0
  %1215 = vmatprep.subr.mxu0 0.0
  %1216 = vmatpush1.msra.mxu0 0.0
  %1217 = vmatprep.subr.mxu0 0.0
  %1218 = vmatpush1.msra.mxu0 0.0
  %1219 = vmatprep.subr.mxu0 0.0
  %1220 = vmatpush1.msra.mxu0 0.0
  %1221 = vmatprep.subr.mxu0 0.0
  %1222 = vmatpush1.msra.mxu0 0.0
  %1223 = vmatprep.subr.mxu0 0.0
  %1224 = vmatpush1.msra.mxu0 %v37
  %1225 = vmatprep.subr.mxu0 0.0
  %1226 = vmatpush1.msra.mxu0 %v36
  %1227 = vmatprep.subr.mxu0 0.0
  %1228 = vmatpush2.msra.mxu0 0.0
  %1229 = vmatprep.subr.mxu0 0.0
  %1230 = vmatpush2.msra.mxu0 0.0
  %1231 = vmatprep.subr.mxu0 0.0
  %1232 = vmatpush2.msra.mxu0 0.0
  %1233 = vmatprep.subr.mxu0 0.0
  %1234 = vmatpush2.msra.mxu0 0.0
  %1235 = vmatprep.subr.mxu0 0.0
  %1236 = vmatpush2.msra.mxu0 0.0
  %1237 = vmatprep.subr.mxu0 0.0
  %1238 = vmatpush2.msra.mxu0 0.0
  %1239 = vmatprep.subr.mxu0 0.0
  %1240 = vmatpush2.msra.mxu0 0.0
  %1241 = vmatprep.subr.mxu0 0.0
  %1242 = vmatpush2.msra.mxu0 0.0
  %1243 = vmatprep.subr.mxu0 0.0
  %1244 = vmatpush2.msra.mxu0 0.0
  %1245 = vmatprep.subr.mxu0 0.0
  %1246 = vmatpush2.msra.mxu0 0.0
  %1247 = vmatprep.subr.mxu0 0.0
  %1248 = vmatpush2.msra.mxu0 0.0
  %1249 = vmatprep.subr.mxu0 0.0
  %1250 = vmatpush2.msra.mxu0 0.0
  %1251 = vmatprep.subr.mxu0 0.0
  %1252 = vmatpush2.msra.mxu0 0.0
  %1253 = vmatprep.subr.mxu0 0.0
  %1254 = vmatpush2.msra.mxu0 0.0
  %1255 = vmatprep.subr.mxu0 0.0
  %1256 = vmatpush2.msra.mxu0 0.0
  %1257 = vmatprep.subr.mxu0 0.0
  %1258 = vmatpush2.msra.mxu0 0.0
  %1259 = vmatprep.mubr.f32.mxu0 0.0
  %1260 = vmatmul.mubr.f32.gmra.mxu0 %v1193
  %v1261 = vpop.f32.mrf.mxu0
  %v1262 = vadd.f32 0.0, %v1261
  %v1263 = vpop.f32.mrf.mxu0
  %1264 = vdwg.mxu0
  %1265 = vmatprep.subr.mxu0 0.0
  %1266 = vmatpush1.msra.mxu0 0.0
  %1267 = vmatprep.subr.mxu0 0.0
  %1268 = vmatpush1.msra.mxu0 0.0
  %1269 = vmatprep.subr.mxu0 0.0
  %1270 = vmatpush1.msra.mxu0 0.0
  %1271 = vmatprep.subr.mxu0 0.0
  %1272 = vmatpush1.msra.mxu0 0.0
  %1273 = vmatprep.subr.mxu0 0.0
  %1274 = vmatpush1.msra.mxu0 0.0
  %1275 = vmatprep.subr.mxu0 0.0
  %1276 = vmatpush1.msra.mxu0 0.0
  %1277 = vmatprep.subr.mxu0 0.0
  %1278 = vmatpush1.msra.mxu0 0.0
  %1279 = vmatprep.subr.mxu0 0.0
  %1280 = vmatpush1.msra.mxu0 0.0
  %1281 = vmatprep.subr.mxu0 0.0
  %1282 = vmatpush1.msra.mxu0 0.0
  %1283 = vmatprep.subr.mxu0 0.0
  %1284 = vmatpush1.msra.mxu0 0.0
  %1285 = vmatprep.subr.mxu0 0.0
  %1286 = vmatpush1.msra.mxu0 0.0
  %1287 = vmatprep.subr.mxu0 0.0
  %1288 = vmatpush1.msra.mxu0 0.0
  %1289 = vmatprep.subr.mxu0 0.0
  %1290 = vmatpush1.msra.mxu0 0.0
  %1291 = vmatprep.subr.mxu0 0.0
  %1292 = vmatpush1.msra.mxu0 0.0
  %1293 = vmatprep.subr.mxu0 0.0
  %1294 = vmatpush1.msra.mxu0 %v35
  %1295 = vmatprep.subr.mxu0 0.0
  %1296 = vmatpush1.msra.mxu0 %v34
  %1297 = vmatprep.subr.mxu0 0.0
  %1298 = vmatpush2.msra.mxu0 0.0
  %1299 = vmatprep.subr.mxu0 0.0
  %1300 = vmatpush2.msra.mxu0 0.0
  %1301 = vmatprep.subr.mxu0 0.0
  %1302 = vmatpush2.msra.mxu0 0.0
  %1303 = vmatprep.subr.mxu0 0.0
  %1304 = vmatpush2.msra.mxu0 0.0
  %1305 = vmatprep.subr.mxu0 0.0
  %1306 = vmatpush2.msra.mxu0 0.0
  %1307 = vmatprep.subr.mxu0 0.0
  %1308 = vmatpush2.msra.mxu0 0.0
  %1309 = vmatprep.subr.mxu0 0.0
  %1310 = vmatpush2.msra.mxu0 0.0
  %1311 = vmatprep.subr.mxu0 0.0
  %1312 = vmatpush2.msra.mxu0 0.0
  %1313 = vmatprep.subr.mxu0 0.0
  %1314 = vmatpush2.msra.mxu0 0.0
  %1315 = vmatprep.subr.mxu0 0.0
  %1316 = vmatpush2.msra.mxu0 0.0
  %1317 = vmatprep.subr.mxu0 0.0
  %1318 = vmatpush2.msra.mxu0 0.0
  %1319 = vmatprep.subr.mxu0 0.0
  %1320 = vmatpush2.msra.mxu0 0.0
  %1321 = vmatprep.subr.mxu0 0.0
  %1322 = vmatpush2.msra.mxu0 0.0
  %1323 = vmatprep.subr.mxu0 0.0
  %1324 = vmatpush2.msra.mxu0 0.0
  %1325 = vmatprep.subr.mxu0 0.0
  %1326 = vmatpush2.msra.mxu0 0.0
  %1327 = vmatprep.subr.mxu0 0.0
  %1328 = vmatpush2.msra.mxu0 0.0
  %1329 = vmatprep.mubr.f32.mxu0 0.0
  %1330 = vmatmul.mubr.f32.gmra.mxu0 %v1107
  %v1331 = vpop.f32.mrf.mxu0
  %v1332 = vadd.f32 %v1262, %v1331
  %v1333 = vpop.f32.mrf.mxu0
  %1334 = vdwg.mxu0
  %v1335 = vadd.f32 %v1332, %v361
  %v1336 = vtanh.pop %v1335
  %v1337 = vsub.f32 1.0, %v1185
  %v1338 = vmul.f32 %v1337, %v1016
  %v1339 = vmul.f32 %v1185, %v1336
  %v1340 = vadd.f32 %v1338, %v1339
  %s1341 = scalar_lea.vmem %s8, 6
  %1342 = vst.msk [vmem:[%s1341] sm:$0x3] %vm369, %v1340
  %s1343 = scalar_lea.vmem %s1, 8
  %v1344 = vld [vmem:[%s1343] sm:$0x3]
  %s1345 = scalar_lea.vmem %s0, 8
  %v1346 = vld [vmem:[%s1345] sm:$0x3]
  %v1347 = vmul.f32 %v1346, %v1344
  %v1348 = vsub.f32 1.0, %v1344
  %v1349 = vmul.f32 %v1340, %v1348
  %v1350 = vadd.f32 %v1347, %v1349
  %v1351 = vxor.u32 %v1350, 2147483648
  %v1352 = vmul.f32 %v1351, 1.442695
  %v1353 = vpow.pop %v1352
  %v1354 = vadd.f32 %v1353, 1.0
  %v1355 = vrcp.pop %v1354
  %v1356 = vmul.f32 1.0, %v1355
  %v1358 = vsel %vm51, %v1340, 0
  %1360 = vmatprep.subr.mxu0 0.0
  %1361 = vmatpush1.msra.mxu0 0.0
  %1362 = vmatprep.subr.mxu0 0.0
  %1363 = vmatpush1.msra.mxu0 0.0
  %1364 = vmatprep.subr.mxu0 0.0
  %1365 = vmatpush1.msra.mxu0 0.0
  %1366 = vmatprep.subr.mxu0 0.0
  %1367 = vmatpush1.msra.mxu0 0.0
  %1368 = vmatprep.subr.mxu0 0.0
  %1369 = vmatpush1.msra.mxu0 0.0
  %1370 = vmatprep.subr.mxu0 0.0
  %1371 = vmatpush1.msra.mxu0 0.0
  %1372 = vmatprep.subr.mxu0 0.0
  %1373 = vmatpush1.msra.mxu0 0.0
  %1374 = vmatprep.subr.mxu0 0.0
  %1375 = vmatpush1.msra.mxu0 0.0
  %1376 = vmatprep.subr.mxu0 0.0
  %1377 = vmatpush1.msra.mxu0 0.0
  %1378 = vmatprep.subr.mxu0 0.0
  %1379 = vmatpush1.msra.mxu0 0.0
  %1380 = vmatprep.subr.mxu0 0.0
  %1381 = vmatpush1.msra.mxu0 0.0
  %1382 = vmatprep.subr.mxu0 0.0
  %1383 = vmatpush1.msra.mxu0 0.0
  %1384 = vmatprep.subr.mxu0 0.0
  %1385 = vmatpush1.msra.mxu0 0.0
  %1386 = vmatprep.subr.mxu0 0.0
  %1387 = vmatpush1.msra.mxu0 0.0
  %1388 = vmatprep.subr.mxu0 0.0
  %1389 = vmatpush1.msra.mxu0 %v32
  %1390 = vmatprep.subr.mxu0 0.0
  %1391 = vmatpush1.msra.mxu0 %v31
  %1392 = vmatprep.subr.mxu0 0.0
  %1393 = vmatpush2.msra.mxu0 0.0
  %1394 = vmatprep.subr.mxu0 0.0
  %1395 = vmatpush2.msra.mxu0 0.0
  %1396 = vmatprep.subr.mxu0 0.0
  %1397 = vmatpush2.msra.mxu0 0.0
  %1398 = vmatprep.subr.mxu0 0.0
  %1399 = vmatpush2.msra.mxu0 0.0
  %1400 = vmatprep.subr.mxu0 0.0
  %1401 = vmatpush2.msra.mxu0 0.0
  %1402 = vmatprep.subr.mxu0 0.0
  %1403 = vmatpush2.msra.mxu0 0.0
  %1404 = vmatprep.subr.mxu0 0.0
  %1405 = vmatpush2.msra.mxu0 0.0
  %1406 = vmatprep.subr.mxu0 0.0
  %1407 = vmatpush2.msra.mxu0 0.0
  %1408 = vmatprep.subr.mxu0 0.0
  %1409 = vmatpush2.msra.mxu0 0.0
  %1410 = vmatprep.subr.mxu0 0.0
  %1411 = vmatpush2.msra.mxu0 0.0
  %1412 = vmatprep.subr.mxu0 0.0
  %1413 = vmatpush2.msra.mxu0 0.0
  %1414 = vmatprep.subr.mxu0 0.0
  %1415 = vmatpush2.msra.mxu0 0.0
  %1416 = vmatprep.subr.mxu0 0.0
  %1417 = vmatpush2.msra.mxu0 0.0
  %1418 = vmatprep.subr.mxu0 0.0
  %1419 = vmatpush2.msra.mxu0 0.0
  %1420 = vmatprep.subr.mxu0 0.0
  %1421 = vmatpush2.msra.mxu0 0.0
  %1422 = vmatprep.subr.mxu0 0.0
  %1423 = vmatpush2.msra.mxu0 0.0
  %1424 = vmatprep.mubr.f32.mxu0 0.0
  %1425 = vmatmul.mubr.f32.gmra.mxu0 %v1358
  %v1426 = vpop.f32.mrf.mxu0
  %v1427 = vadd.f32 0.0, %v1426
  %v1428 = vpop.f32.mrf.mxu0
  %1429 = vdwg.mxu0
  %v1431 = vsel %vm51, %v1356, 0
  %1433 = vmatprep.subr.mxu0 0.0
  %1434 = vmatpush1.msra.mxu0 0.0
  %1435 = vmatprep.subr.mxu0 0.0
  %1436 = vmatpush1.msra.mxu0 0.0
  %1437 = vmatprep.subr.mxu0 0.0
  %1438 = vmatpush1.msra.mxu0 0.0
  %1439 = vmatprep.subr.mxu0 0.0
  %1440 = vmatpush1.msra.mxu0 0.0
  %1441 = vmatprep.subr.mxu0 0.0
  %1442 = vmatpush1.msra.mxu0 0.0
  %1443 = vmatprep.subr.mxu0 0.0
  %1444 = vmatpush1.msra.mxu0 0.0
  %1445 = vmatprep.subr.mxu0 0.0
  %1446 = vmatpush1.msra.mxu0 0.0
  %1447 = vmatprep.subr.mxu0 0.0
  %1448 = vmatpush1.msra.mxu0 0.0
  %1449 = vmatprep.subr.mxu0 0.0
  %1450 = vmatpush1.msra.mxu0 0.0
  %1451 = vmatprep.subr.mxu0 0.0
  %1452 = vmatpush1.msra.mxu0 0.0
  %1453 = vmatprep.subr.mxu0 0.0
  %1454 = vmatpush1.msra.mxu0 0.0
  %1455 = vmatprep.subr.mxu0 0.0
  %1456 = vmatpush1.msra.mxu0 0.0
  %1457 = vmatprep.subr.mxu0 0.0
  %1458 = vmatpush1.msra.mxu0 0.0
  %1459 = vmatprep.subr.mxu0 0.0
  %1460 = vmatpush1.msra.mxu0 0.0
  %1461 = vmatprep.subr.mxu0 0.0
  %1462 = vmatpush1.msra.mxu0 %v30
  %1463 = vmatprep.subr.mxu0 0.0
  %1464 = vmatpush1.msra.mxu0 %v29
  %1465 = vmatprep.subr.mxu0 0.0
  %1466 = vmatpush2.msra.mxu0 0.0
  %1467 = vmatprep.subr.mxu0 0.0
  %1468 = vmatpush2.msra.mxu0 0.0
  %1469 = vmatprep.subr.mxu0 0.0
  %1470 = vmatpush2.msra.mxu0 0.0
  %1471 = vmatprep.subr.mxu0 0.0
  %1472 = vmatpush2.msra.mxu0 0.0
  %1473 = vmatprep.subr.mxu0 0.0
  %1474 = vmatpush2.msra.mxu0 0.0
  %1475 = vmatprep.subr.mxu0 0.0
  %1476 = vmatpush2.msra.mxu0 0.0
  %1477 = vmatprep.subr.mxu0 0.0
  %1478 = vmatpush2.msra.mxu0 0.0
  %1479 = vmatprep.subr.mxu0 0.0
  %1480 = vmatpush2.msra.mxu0 0.0
  %1481 = vmatprep.subr.mxu0 0.0
  %1482 = vmatpush2.msra.mxu0 0.0
  %1483 = vmatprep.subr.mxu0 0.0
  %1484 = vmatpush2.msra.mxu0 0.0
  %1485 = vmatprep.subr.mxu0 0.0
  %1486 = vmatpush2.msra.mxu0 0.0
  %1487 = vmatprep.subr.mxu0 0.0
  %1488 = vmatpush2.msra.mxu0 0.0
  %1489 = vmatprep.subr.mxu0 0.0
  %1490 = vmatpush2.msra.mxu0 0.0
  %1491 = vmatprep.subr.mxu0 0.0
  %1492 = vmatpush2.msra.mxu0 0.0
  %1493 = vmatprep.subr.mxu0 0.0
  %1494 = vmatpush2.msra.mxu0 0.0
  %1495 = vmatprep.subr.mxu0 0.0
  %1496 = vmatpush2.msra.mxu0 0.0
  %1497 = vmatprep.mubr.f32.mxu0 0.0
  %1498 = vmatmul.mubr.f32.gmra.mxu0 %v1431
  %v1499 = vpop.f32.mrf.mxu0
  %v1500 = vadd.f32 %v1427, %v1499
  %v1501 = vpop.f32.mrf.mxu0
  %1502 = vdwg.mxu0
  %v1503 = vadd.f32 %v1500, %v202
  %v1504 = vxor.u32 %v1503, 2147483648
  %v1505 = vmul.f32 %v1504, 1.442695
  %v1506 = vpow.pop %v1505
  %v1507 = vadd.f32 %v1506, 1.0
  %v1508 = vrcp.pop %v1507
  %v1509 = vmul.f32 1.0, %v1508
  %1510 = vrot.lane.b32.xlu0 %v1340, 16
  %v1511 = vpop.permute.xlu0 %1510
  %v1513 = vmul.f32 %v1509, %v1511
  %1515 = vrot.lane.b32.xlu0 %v1513, 112
  %v1516 = vpop.permute.xlu0 %1515
  %v1517 = vsel %vm51, %v1516, 0
  %1519 = vmatprep.subr.mxu0 0.0
  %1520 = vmatpush1.msra.mxu0 0.0
  %1521 = vmatprep.subr.mxu0 0.0
  %1522 = vmatpush1.msra.mxu0 0.0
  %1523 = vmatprep.subr.mxu0 0.0
  %1524 = vmatpush1.msra.mxu0 0.0
  %1525 = vmatprep.subr.mxu0 0.0
  %1526 = vmatpush1.msra.mxu0 0.0
  %1527 = vmatprep.subr.mxu0 0.0
  %1528 = vmatpush1.msra.mxu0 0.0
  %1529 = vmatprep.subr.mxu0 0.0
  %1530 = vmatpush1.msra.mxu0 0.0
  %1531 = vmatprep.subr.mxu0 0.0
  %1532 = vmatpush1.msra.mxu0 0.0
  %1533 = vmatprep.subr.mxu0 0.0
  %1534 = vmatpush1.msra.mxu0 0.0
  %1535 = vmatprep.subr.mxu0 0.0
  %1536 = vmatpush1.msra.mxu0 0.0
  %1537 = vmatprep.subr.mxu0 0.0
  %1538 = vmatpush1.msra.mxu0 0.0
  %1539 = vmatprep.subr.mxu0 0.0
  %1540 = vmatpush1.msra.mxu0 0.0
  %1541 = vmatprep.subr.mxu0 0.0
  %1542 = vmatpush1.msra.mxu0 0.0
  %1543 = vmatprep.subr.mxu0 0.0
  %1544 = vmatpush1.msra.mxu0 0.0
  %1545 = vmatprep.subr.mxu0 0.0
  %1546 = vmatpush1.msra.mxu0 0.0
  %1547 = vmatprep.subr.mxu0 0.0
  %1548 = vmatpush1.msra.mxu0 %v37
  %1549 = vmatprep.subr.mxu0 0.0
  %1550 = vmatpush1.msra.mxu0 %v36
  %1551 = vmatprep.subr.mxu0 0.0
  %1552 = vmatpush2.msra.mxu0 0.0
  %1553 = vmatprep.subr.mxu0 0.0
  %1554 = vmatpush2.msra.mxu0 0.0
  %1555 = vmatprep.subr.mxu0 0.0
  %1556 = vmatpush2.msra.mxu0 0.0
  %1557 = vmatprep.subr.mxu0 0.0
  %1558 = vmatpush2.msra.mxu0 0.0
  %1559 = vmatprep.subr.mxu0 0.0
  %1560 = vmatpush2.msra.mxu0 0.0
  %1561 = vmatprep.subr.mxu0 0.0
  %1562 = vmatpush2.msra.mxu0 0.0
  %1563 = vmatprep.subr.mxu0 0.0
  %1564 = vmatpush2.msra.mxu0 0.0
  %1565 = vmatprep.subr.mxu0 0.0
  %1566 = vmatpush2.msra.mxu0 0.0
  %1567 = vmatprep.subr.mxu0 0.0
  %1568 = vmatpush2.msra.mxu0 0.0
  %1569 = vmatprep.subr.mxu0 0.0
  %1570 = vmatpush2.msra.mxu0 0.0
  %1571 = vmatprep.subr.mxu0 0.0
  %1572 = vmatpush2.msra.mxu0 0.0
  %1573 = vmatprep.subr.mxu0 0.0
  %1574 = vmatpush2.msra.mxu0 0.0
  %1575 = vmatprep.subr.mxu0 0.0
  %1576 = vmatpush2.msra.mxu0 0.0
  %1577 = vmatprep.subr.mxu0 0.0
  %1578 = vmatpush2.msra.mxu0 0.0
  %1579 = vmatprep.subr.mxu0 0.0
  %1580 = vmatpush2.msra.mxu0 0.0
  %1581 = vmatprep.subr.mxu0 0.0
  %1582 = vmatpush2.msra.mxu0 0.0
  %1583 = vmatprep.mubr.f32.mxu0 0.0
  %1584 = vmatmul.mubr.f32.gmra.mxu0 %v1517
  %v1585 = vpop.f32.mrf.mxu0
  %v1586 = vadd.f32 0.0, %v1585
  %v1587 = vpop.f32.mrf.mxu0
  %1588 = vdwg.mxu0
  %1589 = vmatprep.subr.mxu0 0.0
  %1590 = vmatpush1.msra.mxu0 0.0
  %1591 = vmatprep.subr.mxu0 0.0
  %1592 = vmatpush1.msra.mxu0 0.0
  %1593 = vmatprep.subr.mxu0 0.0
  %1594 = vmatpush1.msra.mxu0 0.0
  %1595 = vmatprep.subr.mxu0 0.0
  %1596 = vmatpush1.msra.mxu0 0.0
  %1597 = vmatprep.subr.mxu0 0.0
  %1598 = vmatpush1.msra.mxu0 0.0
  %1599 = vmatprep.subr.mxu0 0.0
  %1600 = vmatpush1.msra.mxu0 0.0
  %1601 = vmatprep.subr.mxu0 0.0
  %1602 = vmatpush1.msra.mxu0 0.0
  %1603 = vmatprep.subr.mxu0 0.0
  %1604 = vmatpush1.msra.mxu0 0.0
  %1605 = vmatprep.subr.mxu0 0.0
  %1606 = vmatpush1.msra.mxu0 0.0
  %1607 = vmatprep.subr.mxu0 0.0
  %1608 = vmatpush1.msra.mxu0 0.0
  %1609 = vmatprep.subr.mxu0 0.0
  %1610 = vmatpush1.msra.mxu0 0.0
  %1611 = vmatprep.subr.mxu0 0.0
  %1612 = vmatpush1.msra.mxu0 0.0
  %1613 = vmatprep.subr.mxu0 0.0
  %1614 = vmatpush1.msra.mxu0 0.0
  %1615 = vmatprep.subr.mxu0 0.0
  %1616 = vmatpush1.msra.mxu0 0.0
  %1617 = vmatprep.subr.mxu0 0.0
  %1618 = vmatpush1.msra.mxu0 %v35
  %1619 = vmatprep.subr.mxu0 0.0
  %1620 = vmatpush1.msra.mxu0 %v34
  %1621 = vmatprep.subr.mxu0 0.0
  %1622 = vmatpush2.msra.mxu0 0.0
  %1623 = vmatprep.subr.mxu0 0.0
  %1624 = vmatpush2.msra.mxu0 0.0
  %1625 = vmatprep.subr.mxu0 0.0
  %1626 = vmatpush2.msra.mxu0 0.0
  %1627 = vmatprep.subr.mxu0 0.0
  %1628 = vmatpush2.msra.mxu0 0.0
  %1629 = vmatprep.subr.mxu0 0.0
  %1630 = vmatpush2.msra.mxu0 0.0
  %1631 = vmatprep.subr.mxu0 0.0
  %1632 = vmatpush2.msra.mxu0 0.0
  %1633 = vmatprep.subr.mxu0 0.0
  %1634 = vmatpush2.msra.mxu0 0.0
  %1635 = vmatprep.subr.mxu0 0.0
  %1636 = vmatpush2.msra.mxu0 0.0
  %1637 = vmatprep.subr.mxu0 0.0
  %1638 = vmatpush2.msra.mxu0 0.0
  %1639 = vmatprep.subr.mxu0 0.0
  %1640 = vmatpush2.msra.mxu0 0.0
  %1641 = vmatprep.subr.mxu0 0.0
  %1642 = vmatpush2.msra.mxu0 0.0
  %1643 = vmatprep.subr.mxu0 0.0
  %1644 = vmatpush2.msra.mxu0 0.0
  %1645 = vmatprep.subr.mxu0 0.0
  %1646 = vmatpush2.msra.mxu0 0.0
  %1647 = vmatprep.subr.mxu0 0.0
  %1648 = vmatpush2.msra.mxu0 0.0
  %1649 = vmatprep.subr.mxu0 0.0
  %1650 = vmatpush2.msra.mxu0 0.0
  %1651 = vmatprep.subr.mxu0 0.0
  %1652 = vmatpush2.msra.mxu0 0.0
  %1653 = vmatprep.mubr.f32.mxu0 0.0
  %1654 = vmatmul.mubr.f32.gmra.mxu0 %v1431
  %v1655 = vpop.f32.mrf.mxu0
  %v1656 = vadd.f32 %v1586, %v1655
  %v1657 = vpop.f32.mrf.mxu0
  %1658 = vdwg.mxu0
  %v1659 = vadd.f32 %v1656, %v361
  %v1660 = vtanh.pop %v1659
  %v1661 = vsub.f32 1.0, %v1509
  %v1662 = vmul.f32 %v1661, %v1340
  %v1663 = vmul.f32 %v1509, %v1660
  %v1664 = vadd.f32 %v1662, %v1663
  %s1665 = scalar_lea.vmem %s8, 8
  %1666 = vst.msk [vmem:[%s1665] sm:$0x3] %vm369, %v1664
  %s1667 = scalar_lea.vmem %s1, 10
  %v1668 = vld [vmem:[%s1667] sm:$0x3]
  %s1669 = scalar_lea.vmem %s0, 10
  %v1670 = vld [vmem:[%s1669] sm:$0x3]
  %v1671 = vmul.f32 %v1670, %v1668
  %v1672 = vsub.f32 1.0, %v1668
  %v1673 = vmul.f32 %v1664, %v1672
  %v1674 = vadd.f32 %v1671, %v1673
  %v1675 = vxor.u32 %v1674, 2147483648
  %v1676 = vmul.f32 %v1675, 1.442695
  %v1677 = vpow.pop %v1676
  %v1678 = vadd.f32 %v1677, 1.0
  %v1679 = vrcp.pop %v1678
  %v1680 = vmul.f32 1.0, %v1679
  %v1682 = vsel %vm51, %v1664, 0
  %1684 = vmatprep.subr.mxu0 0.0
  %1685 = vmatpush1.msra.mxu0 0.0
  %1686 = vmatprep.subr.mxu0 0.0
  %1687 = vmatpush1.msra.mxu0 0.0
  %1688 = vmatprep.subr.mxu0 0.0
  %1689 = vmatpush1.msra.mxu0 0.0
  %1690 = vmatprep.subr.mxu0 0.0
  %1691 = vmatpush1.msra.mxu0 0.0
  %1692 = vmatprep.subr.mxu0 0.0
  %1693 = vmatpush1.msra.mxu0 0.0
  %1694 = vmatprep.subr.mxu0 0.0
  %1695 = vmatpush1.msra.mxu0 0.0
  %1696 = vmatprep.subr.mxu0 0.0
  %1697 = vmatpush1.msra.mxu0 0.0
  %1698 = vmatprep.subr.mxu0 0.0
  %1699 = vmatpush1.msra.mxu0 0.0
  %1700 = vmatprep.subr.mxu0 0.0
  %1701 = vmatpush1.msra.mxu0 0.0
  %1702 = vmatprep.subr.mxu0 0.0
  %1703 = vmatpush1.msra.mxu0 0.0
  %1704 = vmatprep.subr.mxu0 0.0
  %1705 = vmatpush1.msra.mxu0 0.0
  %1706 = vmatprep.subr.mxu0 0.0
  %1707 = vmatpush1.msra.mxu0 0.0
  %1708 = vmatprep.subr.mxu0 0.0
  %1709 = vmatpush1.msra.mxu0 0.0
  %1710 = vmatprep.subr.mxu0 0.0
  %1711 = vmatpush1.msra.mxu0 0.0
  %1712 = vmatprep.subr.mxu0 0.0
  %1713 = vmatpush1.msra.mxu0 %v32
  %1714 = vmatprep.subr.mxu0 0.0
  %1715 = vmatpush1.msra.mxu0 %v31
  %1716 = vmatprep.subr.mxu0 0.0
  %1717 = vmatpush2.msra.mxu0 0.0
  %1718 = vmatprep.subr.mxu0 0.0
  %1719 = vmatpush2.msra.mxu0 0.0
  %1720 = vmatprep.subr.mxu0 0.0
  %1721 = vmatpush2.msra.mxu0 0.0
  %1722 = vmatprep.subr.mxu0 0.0
  %1723 = vmatpush2.msra.mxu0 0.0
  %1724 = vmatprep.subr.mxu0 0.0
  %1725 = vmatpush2.msra.mxu0 0.0
  %1726 = vmatprep.subr.mxu0 0.0
  %1727 = vmatpush2.msra.mxu0 0.0
  %1728 = vmatprep.subr.mxu0 0.0
  %1729 = vmatpush2.msra.mxu0 0.0
  %1730 = vmatprep.subr.mxu0 0.0
  %1731 = vmatpush2.msra.mxu0 0.0
  %1732 = vmatprep.subr.mxu0 0.0
  %1733 = vmatpush2.msra.mxu0 0.0
  %1734 = vmatprep.subr.mxu0 0.0
  %1735 = vmatpush2.msra.mxu0 0.0
  %1736 = vmatprep.subr.mxu0 0.0
  %1737 = vmatpush2.msra.mxu0 0.0
  %1738 = vmatprep.subr.mxu0 0.0
  %1739 = vmatpush2.msra.mxu0 0.0
  %1740 = vmatprep.subr.mxu0 0.0
  %1741 = vmatpush2.msra.mxu0 0.0
  %1742 = vmatprep.subr.mxu0 0.0
  %1743 = vmatpush2.msra.mxu0 0.0
  %1744 = vmatprep.subr.mxu0 0.0
  %1745 = vmatpush2.msra.mxu0 0.0
  %1746 = vmatprep.subr.mxu0 0.0
  %1747 = vmatpush2.msra.mxu0 0.0
  %1748 = vmatprep.mubr.f32.mxu0 0.0
  %1749 = vmatmul.mubr.f32.gmra.mxu0 %v1682
  %v1750 = vpop.f32.mrf.mxu0
  %v1751 = vadd.f32 0.0, %v1750
  %v1752 = vpop.f32.mrf.mxu0
  %1753 = vdwg.mxu0
  %v1755 = vsel %vm51, %v1680, 0
  %1757 = vmatprep.subr.mxu0 0.0
  %1758 = vmatpush1.msra.mxu0 0.0
  %1759 = vmatprep.subr.mxu0 0.0
  %1760 = vmatpush1.msra.mxu0 0.0
  %1761 = vmatprep.subr.mxu0 0.0
  %1762 = vmatpush1.msra.mxu0 0.0
  %1763 = vmatprep.subr.mxu0 0.0
  %1764 = vmatpush1.msra.mxu0 0.0
  %1765 = vmatprep.subr.mxu0 0.0
  %1766 = vmatpush1.msra.mxu0 0.0
  %1767 = vmatprep.subr.mxu0 0.0
  %1768 = vmatpush1.msra.mxu0 0.0
  %1769 = vmatprep.subr.mxu0 0.0
  %1770 = vmatpush1.msra.mxu0 0.0
  %1771 = vmatprep.subr.mxu0 0.0
  %1772 = vmatpush1.msra.mxu0 0.0
  %1773 = vmatprep.subr.mxu0 0.0
  %1774 = vmatpush1.msra.mxu0 0.0
  %1775 = vmatprep.subr.mxu0 0.0
  %1776 = vmatpush1.msra.mxu0 0.0
  %1777 = vmatprep.subr.mxu0 0.0
  %1778 = vmatpush1.msra.mxu0 0.0
  %1779 = vmatprep.subr.mxu0 0.0
  %1780 = vmatpush1.msra.mxu0 0.0
  %1781 = vmatprep.subr.mxu0 0.0
  %1782 = vmatpush1.msra.mxu0 0.0
  %1783 = vmatprep.subr.mxu0 0.0
  %1784 = vmatpush1.msra.mxu0 0.0
  %1785 = vmatprep.subr.mxu0 0.0
  %1786 = vmatpush1.msra.mxu0 %v30
  %1787 = vmatprep.subr.mxu0 0.0
  %1788 = vmatpush1.msra.mxu0 %v29
  %1789 = vmatprep.subr.mxu0 0.0
  %1790 = vmatpush2.msra.mxu0 0.0
  %1791 = vmatprep.subr.mxu0 0.0
  %1792 = vmatpush2.msra.mxu0 0.0
  %1793 = vmatprep.subr.mxu0 0.0
  %1794 = vmatpush2.msra.mxu0 0.0
  %1795 = vmatprep.subr.mxu0 0.0
  %1796 = vmatpush2.msra.mxu0 0.0
  %1797 = vmatprep.subr.mxu0 0.0
  %1798 = vmatpush2.msra.mxu0 0.0
  %1799 = vmatprep.subr.mxu0 0.0
  %1800 = vmatpush2.msra.mxu0 0.0
  %1801 = vmatprep.subr.mxu0 0.0
  %1802 = vmatpush2.msra.mxu0 0.0
  %1803 = vmatprep.subr.mxu0 0.0
  %1804 = vmatpush2.msra.mxu0 0.0
  %1805 = vmatprep.subr.mxu0 0.0
  %1806 = vmatpush2.msra.mxu0 0.0
  %1807 = vmatprep.subr.mxu0 0.0
  %1808 = vmatpush2.msra.mxu0 0.0
  %1809 = vmatprep.subr.mxu0 0.0
  %1810 = vmatpush2.msra.mxu0 0.0
  %1811 = vmatprep.subr.mxu0 0.0
  %1812 = vmatpush2.msra.mxu0 0.0
  %1813 = vmatprep.subr.mxu0 0.0
  %1814 = vmatpush2.msra.mxu0 0.0
  %1815 = vmatprep.subr.mxu0 0.0
  %1816 = vmatpush2.msra.mxu0 0.0
  %1817 = vmatprep.subr.mxu0 0.0
  %1818 = vmatpush2.msra.mxu0 0.0
  %1819 = vmatprep.subr.mxu0 0.0
  %1820 = vmatpush2.msra.mxu0 0.0
  %1821 = vmatprep.mubr.f32.mxu0 0.0
  %1822 = vmatmul.mubr.f32.gmra.mxu0 %v1755
  %v1823 = vpop.f32.mrf.mxu0
  %v1824 = vadd.f32 %v1751, %v1823
  %v1825 = vpop.f32.mrf.mxu0
  %1826 = vdwg.mxu0
  %v1827 = vadd.f32 %v1824, %v202
  %v1828 = vxor.u32 %v1827, 2147483648
  %v1829 = vmul.f32 %v1828, 1.442695
  %v1830 = vpow.pop %v1829
  %v1831 = vadd.f32 %v1830, 1.0
  %v1832 = vrcp.pop %v1831
  %v1833 = vmul.f32 1.0, %v1832
  %1834 = vrot.lane.b32.xlu0 %v1664, 16
  %v1835 = vpop.permute.xlu0 %1834
  %v1837 = vmul.f32 %v1833, %v1835
  %1839 = vrot.lane.b32.xlu0 %v1837, 112
  %v1840 = vpop.permute.xlu0 %1839
  %v1841 = vsel %vm51, %v1840, 0
  %1843 = vmatprep.subr.mxu0 0.0
  %1844 = vmatpush1.msra.mxu0 0.0
  %1845 = vmatprep.subr.mxu0 0.0
  %1846 = vmatpush1.msra.mxu0 0.0
  %1847 = vmatprep.subr.mxu0 0.0
  %1848 = vmatpush1.msra.mxu0 0.0
  %1849 = vmatprep.subr.mxu0 0.0
  %1850 = vmatpush1.msra.mxu0 0.0
  %1851 = vmatprep.subr.mxu0 0.0
  %1852 = vmatpush1.msra.mxu0 0.0
  %1853 = vmatprep.subr.mxu0 0.0
  %1854 = vmatpush1.msra.mxu0 0.0
  %1855 = vmatprep.subr.mxu0 0.0
  %1856 = vmatpush1.msra.mxu0 0.0
  %1857 = vmatprep.subr.mxu0 0.0
  %1858 = vmatpush1.msra.mxu0 0.0
  %1859 = vmatprep.subr.mxu0 0.0
  %1860 = vmatpush1.msra.mxu0 0.0
  %1861 = vmatprep.subr.mxu0 0.0
  %1862 = vmatpush1.msra.mxu0 0.0
  %1863 = vmatprep.subr.mxu0 0.0
  %1864 = vmatpush1.msra.mxu0 0.0
  %1865 = vmatprep.subr.mxu0 0.0
  %1866 = vmatpush1.msra.mxu0 0.0
  %1867 = vmatprep.subr.mxu0 0.0
  %1868 = vmatpush1.msra.mxu0 0.0
  %1869 = vmatprep.subr.mxu0 0.0
  %1870 = vmatpush1.msra.mxu0 0.0
  %1871 = vmatprep.subr.mxu0 0.0
  %1872 = vmatpush1.msra.mxu0 %v37
  %1873 = vmatprep.subr.mxu0 0.0
  %1874 = vmatpush1.msra.mxu0 %v36
  %1875 = vmatprep.subr.mxu0 0.0
  %1876 = vmatpush2.msra.mxu0 0.0
  %1877 = vmatprep.subr.mxu0 0.0
  %1878 = vmatpush2.msra.mxu0 0.0
  %1879 = vmatprep.subr.mxu0 0.0
  %1880 = vmatpush2.msra.mxu0 0.0
  %1881 = vmatprep.subr.mxu0 0.0
  %1882 = vmatpush2.msra.mxu0 0.0
  %1883 = vmatprep.subr.mxu0 0.0
  %1884 = vmatpush2.msra.mxu0 0.0
  %1885 = vmatprep.subr.mxu0 0.0
  %1886 = vmatpush2.msra.mxu0 0.0
  %1887 = vmatprep.subr.mxu0 0.0
  %1888 = vmatpush2.msra.mxu0 0.0
  %1889 = vmatprep.subr.mxu0 0.0
  %1890 = vmatpush2.msra.mxu0 0.0
  %1891 = vmatprep.subr.mxu0 0.0
  %1892 = vmatpush2.msra.mxu0 0.0
  %1893 = vmatprep.subr.mxu0 0.0
  %1894 = vmatpush2.msra.mxu0 0.0
  %1895 = vmatprep.subr.mxu0 0.0
  %1896 = vmatpush2.msra.mxu0 0.0
  %1897 = vmatprep.subr.mxu0 0.0
  %1898 = vmatpush2.msra.mxu0 0.0
  %1899 = vmatprep.subr.mxu0 0.0
  %1900 = vmatpush2.msra.mxu0 0.0
  %1901 = vmatprep.subr.mxu0 0.0
  %1902 = vmatpush2.msra.mxu0 0.0
  %1903 = vmatprep.subr.mxu0 0.0
  %1904 = vmatpush2.msra.mxu0 0.0
  %1905 = vmatprep.subr.mxu0 0.0
  %1906 = vmatpush2.msra.mxu0 0.0
  %1907 = vmatprep.mubr.f32.mxu0 0.0
  %1908 = vmatmul.mubr.f32.gmra.mxu0 %v1841
  %v1909 = vpop.f32.mrf.mxu0
  %v1910 = vadd.f32 0.0, %v1909
  %v1911 = vpop.f32.mrf.mxu0
  %1912 = vdwg.mxu0
  %1913 = vmatprep.subr.mxu0 0.0
  %1914 = vmatpush1.msra.mxu0 0.0
  %1915 = vmatprep.subr.mxu0 0.0
  %1916 = vmatpush1.msra.mxu0 0.0
  %1917 = vmatprep.subr.mxu0 0.0
  %1918 = vmatpush1.msra.mxu0 0.0
  %1919 = vmatprep.subr.mxu0 0.0
  %1920 = vmatpush1.msra.mxu0 0.0
  %1921 = vmatprep.subr.mxu0 0.0
  %1922 = vmatpush1.msra.mxu0 0.0
  %1923 = vmatprep.subr.mxu0 0.0
  %1924 = vmatpush1.msra.mxu0 0.0
  %1925 = vmatprep.subr.mxu0 0.0
  %1926 = vmatpush1.msra.mxu0 0.0
  %1927 = vmatprep.subr.mxu0 0.0
  %1928 = vmatpush1.msra.mxu0 0.0
  %1929 = vmatprep.subr.mxu0 0.0
  %1930 = vmatpush1.msra.mxu0 0.0
  %1931 = vmatprep.subr.mxu0 0.0
  %1932 = vmatpush1.msra.mxu0 0.0
  %1933 = vmatprep.subr.mxu0 0.0
  %1934 = vmatpush1.msra.mxu0 0.0
  %1935 = vmatprep.subr.mxu0 0.0
  %1936 = vmatpush1.msra.mxu0 0.0
  %1937 = vmatprep.subr.mxu0 0.0
  %1938 = vmatpush1.msra.mxu0 0.0
  %1939 = vmatprep.subr.mxu0 0.0
  %1940 = vmatpush1.msra.mxu0 0.0
  %1941 = vmatprep.subr.mxu0 0.0
  %1942 = vmatpush1.msra.mxu0 %v35
  %1943 = vmatprep.subr.mxu0 0.0
  %1944 = vmatpush1.msra.mxu0 %v34
  %1945 = vmatprep.subr.mxu0 0.0
  %1946 = vmatpush2.msra.mxu0 0.0
  %1947 = vmatprep.subr.mxu0 0.0
  %1948 = vmatpush2.msra.mxu0 0.0
  %1949 = vmatprep.subr.mxu0 0.0
  %1950 = vmatpush2.msra.mxu0 0.0
  %1951 = vmatprep.subr.mxu0 0.0
  %1952 = vmatpush2.msra.mxu0 0.0
  %1953 = vmatprep.subr.mxu0 0.0
  %1954 = vmatpush2.msra.mxu0 0.0
  %1955 = vmatprep.subr.mxu0 0.0
  %1956 = vmatpush2.msra.mxu0 0.0
  %1957 = vmatprep.subr.mxu0 0.0
  %1958 = vmatpush2.msra.mxu0 0.0
  %1959 = vmatprep.subr.mxu0 0.0
  %1960 = vmatpush2.msra.mxu0 0.0
  %1961 = vmatprep.subr.mxu0 0.0
  %1962 = vmatpush2.msra.mxu0 0.0
  %1963 = vmatprep.subr.mxu0 0.0
  %1964 = vmatpush2.msra.mxu0 0.0
  %1965 = vmatprep.subr.mxu0 0.0
  %1966 = vmatpush2.msra.mxu0 0.0
  %1967 = vmatprep.subr.mxu0 0.0
  %1968 = vmatpush2.msra.mxu0 0.0
  %1969 = vmatprep.subr.mxu0 0.0
  %1970 = vmatpush2.msra.mxu0 0.0
  %1971 = vmatprep.subr.mxu0 0.0
  %1972 = vmatpush2.msra.mxu0 0.0
  %1973 = vmatprep.subr.mxu0 0.0
  %1974 = vmatpush2.msra.mxu0 0.0
  %1975 = vmatprep.subr.mxu0 0.0
  %1976 = vmatpush2.msra.mxu0 0.0
  %1977 = vmatprep.mubr.f32.mxu0 0.0
  %1978 = vmatmul.mubr.f32.gmra.mxu0 %v1755
  %v1979 = vpop.f32.mrf.mxu0
  %v1980 = vadd.f32 %v1910, %v1979
  %v1981 = vpop.f32.mrf.mxu0
  %1982 = vdwg.mxu0
  %v1983 = vadd.f32 %v1980, %v361
  %v1984 = vtanh.pop %v1983
  %v1985 = vsub.f32 1.0, %v1833
  %v1986 = vmul.f32 %v1985, %v1664
  %v1987 = vmul.f32 %v1833, %v1984
  %v1988 = vadd.f32 %v1986, %v1987
  %s1989 = scalar_lea.vmem %s8, 10
  %1990 = vst.msk [vmem:[%s1989] sm:$0x3] %vm369, %v1988
  %s1991 = scalar_lea.vmem %s1, 12
  %v1992 = vld [vmem:[%s1991] sm:$0x3]
  %s1993 = scalar_lea.vmem %s0, 12
  %v1994 = vld [vmem:[%s1993] sm:$0x3]
  %v1995 = vmul.f32 %v1994, %v1992
  %v1996 = vsub.f32 1.0, %v1992
  %v1997 = vmul.f32 %v1988, %v1996
  %v1998 = vadd.f32 %v1995, %v1997
  %v1999 = vxor.u32 %v1998, 2147483648
  %v2000 = vmul.f32 %v1999, 1.442695
  %v2001 = vpow.pop %v2000
  %v2002 = vadd.f32 %v2001, 1.0
  %v2003 = vrcp.pop %v2002
  %v2004 = vmul.f32 1.0, %v2003
  %v2006 = vsel %vm51, %v1988, 0
  %2008 = vmatprep.subr.mxu0 0.0
  %2009 = vmatpush1.msra.mxu0 0.0
  %2010 = vmatprep.subr.mxu0 0.0
  %2011 = vmatpush1.msra.mxu0 0.0
  %2012 = vmatprep.subr.mxu0 0.0
  %2013 = vmatpush1.msra.mxu0 0.0
  %2014 = vmatprep.subr.mxu0 0.0
  %2015 = vmatpush1.msra.mxu0 0.0
  %2016 = vmatprep.subr.mxu0 0.0
  %2017 = vmatpush1.msra.mxu0 0.0
  %2018 = vmatprep.subr.mxu0 0.0
  %2019 = vmatpush1.msra.mxu0 0.0
  %2020 = vmatprep.subr.mxu0 0.0
  %2021 = vmatpush1.msra.mxu0 0.0
  %2022 = vmatprep.subr.mxu0 0.0
  %2023 = vmatpush1.msra.mxu0 0.0
  %2024 = vmatprep.subr.mxu0 0.0
  %2025 = vmatpush1.msra.mxu0 0.0
  %2026 = vmatprep.subr.mxu0 0.0
  %2027 = vmatpush1.msra.mxu0 0.0
  %2028 = vmatprep.subr.mxu0 0.0
  %2029 = vmatpush1.msra.mxu0 0.0
  %2030 = vmatprep.subr.mxu0 0.0
  %2031 = vmatpush1.msra.mxu0 0.0
  %2032 = vmatprep.subr.mxu0 0.0
  %2033 = vmatpush1.msra.mxu0 0.0
  %2034 = vmatprep.subr.mxu0 0.0
  %2035 = vmatpush1.msra.mxu0 0.0
  %2036 = vmatprep.subr.mxu0 0.0
  %2037 = vmatpush1.msra.mxu0 %v32
  %2038 = vmatprep.subr.mxu0 0.0
  %2039 = vmatpush1.msra.mxu0 %v31
  %2040 = vmatprep.subr.mxu0 0.0
  %2041 = vmatpush2.msra.mxu0 0.0
  %2042 = vmatprep.subr.mxu0 0.0
  %2043 = vmatpush2.msra.mxu0 0.0
  %2044 = vmatprep.subr.mxu0 0.0
  %2045 = vmatpush2.msra.mxu0 0.0
  %2046 = vmatprep.subr.mxu0 0.0
  %2047 = vmatpush2.msra.mxu0 0.0
  %2048 = vmatprep.subr.mxu0 0.0
  %2049 = vmatpush2.msra.mxu0 0.0
  %2050 = vmatprep.subr.mxu0 0.0
  %2051 = vmatpush2.msra.mxu0 0.0
  %2052 = vmatprep.subr.mxu0 0.0
  %2053 = vmatpush2.msra.mxu0 0.0
  %2054 = vmatprep.subr.mxu0 0.0
  %2055 = vmatpush2.msra.mxu0 0.0
  %2056 = vmatprep.subr.mxu0 0.0
  %2057 = vmatpush2.msra.mxu0 0.0
  %2058 = vmatprep.subr.mxu0 0.0
  %2059 = vmatpush2.msra.mxu0 0.0
  %2060 = vmatprep.subr.mxu0 0.0
  %2061 = vmatpush2.msra.mxu0 0.0
  %2062 = vmatprep.subr.mxu0 0.0
  %2063 = vmatpush2.msra.mxu0 0.0
  %2064 = vmatprep.subr.mxu0 0.0
  %2065 = vmatpush2.msra.mxu0 0.0
  %2066 = vmatprep.subr.mxu0 0.0
  %2067 = vmatpush2.msra.mxu0 0.0
  %2068 = vmatprep.subr.mxu0 0.0
  %2069 = vmatpush2.msra.mxu0 0.0
  %2070 = vmatprep.subr.mxu0 0.0
  %2071 = vmatpush2.msra.mxu0 0.0
  %2072 = vmatprep.mubr.f32.mxu0 0.0
  %2073 = vmatmul.mubr.f32.gmra.mxu0 %v2006
  %v2074 = vpop.f32.mrf.mxu0
  %v2075 = vadd.f32 0.0, %v2074
  %v2076 = vpop.f32.mrf.mxu0
  %2077 = vdwg.mxu0
  %v2079 = vsel %vm51, %v2004, 0
  %2081 = vmatprep.subr.mxu0 0.0
  %2082 = vmatpush1.msra.mxu0 0.0
  %2083 = vmatprep.subr.mxu0 0.0
  %2084 = vmatpush1.msra.mxu0 0.0
  %2085 = vmatprep.subr.mxu0 0.0
  %2086 = vmatpush1.msra.mxu0 0.0
  %2087 = vmatprep.subr.mxu0 0.0
  %2088 = vmatpush1.msra.mxu0 0.0
  %2089 = vmatprep.subr.mxu0 0.0
  %2090 = vmatpush1.msra.mxu0 0.0
  %2091 = vmatprep.subr.mxu0 0.0
  %2092 = vmatpush1.msra.mxu0 0.0
  %2093 = vmatprep.subr.mxu0 0.0
  %2094 = vmatpush1.msra.mxu0 0.0
  %2095 = vmatprep.subr.mxu0 0.0
  %2096 = vmatpush1.msra.mxu0 0.0
  %2097 = vmatprep.subr.mxu0 0.0
  %2098 = vmatpush1.msra.mxu0 0.0
  %2099 = vmatprep.subr.mxu0 0.0
  %2100 = vmatpush1.msra.mxu0 0.0
  %2101 = vmatprep.subr.mxu0 0.0
  %2102 = vmatpush1.msra.mxu0 0.0
  %2103 = vmatprep.subr.mxu0 0.0
  %2104 = vmatpush1.msra.mxu0 0.0
  %2105 = vmatprep.subr.mxu0 0.0
  %2106 = vmatpush1.msra.mxu0 0.0
  %2107 = vmatprep.subr.mxu0 0.0
  %2108 = vmatpush1.msra.mxu0 0.0
  %2109 = vmatprep.subr.mxu0 0.0
  %2110 = vmatpush1.msra.mxu0 %v30
  %2111 = vmatprep.subr.mxu0 0.0
  %2112 = vmatpush1.msra.mxu0 %v29
  %2113 = vmatprep.subr.mxu0 0.0
  %2114 = vmatpush2.msra.mxu0 0.0
  %2115 = vmatprep.subr.mxu0 0.0
  %2116 = vmatpush2.msra.mxu0 0.0
  %2117 = vmatprep.subr.mxu0 0.0
  %2118 = vmatpush2.msra.mxu0 0.0
  %2119 = vmatprep.subr.mxu0 0.0
  %2120 = vmatpush2.msra.mxu0 0.0
  %2121 = vmatprep.subr.mxu0 0.0
  %2122 = vmatpush2.msra.mxu0 0.0
  %2123 = vmatprep.subr.mxu0 0.0
  %2124 = vmatpush2.msra.mxu0 0.0
  %2125 = vmatprep.subr.mxu0 0.0
  %2126 = vmatpush2.msra.mxu0 0.0
  %2127 = vmatprep.subr.mxu0 0.0
  %2128 = vmatpush2.msra.mxu0 0.0
  %2129 = vmatprep.subr.mxu0 0.0
  %2130 = vmatpush2.msra.mxu0 0.0
  %2131 = vmatprep.subr.mxu0 0.0
  %2132 = vmatpush2.msra.mxu0 0.0
  %2133 = vmatprep.subr.mxu0 0.0
  %2134 = vmatpush2.msra.mxu0 0.0
  %2135 = vmatprep.subr.mxu0 0.0
  %2136 = vmatpush2.msra.mxu0 0.0
  %2137 = vmatprep.subr.mxu0 0.0
  %2138 = vmatpush2.msra.mxu0 0.0
  %2139 = vmatprep.subr.mxu0 0.0
  %2140 = vmatpush2.msra.mxu0 0.0
  %2141 = vmatprep.subr.mxu0 0.0
  %2142 = vmatpush2.msra.mxu0 0.0
  %2143 = vmatprep.subr.mxu0 0.0
  %2144 = vmatpush2.msra.mxu0 0.0
  %2145 = vmatprep.mubr.f32.mxu0 0.0
  %2146 = vmatmul.mubr.f32.gmra.mxu0 %v2079
  %v2147 = vpop.f32.mrf.mxu0
  %v2148 = vadd.f32 %v2075, %v2147
  %v2149 = vpop.f32.mrf.mxu0
  %2150 = vdwg.mxu0
  %v2151 = vadd.f32 %v2148, %v202
  %v2152 = vxor.u32 %v2151, 2147483648
  %v2153 = vmul.f32 %v2152, 1.442695
  %v2154 = vpow.pop %v2153
  %v2155 = vadd.f32 %v2154, 1.0
  %v2156 = vrcp.pop %v2155
  %v2157 = vmul.f32 1.0, %v2156
  %2158 = vrot.lane.b32.xlu0 %v1988, 16
  %v2159 = vpop.permute.xlu0 %2158
  %v2161 = vmul.f32 %v2157, %v2159
  %2163 = vrot.lane.b32.xlu0 %v2161, 112
  %v2164 = vpop.permute.xlu0 %2163
  %v2165 = vsel %vm51, %v2164, 0
  %2167 = vmatprep.subr.mxu0 0.0
  %2168 = vmatpush1.msra.mxu0 0.0
  %2169 = vmatprep.subr.mxu0 0.0
  %2170 = vmatpush1.msra.mxu0 0.0
  %2171 = vmatprep.subr.mxu0 0.0
  %2172 = vmatpush1.msra.mxu0 0.0
  %2173 = vmatprep.subr.mxu0 0.0
  %2174 = vmatpush1.msra.mxu0 0.0
  %2175 = vmatprep.subr.mxu0 0.0
  %2176 = vmatpush1.msra.mxu0 0.0
  %2177 = vmatprep.subr.mxu0 0.0
  %2178 = vmatpush1.msra.mxu0 0.0
  %2179 = vmatprep.subr.mxu0 0.0
  %2180 = vmatpush1.msra.mxu0 0.0
  %2181 = vmatprep.subr.mxu0 0.0
  %2182 = vmatpush1.msra.mxu0 0.0
  %2183 = vmatprep.subr.mxu0 0.0
  %2184 = vmatpush1.msra.mxu0 0.0
  %2185 = vmatprep.subr.mxu0 0.0
  %2186 = vmatpush1.msra.mxu0 0.0
  %2187 = vmatprep.subr.mxu0 0.0
  %2188 = vmatpush1.msra.mxu0 0.0
  %2189 = vmatprep.subr.mxu0 0.0
  %2190 = vmatpush1.msra.mxu0 0.0
  %2191 = vmatprep.subr.mxu0 0.0
  %2192 = vmatpush1.msra.mxu0 0.0
  %2193 = vmatprep.subr.mxu0 0.0
  %2194 = vmatpush1.msra.mxu0 0.0
  %2195 = vmatprep.subr.mxu0 0.0
  %2196 = vmatpush1.msra.mxu0 %v37
  %2197 = vmatprep.subr.mxu0 0.0
  %2198 = vmatpush1.msra.mxu0 %v36
  %2199 = vmatprep.subr.mxu0 0.0
  %2200 = vmatpush2.msra.mxu0 0.0
  %2201 = vmatprep.subr.mxu0 0.0
  %2202 = vmatpush2.msra.mxu0 0.0
  %2203 = vmatprep.subr.mxu0 0.0
  %2204 = vmatpush2.msra.mxu0 0.0
  %2205 = vmatprep.subr.mxu0 0.0
  %2206 = vmatpush2.msra.mxu0 0.0
  %2207 = vmatprep.subr.mxu0 0.0
  %2208 = vmatpush2.msra.mxu0 0.0
  %2209 = vmatprep.subr.mxu0 0.0
  %2210 = vmatpush2.msra.mxu0 0.0
  %2211 = vmatprep.subr.mxu0 0.0
  %2212 = vmatpush2.msra.mxu0 0.0
  %2213 = vmatprep.subr.mxu0 0.0
  %2214 = vmatpush2.msra.mxu0 0.0
  %2215 = vmatprep.subr.mxu0 0.0
  %2216 = vmatpush2.msra.mxu0 0.0
  %2217 = vmatprep.subr.mxu0 0.0
  %2218 = vmatpush2.msra.mxu0 0.0
  %2219 = vmatprep.subr.mxu0 0.0
  %2220 = vmatpush2.msra.mxu0 0.0
  %2221 = vmatprep.subr.mxu0 0.0
  %2222 = vmatpush2.msra.mxu0 0.0
  %2223 = vmatprep.subr.mxu0 0.0
  %2224 = vmatpush2.msra.mxu0 0.0
  %2225 = vmatprep.subr.mxu0 0.0
  %2226 = vmatpush2.msra.mxu0 0.0
  %2227 = vmatprep.subr.mxu0 0.0
  %2228 = vmatpush2.msra.mxu0 0.0
  %2229 = vmatprep.subr.mxu0 0.0
  %2230 = vmatpush2.msra.mxu0 0.0
  %2231 = vmatprep.mubr.f32.mxu0 0.0
  %2232 = vmatmul.mubr.f32.gmra.mxu0 %v2165
  %v2233 = vpop.f32.mrf.mxu0
  %v2234 = vadd.f32 0.0, %v2233
  %v2235 = vpop.f32.mrf.mxu0
  %2236 = vdwg.mxu0
  %2237 = vmatprep.subr.mxu0 0.0
  %2238 = vmatpush1.msra.mxu0 0.0
  %2239 = vmatprep.subr.mxu0 0.0
  %2240 = vmatpush1.msra.mxu0 0.0
  %2241 = vmatprep.subr.mxu0 0.0
  %2242 = vmatpush1.msra.mxu0 0.0
  %2243 = vmatprep.subr.mxu0 0.0
  %2244 = vmatpush1.msra.mxu0 0.0
  %2245 = vmatprep.subr.mxu0 0.0
  %2246 = vmatpush1.msra.mxu0 0.0
  %2247 = vmatprep.subr.mxu0 0.0
  %2248 = vmatpush1.msra.mxu0 0.0
  %2249 = vmatprep.subr.mxu0 0.0
  %2250 = vmatpush1.msra.mxu0 0.0
  %2251 = vmatprep.subr.mxu0 0.0
  %2252 = vmatpush1.msra.mxu0 0.0
  %2253 = vmatprep.subr.mxu0 0.0
  %2254 = vmatpush1.msra.mxu0 0.0
  %2255 = vmatprep.subr.mxu0 0.0
  %2256 = vmatpush1.msra.mxu0 0.0
  %2257 = vmatprep.subr.mxu0 0.0
  %2258 = vmatpush1.msra.mxu0 0.0
  %2259 = vmatprep.subr.mxu0 0.0
  %2260 = vmatpush1.msra.mxu0 0.0
  %2261 = vmatprep.subr.mxu0 0.0
  %2262 = vmatpush1.msra.mxu0 0.0
  %2263 = vmatprep.subr.mxu0 0.0
  %2264 = vmatpush1.msra.mxu0 0.0
  %2265 = vmatprep.subr.mxu0 0.0
  %2266 = vmatpush1.msra.mxu0 %v35
  %2267 = vmatprep.subr.mxu0 0.0
  %2268 = vmatpush1.msra.mxu0 %v34
  %2269 = vmatprep.subr.mxu0 0.0
  %2270 = vmatpush2.msra.mxu0 0.0
  %2271 = vmatprep.subr.mxu0 0.0
  %2272 = vmatpush2.msra.mxu0 0.0
  %2273 = vmatprep.subr.mxu0 0.0
  %2274 = vmatpush2.msra.mxu0 0.0
  %2275 = vmatprep.subr.mxu0 0.0
  %2276 = vmatpush2.msra.mxu0 0.0
  %2277 = vmatprep.subr.mxu0 0.0
  %2278 = vmatpush2.msra.mxu0 0.0
  %2279 = vmatprep.subr.mxu0 0.0
  %2280 = vmatpush2.msra.mxu0 0.0
  %2281 = vmatprep.subr.mxu0 0.0
  %2282 = vmatpush2.msra.mxu0 0.0
  %2283 = vmatprep.subr.mxu0 0.0
  %2284 = vmatpush2.msra.mxu0 0.0
  %2285 = vmatprep.subr.mxu0 0.0
  %2286 = vmatpush2.msra.mxu0 0.0
  %2287 = vmatprep.subr.mxu0 0.0
  %2288 = vmatpush2.msra.mxu0 0.0
  %2289 = vmatprep.subr.mxu0 0.0
  %2290 = vmatpush2.msra.mxu0 0.0
  %2291 = vmatprep.subr.mxu0 0.0
  %2292 = vmatpush2.msra.mxu0 0.0
  %2293 = vmatprep.subr.mxu0 0.0
  %2294 = vmatpush2.msra.mxu0 0.0
  %2295 = vmatprep.subr.mxu0 0.0
  %2296 = vmatpush2.msra.mxu0 0.0
  %2297 = vmatprep.subr.mxu0 0.0
  %2298 = vmatpush2.msra.mxu0 0.0
  %2299 = vmatprep.subr.mxu0 0.0
  %2300 = vmatpush2.msra.mxu0 0.0
  %2301 = vmatprep.mubr.f32.mxu0 0.0
  %2302 = vmatmul.mubr.f32.gmra.mxu0 %v2079
  %v2303 = vpop.f32.mrf.mxu0
  %v2304 = vadd.f32 %v2234, %v2303
  %v2305 = vpop.f32.mrf.mxu0
  %2306 = vdwg.mxu0
  %v2307 = vadd.f32 %v2304, %v361
  %v2308 = vtanh.pop %v2307
  %v2309 = vsub.f32 1.0, %v2157
  %v2310 = vmul.f32 %v2309, %v1988
  %v2311 = vmul.f32 %v2157, %v2308
  %v2312 = vadd.f32 %v2310, %v2311
  %s2313 = scalar_lea.vmem %s8, 12
  %2314 = vst.msk [vmem:[%s2313] sm:$0x3] %vm369, %v2312
  %s2315 = scalar_lea.vmem %s1, 14
  %v2316 = vld [vmem:[%s2315] sm:$0x3]
  %s2317 = scalar_lea.vmem %s0, 14
  %v2318 = vld [vmem:[%s2317] sm:$0x3]
  %v2319 = vmul.f32 %v2318, %v2316
  %v2320 = vsub.f32 1.0, %v2316
  %v2321 = vmul.f32 %v2312, %v2320
  %v2322 = vadd.f32 %v2319, %v2321
  %v2323 = vxor.u32 %v2322, 2147483648
  %v2324 = vmul.f32 %v2323, 1.442695
  %v2325 = vpow.pop %v2324
  %v2326 = vadd.f32 %v2325, 1.0
  %v2327 = vrcp.pop %v2326
  %v2328 = vmul.f32 1.0, %v2327
  %v2330 = vsel %vm51, %v2312, 0
  %2332 = vmatprep.subr.mxu0 0.0
  %2333 = vmatpush1.msra.mxu0 0.0
  %2334 = vmatprep.subr.mxu0 0.0
  %2335 = vmatpush1.msra.mxu0 0.0
  %2336 = vmatprep.subr.mxu0 0.0
  %2337 = vmatpush1.msra.mxu0 0.0
  %2338 = vmatprep.subr.mxu0 0.0
  %2339 = vmatpush1.msra.mxu0 0.0
  %2340 = vmatprep.subr.mxu0 0.0
  %2341 = vmatpush1.msra.mxu0 0.0
  %2342 = vmatprep.subr.mxu0 0.0
  %2343 = vmatpush1.msra.mxu0 0.0
  %2344 = vmatprep.subr.mxu0 0.0
  %2345 = vmatpush1.msra.mxu0 0.0
  %2346 = vmatprep.subr.mxu0 0.0
  %2347 = vmatpush1.msra.mxu0 0.0
  %2348 = vmatprep.subr.mxu0 0.0
  %2349 = vmatpush1.msra.mxu0 0.0
  %2350 = vmatprep.subr.mxu0 0.0
  %2351 = vmatpush1.msra.mxu0 0.0
  %2352 = vmatprep.subr.mxu0 0.0
  %2353 = vmatpush1.msra.mxu0 0.0
  %2354 = vmatprep.subr.mxu0 0.0
  %2355 = vmatpush1.msra.mxu0 0.0
  %2356 = vmatprep.subr.mxu0 0.0
  %2357 = vmatpush1.msra.mxu0 0.0
  %2358 = vmatprep.subr.mxu0 0.0
  %2359 = vmatpush1.msra.mxu0 0.0
  %2360 = vmatprep.subr.mxu0 0.0
  %2361 = vmatpush1.msra.mxu0 %v32
  %2362 = vmatprep.subr.mxu0 0.0
  %2363 = vmatpush1.msra.mxu0 %v31
  %2364 = vmatprep.subr.mxu0 0.0
  %2365 = vmatpush2.msra.mxu0 0.0
  %2366 = vmatprep.subr.mxu0 0.0
  %2367 = vmatpush2.msra.mxu0 0.0
  %2368 = vmatprep.subr.mxu0 0.0
  %2369 = vmatpush2.msra.mxu0 0.0
  %2370 = vmatprep.subr.mxu0 0.0
  %2371 = vmatpush2.msra.mxu0 0.0
  %2372 = vmatprep.subr.mxu0 0.0
  %2373 = vmatpush2.msra.mxu0 0.0
  %2374 = vmatprep.subr.mxu0 0.0
  %2375 = vmatpush2.msra.mxu0 0.0
  %2376 = vmatprep.subr.mxu0 0.0
  %2377 = vmatpush2.msra.mxu0 0.0
  %2378 = vmatprep.subr.mxu0 0.0
  %2379 = vmatpush2.msra.mxu0 0.0
  %2380 = vmatprep.subr.mxu0 0.0
  %2381 = vmatpush2.msra.mxu0 0.0
  %2382 = vmatprep.subr.mxu0 0.0
  %2383 = vmatpush2.msra.mxu0 0.0
  %2384 = vmatprep.subr.mxu0 0.0
  %2385 = vmatpush2.msra.mxu0 0.0
  %2386 = vmatprep.subr.mxu0 0.0
  %2387 = vmatpush2.msra.mxu0 0.0
  %2388 = vmatprep.subr.mxu0 0.0
  %2389 = vmatpush2.msra.mxu0 0.0
  %2390 = vmatprep.subr.mxu0 0.0
  %2391 = vmatpush2.msra.mxu0 0.0
  %2392 = vmatprep.subr.mxu0 0.0
  %2393 = vmatpush2.msra.mxu0 0.0
  %2394 = vmatprep.subr.mxu0 0.0
  %2395 = vmatpush2.msra.mxu0 0.0
  %2396 = vmatprep.mubr.f32.mxu0 0.0
  %2397 = vmatmul.mubr.f32.gmra.mxu0 %v2330
  %v2398 = vpop.f32.mrf.mxu0
  %v2399 = vadd.f32 0.0, %v2398
  %v2400 = vpop.f32.mrf.mxu0
  %2401 = vdwg.mxu0
  %v2403 = vsel %vm51, %v2328, 0
  %2405 = vmatprep.subr.mxu0 0.0
  %2406 = vmatpush1.msra.mxu0 0.0
  %2407 = vmatprep.subr.mxu0 0.0
  %2408 = vmatpush1.msra.mxu0 0.0
  %2409 = vmatprep.subr.mxu0 0.0
  %2410 = vmatpush1.msra.mxu0 0.0
  %2411 = vmatprep.subr.mxu0 0.0
  %2412 = vmatpush1.msra.mxu0 0.0
  %2413 = vmatprep.subr.mxu0 0.0
  %2414 = vmatpush1.msra.mxu0 0.0
  %2415 = vmatprep.subr.mxu0 0.0
  %2416 = vmatpush1.msra.mxu0 0.0
  %2417 = vmatprep.subr.mxu0 0.0
  %2418 = vmatpush1.msra.mxu0 0.0
  %2419 = vmatprep.subr.mxu0 0.0
  %2420 = vmatpush1.msra.mxu0 0.0
  %2421 = vmatprep.subr.mxu0 0.0
  %2422 = vmatpush1.msra.mxu0 0.0
  %2423 = vmatprep.subr.mxu0 0.0
  %2424 = vmatpush1.msra.mxu0 0.0
  %2425 = vmatprep.subr.mxu0 0.0
  %2426 = vmatpush1.msra.mxu0 0.0
  %2427 = vmatprep.subr.mxu0 0.0
  %2428 = vmatpush1.msra.mxu0 0.0
  %2429 = vmatprep.subr.mxu0 0.0
  %2430 = vmatpush1.msra.mxu0 0.0
  %2431 = vmatprep.subr.mxu0 0.0
  %2432 = vmatpush1.msra.mxu0 0.0
  %2433 = vmatprep.subr.mxu0 0.0
  %2434 = vmatpush1.msra.mxu0 %v30
  %2435 = vmatprep.subr.mxu0 0.0
  %2436 = vmatpush1.msra.mxu0 %v29
  %2437 = vmatprep.subr.mxu0 0.0
  %2438 = vmatpush2.msra.mxu0 0.0
  %2439 = vmatprep.subr.mxu0 0.0
  %2440 = vmatpush2.msra.mxu0 0.0
  %2441 = vmatprep.subr.mxu0 0.0
  %2442 = vmatpush2.msra.mxu0 0.0
  %2443 = vmatprep.subr.mxu0 0.0
  %2444 = vmatpush2.msra.mxu0 0.0
  %2445 = vmatprep.subr.mxu0 0.0
  %2446 = vmatpush2.msra.mxu0 0.0
  %2447 = vmatprep.subr.mxu0 0.0
  %2448 = vmatpush2.msra.mxu0 0.0
  %2449 = vmatprep.subr.mxu0 0.0
  %2450 = vmatpush2.msra.mxu0 0.0
  %2451 = vmatprep.subr.mxu0 0.0
  %2452 = vmatpush2.msra.mxu0 0.0
  %2453 = vmatprep.subr.mxu0 0.0
  %2454 = vmatpush2.msra.mxu0 0.0
  %2455 = vmatprep.subr.mxu0 0.0
  %2456 = vmatpush2.msra.mxu0 0.0
  %2457 = vmatprep.subr.mxu0 0.0
  %2458 = vmatpush2.msra.mxu0 0.0
  %2459 = vmatprep.subr.mxu0 0.0
  %2460 = vmatpush2.msra.mxu0 0.0
  %2461 = vmatprep.subr.mxu0 0.0
  %2462 = vmatpush2.msra.mxu0 0.0
  %2463 = vmatprep.subr.mxu0 0.0
  %2464 = vmatpush2.msra.mxu0 0.0
  %2465 = vmatprep.subr.mxu0 0.0
  %2466 = vmatpush2.msra.mxu0 0.0
  %2467 = vmatprep.subr.mxu0 0.0
  %2468 = vmatpush2.msra.mxu0 0.0
  %2469 = vmatprep.mubr.f32.mxu0 0.0
  %2470 = vmatmul.mubr.f32.gmra.mxu0 %v2403
  %v2471 = vpop.f32.mrf.mxu0
  %v2472 = vadd.f32 %v2399, %v2471
  %v2473 = vpop.f32.mrf.mxu0
  %2474 = vdwg.mxu0
  %v2475 = vadd.f32 %v2472, %v202
  %v2476 = vxor.u32 %v2475, 2147483648
  %v2477 = vmul.f32 %v2476, 1.442695
  %v2478 = vpow.pop %v2477
  %v2479 = vadd.f32 %v2478, 1.0
  %v2480 = vrcp.pop %v2479
  %v2481 = vmul.f32 1.0, %v2480
  %2482 = vrot.lane.b32.xlu0 %v2312, 16
  %v2483 = vpop.permute.xlu0 %2482
  %v2485 = vmul.f32 %v2481, %v2483
  %2487 = vrot.lane.b32.xlu0 %v2485, 112
  %v2488 = vpop.permute.xlu0 %2487
  %v2489 = vsel %vm51, %v2488, 0
  %2491 = vmatprep.subr.mxu0 0.0
  %2492 = vmatpush1.msra.mxu0 0.0
  %2493 = vmatprep.subr.mxu0 0.0
  %2494 = vmatpush1.msra.mxu0 0.0
  %2495 = vmatprep.subr.mxu0 0.0
  %2496 = vmatpush1.msra.mxu0 0.0
  %2497 = vmatprep.subr.mxu0 0.0
  %2498 = vmatpush1.msra.mxu0 0.0
  %2499 = vmatprep.subr.mxu0 0.0
  %2500 = vmatpush1.msra.mxu0 0.0
  %2501 = vmatprep.subr.mxu0 0.0
  %2502 = vmatpush1.msra.mxu0 0.0
  %2503 = vmatprep.subr.mxu0 0.0
  %2504 = vmatpush1.msra.mxu0 0.0
  %2505 = vmatprep.subr.mxu0 0.0
  %2506 = vmatpush1.msra.mxu0 0.0
  %2507 = vmatprep.subr.mxu0 0.0
  %2508 = vmatpush1.msra.mxu0 0.0
  %2509 = vmatprep.subr.mxu0 0.0
  %2510 = vmatpush1.msra.mxu0 0.0
  %2511 = vmatprep.subr.mxu0 0.0
  %2512 = vmatpush1.msra.mxu0 0.0
  %2513 = vmatprep.subr.mxu0 0.0
  %2514 = vmatpush1.msra.mxu0 0.0
  %2515 = vmatprep.subr.mxu0 0.0
  %2516 = vmatpush1.msra.mxu0 0.0
  %2517 = vmatprep.subr.mxu0 0.0
  %2518 = vmatpush1.msra.mxu0 0.0
  %2519 = vmatprep.subr.mxu0 0.0
  %2520 = vmatpush1.msra.mxu0 %v37
  %2521 = vmatprep.subr.mxu0 0.0
  %2522 = vmatpush1.msra.mxu0 %v36
  %2523 = vmatprep.subr.mxu0 0.0
  %2524 = vmatpush2.msra.mxu0 0.0
  %2525 = vmatprep.subr.mxu0 0.0
  %2526 = vmatpush2.msra.mxu0 0.0
  %2527 = vmatprep.subr.mxu0 0.0
  %2528 = vmatpush2.msra.mxu0 0.0
  %2529 = vmatprep.subr.mxu0 0.0
  %2530 = vmatpush2.msra.mxu0 0.0
  %2531 = vmatprep.subr.mxu0 0.0
  %2532 = vmatpush2.msra.mxu0 0.0
  %2533 = vmatprep.subr.mxu0 0.0
  %2534 = vmatpush2.msra.mxu0 0.0
  %2535 = vmatprep.subr.mxu0 0.0
  %2536 = vmatpush2.msra.mxu0 0.0
  %2537 = vmatprep.subr.mxu0 0.0
  %2538 = vmatpush2.msra.mxu0 0.0
  %2539 = vmatprep.subr.mxu0 0.0
  %2540 = vmatpush2.msra.mxu0 0.0
  %2541 = vmatprep.subr.mxu0 0.0
  %2542 = vmatpush2.msra.mxu0 0.0
  %2543 = vmatprep.subr.mxu0 0.0
  %2544 = vmatpush2.msra.mxu0 0.0
  %2545 = vmatprep.subr.mxu0 0.0
  %2546 = vmatpush2.msra.mxu0 0.0
  %2547 = vmatprep.subr.mxu0 0.0
  %2548 = vmatpush2.msra.mxu0 0.0
  %2549 = vmatprep.subr.mxu0 0.0
  %2550 = vmatpush2.msra.mxu0 0.0
  %2551 = vmatprep.subr.mxu0 0.0
  %2552 = vmatpush2.msra.mxu0 0.0
  %2553 = vmatprep.subr.mxu0 0.0
  %2554 = vmatpush2.msra.mxu0 0.0
  %2555 = vmatprep.mubr.f32.mxu0 0.0
  %2556 = vmatmul.mubr.f32.gmra.mxu0 %v2489
  %v2557 = vpop.f32.mrf.mxu0
  %v2558 = vadd.f32 0.0, %v2557
  %v2559 = vpop.f32.mrf.mxu0
  %2560 = vdwg.mxu0
  %2561 = vmatprep.subr.mxu0 0.0
  %2562 = vmatpush1.msra.mxu0 0.0
  %2563 = vmatprep.subr.mxu0 0.0
  %2564 = vmatpush1.msra.mxu0 0.0
  %2565 = vmatprep.subr.mxu0 0.0
  %2566 = vmatpush1.msra.mxu0 0.0
  %2567 = vmatprep.subr.mxu0 0.0
  %2568 = vmatpush1.msra.mxu0 0.0
  %2569 = vmatprep.subr.mxu0 0.0
  %2570 = vmatpush1.msra.mxu0 0.0
  %2571 = vmatprep.subr.mxu0 0.0
  %2572 = vmatpush1.msra.mxu0 0.0
  %2573 = vmatprep.subr.mxu0 0.0
  %2574 = vmatpush1.msra.mxu0 0.0
  %2575 = vmatprep.subr.mxu0 0.0
  %2576 = vmatpush1.msra.mxu0 0.0
  %2577 = vmatprep.subr.mxu0 0.0
  %2578 = vmatpush1.msra.mxu0 0.0
  %2579 = vmatprep.subr.mxu0 0.0
  %2580 = vmatpush1.msra.mxu0 0.0
  %2581 = vmatprep.subr.mxu0 0.0
  %2582 = vmatpush1.msra.mxu0 0.0
  %2583 = vmatprep.subr.mxu0 0.0
  %2584 = vmatpush1.msra.mxu0 0.0
  %2585 = vmatprep.subr.mxu0 0.0
  %2586 = vmatpush1.msra.mxu0 0.0
  %2587 = vmatprep.subr.mxu0 0.0
  %2588 = vmatpush1.msra.mxu0 0.0
  %2589 = vmatprep.subr.mxu0 0.0
  %2590 = vmatpush1.msra.mxu0 %v35
  %2591 = vmatprep.subr.mxu0 0.0
  %2592 = vmatpush1.msra.mxu0 %v34
  %2593 = vmatprep.subr.mxu0 0.0
  %2594 = vmatpush2.msra.mxu0 0.0
  %2595 = vmatprep.subr.mxu0 0.0
  %2596 = vmatpush2.msra.mxu0 0.0
  %2597 = vmatprep.subr.mxu0 0.0
  %2598 = vmatpush2.msra.mxu0 0.0
  %2599 = vmatprep.subr.mxu0 0.0
  %2600 = vmatpush2.msra.mxu0 0.0
  %2601 = vmatprep.subr.mxu0 0.0
  %2602 = vmatpush2.msra.mxu0 0.0
  %2603 = vmatprep.subr.mxu0 0.0
  %2604 = vmatpush2.msra.mxu0 0.0
  %2605 = vmatprep.subr.mxu0 0.0
  %2606 = vmatpush2.msra.mxu0 0.0
  %2607 = vmatprep.subr.mxu0 0.0
  %2608 = vmatpush2.msra.mxu0 0.0
  %2609 = vmatprep.subr.mxu0 0.0
  %2610 = vmatpush2.msra.mxu0 0.0
  %2611 = vmatprep.subr.mxu0 0.0
  %2612 = vmatpush2.msra.mxu0 0.0
  %2613 = vmatprep.subr.mxu0 0.0
  %2614 = vmatpush2.msra.mxu0 0.0
  %2615 = vmatprep.subr.mxu0 0.0
  %2616 = vmatpush2.msra.mxu0 0.0
  %2617 = vmatprep.subr.mxu0 0.0
  %2618 = vmatpush2.msra.mxu0 0.0
  %2619 = vmatprep.subr.mxu0 0.0
  %2620 = vmatpush2.msra.mxu0 0.0
  %2621 = vmatprep.subr.mxu0 0.0
  %2622 = vmatpush2.msra.mxu0 0.0
  %2623 = vmatprep.subr.mxu0 0.0
  %2624 = vmatpush2.msra.mxu0 0.0
  %2625 = vmatprep.mubr.f32.mxu0 0.0
  %2626 = vmatmul.mubr.f32.gmra.mxu0 %v2403
  %v2627 = vpop.f32.mrf.mxu0
  %v2628 = vadd.f32 %v2558, %v2627
  %v2629 = vpop.f32.mrf.mxu0
  %2630 = vdwg.mxu0
  %v2631 = vadd.f32 %v2628, %v361
  %v2632 = vtanh.pop %v2631
  %v2633 = vsub.f32 1.0, %v2481
  %v2634 = vmul.f32 %v2633, %v2312
  %v2635 = vmul.f32 %v2481, %v2632
  %v2636 = vadd.f32 %v2634, %v2635
  %s2637 = scalar_lea.vmem %s8, 14
  %2638 = vst.msk [vmem:[%s2637] sm:$0x3] %vm369, %v2636
  // Predicated region
  $region34: #{slmgnn_forward.6} parent=0 // pred_check
    _
  $region35: #{slmgnn_forward.6} parent=0 // pred_check_branch
    %2640 = sbr.rel (0) target = $region37
  $region36: #{slmgnn_forward.6} parent=0 // pred_region
    _
  $region37: #{slmgnn_forward.6} parent=0 // pred_fallthru
    _
  // Predicated region
  $region38: #{slmgnn_forward.6} parent=0 // pred_check
    _
  $region39: #{slmgnn_forward.6} parent=0 // pred_check_branch
    %2642 = sbr.rel (0) target = $region41
  $region40: #{slmgnn_forward.6} parent=0 // pred_region
    _
  $region41: #{slmgnn_forward.6} parent=0 // pred_fallthru
    _

// kernel: slmgnn_forward.7
$region0: #{slmgnn_forward.7}
  #allocation0 [shape = 'u32[]', space=smem, size = 0x4, offset = 0x4, fixed_abs, tag = 'smem constant byte address 0x4 - core index']
  #allocation1 [shape = 'u32[144,128]{1,0:T(1,128)}', space=vmem, size = 0x12000, scoped, tag = 'internal scratch']
  #allocation2 [shape = 'f32[1,1]{1,0:T(1,128)S(1)}', space=vmem, size = 0x200, scoped, tag = 'scoped memory for slmgnn_forward.7']
  %s0 = inlined_call_operand.vmem [shape: f32[256,32], index: 0, kind: input, shape index: {}]
  %s1 = inlined_call_operand.vmem [shape: f32[256,32], index: 1, kind: input, shape index: {}]
  %s2 = inlined_call_operand.vmem [shape: f32[256,1], index: 2, kind: input, shape index: {}]
  %s3 = inlined_call_operand.vmem [shape: f32[1,32], index: 3, kind: input, shape index: {}]
  %s4 = inlined_call_operand.vmem [shape: f32[1,32], index: 4, kind: input, shape index: {}]
  %s5 = inlined_call_operand.vmem [shape: f32[256,32], index: 5, kind: input, shape index: {}]
  %s6 = inlined_call_operand.vmem [shape: f32[32,64], index: 6, kind: input, shape index: {}]
  %s7 = inlined_call_operand.vmem [shape: f32[32,64], index: 7, kind: input, shape index: {}]
  %s8 = inlined_call_operand.vmem [shape: f32[1,64], index: 8, kind: input, shape index: {}]
  %s9 = inlined_call_operand.vmem [shape: f32[32,64], index: 9, kind: input, shape index: {}]
  %s10 = inlined_call_operand.vmem [shape: f32[1,64], index: 10, kind: input, shape index: {}]
  %s11 = inlined_call_operand.vmem [shape: f32[64,1], index: 11, kind: input, shape index: {}]
  %s12 = inlined_call_operand.<no memory space> [shape: f32[1,1], index: 12, kind: input, shape index: {}]
  %s13 = inlined_call_operand.vmem [shape: f32[256,1], index: 13, kind: output, shape index: {}]
  %s14 = sld [smem:[#allocation0]]
  $region62: #{slmgnn_forward.7} parent=0
    _
  %s16 = ssub.s32 1, %s14
  %s17 = scalar_select 0, %s16, %s14
  %v18 = vstv %s12
  %19 = vst [vmem:[#allocation2] sm:$0x1] %v18
  // Predicated region
  $region2: #{slmgnn_forward.7} parent=0 // pred_check
    _
  $region3: #{slmgnn_forward.7} parent=0 // pred_check_branch
    %21 = sbr.rel (0) target = $region5
  $region4: #{slmgnn_forward.7} parent=0 // pred_region
    _
  $region5: #{slmgnn_forward.7} parent=0 // pred_fallthru
    _
  // Predicated region
  $region6: #{slmgnn_forward.7} parent=0 // pred_check
    _
  $region7: #{slmgnn_forward.7} parent=0 // pred_check_branch
    %23 = sbr.rel (0) target = $region9
  $region8: #{slmgnn_forward.7} parent=0 // pred_region
    _
  $region9: #{slmgnn_forward.7} parent=0 // pred_fallthru
    _
  // Predicated region
  $region10: #{slmgnn_forward.7} parent=0 // pred_check
    _
  $region11: #{slmgnn_forward.7} parent=0 // pred_check_branch
    %25 = sbr.rel (0) target = $region13
  $region12: #{slmgnn_forward.7} parent=0 // pred_region
    _
  $region13: #{slmgnn_forward.7} parent=0 // pred_fallthru
    _
  // Predicated region
  $region14: #{slmgnn_forward.7} parent=0 // pred_check
    _
  $region15: #{slmgnn_forward.7} parent=0 // pred_check_branch
    %27 = sbr.rel (0) target = $region17
  $region16: #{slmgnn_forward.7} parent=0 // pred_region
    _
  $region17: #{slmgnn_forward.7} parent=0 // pred_fallthru
    _
  // Predicated region
  $region18: #{slmgnn_forward.7} parent=0 // pred_check
    _
  $region19: #{slmgnn_forward.7} parent=0 // pred_check_branch
    %29 = sbr.rel (0) target = $region21
  $region20: #{slmgnn_forward.7} parent=0 // pred_region
    _
  $region21: #{slmgnn_forward.7} parent=0 // pred_fallthru
    _
  // Predicated region
  $region22: #{slmgnn_forward.7} parent=0 // pred_check
    _
  $region23: #{slmgnn_forward.7} parent=0 // pred_check_branch
    %31 = sbr.rel (0) target = $region25
  $region24: #{slmgnn_forward.7} parent=0 // pred_region
    _
  $region25: #{slmgnn_forward.7} parent=0 // pred_fallthru
    _
  // Predicated region
  $region26: #{slmgnn_forward.7} parent=0 // pred_check
    _
  $region27: #{slmgnn_forward.7} parent=0 // pred_check_branch
    %33 = sbr.rel (0) target = $region29
  $region28: #{slmgnn_forward.7} parent=0 // pred_region
    _
  $region29: #{slmgnn_forward.7} parent=0 // pred_fallthru
    _
  // Predicated region
  $region30: #{slmgnn_forward.7} parent=0 // pred_check
    _
  $region31: #{slmgnn_forward.7} parent=0 // pred_check_branch
    %35 = sbr.rel (0) target = $region33
  $region32: #{slmgnn_forward.7} parent=0 // pred_region
    _
  $region33: #{slmgnn_forward.7} parent=0 // pred_fallthru
    _
  // Predicated region
  $region34: #{slmgnn_forward.7} parent=0 // pred_check
    _
  $region35: #{slmgnn_forward.7} parent=0 // pred_check_branch
    %37 = sbr.rel (0) target = $region37
  $region36: #{slmgnn_forward.7} parent=0 // pred_region
    _
  $region37: #{slmgnn_forward.7} parent=0 // pred_fallthru
    _
  // Predicated region
  $region38: #{slmgnn_forward.7} parent=0 // pred_check
    _
  $region39: #{slmgnn_forward.7} parent=0 // pred_check_branch
    %39 = sbr.rel (0) target = $region41
  $region40: #{slmgnn_forward.7} parent=0 // pred_region
    _
  $region41: #{slmgnn_forward.7} parent=0 // pred_fallthru
    _
  // Predicated region
  $region42: #{slmgnn_forward.7} parent=0 // pred_check
    _
  $region43: #{slmgnn_forward.7} parent=0 // pred_check_branch
    %41 = sbr.rel (0) target = $region45
  $region44: #{slmgnn_forward.7} parent=0 // pred_region
    _
  $region45: #{slmgnn_forward.7} parent=0 // pred_fallthru
    _
  // Predicated region
  $region46: #{slmgnn_forward.7} parent=0 // pred_check
    _
  $region47: #{slmgnn_forward.7} parent=0 // pred_check_branch
    %43 = sbr.rel (0) target = $region49
  $region48: #{slmgnn_forward.7} parent=0 // pred_region
    _
  $region49: #{slmgnn_forward.7} parent=0 // pred_fallthru
    _
  // Predicated region
  $region50: #{slmgnn_forward.7} parent=0 // pred_check
    _
  $region51: #{slmgnn_forward.7} parent=0 // pred_check_branch
    %45 = sbr.rel (0) target = $region53
  $region52: #{slmgnn_forward.7} parent=0 // pred_region
    _
  $region53: #{slmgnn_forward.7} parent=0 // pred_fallthru
    _
  %v46 = vld [vmem:[%s0] sm:$0xff]
  %v47 = vld [vmem:[%s0 + $0x8] sm:$0xff]
  %v48 = vld [vmem:[%s0 + $0x10] sm:$0xff]
  %v49 = vld [vmem:[%s0 + $0x18] sm:$0xff]
  %v50 = vld [vmem:[%s0 + $0x20] sm:$0xff]
  %v51 = vld [vmem:[%s0 + $0x28] sm:$0xff]
  %v52 = vld [vmem:[%s0 + $0x30] sm:$0xff]
  %v53 = vld [vmem:[%s0 + $0x38] sm:$0xff]
  %v54 = vld [vmem:[%s0 + $0x40] sm:$0xff]
  %v55 = vld [vmem:[%s0 + $0x48] sm:$0xff]
  %v56 = vld [vmem:[%s0 + $0x50] sm:$0xff]
  %v57 = vld [vmem:[%s0 + $0x58] sm:$0xff]
  %v58 = vld [vmem:[%s0 + $0x60] sm:$0xff]
  %v59 = vld [vmem:[%s0 + $0x68] sm:$0xff]
  %v60 = vld [vmem:[%s0 + $0x70] sm:$0xff]
  %v61 = vld [vmem:[%s0 + $0x78] sm:$0xff]
  %v62 = vld [vmem:[%s0 + $0x80] sm:$0xff]
  %v63 = vld [vmem:[%s0 + $0x88] sm:$0xff]
  %v64 = vld [vmem:[%s0 + $0x90] sm:$0xff]
  %v65 = vld [vmem:[%s0 + $0x98] sm:$0xff]
  %v66 = vld [vmem:[%s0 + $0xa0] sm:$0xff]
  %v67 = vld [vmem:[%s0 + $0xa8] sm:$0xff]
  %v68 = vld [vmem:[%s0 + $0xb0] sm:$0xff]
  %v69 = vld [vmem:[%s0 + $0xb8] sm:$0xff]
  %v70 = vld [vmem:[%s0 + $0xc0] sm:$0xff]
  %v71 = vld [vmem:[%s0 + $0xc8] sm:$0xff]
  %v72 = vld [vmem:[%s0 + $0xd0] sm:$0xff]
  %v73 = vld [vmem:[%s0 + $0xd8] sm:$0xff]
  %v74 = vld [vmem:[%s0 + $0xe0] sm:$0xff]
  %v75 = vld [vmem:[%s0 + $0xe8] sm:$0xff]
  %v76 = vld [vmem:[%s0 + $0xf0] sm:$0xff]
  %v77 = vld [vmem:[%s0 + $0xf8] sm:$0xff]
  %v78 = vld [vmem:[%s1] sm:$0xff]
  %v79 = vld [vmem:[%s1 + $0x8] sm:$0xff]
  %v80 = vld [vmem:[%s1 + $0x10] sm:$0xff]
  %v81 = vld [vmem:[%s1 + $0x18] sm:$0xff]
  %v82 = vld [vmem:[%s1 + $0x20] sm:$0xff]
  %v83 = vld [vmem:[%s1 + $0x28] sm:$0xff]
  %v84 = vld [vmem:[%s1 + $0x30] sm:$0xff]
  %v85 = vld [vmem:[%s1 + $0x38] sm:$0xff]
  %v86 = vld [vmem:[%s1 + $0x40] sm:$0xff]
  %v87 = vld [vmem:[%s1 + $0x48] sm:$0xff]
  %v88 = vld [vmem:[%s1 + $0x50] sm:$0xff]
  %v89 = vld [vmem:[%s1 + $0x58] sm:$0xff]
  %v90 = vld [vmem:[%s1 + $0x60] sm:$0xff]
  %v91 = vld [vmem:[%s1 + $0x68] sm:$0xff]
  %v92 = vld [vmem:[%s1 + $0x70] sm:$0xff]
  %v93 = vld [vmem:[%s1 + $0x78] sm:$0xff]
  %v94 = vld [vmem:[%s1 + $0x80] sm:$0xff]
  %v95 = vld [vmem:[%s1 + $0x88] sm:$0xff]
  %v96 = vld [vmem:[%s1 + $0x90] sm:$0xff]
  %v97 = vld [vmem:[%s1 + $0x98] sm:$0xff]
  %v98 = vld [vmem:[%s1 + $0xa0] sm:$0xff]
  %v99 = vld [vmem:[%s1 + $0xa8] sm:$0xff]
  %v100 = vld [vmem:[%s1 + $0xb0] sm:$0xff]
  %v101 = vld [vmem:[%s1 + $0xb8] sm:$0xff]
  %v102 = vld [vmem:[%s1 + $0xc0] sm:$0xff]
  %v103 = vld [vmem:[%s1 + $0xc8] sm:$0xff]
  %v104 = vld [vmem:[%s1 + $0xd0] sm:$0xff]
  %v105 = vld [vmem:[%s1 + $0xd8] sm:$0xff]
  %v106 = vld [vmem:[%s1 + $0xe0] sm:$0xff]
  %v107 = vld [vmem:[%s1 + $0xe8] sm:$0xff]
  %v108 = vld [vmem:[%s1 + $0xf0] sm:$0xff]
  %v109 = vld [vmem:[%s1 + $0xf8] sm:$0xff]
  %v110 = vld [vmem:[%s2] sm:$0xff]
  %v111 = vld [vmem:[%s2 + $0x8] sm:$0xff]
  %v112 = vld [vmem:[%s2 + $0x10] sm:$0xff]
  %v113 = vld [vmem:[%s2 + $0x18] sm:$0xff]
  %v114 = vld [vmem:[%s2 + $0x20] sm:$0xff]
  %v115 = vld [vmem:[%s2 + $0x28] sm:$0xff]
  %v116 = vld [vmem:[%s2 + $0x30] sm:$0xff]
  %v117 = vld [vmem:[%s2 + $0x38] sm:$0xff]
  %v118 = vld [vmem:[%s2 + $0x40] sm:$0xff]
  %v119 = vld [vmem:[%s2 + $0x48] sm:$0xff]
  %v120 = vld [vmem:[%s2 + $0x50] sm:$0xff]
  %v121 = vld [vmem:[%s2 + $0x58] sm:$0xff]
  %v122 = vld [vmem:[%s2 + $0x60] sm:$0xff]
  %v123 = vld [vmem:[%s2 + $0x68] sm:$0xff]
  %v124 = vld [vmem:[%s2 + $0x70] sm:$0xff]
  %v125 = vld [vmem:[%s2 + $0x78] sm:$0xff]
  %v126 = vld [vmem:[%s2 + $0x80] sm:$0xff]
  %v127 = vld [vmem:[%s2 + $0x88] sm:$0xff]
  %v128 = vld [vmem:[%s2 + $0x90] sm:$0xff]
  %v129 = vld [vmem:[%s2 + $0x98] sm:$0xff]
  %v130 = vld [vmem:[%s2 + $0xa0] sm:$0xff]
  %v131 = vld [vmem:[%s2 + $0xa8] sm:$0xff]
  %v132 = vld [vmem:[%s2 + $0xb0] sm:$0xff]
  %v133 = vld [vmem:[%s2 + $0xb8] sm:$0xff]
  %v134 = vld [vmem:[%s2 + $0xc0] sm:$0xff]
  %v135 = vld [vmem:[%s2 + $0xc8] sm:$0xff]
  %v136 = vld [vmem:[%s2 + $0xd0] sm:$0xff]
  %v137 = vld [vmem:[%s2 + $0xd8] sm:$0xff]
  %v138 = vld [vmem:[%s2 + $0xe0] sm:$0xff]
  %v139 = vld [vmem:[%s2 + $0xe8] sm:$0xff]
  %v140 = vld [vmem:[%s2 + $0xf0] sm:$0xff]
  %v141 = vld [vmem:[%s2 + $0xf8] sm:$0xff]
  %v142 = vld [vmem:[%s3] sm:$0x1]
  %v143 = vld [vmem:[%s4] sm:$0x1]
  %v144 = vld [vmem:[%s5] sm:$0xff]
  %v145 = vld [vmem:[%s5 + $0x8] sm:$0xff]
  %v146 = vld [vmem:[%s5 + $0x10] sm:$0xff]
  %v147 = vld [vmem:[%s5 + $0x18] sm:$0xff]
  %v148 = vld [vmem:[%s5 + $0x20] sm:$0xff]
  %v149 = vld [vmem:[%s5 + $0x28] sm:$0xff]
  %v150 = vld [vmem:[%s5 + $0x30] sm:$0xff]
  %v151 = vld [vmem:[%s5 + $0x38] sm:$0xff]
  %v152 = vld [vmem:[%s5 + $0x40] sm:$0xff]
  %v153 = vld [vmem:[%s5 + $0x48] sm:$0xff]
  %v154 = vld [vmem:[%s5 + $0x50] sm:$0xff]
  %v155 = vld [vmem:[%s5 + $0x58] sm:$0xff]
  %v156 = vld [vmem:[%s5 + $0x60] sm:$0xff]
  %v157 = vld [vmem:[%s5 + $0x68] sm:$0xff]
  %v158 = vld [vmem:[%s5 + $0x70] sm:$0xff]
  %v159 = vld [vmem:[%s5 + $0x78] sm:$0xff]
  %v160 = vld [vmem:[%s5 + $0x80] sm:$0xff]
  %v161 = vld [vmem:[%s5 + $0x88] sm:$0xff]
  %v162 = vld [vmem:[%s5 + $0x90] sm:$0xff]
  %v163 = vld [vmem:[%s5 + $0x98] sm:$0xff]
  %v164 = vld [vmem:[%s5 + $0xa0] sm:$0xff]
  %v165 = vld [vmem:[%s5 + $0xa8] sm:$0xff]
  %v166 = vld [vmem:[%s5 + $0xb0] sm:$0xff]
  %v167 = vld [vmem:[%s5 + $0xb8] sm:$0xff]
  %v168 = vld [vmem:[%s5 + $0xc0] sm:$0xff]
  %v169 = vld [vmem:[%s5 + $0xc8] sm:$0xff]
  %v170 = vld [vmem:[%s5 + $0xd0] sm:$0xff]
  %v171 = vld [vmem:[%s5 + $0xd8] sm:$0xff]
  %v172 = vld [vmem:[%s5 + $0xe0] sm:$0xff]
  %v173 = vld [vmem:[%s5 + $0xe8] sm:$0xff]
  %v174 = vld [vmem:[%s5 + $0xf0] sm:$0xff]
  %v175 = vld [vmem:[%s5 + $0xf8] sm:$0xff]
  %177 = vset.pattern.permute.xlu0 0
  %178 = vperm.xlu0 %177, %v110
  %v179 = vpop.permute.xlu0 %178
  %182 = vset.pattern.permute.xlu0 0
  %183 = vperm.xlu0 %182, %v111
  %v184 = vpop.permute.xlu0 %183
  %187 = vset.pattern.permute.xlu0 0
  %188 = vperm.xlu0 %187, %v112
  %v189 = vpop.permute.xlu0 %188
  %192 = vset.pattern.permute.xlu0 0
  %193 = vperm.xlu0 %192, %v113
  %v194 = vpop.permute.xlu0 %193
  %197 = vset.pattern.permute.xlu0 0
  %198 = vperm.xlu0 %197, %v114
  %v199 = vpop.permute.xlu0 %198
  %202 = vset.pattern.permute.xlu0 0
  %203 = vperm.xlu0 %202, %v115
  %v204 = vpop.permute.xlu0 %203
  %207 = vset.pattern.permute.xlu0 0
  %208 = vperm.xlu0 %207, %v116
  %v209 = vpop.permute.xlu0 %208
  %212 = vset.pattern.permute.xlu0 0
  %213 = vperm.xlu0 %212, %v117
  %v214 = vpop.permute.xlu0 %213
  %217 = vset.pattern.permute.xlu0 0
  %218 = vperm.xlu0 %217, %v118
  %v219 = vpop.permute.xlu0 %218
  %222 = vset.pattern.permute.xlu0 0
  %223 = vperm.xlu0 %222, %v119
  %v224 = vpop.permute.xlu0 %223
  %227 = vset.pattern.permute.xlu0 0
  %228 = vperm.xlu0 %227, %v120
  %v229 = vpop.permute.xlu0 %228
  %232 = vset.pattern.permute.xlu0 0
  %233 = vperm.xlu0 %232, %v121
  %v234 = vpop.permute.xlu0 %233
  %237 = vset.pattern.permute.xlu0 0
  %238 = vperm.xlu0 %237, %v122
  %v239 = vpop.permute.xlu0 %238
  %242 = vset.pattern.permute.xlu0 0
  %243 = vperm.xlu0 %242, %v123
  %v244 = vpop.permute.xlu0 %243
  %247 = vset.pattern.permute.xlu0 0
  %248 = vperm.xlu0 %247, %v124
  %v249 = vpop.permute.xlu0 %248
  %252 = vset.pattern.permute.xlu0 0
  %253 = vperm.xlu0 %252, %v125
  %v254 = vpop.permute.xlu0 %253
  %257 = vset.pattern.permute.xlu0 0
  %258 = vperm.xlu0 %257, %v126
  %v259 = vpop.permute.xlu0 %258
  %262 = vset.pattern.permute.xlu0 0
  %263 = vperm.xlu0 %262, %v127
  %v264 = vpop.permute.xlu0 %263
  %267 = vset.pattern.permute.xlu0 0
  %268 = vperm.xlu0 %267, %v128
  %v269 = vpop.permute.xlu0 %268
  %272 = vset.pattern.permute.xlu0 0
  %273 = vperm.xlu0 %272, %v129
  %v274 = vpop.permute.xlu0 %273
  %277 = vset.pattern.permute.xlu0 0
  %278 = vperm.xlu0 %277, %v130
  %v279 = vpop.permute.xlu0 %278
  %282 = vset.pattern.permute.xlu0 0
  %283 = vperm.xlu0 %282, %v131
  %v284 = vpop.permute.xlu0 %283
  %287 = vset.pattern.permute.xlu0 0
  %288 = vperm.xlu0 %287, %v132
  %v289 = vpop.permute.xlu0 %288
  %292 = vset.pattern.permute.xlu0 0
  %293 = vperm.xlu0 %292, %v133
  %v294 = vpop.permute.xlu0 %293
  %297 = vset.pattern.permute.xlu0 0
  %298 = vperm.xlu0 %297, %v134
  %v299 = vpop.permute.xlu0 %298
  %302 = vset.pattern.permute.xlu0 0
  %303 = vperm.xlu0 %302, %v135
  %v304 = vpop.permute.xlu0 %303
  %307 = vset.pattern.permute.xlu0 0
  %308 = vperm.xlu0 %307, %v136
  %v309 = vpop.permute.xlu0 %308
  %312 = vset.pattern.permute.xlu0 0
  %313 = vperm.xlu0 %312, %v137
  %v314 = vpop.permute.xlu0 %313
  %317 = vset.pattern.permute.xlu0 0
  %318 = vperm.xlu0 %317, %v138
  %v319 = vpop.permute.xlu0 %318
  %322 = vset.pattern.permute.xlu0 0
  %323 = vperm.xlu0 %322, %v139
  %v324 = vpop.permute.xlu0 %323
  %327 = vset.pattern.permute.xlu0 0
  %328 = vperm.xlu0 %327, %v140
  %v329 = vpop.permute.xlu0 %328
  %332 = vset.pattern.permute.xlu0 0
  %333 = vperm.xlu0 %332, %v141
  %v334 = vpop.permute.xlu0 %333
  %v337 = vlaneseq
  %v338 = vshrl.u32 %v337, 7
  %v339 = vsub.s32 0, %v338
  %v340 = vrot.slane %v142, %v339
  %v342 = vmul.f32 %v179, %v340
  %v343 = vmul.f32 %v184, %v340
  %v344 = vmul.f32 %v189, %v340
  %v345 = vmul.f32 %v194, %v340
  %v346 = vmul.f32 %v199, %v340
  %v347 = vmul.f32 %v204, %v340
  %v348 = vmul.f32 %v209, %v340
  %v349 = vmul.f32 %v214, %v340
  %v350 = vmul.f32 %v219, %v340
  %v351 = vmul.f32 %v224, %v340
  %v352 = vmul.f32 %v229, %v340
  %v353 = vmul.f32 %v234, %v340
  %v354 = vmul.f32 %v239, %v340
  %v355 = vmul.f32 %v244, %v340
  %v356 = vmul.f32 %v249, %v340
  %v357 = vmul.f32 %v254, %v340
  %v358 = vmul.f32 %v259, %v340
  %v359 = vmul.f32 %v264, %v340
  %v360 = vmul.f32 %v269, %v340
  %v361 = vmul.f32 %v274, %v340
  %v362 = vmul.f32 %v279, %v340
  %v363 = vmul.f32 %v284, %v340
  %v364 = vmul.f32 %v289, %v340
  %v365 = vmul.f32 %v294, %v340
  %v366 = vmul.f32 %v299, %v340
  %v367 = vmul.f32 %v304, %v340
  %v368 = vmul.f32 %v309, %v340
  %v369 = vmul.f32 %v314, %v340
  %v370 = vmul.f32 %v319, %v340
  %v371 = vmul.f32 %v324, %v340
  %v372 = vmul.f32 %v329, %v340
  %v373 = vmul.f32 %v334, %v340
  %v375 = vlaneseq
  %v376 = vshrl.u32 %v375, 7
  %v377 = vsub.s32 0, %v376
  %v378 = vrot.slane %v143, %v377
  %v380 = vadd.f32 %v342, %v378
  %v381 = vadd.f32 %v343, %v378
  %v382 = vadd.f32 %v344, %v378
  %v383 = vadd.f32 %v345, %v378
  %v384 = vadd.f32 %v346, %v378
  %v385 = vadd.f32 %v347, %v378
  %v386 = vadd.f32 %v348, %v378
  %v387 = vadd.f32 %v349, %v378
  %v388 = vadd.f32 %v350, %v378
  %v389 = vadd.f32 %v351, %v378
  %v390 = vadd.f32 %v352, %v378
  %v391 = vadd.f32 %v353, %v378
  %v392 = vadd.f32 %v354, %v378
  %v393 = vadd.f32 %v355, %v378
  %v394 = vadd.f32 %v356, %v378
  %v395 = vadd.f32 %v357, %v378
  %v396 = vadd.f32 %v358, %v378
  %v397 = vadd.f32 %v359, %v378
  %v398 = vadd.f32 %v360, %v378
  %v399 = vadd.f32 %v361, %v378
  %v400 = vadd.f32 %v362, %v378
  %v401 = vadd.f32 %v363, %v378
  %v402 = vadd.f32 %v364, %v378
  %v403 = vadd.f32 %v365, %v378
  %v404 = vadd.f32 %v366, %v378
  %v405 = vadd.f32 %v367, %v378
  %v406 = vadd.f32 %v368, %v378
  %v407 = vadd.f32 %v369, %v378
  %v408 = vadd.f32 %v370, %v378
  %v409 = vadd.f32 %v371, %v378
  %v410 = vadd.f32 %v372, %v378
  %v411 = vadd.f32 %v373, %v378
  %v412 = vadd.f32 %v380, %v46
  %v413 = vadd.f32 %v381, %v47
  %v414 = vadd.f32 %v382, %v48
  %v415 = vadd.f32 %v383, %v49
  %v416 = vadd.f32 %v384, %v50
  %v417 = vadd.f32 %v385, %v51
  %v418 = vadd.f32 %v386, %v52
  %v419 = vadd.f32 %v387, %v53
  %v420 = vadd.f32 %v388, %v54
  %v421 = vadd.f32 %v389, %v55
  %v422 = vadd.f32 %v390, %v56
  %v423 = vadd.f32 %v391, %v57
  %v424 = vadd.f32 %v392, %v58
  %v425 = vadd.f32 %v393, %v59
  %v426 = vadd.f32 %v394, %v60
  %v427 = vadd.f32 %v395, %v61
  %v428 = vadd.f32 %v396, %v62
  %v429 = vadd.f32 %v397, %v63
  %v430 = vadd.f32 %v398, %v64
  %v431 = vadd.f32 %v399, %v65
  %v432 = vadd.f32 %v400, %v66
  %v433 = vadd.f32 %v401, %v67
  %v434 = vadd.f32 %v402, %v68
  %v435 = vadd.f32 %v403, %v69
  %v436 = vadd.f32 %v404, %v70
  %v437 = vadd.f32 %v405, %v71
  %v438 = vadd.f32 %v406, %v72
  %v439 = vadd.f32 %v407, %v73
  %v440 = vadd.f32 %v408, %v74
  %v441 = vadd.f32 %v409, %v75
  %v442 = vadd.f32 %v410, %v76
  %v443 = vadd.f32 %v411, %v77
  %v444 = vadd.f32 %v412, %v78
  %v445 = vadd.f32 %v413, %v79
  %v446 = vadd.f32 %v414, %v80
  %v447 = vadd.f32 %v415, %v81
  %v448 = vadd.f32 %v416, %v82
  %v449 = vadd.f32 %v417, %v83
  %v450 = vadd.f32 %v418, %v84
  %v451 = vadd.f32 %v419, %v85
  %v452 = vadd.f32 %v420, %v86
  %v453 = vadd.f32 %v421, %v87
  %v454 = vadd.f32 %v422, %v88
  %v455 = vadd.f32 %v423, %v89
  %v456 = vadd.f32 %v424, %v90
  %v457 = vadd.f32 %v425, %v91
  %v458 = vadd.f32 %v426, %v92
  %v459 = vadd.f32 %v427, %v93
  %v460 = vadd.f32 %v428, %v94
  %v461 = vadd.f32 %v429, %v95
  %v462 = vadd.f32 %v430, %v96
  %v463 = vadd.f32 %v431, %v97
  %v464 = vadd.f32 %v432, %v98
  %v465 = vadd.f32 %v433, %v99
  %v466 = vadd.f32 %v434, %v100
  %v467 = vadd.f32 %v435, %v101
  %v468 = vadd.f32 %v436, %v102
  %v469 = vadd.f32 %v437, %v103
  %v470 = vadd.f32 %v438, %v104
  %v471 = vadd.f32 %v439, %v105
  %v472 = vadd.f32 %v440, %v106
  %v473 = vadd.f32 %v441, %v107
  %v474 = vadd.f32 %v442, %v108
  %v475 = vadd.f32 %v443, %v109
  %v476 = vld [vmem:[%s6] sm:$0xff]
  %v477 = vld [vmem:[%s6 + $0x8] sm:$0xff]
  %v478 = vld [vmem:[%s6 + $0x10] sm:$0xff]
  %v479 = vld [vmem:[%s6 + $0x18] sm:$0xff]
  %v480 = vld [vmem:[%s7] sm:$0xff]
  %v481 = vld [vmem:[%s7 + $0x8] sm:$0xff]
  %v482 = vld [vmem:[%s7 + $0x10] sm:$0xff]
  %v483 = vld [vmem:[%s7 + $0x18] sm:$0xff]
  %v484 = vld [vmem:[%s8] sm:$0x1]
  %v485 = vld [vmem:[%s9] sm:$0xff]
  %v486 = vld [vmem:[%s9 + $0x8] sm:$0xff]
  %v487 = vld [vmem:[%s9 + $0x10] sm:$0xff]
  %v488 = vld [vmem:[%s9 + $0x18] sm:$0xff]
  %v489 = vld [vmem:[%s10] sm:$0x1]
  %v490 = vld [vmem:[%s11] sm:$0xff]
  %v491 = vld [vmem:[%s11 + $0x8] sm:$0xff]
  %v492 = vld [vmem:[%s11 + $0x10] sm:$0xff]
  %v493 = vld [vmem:[%s11 + $0x18] sm:$0xff]
  %v494 = vld [vmem:[%s11 + $0x20] sm:$0xff]
  %v495 = vld [vmem:[%s11 + $0x28] sm:$0xff]
  %v496 = vld [vmem:[%s11 + $0x30] sm:$0xff]
  %v497 = vld [vmem:[%s11 + $0x38] sm:$0xff]
  %v498 = vld [vmem:[#allocation2] sm:$0x1]
  %vm499 = vcmask 261120
  %v501 = vsel %vm499, %v444, 0
  %v504 = vsel %vm499, %v445, 0
  %v507 = vsel %vm499, %v446, 0
  %v510 = vsel %vm499, %v447, 0
  %v513 = vsel %vm499, %v448, 0
  %v516 = vsel %vm499, %v449, 0
  %v519 = vsel %vm499, %v450, 0
  %v522 = vsel %vm499, %v451, 0
  %v525 = vsel %vm499, %v452, 0
  %v528 = vsel %vm499, %v453, 0
  %v531 = vsel %vm499, %v454, 0
  %v534 = vsel %vm499, %v455, 0
  %v537 = vsel %vm499, %v456, 0
  %v540 = vsel %vm499, %v457, 0
  %v543 = vsel %vm499, %v458, 0
  %v546 = vsel %vm499, %v459, 0
  %v549 = vsel %vm499, %v460, 0
  %v552 = vsel %vm499, %v461, 0
  %v555 = vsel %vm499, %v462, 0
  %v558 = vsel %vm499, %v463, 0
  %v561 = vsel %vm499, %v464, 0
  %v564 = vsel %vm499, %v465, 0
  %v567 = vsel %vm499, %v466, 0
  %v570 = vsel %vm499, %v467, 0
  %v573 = vsel %vm499, %v468, 0
  %v576 = vsel %vm499, %v469, 0
  %v579 = vsel %vm499, %v470, 0
  %v582 = vsel %vm499, %v471, 0
  %v585 = vsel %vm499, %v472, 0
  %v588 = vsel %vm499, %v473, 0
  %v591 = vsel %vm499, %v474, 0
  %v594 = vsel %vm499, %v475, 0
  %596 = vmatprep.subr.mxu0 0.0
  %597 = vmatpush1.msra.mxu0 0.0
  %598 = vmatprep.subr.mxu0 0.0
  %599 = vmatpush1.msra.mxu0 0.0
  %600 = vmatprep.subr.mxu0 0.0
  %601 = vmatpush1.msra.mxu0 0.0
  %602 = vmatprep.subr.mxu0 0.0
  %603 = vmatpush1.msra.mxu0 0.0
  %604 = vmatprep.subr.mxu0 0.0
  %605 = vmatpush1.msra.mxu0 0.0
  %606 = vmatprep.subr.mxu0 0.0
  %607 = vmatpush1.msra.mxu0 0.0
  %608 = vmatprep.subr.mxu0 0.0
  %609 = vmatpush1.msra.mxu0 0.0
  %610 = vmatprep.subr.mxu0 0.0
  %611 = vmatpush1.msra.mxu0 0.0
  %612 = vmatprep.subr.mxu0 0.0
  %613 = vmatpush1.msra.mxu0 0.0
  %614 = vmatprep.subr.mxu0 0.0
  %615 = vmatpush1.msra.mxu0 0.0
  %616 = vmatprep.subr.mxu0 0.0
  %617 = vmatpush1.msra.mxu0 0.0
  %618 = vmatprep.subr.mxu0 0.0
  %619 = vmatpush1.msra.mxu0 0.0
  %620 = vmatprep.subr.mxu0 0.0
  %621 = vmatpush1.msra.mxu0 %v483
  %622 = vmatprep.subr.mxu0 0.0
  %623 = vmatpush1.msra.mxu0 %v482
  %624 = vmatprep.subr.mxu0 0.0
  %625 = vmatpush1.msra.mxu0 %v481
  %626 = vmatprep.subr.mxu0 0.0
  %627 = vmatpush1.msra.mxu0 %v480
  %628 = vmatprep.subr.mxu0 0.0
  %629 = vmatpush2.msra.mxu0 0.0
  %630 = vmatprep.subr.mxu0 0.0
  %631 = vmatpush2.msra.mxu0 0.0
  %632 = vmatprep.subr.mxu0 0.0
  %633 = vmatpush2.msra.mxu0 0.0
  %634 = vmatprep.subr.mxu0 0.0
  %635 = vmatpush2.msra.mxu0 0.0
  %636 = vmatprep.subr.mxu0 0.0
  %637 = vmatpush2.msra.mxu0 0.0
  %638 = vmatprep.subr.mxu0 0.0
  %639 = vmatpush2.msra.mxu0 0.0
  %640 = vmatprep.subr.mxu0 0.0
  %641 = vmatpush2.msra.mxu0 0.0
  %642 = vmatprep.subr.mxu0 0.0
  %643 = vmatpush2.msra.mxu0 0.0
  %644 = vmatprep.subr.mxu0 0.0
  %645 = vmatpush2.msra.mxu0 0.0
  %646 = vmatprep.subr.mxu0 0.0
  %647 = vmatpush2.msra.mxu0 0.0
  %648 = vmatprep.subr.mxu0 0.0
  %649 = vmatpush2.msra.mxu0 0.0
  %650 = vmatprep.subr.mxu0 0.0
  %651 = vmatpush2.msra.mxu0 0.0
  %652 = vmatprep.subr.mxu0 0.0
  %653 = vmatpush2.msra.mxu0 0.0
  %654 = vmatprep.subr.mxu0 0.0
  %655 = vmatpush2.msra.mxu0 0.0
  %656 = vmatprep.subr.mxu0 0.0
  %657 = vmatpush2.msra.mxu0 0.0
  %658 = vmatprep.subr.mxu0 0.0
  %659 = vmatpush2.msra.mxu0 0.0
  %660 = vmatprep.mubr.f32.mxu0 0.0
  %661 = vmatmul.mubr.f32.gmra.mxu0 %v501
  %v662 = vpop.f32.mrf.mxu0
  %v663 = vadd.f32 0.0, %v662
  %v664 = vpop.f32.mrf.mxu0
  %665 = vmatprep.mubr.f32.mxu0 0.0
  %666 = vmatmul.mubr.f32.gmra.mxu0 %v504
  %v667 = vpop.f32.mrf.mxu0
  %v668 = vadd.f32 0.0, %v667
  %v669 = vpop.f32.mrf.mxu0
  %670 = vmatprep.mubr.f32.mxu0 0.0
  %671 = vmatmul.mubr.f32.gmra.mxu0 %v507
  %v672 = vpop.f32.mrf.mxu0
  %v673 = vadd.f32 0.0, %v672
  %v674 = vpop.f32.mrf.mxu0
  %675 = vmatprep.mubr.f32.mxu0 0.0
  %676 = vmatmul.mubr.f32.gmra.mxu0 %v510
  %v677 = vpop.f32.mrf.mxu0
  %v678 = vadd.f32 0.0, %v677
  %v679 = vpop.f32.mrf.mxu0
  %680 = vmatprep.mubr.f32.mxu0 0.0
  %681 = vmatmul.mubr.f32.gmra.mxu0 %v513
  %v682 = vpop.f32.mrf.mxu0
  %v683 = vadd.f32 0.0, %v682
  %v684 = vpop.f32.mrf.mxu0
  %685 = vmatprep.mubr.f32.mxu0 0.0
  %686 = vmatmul.mubr.f32.gmra.mxu0 %v516
  %v687 = vpop.f32.mrf.mxu0
  %v688 = vadd.f32 0.0, %v687
  %v689 = vpop.f32.mrf.mxu0
  %690 = vmatprep.mubr.f32.mxu0 0.0
  %691 = vmatmul.mubr.f32.gmra.mxu0 %v519
  %v692 = vpop.f32.mrf.mxu0
  %v693 = vadd.f32 0.0, %v692
  %v694 = vpop.f32.mrf.mxu0
  %695 = vmatprep.mubr.f32.mxu0 0.0
  %696 = vmatmul.mubr.f32.gmra.mxu0 %v522
  %v697 = vpop.f32.mrf.mxu0
  %v698 = vadd.f32 0.0, %v697
  %v699 = vpop.f32.mrf.mxu0
  %700 = vmatprep.mubr.f32.mxu0 0.0
  %701 = vmatmul.mubr.f32.gmra.mxu0 %v525
  %v702 = vpop.f32.mrf.mxu0
  %v703 = vadd.f32 0.0, %v702
  %v704 = vpop.f32.mrf.mxu0
  %705 = vmatprep.mubr.f32.mxu0 0.0
  %706 = vmatmul.mubr.f32.gmra.mxu0 %v528
  %v707 = vpop.f32.mrf.mxu0
  %v708 = vadd.f32 0.0, %v707
  %v709 = vpop.f32.mrf.mxu0
  %710 = vmatprep.mubr.f32.mxu0 0.0
  %711 = vmatmul.mubr.f32.gmra.mxu0 %v531
  %v712 = vpop.f32.mrf.mxu0
  %v713 = vadd.f32 0.0, %v712
  %v714 = vpop.f32.mrf.mxu0
  %715 = vmatprep.mubr.f32.mxu0 0.0
  %716 = vmatmul.mubr.f32.gmra.mxu0 %v534
  %v717 = vpop.f32.mrf.mxu0
  %v718 = vadd.f32 0.0, %v717
  %v719 = vpop.f32.mrf.mxu0
  %720 = vmatprep.mubr.f32.mxu0 0.0
  %721 = vmatmul.mubr.f32.gmra.mxu0 %v537
  %v722 = vpop.f32.mrf.mxu0
  %v723 = vadd.f32 0.0, %v722
  %v724 = vpop.f32.mrf.mxu0
  %725 = vmatprep.mubr.f32.mxu0 0.0
  %726 = vmatmul.mubr.f32.gmra.mxu0 %v540
  %v727 = vpop.f32.mrf.mxu0
  %v728 = vadd.f32 0.0, %v727
  %v729 = vpop.f32.mrf.mxu0
  %730 = vmatprep.mubr.f32.mxu0 0.0
  %731 = vmatmul.mubr.f32.gmra.mxu0 %v543
  %v732 = vpop.f32.mrf.mxu0
  %v733 = vadd.f32 0.0, %v732
  %v734 = vpop.f32.mrf.mxu0
  %735 = vmatprep.mubr.f32.mxu0 0.0
  %736 = vmatmul.mubr.f32.gmra.mxu0 %v546
  %v737 = vpop.f32.mrf.mxu0
  %v738 = vadd.f32 0.0, %v737
  %v739 = vpop.f32.mrf.mxu0
  %740 = vmatprep.mubr.f32.mxu0 0.0
  %741 = vmatmul.mubr.f32.gmra.mxu0 %v549
  %v742 = vpop.f32.mrf.mxu0
  %v743 = vadd.f32 0.0, %v742
  %v744 = vpop.f32.mrf.mxu0
  %745 = vmatprep.mubr.f32.mxu0 0.0
  %746 = vmatmul.mubr.f32.gmra.mxu0 %v552
  %v747 = vpop.f32.mrf.mxu0
  %v748 = vadd.f32 0.0, %v747
  %v749 = vpop.f32.mrf.mxu0
  %750 = vmatprep.mubr.f32.mxu0 0.0
  %751 = vmatmul.mubr.f32.gmra.mxu0 %v555
  %v752 = vpop.f32.mrf.mxu0
  %v753 = vadd.f32 0.0, %v752
  %v754 = vpop.f32.mrf.mxu0
  %755 = vmatprep.mubr.f32.mxu0 0.0
  %756 = vmatmul.mubr.f32.gmra.mxu0 %v558
  %v757 = vpop.f32.mrf.mxu0
  %v758 = vadd.f32 0.0, %v757
  %v759 = vpop.f32.mrf.mxu0
  %760 = vmatprep.mubr.f32.mxu0 0.0
  %761 = vmatmul.mubr.f32.gmra.mxu0 %v561
  %v762 = vpop.f32.mrf.mxu0
  %v763 = vadd.f32 0.0, %v762
  %v764 = vpop.f32.mrf.mxu0
  %765 = vmatprep.mubr.f32.mxu0 0.0
  %766 = vmatmul.mubr.f32.gmra.mxu0 %v564
  %v767 = vpop.f32.mrf.mxu0
  %v768 = vadd.f32 0.0, %v767
  %v769 = vpop.f32.mrf.mxu0
  %770 = vmatprep.mubr.f32.mxu0 0.0
  %771 = vmatmul.mubr.f32.gmra.mxu0 %v567
  %v772 = vpop.f32.mrf.mxu0
  %v773 = vadd.f32 0.0, %v772
  %v774 = vpop.f32.mrf.mxu0
  %775 = vmatprep.mubr.f32.mxu0 0.0
  %776 = vmatmul.mubr.f32.gmra.mxu0 %v570
  %v777 = vpop.f32.mrf.mxu0
  %v778 = vadd.f32 0.0, %v777
  %v779 = vpop.f32.mrf.mxu0
  %780 = vmatprep.mubr.f32.mxu0 0.0
  %781 = vmatmul.mubr.f32.gmra.mxu0 %v573
  %v782 = vpop.f32.mrf.mxu0
  %v783 = vadd.f32 0.0, %v782
  %v784 = vpop.f32.mrf.mxu0
  %785 = vmatprep.mubr.f32.mxu0 0.0
  %786 = vmatmul.mubr.f32.gmra.mxu0 %v576
  %v787 = vpop.f32.mrf.mxu0
  %v788 = vadd.f32 0.0, %v787
  %v789 = vpop.f32.mrf.mxu0
  %790 = vmatprep.mubr.f32.mxu0 0.0
  %791 = vmatmul.mubr.f32.gmra.mxu0 %v579
  %v792 = vpop.f32.mrf.mxu0
  %v793 = vadd.f32 0.0, %v792
  %v794 = vpop.f32.mrf.mxu0
  %795 = vmatprep.mubr.f32.mxu0 0.0
  %796 = vmatmul.mubr.f32.gmra.mxu0 %v582
  %v797 = vpop.f32.mrf.mxu0
  %v798 = vadd.f32 0.0, %v797
  %v799 = vpop.f32.mrf.mxu0
  %800 = vmatprep.mubr.f32.mxu0 0.0
  %801 = vmatmul.mubr.f32.gmra.mxu0 %v585
  %v802 = vpop.f32.mrf.mxu0
  %v803 = vadd.f32 0.0, %v802
  %v804 = vpop.f32.mrf.mxu0
  %805 = vmatprep.mubr.f32.mxu0 0.0
  %806 = vmatmul.mubr.f32.gmra.mxu0 %v588
  %v807 = vpop.f32.mrf.mxu0
  %v808 = vadd.f32 0.0, %v807
  %v809 = vpop.f32.mrf.mxu0
  %810 = vmatprep.mubr.f32.mxu0 0.0
  %811 = vmatmul.mubr.f32.gmra.mxu0 %v591
  %v812 = vpop.f32.mrf.mxu0
  %v813 = vadd.f32 0.0, %v812
  %v814 = vpop.f32.mrf.mxu0
  %815 = vmatprep.mubr.f32.mxu0 0.0
  %816 = vmatmul.mubr.f32.gmra.mxu0 %v594
  %v817 = vpop.f32.mrf.mxu0
  %v818 = vadd.f32 0.0, %v817
  %v819 = vpop.f32.mrf.mxu0
  %820 = vdwg.mxu0
  %v822 = vsel %vm499, 0.0, 0
  %824 = vmatprep.subr.mxu0 0.0
  %825 = vmatpush1.msra.mxu0 0.0
  %826 = vmatprep.subr.mxu0 0.0
  %827 = vmatpush1.msra.mxu0 0.0
  %828 = vmatprep.subr.mxu0 0.0
  %829 = vmatpush1.msra.mxu0 0.0
  %830 = vmatprep.subr.mxu0 0.0
  %831 = vmatpush1.msra.mxu0 0.0
  %832 = vmatprep.subr.mxu0 0.0
  %833 = vmatpush1.msra.mxu0 0.0
  %834 = vmatprep.subr.mxu0 0.0
  %835 = vmatpush1.msra.mxu0 0.0
  %836 = vmatprep.subr.mxu0 0.0
  %837 = vmatpush1.msra.mxu0 0.0
  %838 = vmatprep.subr.mxu0 0.0
  %839 = vmatpush1.msra.mxu0 0.0
  %840 = vmatprep.subr.mxu0 0.0
  %841 = vmatpush1.msra.mxu0 0.0
  %842 = vmatprep.subr.mxu0 0.0
  %843 = vmatpush1.msra.mxu0 0.0
  %844 = vmatprep.subr.mxu0 0.0
  %845 = vmatpush1.msra.mxu0 0.0
  %846 = vmatprep.subr.mxu0 0.0
  %847 = vmatpush1.msra.mxu0 0.0
  %848 = vmatprep.subr.mxu0 0.0
  %849 = vmatpush1.msra.mxu0 %v479
  %850 = vmatprep.subr.mxu0 0.0
  %851 = vmatpush1.msra.mxu0 %v478
  %852 = vmatprep.subr.mxu0 0.0
  %853 = vmatpush1.msra.mxu0 %v477
  %854 = vmatprep.subr.mxu0 0.0
  %855 = vmatpush1.msra.mxu0 %v476
  %856 = vmatprep.subr.mxu0 0.0
  %857 = vmatpush2.msra.mxu0 0.0
  %858 = vmatprep.subr.mxu0 0.0
  %859 = vmatpush2.msra.mxu0 0.0
  %860 = vmatprep.subr.mxu0 0.0
  %861 = vmatpush2.msra.mxu0 0.0
  %862 = vmatprep.subr.mxu0 0.0
  %863 = vmatpush2.msra.mxu0 0.0
  %864 = vmatprep.subr.mxu0 0.0
  %865 = vmatpush2.msra.mxu0 0.0
  %866 = vmatprep.subr.mxu0 0.0
  %867 = vmatpush2.msra.mxu0 0.0
  %868 = vmatprep.subr.mxu0 0.0
  %869 = vmatpush2.msra.mxu0 0.0
  %870 = vmatprep.subr.mxu0 0.0
  %871 = vmatpush2.msra.mxu0 0.0
  %872 = vmatprep.subr.mxu0 0.0
  %873 = vmatpush2.msra.mxu0 0.0
  %874 = vmatprep.subr.mxu0 0.0
  %875 = vmatpush2.msra.mxu0 0.0
  %876 = vmatprep.subr.mxu0 0.0
  %877 = vmatpush2.msra.mxu0 0.0
  %878 = vmatprep.subr.mxu0 0.0
  %879 = vmatpush2.msra.mxu0 0.0
  %880 = vmatprep.subr.mxu0 0.0
  %881 = vmatpush2.msra.mxu0 0.0
  %882 = vmatprep.subr.mxu0 0.0
  %883 = vmatpush2.msra.mxu0 0.0
  %884 = vmatprep.subr.mxu0 0.0
  %885 = vmatpush2.msra.mxu0 0.0
  %886 = vmatprep.subr.mxu0 0.0
  %887 = vmatpush2.msra.mxu0 0.0
  %888 = vmatprep.mubr.f32.mxu0 0.0
  %889 = vmatmul.mubr.f32.gmra.mxu0 %v822
  %v890 = vpop.f32.mrf.mxu0
  %v891 = vadd.f32 %v663, %v890
  %v892 = vpop.f32.mrf.mxu0
  %893 = vmatprep.mubr.f32.mxu0 0.0
  %894 = vmatmul.mubr.f32.gmra.mxu0 %v822
  %v895 = vpop.f32.mrf.mxu0
  %v896 = vadd.f32 %v668, %v895
  %v897 = vpop.f32.mrf.mxu0
  %898 = vmatprep.mubr.f32.mxu0 0.0
  %899 = vmatmul.mubr.f32.gmra.mxu0 %v822
  %v900 = vpop.f32.mrf.mxu0
  %v901 = vadd.f32 %v673, %v900
  %v902 = vpop.f32.mrf.mxu0
  %903 = vmatprep.mubr.f32.mxu0 0.0
  %904 = vmatmul.mubr.f32.gmra.mxu0 %v822
  %v905 = vpop.f32.mrf.mxu0
  %v906 = vadd.f32 %v678, %v905
  %v907 = vpop.f32.mrf.mxu0
  %908 = vmatprep.mubr.f32.mxu0 0.0
  %909 = vmatmul.mubr.f32.gmra.mxu0 %v501
  %v910 = vpop.f32.mrf.mxu0
  %v911 = vadd.f32 %v683, %v910
  %v912 = vpop.f32.mrf.mxu0
  %913 = vmatprep.mubr.f32.mxu0 0.0
  %914 = vmatmul.mubr.f32.gmra.mxu0 %v504
  %v915 = vpop.f32.mrf.mxu0
  %v916 = vadd.f32 %v688, %v915
  %v917 = vpop.f32.mrf.mxu0
  %918 = vmatprep.mubr.f32.mxu0 0.0
  %919 = vmatmul.mubr.f32.gmra.mxu0 %v507
  %v920 = vpop.f32.mrf.mxu0
  %v921 = vadd.f32 %v693, %v920
  %v922 = vpop.f32.mrf.mxu0
  %923 = vmatprep.mubr.f32.mxu0 0.0
  %924 = vmatmul.mubr.f32.gmra.mxu0 %v510
  %v925 = vpop.f32.mrf.mxu0
  %v926 = vadd.f32 %v698, %v925
  %v927 = vpop.f32.mrf.mxu0
  %928 = vmatprep.mubr.f32.mxu0 0.0
  %929 = vmatmul.mubr.f32.gmra.mxu0 %v513
  %v930 = vpop.f32.mrf.mxu0
  %v931 = vadd.f32 %v703, %v930
  %v932 = vpop.f32.mrf.mxu0
  %933 = vmatprep.mubr.f32.mxu0 0.0
  %934 = vmatmul.mubr.f32.gmra.mxu0 %v516
  %v935 = vpop.f32.mrf.mxu0
  %v936 = vadd.f32 %v708, %v935
  %v937 = vpop.f32.mrf.mxu0
  %938 = vmatprep.mubr.f32.mxu0 0.0
  %939 = vmatmul.mubr.f32.gmra.mxu0 %v519
  %v940 = vpop.f32.mrf.mxu0
  %v941 = vadd.f32 %v713, %v940
  %v942 = vpop.f32.mrf.mxu0
  %943 = vmatprep.mubr.f32.mxu0 0.0
  %944 = vmatmul.mubr.f32.gmra.mxu0 %v522
  %v945 = vpop.f32.mrf.mxu0
  %v946 = vadd.f32 %v718, %v945
  %v947 = vpop.f32.mrf.mxu0
  %948 = vmatprep.mubr.f32.mxu0 0.0
  %949 = vmatmul.mubr.f32.gmra.mxu0 %v525
  %v950 = vpop.f32.mrf.mxu0
  %v951 = vadd.f32 %v723, %v950
  %v952 = vpop.f32.mrf.mxu0
  %953 = vmatprep.mubr.f32.mxu0 0.0
  %954 = vmatmul.mubr.f32.gmra.mxu0 %v528
  %v955 = vpop.f32.mrf.mxu0
  %v956 = vadd.f32 %v728, %v955
  %v957 = vpop.f32.mrf.mxu0
  %958 = vmatprep.mubr.f32.mxu0 0.0
  %959 = vmatmul.mubr.f32.gmra.mxu0 %v531
  %v960 = vpop.f32.mrf.mxu0
  %v961 = vadd.f32 %v733, %v960
  %v962 = vpop.f32.mrf.mxu0
  %963 = vmatprep.mubr.f32.mxu0 0.0
  %964 = vmatmul.mubr.f32.gmra.mxu0 %v534
  %v965 = vpop.f32.mrf.mxu0
  %v966 = vadd.f32 %v738, %v965
  %v967 = vpop.f32.mrf.mxu0
  %968 = vmatprep.mubr.f32.mxu0 0.0
  %969 = vmatmul.mubr.f32.gmra.mxu0 %v537
  %v970 = vpop.f32.mrf.mxu0
  %v971 = vadd.f32 %v743, %v970
  %v972 = vpop.f32.mrf.mxu0
  %973 = vmatprep.mubr.f32.mxu0 0.0
  %974 = vmatmul.mubr.f32.gmra.mxu0 %v540
  %v975 = vpop.f32.mrf.mxu0
  %v976 = vadd.f32 %v748, %v975
  %v977 = vpop.f32.mrf.mxu0
  %978 = vmatprep.mubr.f32.mxu0 0.0
  %979 = vmatmul.mubr.f32.gmra.mxu0 %v543
  %v980 = vpop.f32.mrf.mxu0
  %v981 = vadd.f32 %v753, %v980
  %v982 = vpop.f32.mrf.mxu0
  %983 = vmatprep.mubr.f32.mxu0 0.0
  %984 = vmatmul.mubr.f32.gmra.mxu0 %v546
  %v985 = vpop.f32.mrf.mxu0
  %v986 = vadd.f32 %v758, %v985
  %v987 = vpop.f32.mrf.mxu0
  %988 = vmatprep.mubr.f32.mxu0 0.0
  %989 = vmatmul.mubr.f32.gmra.mxu0 %v549
  %v990 = vpop.f32.mrf.mxu0
  %v991 = vadd.f32 %v763, %v990
  %v992 = vpop.f32.mrf.mxu0
  %993 = vmatprep.mubr.f32.mxu0 0.0
  %994 = vmatmul.mubr.f32.gmra.mxu0 %v552
  %v995 = vpop.f32.mrf.mxu0
  %v996 = vadd.f32 %v768, %v995
  %v997 = vpop.f32.mrf.mxu0
  %998 = vmatprep.mubr.f32.mxu0 0.0
  %999 = vmatmul.mubr.f32.gmra.mxu0 %v555
  %v1000 = vpop.f32.mrf.mxu0
  %v1001 = vadd.f32 %v773, %v1000
  %v1002 = vpop.f32.mrf.mxu0
  %1003 = vmatprep.mubr.f32.mxu0 0.0
  %1004 = vmatmul.mubr.f32.gmra.mxu0 %v558
  %v1005 = vpop.f32.mrf.mxu0
  %v1006 = vadd.f32 %v778, %v1005
  %v1007 = vpop.f32.mrf.mxu0
  %1008 = vmatprep.mubr.f32.mxu0 0.0
  %1009 = vmatmul.mubr.f32.gmra.mxu0 %v561
  %v1010 = vpop.f32.mrf.mxu0
  %v1011 = vadd.f32 %v783, %v1010
  %v1012 = vpop.f32.mrf.mxu0
  %1013 = vmatprep.mubr.f32.mxu0 0.0
  %1014 = vmatmul.mubr.f32.gmra.mxu0 %v564
  %v1015 = vpop.f32.mrf.mxu0
  %v1016 = vadd.f32 %v788, %v1015
  %v1017 = vpop.f32.mrf.mxu0
  %1018 = vmatprep.mubr.f32.mxu0 0.0
  %1019 = vmatmul.mubr.f32.gmra.mxu0 %v567
  %v1020 = vpop.f32.mrf.mxu0
  %v1021 = vadd.f32 %v793, %v1020
  %v1022 = vpop.f32.mrf.mxu0
  %1023 = vmatprep.mubr.f32.mxu0 0.0
  %1024 = vmatmul.mubr.f32.gmra.mxu0 %v570
  %v1025 = vpop.f32.mrf.mxu0
  %v1026 = vadd.f32 %v798, %v1025
  %v1027 = vpop.f32.mrf.mxu0
  %1028 = vmatprep.mubr.f32.mxu0 0.0
  %1029 = vmatmul.mubr.f32.gmra.mxu0 %v573
  %v1030 = vpop.f32.mrf.mxu0
  %v1031 = vadd.f32 %v803, %v1030
  %v1032 = vpop.f32.mrf.mxu0
  %1033 = vmatprep.mubr.f32.mxu0 0.0
  %1034 = vmatmul.mubr.f32.gmra.mxu0 %v576
  %v1035 = vpop.f32.mrf.mxu0
  %v1036 = vadd.f32 %v808, %v1035
  %v1037 = vpop.f32.mrf.mxu0
  %1038 = vmatprep.mubr.f32.mxu0 0.0
  %1039 = vmatmul.mubr.f32.gmra.mxu0 %v579
  %v1040 = vpop.f32.mrf.mxu0
  %v1041 = vadd.f32 %v813, %v1040
  %v1042 = vpop.f32.mrf.mxu0
  %1043 = vmatprep.mubr.f32.mxu0 0.0
  %1044 = vmatmul.mubr.f32.gmra.mxu0 %v582
  %v1045 = vpop.f32.mrf.mxu0
  %v1046 = vadd.f32 %v818, %v1045
  %v1047 = vpop.f32.mrf.mxu0
  %1048 = vdwg.mxu0
  %v1050 = vlaneseq
  %v1051 = vshrl.u32 %v1050, 7
  %v1052 = vsub.s32 0, %v1051
  %v1053 = vrot.slane %v484, %v1052
  %v1055 = vadd.f32 %v891, %v1053
  %v1056 = vadd.f32 %v896, %v1053
  %v1057 = vadd.f32 %v901, %v1053
  %v1058 = vadd.f32 %v906, %v1053
  %v1059 = vadd.f32 %v911, %v1053
  %v1060 = vadd.f32 %v916, %v1053
  %v1061 = vadd.f32 %v921, %v1053
  %v1062 = vadd.f32 %v926, %v1053
  %v1063 = vadd.f32 %v931, %v1053
  %v1064 = vadd.f32 %v936, %v1053
  %v1065 = vadd.f32 %v941, %v1053
  %v1066 = vadd.f32 %v946, %v1053
  %v1067 = vadd.f32 %v951, %v1053
  %v1068 = vadd.f32 %v956, %v1053
  %v1069 = vadd.f32 %v961, %v1053
  %v1070 = vadd.f32 %v966, %v1053
  %v1071 = vadd.f32 %v971, %v1053
  %v1072 = vadd.f32 %v976, %v1053
  %v1073 = vadd.f32 %v981, %v1053
  %v1074 = vadd.f32 %v986, %v1053
  %v1075 = vadd.f32 %v991, %v1053
  %v1076 = vadd.f32 %v996, %v1053
  %v1077 = vadd.f32 %v1001, %v1053
  %v1078 = vadd.f32 %v1006, %v1053
  %v1079 = vadd.f32 %v1011, %v1053
  %v1080 = vadd.f32 %v1016, %v1053
  %v1081 = vadd.f32 %v1021, %v1053
  %v1082 = vadd.f32 %v1026, %v1053
  %v1083 = vadd.f32 %v1031, %v1053
  %v1084 = vadd.f32 %v1036, %v1053
  %v1085 = vadd.f32 %v1041, %v1053
  %v1086 = vadd.f32 %v1046, %v1053
  %v1087 = vtanh.pop %v1055
  %v1088 = vtanh.pop %v1056
  %v1089 = vtanh.pop %v1057
  %v1090 = vtanh.pop %v1058
  %v1091 = vtanh.pop %v1059
  %v1092 = vtanh.pop %v1060
  %v1093 = vtanh.pop %v1061
  %v1094 = vtanh.pop %v1062
  %v1095 = vtanh.pop %v1063
  %v1096 = vtanh.pop %v1064
  %v1097 = vtanh.pop %v1065
  %v1098 = vtanh.pop %v1066
  %v1099 = vtanh.pop %v1067
  %v1100 = vtanh.pop %v1068
  %v1101 = vtanh.pop %v1069
  %v1102 = vtanh.pop %v1070
  %v1103 = vtanh.pop %v1071
  %v1104 = vtanh.pop %v1072
  %v1105 = vtanh.pop %v1073
  %v1106 = vtanh.pop %v1074
  %v1107 = vtanh.pop %v1075
  %v1108 = vtanh.pop %v1076
  %v1109 = vtanh.pop %v1077
  %v1110 = vtanh.pop %v1078
  %v1111 = vtanh.pop %v1079
  %v1112 = vtanh.pop %v1080
  %v1113 = vtanh.pop %v1081
  %v1114 = vtanh.pop %v1082
  %v1115 = vtanh.pop %v1083
  %v1116 = vtanh.pop %v1084
  %v1117 = vtanh.pop %v1085
  %v1118 = vtanh.pop %v1086
  %v1119 = vxor.u32 %v1055, 2147483648
  %v1120 = vxor.u32 %v1056, 2147483648
  %v1121 = vxor.u32 %v1057, 2147483648
  %v1122 = vxor.u32 %v1058, 2147483648
  %v1123 = vxor.u32 %v1059, 2147483648
  %v1124 = vxor.u32 %v1060, 2147483648
  %v1125 = vxor.u32 %v1061, 2147483648
  %v1126 = vxor.u32 %v1062, 2147483648
  %v1127 = vxor.u32 %v1063, 2147483648
  %v1128 = vxor.u32 %v1064, 2147483648
  %v1129 = vxor.u32 %v1065, 2147483648
  %v1130 = vxor.u32 %v1066, 2147483648
  %v1131 = vxor.u32 %v1067, 2147483648
  %v1132 = vxor.u32 %v1068, 2147483648
  %v1133 = vxor.u32 %v1069, 2147483648
  %v1134 = vxor.u32 %v1070, 2147483648
  %v1135 = vxor.u32 %v1071, 2147483648
  %v1136 = vxor.u32 %v1072, 2147483648
  %v1137 = vxor.u32 %v1073, 2147483648
  %v1138 = vxor.u32 %v1074, 2147483648
  %v1139 = vxor.u32 %v1075, 2147483648
  %v1140 = vxor.u32 %v1076, 2147483648
  %v1141 = vxor.u32 %v1077, 2147483648
  %v1142 = vxor.u32 %v1078, 2147483648
  %v1143 = vxor.u32 %v1079, 2147483648
  %v1144 = vxor.u32 %v1080, 2147483648
  %v1145 = vxor.u32 %v1081, 2147483648
  %v1146 = vxor.u32 %v1082, 2147483648
  %v1147 = vxor.u32 %v1083, 2147483648
  %v1148 = vxor.u32 %v1084, 2147483648
  %v1149 = vxor.u32 %v1085, 2147483648
  %v1150 = vxor.u32 %v1086, 2147483648
  %v1151 = vmul.f32 %v1119, 1.442695
  %v1152 = vpow.pop %v1151
  %v1153 = vmul.f32 %v1120, 1.442695
  %v1154 = vpow.pop %v1153
  %v1155 = vmul.f32 %v1121, 1.442695
  %v1156 = vpow.pop %v1155
  %v1157 = vmul.f32 %v1122, 1.442695
  %v1158 = vpow.pop %v1157
  %v1159 = vmul.f32 %v1123, 1.442695
  %v1160 = vpow.pop %v1159
  %v1161 = vmul.f32 %v1124, 1.442695
  %v1162 = vpow.pop %v1161
  %v1163 = vmul.f32 %v1125, 1.442695
  %v1164 = vpow.pop %v1163
  %v1165 = vmul.f32 %v1126, 1.442695
  %v1166 = vpow.pop %v1165
  %v1167 = vmul.f32 %v1127, 1.442695
  %v1168 = vpow.pop %v1167
  %v1169 = vmul.f32 %v1128, 1.442695
  %v1170 = vpow.pop %v1169
  %v1171 = vmul.f32 %v1129, 1.442695
  %v1172 = vpow.pop %v1171
  %v1173 = vmul.f32 %v1130, 1.442695
  %v1174 = vpow.pop %v1173
  %v1175 = vmul.f32 %v1131, 1.442695
  %v1176 = vpow.pop %v1175
  %v1177 = vmul.f32 %v1132, 1.442695
  %v1178 = vpow.pop %v1177
  %v1179 = vmul.f32 %v1133, 1.442695
  %v1180 = vpow.pop %v1179
  %v1181 = vmul.f32 %v1134, 1.442695
  %v1182 = vpow.pop %v1181
  %v1183 = vmul.f32 %v1135, 1.442695
  %v1184 = vpow.pop %v1183
  %v1185 = vmul.f32 %v1136, 1.442695
  %v1186 = vpow.pop %v1185
  %v1187 = vmul.f32 %v1137, 1.442695
  %v1188 = vpow.pop %v1187
  %v1189 = vmul.f32 %v1138, 1.442695
  %v1190 = vpow.pop %v1189
  %v1191 = vmul.f32 %v1139, 1.442695
  %v1192 = vpow.pop %v1191
  %v1193 = vmul.f32 %v1140, 1.442695
  %v1194 = vpow.pop %v1193
  %v1195 = vmul.f32 %v1141, 1.442695
  %v1196 = vpow.pop %v1195
  %v1197 = vmul.f32 %v1142, 1.442695
  %v1198 = vpow.pop %v1197
  %v1199 = vmul.f32 %v1143, 1.442695
  %v1200 = vpow.pop %v1199
  %v1201 = vmul.f32 %v1144, 1.442695
  %v1202 = vpow.pop %v1201
  %v1203 = vmul.f32 %v1145, 1.442695
  %v1204 = vpow.pop %v1203
  %v1205 = vmul.f32 %v1146, 1.442695
  %v1206 = vpow.pop %v1205
  %v1207 = vmul.f32 %v1147, 1.442695
  %v1208 = vpow.pop %v1207
  %v1209 = vmul.f32 %v1148, 1.442695
  %v1210 = vpow.pop %v1209
  %v1211 = vmul.f32 %v1149, 1.442695
  %v1212 = vpow.pop %v1211
  %v1213 = vmul.f32 %v1150, 1.442695
  %v1214 = vpow.pop %v1213
  %v1215 = vadd.f32 %v1152, 1.0
  %v1216 = vadd.f32 %v1154, 1.0
  %v1217 = vadd.f32 %v1156, 1.0
  %v1218 = vadd.f32 %v1158, 1.0
  %v1219 = vadd.f32 %v1160, 1.0
  %v1220 = vadd.f32 %v1162, 1.0
  %v1221 = vadd.f32 %v1164, 1.0
  %v1222 = vadd.f32 %v1166, 1.0
  %v1223 = vadd.f32 %v1168, 1.0
  %v1224 = vadd.f32 %v1170, 1.0
  %v1225 = vadd.f32 %v1172, 1.0
  %v1226 = vadd.f32 %v1174, 1.0
  %v1227 = vadd.f32 %v1176, 1.0
  %v1228 = vadd.f32 %v1178, 1.0
  %v1229 = vadd.f32 %v1180, 1.0
  %v1230 = vadd.f32 %v1182, 1.0
  %v1231 = vadd.f32 %v1184, 1.0
  %v1232 = vadd.f32 %v1186, 1.0
  %v1233 = vadd.f32 %v1188, 1.0
  %v1234 = vadd.f32 %v1190, 1.0
  %v1235 = vadd.f32 %v1192, 1.0
  %v1236 = vadd.f32 %v1194, 1.0
  %v1237 = vadd.f32 %v1196, 1.0
  %v1238 = vadd.f32 %v1198, 1.0
  %v1239 = vadd.f32 %v1200, 1.0
  %v1240 = vadd.f32 %v1202, 1.0
  %v1241 = vadd.f32 %v1204, 1.0
  %v1242 = vadd.f32 %v1206, 1.0
  %v1243 = vadd.f32 %v1208, 1.0
  %v1244 = vadd.f32 %v1210, 1.0
  %v1245 = vadd.f32 %v1212, 1.0
  %v1246 = vadd.f32 %v1214, 1.0
  %v1247 = vrcp.pop %v1215
  %v1248 = vmul.f32 1.0, %v1247
  %v1249 = vrcp.pop %v1216
  %v1250 = vmul.f32 1.0, %v1249
  %v1251 = vrcp.pop %v1217
  %v1252 = vmul.f32 1.0, %v1251
  %v1253 = vrcp.pop %v1218
  %v1254 = vmul.f32 1.0, %v1253
  %v1255 = vrcp.pop %v1219
  %v1256 = vmul.f32 1.0, %v1255
  %v1257 = vrcp.pop %v1220
  %v1258 = vmul.f32 1.0, %v1257
  %v1259 = vrcp.pop %v1221
  %v1260 = vmul.f32 1.0, %v1259
  %v1261 = vrcp.pop %v1222
  %v1262 = vmul.f32 1.0, %v1261
  %v1263 = vrcp.pop %v1223
  %v1264 = vmul.f32 1.0, %v1263
  %v1265 = vrcp.pop %v1224
  %v1266 = vmul.f32 1.0, %v1265
  %v1267 = vrcp.pop %v1225
  %v1268 = vmul.f32 1.0, %v1267
  %v1269 = vrcp.pop %v1226
  %v1270 = vmul.f32 1.0, %v1269
  %v1271 = vrcp.pop %v1227
  %v1272 = vmul.f32 1.0, %v1271
  %v1273 = vrcp.pop %v1228
  %v1274 = vmul.f32 1.0, %v1273
  %v1275 = vrcp.pop %v1229
  %v1276 = vmul.f32 1.0, %v1275
  %v1277 = vrcp.pop %v1230
  %v1278 = vmul.f32 1.0, %v1277
  %v1279 = vrcp.pop %v1231
  %v1280 = vmul.f32 1.0, %v1279
  %v1281 = vrcp.pop %v1232
  %v1282 = vmul.f32 1.0, %v1281
  %v1283 = vrcp.pop %v1233
  %v1284 = vmul.f32 1.0, %v1283
  %v1285 = vrcp.pop %v1234
  %v1286 = vmul.f32 1.0, %v1285
  %v1287 = vrcp.pop %v1235
  %v1288 = vmul.f32 1.0, %v1287
  %v1289 = vrcp.pop %v1236
  %v1290 = vmul.f32 1.0, %v1289
  %v1291 = vrcp.pop %v1237
  %v1292 = vmul.f32 1.0, %v1291
  %v1293 = vrcp.pop %v1238
  %v1294 = vmul.f32 1.0, %v1293
  %v1295 = vrcp.pop %v1239
  %v1296 = vmul.f32 1.0, %v1295
  %v1297 = vrcp.pop %v1240
  %v1298 = vmul.f32 1.0, %v1297
  %v1299 = vrcp.pop %v1241
  %v1300 = vmul.f32 1.0, %v1299
  %v1301 = vrcp.pop %v1242
  %v1302 = vmul.f32 1.0, %v1301
  %v1303 = vrcp.pop %v1243
  %v1304 = vmul.f32 1.0, %v1303
  %v1305 = vrcp.pop %v1244
  %v1306 = vmul.f32 1.0, %v1305
  %v1307 = vrcp.pop %v1245
  %v1308 = vmul.f32 1.0, %v1307
  %v1309 = vrcp.pop %v1246
  %v1310 = vmul.f32 1.0, %v1309
  %1343 = vrot.lane.b32.xlu0 %v1248, 96
  %v1344 = vpop.permute.xlu0 %1343
  %1345 = vrot.lane.b32.xlu0 %v1250, 96
  %v1346 = vpop.permute.xlu0 %1345
  %1347 = vrot.lane.b32.xlu0 %v1252, 96
  %v1348 = vpop.permute.xlu0 %1347
  %1349 = vrot.lane.b32.xlu0 %v1254, 96
  %v1350 = vpop.permute.xlu0 %1349
  %1351 = vrot.lane.b32.xlu0 %v1256, 96
  %v1352 = vpop.permute.xlu0 %1351
  %1353 = vrot.lane.b32.xlu0 %v1258, 96
  %v1354 = vpop.permute.xlu0 %1353
  %1355 = vrot.lane.b32.xlu0 %v1260, 96
  %v1356 = vpop.permute.xlu0 %1355
  %1357 = vrot.lane.b32.xlu0 %v1262, 96
  %v1358 = vpop.permute.xlu0 %1357
  %1359 = vrot.lane.b32.xlu0 %v1264, 96
  %v1360 = vpop.permute.xlu0 %1359
  %1361 = vrot.lane.b32.xlu0 %v1266, 96
  %v1362 = vpop.permute.xlu0 %1361
  %1363 = vrot.lane.b32.xlu0 %v1268, 96
  %v1364 = vpop.permute.xlu0 %1363
  %1365 = vrot.lane.b32.xlu0 %v1270, 96
  %v1366 = vpop.permute.xlu0 %1365
  %1367 = vrot.lane.b32.xlu0 %v1272, 96
  %v1368 = vpop.permute.xlu0 %1367
  %1369 = vrot.lane.b32.xlu0 %v1274, 96
  %v1370 = vpop.permute.xlu0 %1369
  %1371 = vrot.lane.b32.xlu0 %v1276, 96
  %v1372 = vpop.permute.xlu0 %1371
  %1373 = vrot.lane.b32.xlu0 %v1278, 96
  %v1374 = vpop.permute.xlu0 %1373
  %1375 = vrot.lane.b32.xlu0 %v1280, 96
  %v1376 = vpop.permute.xlu0 %1375
  %1377 = vrot.lane.b32.xlu0 %v1282, 96
  %v1378 = vpop.permute.xlu0 %1377
  %1379 = vrot.lane.b32.xlu0 %v1284, 96
  %v1380 = vpop.permute.xlu0 %1379
  %1381 = vrot.lane.b32.xlu0 %v1286, 96
  %v1382 = vpop.permute.xlu0 %1381
  %1383 = vrot.lane.b32.xlu0 %v1288, 96
  %v1384 = vpop.permute.xlu0 %1383
  %1385 = vrot.lane.b32.xlu0 %v1290, 96
  %v1386 = vpop.permute.xlu0 %1385
  %1387 = vrot.lane.b32.xlu0 %v1292, 96
  %v1388 = vpop.permute.xlu0 %1387
  %1389 = vrot.lane.b32.xlu0 %v1294, 96
  %v1390 = vpop.permute.xlu0 %1389
  %1391 = vrot.lane.b32.xlu0 %v1296, 96
  %v1392 = vpop.permute.xlu0 %1391
  %1393 = vrot.lane.b32.xlu0 %v1298, 96
  %v1394 = vpop.permute.xlu0 %1393
  %1395 = vrot.lane.b32.xlu0 %v1300, 96
  %v1396 = vpop.permute.xlu0 %1395
  %1397 = vrot.lane.b32.xlu0 %v1302, 96
  %v1398 = vpop.permute.xlu0 %1397
  %1399 = vrot.lane.b32.xlu0 %v1304, 96
  %v1400 = vpop.permute.xlu0 %1399
  %1401 = vrot.lane.b32.xlu0 %v1306, 96
  %v1402 = vpop.permute.xlu0 %1401
  %1403 = vrot.lane.b32.xlu0 %v1308, 96
  %v1404 = vpop.permute.xlu0 %1403
  %1405 = vrot.lane.b32.xlu0 %v1310, 96
  %v1406 = vpop.permute.xlu0 %1405
  %v1439 = vmul.f32 %v1087, %v1344
  %v1440 = vmul.f32 %v1088, %v1346
  %v1441 = vmul.f32 %v1089, %v1348
  %v1442 = vmul.f32 %v1090, %v1350
  %v1443 = vmul.f32 %v1091, %v1352
  %v1444 = vmul.f32 %v1092, %v1354
  %v1445 = vmul.f32 %v1093, %v1356
  %v1446 = vmul.f32 %v1094, %v1358
  %v1447 = vmul.f32 %v1095, %v1360
  %v1448 = vmul.f32 %v1096, %v1362
  %v1449 = vmul.f32 %v1097, %v1364
  %v1450 = vmul.f32 %v1098, %v1366
  %v1451 = vmul.f32 %v1099, %v1368
  %v1452 = vmul.f32 %v1100, %v1370
  %v1453 = vmul.f32 %v1101, %v1372
  %v1454 = vmul.f32 %v1102, %v1374
  %v1455 = vmul.f32 %v1103, %v1376
  %v1456 = vmul.f32 %v1104, %v1378
  %v1457 = vmul.f32 %v1105, %v1380
  %v1458 = vmul.f32 %v1106, %v1382
  %v1459 = vmul.f32 %v1107, %v1384
  %v1460 = vmul.f32 %v1108, %v1386
  %v1461 = vmul.f32 %v1109, %v1388
  %v1462 = vmul.f32 %v1110, %v1390
  %v1463 = vmul.f32 %v1111, %v1392
  %v1464 = vmul.f32 %v1112, %v1394
  %v1465 = vmul.f32 %v1113, %v1396
  %v1466 = vmul.f32 %v1114, %v1398
  %v1467 = vmul.f32 %v1115, %v1400
  %v1468 = vmul.f32 %v1116, %v1402
  %v1469 = vmul.f32 %v1117, %v1404
  %v1470 = vmul.f32 %v1118, %v1406
  %v1471 = vadd.f32 %v1439, %v144
  %v1472 = vadd.f32 %v1440, %v145
  %v1473 = vadd.f32 %v1441, %v146
  %v1474 = vadd.f32 %v1442, %v147
  %v1475 = vadd.f32 %v1443, %v148
  %v1476 = vadd.f32 %v1444, %v149
  %v1477 = vadd.f32 %v1445, %v150
  %v1478 = vadd.f32 %v1446, %v151
  %v1479 = vadd.f32 %v1447, %v152
  %v1480 = vadd.f32 %v1448, %v153
  %v1481 = vadd.f32 %v1449, %v154
  %v1482 = vadd.f32 %v1450, %v155
  %v1483 = vadd.f32 %v1451, %v156
  %v1484 = vadd.f32 %v1452, %v157
  %v1485 = vadd.f32 %v1453, %v158
  %v1486 = vadd.f32 %v1454, %v159
  %v1487 = vadd.f32 %v1455, %v160
  %v1488 = vadd.f32 %v1456, %v161
  %v1489 = vadd.f32 %v1457, %v162
  %v1490 = vadd.f32 %v1458, %v163
  %v1491 = vadd.f32 %v1459, %v164
  %v1492 = vadd.f32 %v1460, %v165
  %v1493 = vadd.f32 %v1461, %v166
  %v1494 = vadd.f32 %v1462, %v167
  %v1495 = vadd.f32 %v1463, %v168
  %v1496 = vadd.f32 %v1464, %v169
  %v1497 = vadd.f32 %v1465, %v170
  %v1498 = vadd.f32 %v1466, %v171
  %v1499 = vadd.f32 %v1467, %v172
  %v1500 = vadd.f32 %v1468, %v173
  %v1501 = vadd.f32 %v1469, %v174
  %v1502 = vadd.f32 %v1470, %v175
  %v1503 = vmax.f32 %v1471, 0.0
  %v1504 = vmax.f32 %v1472, 0.0
  %v1505 = vmax.f32 %v1473, 0.0
  %v1506 = vmax.f32 %v1474, 0.0
  %v1507 = vmax.f32 %v1475, 0.0
  %v1508 = vmax.f32 %v1476, 0.0
  %v1509 = vmax.f32 %v1477, 0.0
  %v1510 = vmax.f32 %v1478, 0.0
  %v1511 = vmax.f32 %v1479, 0.0
  %v1512 = vmax.f32 %v1480, 0.0
  %v1513 = vmax.f32 %v1481, 0.0
  %v1514 = vmax.f32 %v1482, 0.0
  %v1515 = vmax.f32 %v1483, 0.0
  %v1516 = vmax.f32 %v1484, 0.0
  %v1517 = vmax.f32 %v1485, 0.0
  %v1518 = vmax.f32 %v1486, 0.0
  %v1519 = vmax.f32 %v1487, 0.0
  %v1520 = vmax.f32 %v1488, 0.0
  %v1521 = vmax.f32 %v1489, 0.0
  %v1522 = vmax.f32 %v1490, 0.0
  %v1523 = vmax.f32 %v1491, 0.0
  %v1524 = vmax.f32 %v1492, 0.0
  %v1525 = vmax.f32 %v1493, 0.0
  %v1526 = vmax.f32 %v1494, 0.0
  %v1527 = vmax.f32 %v1495, 0.0
  %v1528 = vmax.f32 %v1496, 0.0
  %v1529 = vmax.f32 %v1497, 0.0
  %v1530 = vmax.f32 %v1498, 0.0
  %v1531 = vmax.f32 %v1499, 0.0
  %v1532 = vmax.f32 %v1500, 0.0
  %v1533 = vmax.f32 %v1501, 0.0
  %v1534 = vmax.f32 %v1502, 0.0
  %v1536 = vlaneseq
  %v1537 = vshrl.u32 %v1536, 7
  %v1538 = vsub.s32 0, %v1537
  %v1539 = vrot.slane %v489, %v1538
  %v1542 = vsel %vm499, %v1503, 0
  %v1545 = vsel %vm499, %v1504, 0
  %v1548 = vsel %vm499, %v1505, 0
  %v1551 = vsel %vm499, %v1506, 0
  %v1554 = vsel %vm499, %v1507, 0
  %v1557 = vsel %vm499, %v1508, 0
  %v1560 = vsel %vm499, %v1509, 0
  %v1563 = vsel %vm499, %v1510, 0
  %v1566 = vsel %vm499, %v1511, 0
  %v1569 = vsel %vm499, %v1512, 0
  %v1572 = vsel %vm499, %v1513, 0
  %v1575 = vsel %vm499, %v1514, 0
  %v1578 = vsel %vm499, %v1515, 0
  %v1581 = vsel %vm499, %v1516, 0
  %v1584 = vsel %vm499, %v1517, 0
  %v1587 = vsel %vm499, %v1518, 0
  %v1590 = vsel %vm499, %v1519, 0
  %v1593 = vsel %vm499, %v1520, 0
  %v1596 = vsel %vm499, %v1521, 0
  %v1599 = vsel %vm499, %v1522, 0
  %v1602 = vsel %vm499, %v1523, 0
  %v1605 = vsel %vm499, %v1524, 0
  %v1608 = vsel %vm499, %v1525, 0
  %v1611 = vsel %vm499, %v1526, 0
  %v1614 = vsel %vm499, %v1527, 0
  %v1617 = vsel %vm499, %v1528, 0
  %v1620 = vsel %vm499, %v1529, 0
  %v1623 = vsel %vm499, %v1530, 0
  %v1626 = vsel %vm499, %v1531, 0
  %v1629 = vsel %vm499, %v1532, 0
  %v1632 = vsel %vm499, %v1533, 0
  %v1635 = vsel %vm499, %v1534, 0
  %1637 = vmatprep.subr.mxu0 0.0
  %1638 = vmatpush1.msra.mxu0 0.0
  %1639 = vmatprep.subr.mxu0 0.0
  %1640 = vmatpush1.msra.mxu0 0.0
  %1641 = vmatprep.subr.mxu0 0.0
  %1642 = vmatpush1.msra.mxu0 0.0
  %1643 = vmatprep.subr.mxu0 0.0
  %1644 = vmatpush1.msra.mxu0 0.0
  %1645 = vmatprep.subr.mxu0 0.0
  %1646 = vmatpush1.msra.mxu0 0.0
  %1647 = vmatprep.subr.mxu0 0.0
  %1648 = vmatpush1.msra.mxu0 0.0
  %1649 = vmatprep.subr.mxu0 0.0
  %1650 = vmatpush1.msra.mxu0 0.0
  %1651 = vmatprep.subr.mxu0 0.0
  %1652 = vmatpush1.msra.mxu0 0.0
  %1653 = vmatprep.subr.mxu0 0.0
  %1654 = vmatpush1.msra.mxu0 0.0
  %1655 = vmatprep.subr.mxu0 0.0
  %1656 = vmatpush1.msra.mxu0 0.0
  %1657 = vmatprep.subr.mxu0 0.0
  %1658 = vmatpush1.msra.mxu0 0.0
  %1659 = vmatprep.subr.mxu0 0.0
  %1660 = vmatpush1.msra.mxu0 0.0
  %1661 = vmatprep.subr.mxu0 0.0
  %1662 = vmatpush1.msra.mxu0 %v488
  %1663 = vmatprep.subr.mxu0 0.0
  %1664 = vmatpush1.msra.mxu0 %v487
  %1665 = vmatprep.subr.mxu0 0.0
  %1666 = vmatpush1.msra.mxu0 %v486
  %1667 = vmatprep.subr.mxu0 0.0
  %1668 = vmatpush1.msra.mxu0 %v485
  %1669 = vmatprep.subr.mxu0 0.0
  %1670 = vmatpush2.msra.mxu0 0.0
  %1671 = vmatprep.subr.mxu0 0.0
  %1672 = vmatpush2.msra.mxu0 0.0
  %1673 = vmatprep.subr.mxu0 0.0
  %1674 = vmatpush2.msra.mxu0 0.0
  %1675 = vmatprep.subr.mxu0 0.0
  %1676 = vmatpush2.msra.mxu0 0.0
  %1677 = vmatprep.subr.mxu0 0.0
  %1678 = vmatpush2.msra.mxu0 0.0
  %1679 = vmatprep.subr.mxu0 0.0
  %1680 = vmatpush2.msra.mxu0 0.0
  %1681 = vmatprep.subr.mxu0 0.0
  %1682 = vmatpush2.msra.mxu0 0.0
  %1683 = vmatprep.subr.mxu0 0.0
  %1684 = vmatpush2.msra.mxu0 0.0
  %1685 = vmatprep.subr.mxu0 0.0
  %1686 = vmatpush2.msra.mxu0 0.0
  %1687 = vmatprep.subr.mxu0 0.0
  %1688 = vmatpush2.msra.mxu0 0.0
  %1689 = vmatprep.subr.mxu0 0.0
  %1690 = vmatpush2.msra.mxu0 0.0
  %1691 = vmatprep.subr.mxu0 0.0
  %1692 = vmatpush2.msra.mxu0 0.0
  %1693 = vmatprep.subr.mxu0 0.0
  %1694 = vmatpush2.msra.mxu0 0.0
  %1695 = vmatprep.subr.mxu0 0.0
  %1696 = vmatpush2.msra.mxu0 0.0
  %1697 = vmatprep.subr.mxu0 0.0
  %1698 = vmatpush2.msra.mxu0 0.0
  %1699 = vmatprep.subr.mxu0 0.0
  %1700 = vmatpush2.msra.mxu0 0.0
  %1701 = vmatprep.mubr.f32.mxu0 0.0
  %1702 = vmatmul.mubr.f32.gmra.mxu0 %v1542
  %v1703 = vpop.f32.mrf.mxu0
  %v1704 = vadd.f32 %v1539, %v1703
  %v1705 = vpop.f32.mrf.mxu0
  %1706 = vmatprep.mubr.f32.mxu0 0.0
  %1707 = vmatmul.mubr.f32.gmra.mxu0 %v1545
  %v1708 = vpop.f32.mrf.mxu0
  %v1709 = vadd.f32 %v1539, %v1708
  %v1710 = vpop.f32.mrf.mxu0
  %1711 = vmatprep.mubr.f32.mxu0 0.0
  %1712 = vmatmul.mubr.f32.gmra.mxu0 %v1548
  %v1713 = vpop.f32.mrf.mxu0
  %v1714 = vadd.f32 %v1539, %v1713
  %v1715 = vpop.f32.mrf.mxu0
  %1716 = vmatprep.mubr.f32.mxu0 0.0
  %1717 = vmatmul.mubr.f32.gmra.mxu0 %v1551
  %v1718 = vpop.f32.mrf.mxu0
  %v1719 = vadd.f32 %v1539, %v1718
  %v1720 = vpop.f32.mrf.mxu0
  %1721 = vmatprep.mubr.f32.mxu0 0.0
  %1722 = vmatmul.mubr.f32.gmra.mxu0 %v1554
  %v1723 = vpop.f32.mrf.mxu0
  %v1724 = vadd.f32 %v1539, %v1723
  %v1725 = vpop.f32.mrf.mxu0
  %1726 = vmatprep.mubr.f32.mxu0 0.0
  %1727 = vmatmul.mubr.f32.gmra.mxu0 %v1557
  %v1728 = vpop.f32.mrf.mxu0
  %v1729 = vadd.f32 %v1539, %v1728
  %v1730 = vpop.f32.mrf.mxu0
  %1731 = vmatprep.mubr.f32.mxu0 0.0
  %1732 = vmatmul.mubr.f32.gmra.mxu0 %v1560
  %v1733 = vpop.f32.mrf.mxu0
  %v1734 = vadd.f32 %v1539, %v1733
  %v1735 = vpop.f32.mrf.mxu0
  %1736 = vmatprep.mubr.f32.mxu0 0.0
  %1737 = vmatmul.mubr.f32.gmra.mxu0 %v1563
  %v1738 = vpop.f32.mrf.mxu0
  %v1739 = vadd.f32 %v1539, %v1738
  %v1740 = vpop.f32.mrf.mxu0
  %1741 = vmatprep.mubr.f32.mxu0 0.0
  %1742 = vmatmul.mubr.f32.gmra.mxu0 %v1566
  %v1743 = vpop.f32.mrf.mxu0
  %v1744 = vadd.f32 %v1539, %v1743
  %v1745 = vpop.f32.mrf.mxu0
  %1746 = vmatprep.mubr.f32.mxu0 0.0
  %1747 = vmatmul.mubr.f32.gmra.mxu0 %v1569
  %v1748 = vpop.f32.mrf.mxu0
  %v1749 = vadd.f32 %v1539, %v1748
  %v1750 = vpop.f32.mrf.mxu0
  %1751 = vmatprep.mubr.f32.mxu0 0.0
  %1752 = vmatmul.mubr.f32.gmra.mxu0 %v1572
  %v1753 = vpop.f32.mrf.mxu0
  %v1754 = vadd.f32 %v1539, %v1753
  %v1755 = vpop.f32.mrf.mxu0
  %1756 = vmatprep.mubr.f32.mxu0 0.0
  %1757 = vmatmul.mubr.f32.gmra.mxu0 %v1575
  %v1758 = vpop.f32.mrf.mxu0
  %v1759 = vadd.f32 %v1539, %v1758
  %v1760 = vpop.f32.mrf.mxu0
  %1761 = vmatprep.mubr.f32.mxu0 0.0
  %1762 = vmatmul.mubr.f32.gmra.mxu0 %v1578
  %v1763 = vpop.f32.mrf.mxu0
  %v1764 = vadd.f32 %v1539, %v1763
  %v1765 = vpop.f32.mrf.mxu0
  %1766 = vmatprep.mubr.f32.mxu0 0.0
  %1767 = vmatmul.mubr.f32.gmra.mxu0 %v1581
  %v1768 = vpop.f32.mrf.mxu0
  %v1769 = vadd.f32 %v1539, %v1768
  %v1770 = vpop.f32.mrf.mxu0
  %1771 = vmatprep.mubr.f32.mxu0 0.0
  %1772 = vmatmul.mubr.f32.gmra.mxu0 %v1584
  %v1773 = vpop.f32.mrf.mxu0
  %v1774 = vadd.f32 %v1539, %v1773
  %v1775 = vpop.f32.mrf.mxu0
  %1776 = vmatprep.mubr.f32.mxu0 0.0
  %1777 = vmatmul.mubr.f32.gmra.mxu0 %v1587
  %v1778 = vpop.f32.mrf.mxu0
  %v1779 = vadd.f32 %v1539, %v1778
  %v1780 = vpop.f32.mrf.mxu0
  %1781 = vmatprep.mubr.f32.mxu0 0.0
  %1782 = vmatmul.mubr.f32.gmra.mxu0 %v1590
  %v1783 = vpop.f32.mrf.mxu0
  %v1784 = vadd.f32 %v1539, %v1783
  %v1785 = vpop.f32.mrf.mxu0
  %1786 = vmatprep.mubr.f32.mxu0 0.0
  %1787 = vmatmul.mubr.f32.gmra.mxu0 %v1593
  %v1788 = vpop.f32.mrf.mxu0
  %v1789 = vadd.f32 %v1539, %v1788
  %v1790 = vpop.f32.mrf.mxu0
  %1791 = vmatprep.mubr.f32.mxu0 0.0
  %1792 = vmatmul.mubr.f32.gmra.mxu0 %v1596
  %v1793 = vpop.f32.mrf.mxu0
  %v1794 = vadd.f32 %v1539, %v1793
  %v1795 = vpop.f32.mrf.mxu0
  %1796 = vmatprep.mubr.f32.mxu0 0.0
  %1797 = vmatmul.mubr.f32.gmra.mxu0 %v1599
  %v1798 = vpop.f32.mrf.mxu0
  %v1799 = vadd.f32 %v1539, %v1798
  %v1800 = vpop.f32.mrf.mxu0
  %1801 = vmatprep.mubr.f32.mxu0 0.0
  %1802 = vmatmul.mubr.f32.gmra.mxu0 %v1602
  %v1803 = vpop.f32.mrf.mxu0
  %v1804 = vadd.f32 %v1539, %v1803
  %v1805 = vpop.f32.mrf.mxu0
  %1806 = vmatprep.mubr.f32.mxu0 0.0
  %1807 = vmatmul.mubr.f32.gmra.mxu0 %v1605
  %v1808 = vpop.f32.mrf.mxu0
  %v1809 = vadd.f32 %v1539, %v1808
  %v1810 = vpop.f32.mrf.mxu0
  %1811 = vmatprep.mubr.f32.mxu0 0.0
  %1812 = vmatmul.mubr.f32.gmra.mxu0 %v1608
  %v1813 = vpop.f32.mrf.mxu0
  %v1814 = vadd.f32 %v1539, %v1813
  %v1815 = vpop.f32.mrf.mxu0
  %1816 = vmatprep.mubr.f32.mxu0 0.0
  %1817 = vmatmul.mubr.f32.gmra.mxu0 %v1611
  %v1818 = vpop.f32.mrf.mxu0
  %v1819 = vadd.f32 %v1539, %v1818
  %v1820 = vpop.f32.mrf.mxu0
  %1821 = vmatprep.mubr.f32.mxu0 0.0
  %1822 = vmatmul.mubr.f32.gmra.mxu0 %v1614
  %v1823 = vpop.f32.mrf.mxu0
  %v1824 = vadd.f32 %v1539, %v1823
  %v1825 = vpop.f32.mrf.mxu0
  %1826 = vmatprep.mubr.f32.mxu0 0.0
  %1827 = vmatmul.mubr.f32.gmra.mxu0 %v1617
  %v1828 = vpop.f32.mrf.mxu0
  %v1829 = vadd.f32 %v1539, %v1828
  %v1830 = vpop.f32.mrf.mxu0
  %1831 = vmatprep.mubr.f32.mxu0 0.0
  %1832 = vmatmul.mubr.f32.gmra.mxu0 %v1620
  %v1833 = vpop.f32.mrf.mxu0
  %v1834 = vadd.f32 %v1539, %v1833
  %v1835 = vpop.f32.mrf.mxu0
  %1836 = vmatprep.mubr.f32.mxu0 0.0
  %1837 = vmatmul.mubr.f32.gmra.mxu0 %v1623
  %v1838 = vpop.f32.mrf.mxu0
  %v1839 = vadd.f32 %v1539, %v1838
  %v1840 = vpop.f32.mrf.mxu0
  %1841 = vmatprep.mubr.f32.mxu0 0.0
  %1842 = vmatmul.mubr.f32.gmra.mxu0 %v1626
  %v1843 = vpop.f32.mrf.mxu0
  %v1844 = vadd.f32 %v1539, %v1843
  %v1845 = vpop.f32.mrf.mxu0
  %1846 = vmatprep.mubr.f32.mxu0 0.0
  %1847 = vmatmul.mubr.f32.gmra.mxu0 %v1629
  %v1848 = vpop.f32.mrf.mxu0
  %v1849 = vadd.f32 %v1539, %v1848
  %v1850 = vpop.f32.mrf.mxu0
  %1851 = vmatprep.mubr.f32.mxu0 0.0
  %1852 = vmatmul.mubr.f32.gmra.mxu0 %v1632
  %v1853 = vpop.f32.mrf.mxu0
  %v1854 = vadd.f32 %v1539, %v1853
  %v1855 = vpop.f32.mrf.mxu0
  %1856 = vmatprep.mubr.f32.mxu0 0.0
  %1857 = vmatmul.mubr.f32.gmra.mxu0 %v1635
  %v1858 = vpop.f32.mrf.mxu0
  %v1859 = vadd.f32 %v1539, %v1858
  %v1860 = vpop.f32.mrf.mxu0
  %1861 = vdwg.mxu0
  %v1862 = vmax.f32 %v1704, 0.0
  %v1863 = vmax.f32 %v1709, 0.0
  %v1864 = vmax.f32 %v1714, 0.0
  %v1865 = vmax.f32 %v1719, 0.0
  %v1866 = vmax.f32 %v1724, 0.0
  %v1867 = vmax.f32 %v1729, 0.0
  %v1868 = vmax.f32 %v1734, 0.0
  %v1869 = vmax.f32 %v1739, 0.0
  %v1870 = vmax.f32 %v1744, 0.0
  %v1871 = vmax.f32 %v1749, 0.0
  %v1872 = vmax.f32 %v1754, 0.0
  %v1873 = vmax.f32 %v1759, 0.0
  %v1874 = vmax.f32 %v1764, 0.0
  %v1875 = vmax.f32 %v1769, 0.0
  %v1876 = vmax.f32 %v1774, 0.0
  %v1877 = vmax.f32 %v1779, 0.0
  %v1878 = vmax.f32 %v1784, 0.0
  %v1879 = vmax.f32 %v1789, 0.0
  %v1880 = vmax.f32 %v1794, 0.0
  %v1881 = vmax.f32 %v1799, 0.0
  %v1882 = vmax.f32 %v1804, 0.0
  %v1883 = vmax.f32 %v1809, 0.0
  %v1884 = vmax.f32 %v1814, 0.0
  %v1885 = vmax.f32 %v1819, 0.0
  %v1886 = vmax.f32 %v1824, 0.0
  %v1887 = vmax.f32 %v1829, 0.0
  %v1888 = vmax.f32 %v1834, 0.0
  %v1889 = vmax.f32 %v1839, 0.0
  %v1890 = vmax.f32 %v1844, 0.0
  %v1891 = vmax.f32 %v1849, 0.0
  %v1892 = vmax.f32 %v1854, 0.0
  %v1893 = vmax.f32 %v1859, 0.0
  %v1895 = vlaneseq
  %v1896 = vshrl.u32 %v1895, 7
  %v1897 = vsub.s32 0, %v1896
  %v1898 = vrot.slane %v498, %v1897
  %vm1900 = vcmask 523264
  %v1902 = vsel %vm1900, %v1862, 0
  %v1905 = vsel %vm1900, %v1863, 0
  %v1908 = vsel %vm1900, %v1864, 0
  %v1911 = vsel %vm1900, %v1865, 0
  %v1914 = vsel %vm1900, %v1866, 0
  %v1917 = vsel %vm1900, %v1867, 0
  %v1920 = vsel %vm1900, %v1868, 0
  %v1923 = vsel %vm1900, %v1869, 0
  %v1926 = vsel %vm1900, %v1870, 0
  %v1929 = vsel %vm1900, %v1871, 0
  %v1932 = vsel %vm1900, %v1872, 0
  %v1935 = vsel %vm1900, %v1873, 0
  %v1938 = vsel %vm1900, %v1874, 0
  %v1941 = vsel %vm1900, %v1875, 0
  %v1944 = vsel %vm1900, %v1876, 0
  %v1947 = vsel %vm1900, %v1877, 0
  %v1950 = vsel %vm1900, %v1878, 0
  %v1953 = vsel %vm1900, %v1879, 0
  %v1956 = vsel %vm1900, %v1880, 0
  %v1959 = vsel %vm1900, %v1881, 0
  %v1962 = vsel %vm1900, %v1882, 0
  %v1965 = vsel %vm1900, %v1883, 0
  %v1968 = vsel %vm1900, %v1884, 0
  %v1971 = vsel %vm1900, %v1885, 0
  %v1974 = vsel %vm1900, %v1886, 0
  %v1977 = vsel %vm1900, %v1887, 0
  %v1980 = vsel %vm1900, %v1888, 0
  %v1983 = vsel %vm1900, %v1889, 0
  %v1986 = vsel %vm1900, %v1890, 0
  %v1989 = vsel %vm1900, %v1891, 0
  %v1992 = vsel %vm1900, %v1892, 0
  %v1995 = vsel %vm1900, %v1893, 0
  %1997 = vmatprep.subr.mxu0 0.0
  %1998 = vmatpush1.msra.mxu0 0.0
  %1999 = vmatprep.subr.mxu0 0.0
  %2000 = vmatpush1.msra.mxu0 0.0
  %2001 = vmatprep.subr.mxu0 0.0
  %2002 = vmatpush1.msra.mxu0 0.0
  %2003 = vmatprep.subr.mxu0 0.0
  %2004 = vmatpush1.msra.mxu0 0.0
  %2005 = vmatprep.subr.mxu0 0.0
  %2006 = vmatpush1.msra.mxu0 0.0
  %2007 = vmatprep.subr.mxu0 0.0
  %2008 = vmatpush1.msra.mxu0 0.0
  %2009 = vmatprep.subr.mxu0 0.0
  %2010 = vmatpush1.msra.mxu0 0.0
  %2011 = vmatprep.subr.mxu0 0.0
  %2012 = vmatpush1.msra.mxu0 0.0
  %2013 = vmatprep.subr.mxu0 0.0
  %2014 = vmatpush1.msra.mxu0 %v497
  %2015 = vmatprep.subr.mxu0 0.0
  %2016 = vmatpush1.msra.mxu0 %v496
  %2017 = vmatprep.subr.mxu0 0.0
  %2018 = vmatpush1.msra.mxu0 %v495
  %2019 = vmatprep.subr.mxu0 0.0
  %2020 = vmatpush1.msra.mxu0 %v494
  %2021 = vmatprep.subr.mxu0 0.0
  %2022 = vmatpush1.msra.mxu0 %v493
  %2023 = vmatprep.subr.mxu0 0.0
  %2024 = vmatpush1.msra.mxu0 %v492
  %2025 = vmatprep.subr.mxu0 0.0
  %2026 = vmatpush1.msra.mxu0 %v491
  %2027 = vmatprep.subr.mxu0 0.0
  %2028 = vmatpush1.msra.mxu0 %v490
  %2029 = vmatprep.subr.mxu0 0.0
  %2030 = vmatpush2.msra.mxu0 0.0
  %2031 = vmatprep.subr.mxu0 0.0
  %2032 = vmatpush2.msra.mxu0 0.0
  %2033 = vmatprep.subr.mxu0 0.0
  %2034 = vmatpush2.msra.mxu0 0.0
  %2035 = vmatprep.subr.mxu0 0.0
  %2036 = vmatpush2.msra.mxu0 0.0
  %2037 = vmatprep.subr.mxu0 0.0
  %2038 = vmatpush2.msra.mxu0 0.0
  %2039 = vmatprep.subr.mxu0 0.0
  %2040 = vmatpush2.msra.mxu0 0.0
  %2041 = vmatprep.subr.mxu0 0.0
  %2042 = vmatpush2.msra.mxu0 0.0
  %2043 = vmatprep.subr.mxu0 0.0
  %2044 = vmatpush2.msra.mxu0 0.0
  %2045 = vmatprep.subr.mxu0 0.0
  %2046 = vmatpush2.msra.mxu0 0.0
  %2047 = vmatprep.subr.mxu0 0.0
  %2048 = vmatpush2.msra.mxu0 0.0
  %2049 = vmatprep.subr.mxu0 0.0
  %2050 = vmatpush2.msra.mxu0 0.0
  %2051 = vmatprep.subr.mxu0 0.0
  %2052 = vmatpush2.msra.mxu0 0.0
  %2053 = vmatprep.subr.mxu0 0.0
  %2054 = vmatpush2.msra.mxu0 0.0
  %2055 = vmatprep.subr.mxu0 0.0
  %2056 = vmatpush2.msra.mxu0 0.0
  %2057 = vmatprep.subr.mxu0 0.0
  %2058 = vmatpush2.msra.mxu0 0.0
  %2059 = vmatprep.subr.mxu0 0.0
  %2060 = vmatpush2.msra.mxu0 0.0
  %2061 = vmatprep.mubr.f32.mxu0 0.0
  %2062 = vmatmul.mubr.f32.gmra.mxu0 %v1902
  %v2063 = vpop.f32.mrf.mxu0
  %v2064 = vadd.f32 %v1898, %v2063
  %v2065 = vpop.f32.mrf.mxu0
  %2066 = vmatprep.mubr.f32.mxu0 0.0
  %2067 = vmatmul.mubr.f32.gmra.mxu0 %v1905
  %v2068 = vpop.f32.mrf.mxu0
  %v2069 = vadd.f32 %v1898, %v2068
  %v2070 = vpop.f32.mrf.mxu0
  %2071 = vmatprep.mubr.f32.mxu0 0.0
  %2072 = vmatmul.mubr.f32.gmra.mxu0 %v1908
  %v2073 = vpop.f32.mrf.mxu0
  %v2074 = vadd.f32 %v1898, %v2073
  %v2075 = vpop.f32.mrf.mxu0
  %2076 = vmatprep.mubr.f32.mxu0 0.0
  %2077 = vmatmul.mubr.f32.gmra.mxu0 %v1911
  %v2078 = vpop.f32.mrf.mxu0
  %v2079 = vadd.f32 %v1898, %v2078
  %v2080 = vpop.f32.mrf.mxu0
  %2081 = vmatprep.mubr.f32.mxu0 0.0
  %2082 = vmatmul.mubr.f32.gmra.mxu0 %v1914
  %v2083 = vpop.f32.mrf.mxu0
  %v2084 = vadd.f32 %v1898, %v2083
  %v2085 = vpop.f32.mrf.mxu0
  %2086 = vmatprep.mubr.f32.mxu0 0.0
  %2087 = vmatmul.mubr.f32.gmra.mxu0 %v1917
  %v2088 = vpop.f32.mrf.mxu0
  %v2089 = vadd.f32 %v1898, %v2088
  %v2090 = vpop.f32.mrf.mxu0
  %2091 = vmatprep.mubr.f32.mxu0 0.0
  %2092 = vmatmul.mubr.f32.gmra.mxu0 %v1920
  %v2093 = vpop.f32.mrf.mxu0
  %v2094 = vadd.f32 %v1898, %v2093
  %v2095 = vpop.f32.mrf.mxu0
  %2096 = vmatprep.mubr.f32.mxu0 0.0
  %2097 = vmatmul.mubr.f32.gmra.mxu0 %v1923
  %v2098 = vpop.f32.mrf.mxu0
  %v2099 = vadd.f32 %v1898, %v2098
  %v2100 = vpop.f32.mrf.mxu0
  %2101 = vmatprep.mubr.f32.mxu0 0.0
  %2102 = vmatmul.mubr.f32.gmra.mxu0 %v1926
  %v2103 = vpop.f32.mrf.mxu0
  %v2104 = vadd.f32 %v1898, %v2103
  %v2105 = vpop.f32.mrf.mxu0
  %2106 = vmatprep.mubr.f32.mxu0 0.0
  %2107 = vmatmul.mubr.f32.gmra.mxu0 %v1929
  %v2108 = vpop.f32.mrf.mxu0
  %v2109 = vadd.f32 %v1898, %v2108
  %v2110 = vpop.f32.mrf.mxu0
  %2111 = vmatprep.mubr.f32.mxu0 0.0
  %2112 = vmatmul.mubr.f32.gmra.mxu0 %v1932
  %v2113 = vpop.f32.mrf.mxu0
  %v2114 = vadd.f32 %v1898, %v2113
  %v2115 = vpop.f32.mrf.mxu0
  %2116 = vmatprep.mubr.f32.mxu0 0.0
  %2117 = vmatmul.mubr.f32.gmra.mxu0 %v1935
  %v2118 = vpop.f32.mrf.mxu0
  %v2119 = vadd.f32 %v1898, %v2118
  %v2120 = vpop.f32.mrf.mxu0
  %2121 = vmatprep.mubr.f32.mxu0 0.0
  %2122 = vmatmul.mubr.f32.gmra.mxu0 %v1938
  %v2123 = vpop.f32.mrf.mxu0
  %v2124 = vadd.f32 %v1898, %v2123
  %v2125 = vpop.f32.mrf.mxu0
  %2126 = vmatprep.mubr.f32.mxu0 0.0
  %2127 = vmatmul.mubr.f32.gmra.mxu0 %v1941
  %v2128 = vpop.f32.mrf.mxu0
  %v2129 = vadd.f32 %v1898, %v2128
  %v2130 = vpop.f32.mrf.mxu0
  %2131 = vmatprep.mubr.f32.mxu0 0.0
  %2132 = vmatmul.mubr.f32.gmra.mxu0 %v1944
  %v2133 = vpop.f32.mrf.mxu0
  %v2134 = vadd.f32 %v1898, %v2133
  %v2135 = vpop.f32.mrf.mxu0
  %2136 = vmatprep.mubr.f32.mxu0 0.0
  %2137 = vmatmul.mubr.f32.gmra.mxu0 %v1947
  %v2138 = vpop.f32.mrf.mxu0
  %v2139 = vadd.f32 %v1898, %v2138
  %v2140 = vpop.f32.mrf.mxu0
  %2141 = vmatprep.mubr.f32.mxu0 0.0
  %2142 = vmatmul.mubr.f32.gmra.mxu0 %v1950
  %v2143 = vpop.f32.mrf.mxu0
  %v2144 = vadd.f32 %v1898, %v2143
  %v2145 = vpop.f32.mrf.mxu0
  %2146 = vmatprep.mubr.f32.mxu0 0.0
  %2147 = vmatmul.mubr.f32.gmra.mxu0 %v1953
  %v2148 = vpop.f32.mrf.mxu0
  %v2149 = vadd.f32 %v1898, %v2148
  %v2150 = vpop.f32.mrf.mxu0
  %2151 = vmatprep.mubr.f32.mxu0 0.0
  %2152 = vmatmul.mubr.f32.gmra.mxu0 %v1956
  %v2153 = vpop.f32.mrf.mxu0
  %v2154 = vadd.f32 %v1898, %v2153
  %v2155 = vpop.f32.mrf.mxu0
  %2156 = vmatprep.mubr.f32.mxu0 0.0
  %2157 = vmatmul.mubr.f32.gmra.mxu0 %v1959
  %v2158 = vpop.f32.mrf.mxu0
  %v2159 = vadd.f32 %v1898, %v2158
  %v2160 = vpop.f32.mrf.mxu0
  %2161 = vmatprep.mubr.f32.mxu0 0.0
  %2162 = vmatmul.mubr.f32.gmra.mxu0 %v1962
  %v2163 = vpop.f32.mrf.mxu0
  %v2164 = vadd.f32 %v1898, %v2163
  %v2165 = vpop.f32.mrf.mxu0
  %2166 = vmatprep.mubr.f32.mxu0 0.0
  %2167 = vmatmul.mubr.f32.gmra.mxu0 %v1965
  %v2168 = vpop.f32.mrf.mxu0
  %v2169 = vadd.f32 %v1898, %v2168
  %v2170 = vpop.f32.mrf.mxu0
  %2171 = vmatprep.mubr.f32.mxu0 0.0
  %2172 = vmatmul.mubr.f32.gmra.mxu0 %v1968
  %v2173 = vpop.f32.mrf.mxu0
  %v2174 = vadd.f32 %v1898, %v2173
  %v2175 = vpop.f32.mrf.mxu0
  %2176 = vmatprep.mubr.f32.mxu0 0.0
  %2177 = vmatmul.mubr.f32.gmra.mxu0 %v1971
  %v2178 = vpop.f32.mrf.mxu0
  %v2179 = vadd.f32 %v1898, %v2178
  %v2180 = vpop.f32.mrf.mxu0
  %2181 = vmatprep.mubr.f32.mxu0 0.0
  %2182 = vmatmul.mubr.f32.gmra.mxu0 %v1974
  %v2183 = vpop.f32.mrf.mxu0
  %v2184 = vadd.f32 %v1898, %v2183
  %v2185 = vpop.f32.mrf.mxu0
  %2186 = vmatprep.mubr.f32.mxu0 0.0
  %2187 = vmatmul.mubr.f32.gmra.mxu0 %v1977
  %v2188 = vpop.f32.mrf.mxu0
  %v2189 = vadd.f32 %v1898, %v2188
  %v2190 = vpop.f32.mrf.mxu0
  %2191 = vmatprep.mubr.f32.mxu0 0.0
  %2192 = vmatmul.mubr.f32.gmra.mxu0 %v1980
  %v2193 = vpop.f32.mrf.mxu0
  %v2194 = vadd.f32 %v1898, %v2193
  %v2195 = vpop.f32.mrf.mxu0
  %2196 = vmatprep.mubr.f32.mxu0 0.0
  %2197 = vmatmul.mubr.f32.gmra.mxu0 %v1983
  %v2198 = vpop.f32.mrf.mxu0
  %v2199 = vadd.f32 %v1898, %v2198
  %v2200 = vpop.f32.mrf.mxu0
  %2201 = vmatprep.mubr.f32.mxu0 0.0
  %2202 = vmatmul.mubr.f32.gmra.mxu0 %v1986
  %v2203 = vpop.f32.mrf.mxu0
  %v2204 = vadd.f32 %v1898, %v2203
  %v2205 = vpop.f32.mrf.mxu0
  %2206 = vmatprep.mubr.f32.mxu0 0.0
  %2207 = vmatmul.mubr.f32.gmra.mxu0 %v1989
  %v2208 = vpop.f32.mrf.mxu0
  %v2209 = vadd.f32 %v1898, %v2208
  %v2210 = vpop.f32.mrf.mxu0
  %2211 = vmatprep.mubr.f32.mxu0 0.0
  %2212 = vmatmul.mubr.f32.gmra.mxu0 %v1992
  %v2213 = vpop.f32.mrf.mxu0
  %v2214 = vadd.f32 %v1898, %v2213
  %v2215 = vpop.f32.mrf.mxu0
  %2216 = vmatprep.mubr.f32.mxu0 0.0
  %2217 = vmatmul.mubr.f32.gmra.mxu0 %v1995
  %v2218 = vpop.f32.mrf.mxu0
  %v2219 = vadd.f32 %v1898, %v2218
  %v2220 = vpop.f32.mrf.mxu0
  %2221 = vdwg.mxu0
  %vm2222 = vcmask 7168
  %2223 = vst.msk [vmem:[%s13] sm:$0xff] %vm2222, %v2064
  %2224 = vst.msk [vmem:[%s13 + $0x8] sm:$0xff] %vm2222, %v2069
  %2225 = vst.msk [vmem:[%s13 + $0x10] sm:$0xff] %vm2222, %v2074
  %2226 = vst.msk [vmem:[%s13 + $0x18] sm:$0xff] %vm2222, %v2079
  %2227 = vst.msk [vmem:[%s13 + $0x20] sm:$0xff] %vm2222, %v2084
  %2228 = vst.msk [vmem:[%s13 + $0x28] sm:$0xff] %vm2222, %v2089
  %2229 = vst.msk [vmem:[%s13 + $0x30] sm:$0xff] %vm2222, %v2094
  %2230 = vst.msk [vmem:[%s13 + $0x38] sm:$0xff] %vm2222, %v2099
  %2231 = vst.msk [vmem:[%s13 + $0x40] sm:$0xff] %vm2222, %v2104
  %2232 = vst.msk [vmem:[%s13 + $0x48] sm:$0xff] %vm2222, %v2109
  %2233 = vst.msk [vmem:[%s13 + $0x50] sm:$0xff] %vm2222, %v2114
  %2234 = vst.msk [vmem:[%s13 + $0x58] sm:$0xff] %vm2222, %v2119
  %2235 = vst.msk [vmem:[%s13 + $0x60] sm:$0xff] %vm2222, %v2124
  %2236 = vst.msk [vmem:[%s13 + $0x68] sm:$0xff] %vm2222, %v2129
  %2237 = vst.msk [vmem:[%s13 + $0x70] sm:$0xff] %vm2222, %v2134
  %2238 = vst.msk [vmem:[%s13 + $0x78] sm:$0xff] %vm2222, %v2139
  %2239 = vst.msk [vmem:[%s13 + $0x80] sm:$0xff] %vm2222, %v2144
  %2240 = vst.msk [vmem:[%s13 + $0x88] sm:$0xff] %vm2222, %v2149
  %2241 = vst.msk [vmem:[%s13 + $0x90] sm:$0xff] %vm2222, %v2154
  %2242 = vst.msk [vmem:[%s13 + $0x98] sm:$0xff] %vm2222, %v2159
  %2243 = vst.msk [vmem:[%s13 + $0xa0] sm:$0xff] %vm2222, %v2164
  %2244 = vst.msk [vmem:[%s13 + $0xa8] sm:$0xff] %vm2222, %v2169
  %2245 = vst.msk [vmem:[%s13 + $0xb0] sm:$0xff] %vm2222, %v2174
  %2246 = vst.msk [vmem:[%s13 + $0xb8] sm:$0xff] %vm2222, %v2179
  %2247 = vst.msk [vmem:[%s13 + $0xc0] sm:$0xff] %vm2222, %v2184
  %2248 = vst.msk [vmem:[%s13 + $0xc8] sm:$0xff] %vm2222, %v2189
  %2249 = vst.msk [vmem:[%s13 + $0xd0] sm:$0xff] %vm2222, %v2194
  %2250 = vst.msk [vmem:[%s13 + $0xd8] sm:$0xff] %vm2222, %v2199
  %2251 = vst.msk [vmem:[%s13 + $0xe0] sm:$0xff] %vm2222, %v2204
  %2252 = vst.msk [vmem:[%s13 + $0xe8] sm:$0xff] %vm2222, %v2209
  %2253 = vst.msk [vmem:[%s13 + $0xf0] sm:$0xff] %vm2222, %v2214
  %2254 = vst.msk [vmem:[%s13 + $0xf8] sm:$0xff] %vm2222, %v2219
  // Predicated region
  $region54: #{slmgnn_forward.7} parent=0 // pred_check
    _
  $region55: #{slmgnn_forward.7} parent=0 // pred_check_branch
    %2256 = sbr.rel (0) target = $region57
  $region56: #{slmgnn_forward.7} parent=0 // pred_region
    _
  $region57: #{slmgnn_forward.7} parent=0 // pred_fallthru
    _
  // Predicated region
  $region58: #{slmgnn_forward.7} parent=0 // pred_check
    _
  $region59: #{slmgnn_forward.7} parent=0 // pred_check_branch
    %2258 = sbr.rel (0) target = $region61
  $region60: #{slmgnn_forward.7} parent=0 // pred_region
    _
  $region61: #{slmgnn_forward.7} parent=0 // pred_fallthru
    _

</llo_original>
